<compile_context>
chip_gen: v7x
topology: tpu7x:2x2x1
jax: 0.10.0
libtpu: 0.0.40
codegen_flags: <defaults>
</compile_context>

<pallas_src>
import functools

import jax
import jax.numpy as jnp
from jax.experimental import pallas as pl
from jax.experimental.pallas import tpu as pltpu


LANE = 128      # lane width (last-dim tile)
SUBLANE = 8     # f32 sublane width (second-to-last dim tile)

# PyTorch gate order along 4H is [i, f, g, o]; kernel uses [i, f, o, g] so the
# three sigmoid gates form one contiguous (Bp, 3*Hp) slab.
GATE_PERM = (0, 1, 3, 2)


def _round_up(v, m):
    return ((v + m - 1) // m) * m


# ----------------------------- Pallas kernel ------------------------------- #

def fused_lstm_fc_kernel(*refs, seq_len, batch_pad, hidden_pad, num_layers):
    """Fused multi-layer LSTM + Linear forward, wavefront schedule.

    refs layout (inputs, outputs, scratch):
      refs[0]                       x_ref   (T*Bp, Dp) bf16, time-major flat
      refs[1+3l : 4+3l], l<L        (wih_l, whh_l, b_l)
                                      wih_l: (Din_pad, 4*Hp) bf16 (pre-T, gate
                                             blocked [i,f,o,g])
                                      whh_l: (Hp, 4*Hp)      bf16
                                      b_l:   (1, 4*Hp)       f32  (b_ih + b_hh)
      refs[1+3L]                    fcw_ref (Hp, OUTp) bf16
      refs[2+3L]                    fcb_ref (1, OUTp)  f32
      refs[3+3L]                    out_ref (Bp, OUTp) f32
      refs[4+3L]                    gates0_scr (T*Bp, 4*Hp) f32 scratch
    """
    Hp = hidden_pad
    Bp = batch_pad
    f32 = jnp.float32
    bf16 = jnp.bfloat16

    x_ref = refs[0]
    layer_refs = [tuple(refs[1 + 3 * l: 4 + 3 * l]) for l in range(num_layers)]
    fcw_ref = refs[1 + 3 * num_layers]
    fcb_ref = refs[2 + 3 * num_layers]
    out_ref = refs[3 + 3 * num_layers]
    gates0_scr = refs[4 + 3 * num_layers]

    wih0, whh0, b0 = layer_refs[0]

    # Hoisted layer-0 input projection for ALL timesteps (one big bf16 MXU
    # matmul, f32 accumulation), bias folded in.
    gates0_scr[...] = (
        jnp.dot(x_ref[...], wih0[...], preferred_element_type=f32)
        + b0[...]
    )

    def cell(gates, c):
        """gates: (Bp, 4Hp) f32 pre-activations, order [i, f, o, g]."""
        # sigmoid(x) = 0.5*tanh(0.5*x) + 0.5 — single EUP tanh per gate, and
        # one tanh instance covers the contiguous i|f|o slab.
        s = 0.5 * jnp.tanh(0.5 * gates[:, 0:3 * Hp]) + 0.5
        i_g = s[:, 0 * Hp:1 * Hp]
        f_g = s[:, 1 * Hp:2 * Hp]
        o_g = s[:, 2 * Hp:3 * Hp]
        g_g = jnp.tanh(gates[:, 3 * Hp:4 * Hp])
        c_new = f_g * c + i_g * g_g                    # f32 elementwise
        h_new = o_g * jnp.tanh(c_new)                  # f32 elementwise
        # h is only ever consumed by matmuls -> cast once, right before use.
        return h_new.astype(bf16), c_new

    h = [None] * num_layers                            # bf16 per-layer h carry
    c = [jnp.zeros((Bp, Hp), f32) for _ in range(num_layers)]   # f32 c carry

    # Fully unrolled wavefront: layer l step t runs right after layer l-1
    # step t.  Pure value (SSA) carries -> critical path is T + L - 1 cells.
    for t in range(seq_len):
        # ---- layer 0 (hoisted input projection, read back per step) ----
        g0 = gates0_scr[t * Bp:(t + 1) * Bp, :]
        if t > 0:   # peeled t == 0: h0 == 0, skip the h @ W_hh matmul
            g0 = g0 + jnp.dot(h[0], whh0[...], preferred_element_type=f32)
        h[0], c[0] = cell(g0, c[0])

        # ---- layers 1..L-1: per-step projections (wavefront) ----
        for l in range(1, num_layers):
            wih_l, whh_l, b_l = layer_refs[l]
            g = (jnp.dot(h[l - 1], wih_l[...], preferred_element_type=f32)
                 + b_l[...])
            if t > 0:
                g = g + jnp.dot(h[l], whh_l[...], preferred_element_type=f32)
            h[l], c[l] = cell(g, c[l])

    # Fused FC on the last layer's final hidden state (== out[:, -1, :]).
    out_ref[...] = (
        jnp.dot(h[num_layers - 1], fcw_ref[...], preferred_element_type=f32)
        + fcb_ref[...]
    ).astype(out_ref.dtype)


# --------------------------- One-time param prep ---------------------------- #

def prepare_params(params, input_dim, hidden_dim, output_dim):
    """Transpose, gate-permute to [i,f,o,g], combine biases, zero-pad to
    lane-friendly shapes and cast weights to bf16 — ONCE, not per call."""
    H = hidden_dim
    Hp = _round_up(H, LANE)
    Dp = _round_up(input_dim, LANE)
    OUTp = _round_up(output_dim, LANE)
    perm = jnp.array(GATE_PERM)

    def pad_gate_weight(w, d_in, d_in_pad):
        # (4H, d_in) -> (d_in_pad, 4*Hp), gate-blocked [i,f,o,g] along lanes.
        w4 = w.reshape(4, H, d_in)[perm]
        w4 = jnp.pad(w4, ((0, 0), (0, Hp - H), (0, d_in_pad - d_in)))
        w2 = jnp.transpose(w4, (2, 0, 1)).reshape(d_in_pad, 4 * Hp)
        return w2.astype(jnp.bfloat16)

    def pad_gate_bias(b_ih, b_hh):
        b4 = (b_ih + b_hh).reshape(4, H)[perm]
        b4 = jnp.pad(b4, ((0, 0), (0, Hp - H)))
        return b4.reshape(1, 4 * Hp).astype(jnp.float32)

    layers = []
    for idx, layer in enumerate(params["lstm"]):
        d_in = input_dim if idx == 0 else H
        d_in_pad = Dp if idx == 0 else Hp
        layers.append((
            pad_gate_weight(layer["w_ih"], d_in, d_in_pad),
            pad_gate_weight(layer["w_hh"], H, Hp),
            pad_gate_bias(layer["b_ih"], layer["b_hh"]),
        ))

    fc_w = jnp.pad(jnp.transpose(params["fc_w"]),            # (H, out) padded
                   ((0, Hp - H), (0, OUTp - output_dim))).astype(jnp.bfloat16)
    fc_b = jnp.pad(params["fc_b"],
                   (0, OUTp - output_dim)).reshape(1, OUTp).astype(jnp.float32)
    return {"layers": layers, "fc_w": fc_w, "fc_b": fc_b}


# ------------------------------ Forward wrapper ------------------------------ #

@functools.partial(jax.jit, static_argnames=("output_dim",))
def lstm_model_forward(x, prep, *, output_dim):
    """Full LSTMModel.forward: x (B, T, D_in) -> (B, output_dim)."""
    B, T, D = x.shape
    layers = prep["layers"]
    num_layers = len(layers)
    Hp = layers[0][1].shape[0]       # padded hidden dim
    Dp = layers[0][0].shape[0]       # padded input-feature dim
    OUTp = prep["fc_w"].shape[1]     # padded output dim
    Bp = _round_up(B, SUBLANE)

    # Time-major, pad batch/features, flatten to (T*Bp, Dp) so the hoisted
    # layer-0 projection is one 2-D bf16 MXU matmul.  At realistic T/D this
    # should become a BlockSpec-streamed input instead of a wrapper copy.
    x_tbd = jnp.transpose(x, (1, 0, 2))
    x_tbd = jnp.pad(x_tbd, ((0, 0), (0, Bp - B), (0, Dp - D)))
    x2d = x_tbd.reshape(T * Bp, Dp).astype(jnp.bfloat16)

    kernel = functools.partial(
        fused_lstm_fc_kernel, seq_len=T, batch_pad=Bp, hidden_pad=Hp,
        num_layers=num_layers)

    vmem = pl.BlockSpec(memory_space=pltpu.MemorySpace.VMEM)
    flat_weights = []
    for wih, whh, b in layers:
        flat_weights += [wih, whh, b]

    out = pl.pallas_call(
        kernel,
        out_shape=jax.ShapeDtypeStruct((Bp, OUTp), jnp.float32),
        in_specs=[vmem] * (1 + 3 * num_layers + 2),
        out_specs=vmem,
        scratch_shapes=[
            pltpu.VMEM((T * Bp, 4 * Hp), jnp.float32),   # hoisted L0 gate acts
        ],
        compiler_params=pltpu.CompilerParams(
            vmem_limit_bytes=32 * 1024 * 1024),
    )(x2d, *flat_weights, prep["fc_w"], prep["fc_b"])

    return out[:B, :output_dim]


# ----------------------------- Param init ----------------------------------- #

def init_params(key, input_dim, hidden_dim, layer_dim, output_dim):
    """Deterministic init mimicking PyTorch's U(-1/sqrt(H), 1/sqrt(H))."""
    k = 1.0 / jnp.sqrt(jnp.float32(hidden_dim))
    params = {"lstm": []}
    for layer in range(layer_dim):
        d_in = input_dim if layer == 0 else hidden_dim
        key, k1, k2, k3, k4 = jax.random.split(key, 5)
        params["lstm"].append({
            "w_ih": jax.random.uniform(k1, (4 * hidden_dim, d_in),
                                       jnp.float32, -k, k),
            "w_hh": jax.random.uniform(k2, (4 * hidden_dim, hidden_dim),
                                       jnp.float32, -k, k),
            "b_ih": jax.random.uniform(k3, (4 * hidden_dim,),
                                       jnp.float32, -k, k),
            "b_hh": jax.random.uniform(k4, (4 * hidden_dim,),
                                       jnp.float32, -k, k),
        })
    key, k1, k2 = jax.random.split(key, 3)
    params["fc_w"] = jax.random.uniform(k1, (output_dim, hidden_dim),
                                        jnp.float32, -k, k)
    params["fc_b"] = jax.random.uniform(k2, (output_dim,),
                                        jnp.float32, -k, k)
    return params


# --------------------------------- Main ------------------------------------- #

if __name__ == "__main__":
    batch = 2
    seq = 8
    input_dim = 4
    hidden_dim = 64     # matches the reference module's hidden_dim
    layer_dim = 3
    output_dim = 1

    root = jax.random.PRNGKey(0)
    key_x, key_p = jax.random.split(root)

    x = jax.random.normal(key_x, (batch, seq, input_dim), dtype=jnp.float32)
    params = init_params(key_p, input_dim, hidden_dim, layer_dim, output_dim)
    prep = prepare_params(params, input_dim, hidden_dim, output_dim)  # one-time

    out = lstm_model_forward(x, prep, output_dim=output_dim)
    jax.block_until_ready(out)

    assert out.shape == (batch, output_dim)
    assert out.dtype == jnp.float32
    print("KERNEL_OK")
</pallas_src>

<mosaic_0001>
module attributes {stable_mosaic.version = 11 : i64} {
  func.func @fused_lstm_fc_kernel(%arg0: memref<64x128xbf16, #tpu.memory_space<vmem>>, %arg1: memref<128x512xbf16, #tpu.memory_space<vmem>>, %arg2: memref<128x512xbf16, #tpu.memory_space<vmem>>, %arg3: memref<1x512xf32, #tpu.memory_space<vmem>>, %arg4: memref<128x512xbf16, #tpu.memory_space<vmem>>, %arg5: memref<128x512xbf16, #tpu.memory_space<vmem>>, %arg6: memref<1x512xf32, #tpu.memory_space<vmem>>, %arg7: memref<128x512xbf16, #tpu.memory_space<vmem>>, %arg8: memref<128x512xbf16, #tpu.memory_space<vmem>>, %arg9: memref<1x512xf32, #tpu.memory_space<vmem>>, %arg10: memref<128x128xbf16, #tpu.memory_space<vmem>>, %arg11: memref<1x128xf32, #tpu.memory_space<vmem>>, %arg12: memref<8x128xf32, #tpu.memory_space<vmem>>, %arg13: memref<64x512xf32, #tpu.memory_space<vmem>>) attributes {dimension_semantics = [], scalar_prefetch = 0 : i64, scratch_operands = 1 : i64, tpu.core_type = #tpu.core_type<tc>} {
    %c0 = arith.constant 0 : index
    %c0_0 = arith.constant 0 : index
    %0 = vector.load %arg0[%c0, %c0_0] : memref<64x128xbf16, #tpu.memory_space<vmem>>, vector<64x128xbf16>
    %c0_1 = arith.constant 0 : index
    %c0_2 = arith.constant 0 : index
    %1 = vector.load %arg1[%c0_1, %c0_2] : memref<128x512xbf16, #tpu.memory_space<vmem>>, vector<128x512xbf16>
    %cst = arith.constant dense<0.000000e+00> : vector<64x512xf32>
    %2 = tpu.matmul %0, %1, %cst {dimension_numbers = #tpu.dot_dimension_numbers<[1], [0], [0], [1], [0, 0, 1, 1], [], []>} : vector<64x128xbf16>, vector<128x512xbf16>, vector<64x512xf32> -> vector<64x512xf32>
    %c0_3 = arith.constant 0 : index
    %c0_4 = arith.constant 0 : index
    %3 = vector.load %arg3[%c0_3, %c0_4] : memref<1x512xf32, #tpu.memory_space<vmem>>, vector<1x512xf32>
    %4 = vector.broadcast %3 : vector<1x512xf32> to vector<64x512xf32>
    %5 = arith.addf %2, %4 : vector<64x512xf32>
    %c0_5 = arith.constant 0 : index
    %c0_6 = arith.constant 0 : index
    %6 = vector.load %arg13[%c0_5, %c0_6] : memref<64x512xf32, #tpu.memory_space<vmem>>, vector<64x512xf32>
    tpu.vector_store %arg13[%c0_5, %c0_6], %5 {strides = array<i32>} : memref<64x512xf32, #tpu.memory_space<vmem>>, vector<64x512xf32>,
    %cst_7 = arith.constant 0.000000e+00 : f32
    %7 = vector.broadcast %cst_7 : f32 to vector<8x128xf32>
    %cst_8 = arith.constant 0.000000e+00 : f32
    %8 = vector.broadcast %cst_8 : f32 to vector<8x128xf32>
    %cst_9 = arith.constant 0.000000e+00 : f32
    %9 = vector.broadcast %cst_9 : f32 to vector<8x128xf32>
    %c0_10 = arith.constant 0 : index
    %c0_11 = arith.constant 0 : index
    %10 = vector.load %arg13[%c0_10, %c0_11] : memref<64x512xf32, #tpu.memory_space<vmem>>, vector<8x512xf32>
    %11 = vector.extract_strided_slice %10 {offsets = [0, 0], sizes = [8, 384], strides = [1, 1]} : vector<8x512xf32> to vector<8x384xf32>
    %cst_12 = arith.constant 5.000000e-01 : f32
    %12 = vector.broadcast %cst_12 : f32 to vector<8x384xf32>
    %13 = arith.mulf %12, %11 : vector<8x384xf32>
    %14 = math.tanh %13 : vector<8x384xf32>
    %cst_13 = arith.constant 5.000000e-01 : f32
    %15 = vector.broadcast %cst_13 : f32 to vector<8x384xf32>
    %16 = arith.mulf %15, %14 : vector<8x384xf32>
    %cst_14 = arith.constant 5.000000e-01 : f32
    %17 = vector.broadcast %cst_14 : f32 to vector<8x384xf32>
    %18 = arith.addf %16, %17 : vector<8x384xf32>
    %19 = vector.extract_strided_slice %18 {offsets = [0, 0], sizes = [8, 128], strides = [1, 1]} : vector<8x384xf32> to vector<8x128xf32>
    %20 = vector.extract_strided_slice %18 {offsets = [0, 128], sizes = [8, 128], strides = [1, 1]} : vector<8x384xf32> to vector<8x128xf32>
    %21 = vector.extract_strided_slice %18 {offsets = [0, 256], sizes = [8, 128], strides = [1, 1]} : vector<8x384xf32> to vector<8x128xf32>
    %22 = vector.extract_strided_slice %10 {offsets = [0, 384], sizes = [8, 128], strides = [1, 1]} : vector<8x512xf32> to vector<8x128xf32>
    %23 = math.tanh %22 : vector<8x128xf32>
    %24 = arith.mulf %20, %7 : vector<8x128xf32>
    %25 = arith.mulf %19, %23 : vector<8x128xf32>
    %26 = arith.addf %24, %25 : vector<8x128xf32>
    %27 = math.tanh %26 : vector<8x128xf32>
    %28 = arith.mulf %21, %27 : vector<8x128xf32>
    %29 = arith.truncf %28 : vector<8x128xf32> to vector<8x128xbf16>
    %c0_15 = arith.constant 0 : index
    %c0_16 = arith.constant 0 : index
    %30 = vector.load %arg4[%c0_15, %c0_16] : memref<128x512xbf16, #tpu.memory_space<vmem>>, vector<128x512xbf16>
    %cst_17 = arith.constant dense<0.000000e+00> : vector<8x512xf32>
    %31 = tpu.matmul %29, %30, %cst_17 {dimension_numbers = #tpu.dot_dimension_numbers<[1], [0], [0], [1], [0, 0, 1, 1], [], []>} : vector<8x128xbf16>, vector<128x512xbf16>, vector<8x512xf32> -> vector<8x512xf32>
    %c0_18 = arith.constant 0 : index
    %c0_19 = arith.constant 0 : index
    %32 = vector.load %arg6[%c0_18, %c0_19] : memref<1x512xf32, #tpu.memory_space<vmem>>, vector<1x512xf32>
    %33 = vector.broadcast %32 : vector<1x512xf32> to vector<8x512xf32>
    %34 = arith.addf %31, %33 : vector<8x512xf32>
    %35 = vector.extract_strided_slice %34 {offsets = [0, 0], sizes = [8, 384], strides = [1, 1]} : vector<8x512xf32> to vector<8x384xf32>
    %cst_20 = arith.constant 5.000000e-01 : f32
    %36 = vector.broadcast %cst_20 : f32 to vector<8x384xf32>
    %37 = arith.mulf %36, %35 : vector<8x384xf32>
    %38 = math.tanh %37 : vector<8x384xf32>
    %cst_21 = arith.constant 5.000000e-01 : f32
    %39 = vector.broadcast %cst_21 : f32 to vector<8x384xf32>
    %40 = arith.mulf %39, %38 : vector<8x384xf32>
    %cst_22 = arith.constant 5.000000e-01 : f32
    %41 = vector.broadcast %cst_22 : f32 to vector<8x384xf32>
    %42 = arith.addf %40, %41 : vector<8x384xf32>
    %43 = vector.extract_strided_slice %42 {offsets = [0, 0], sizes = [8, 128], strides = [1, 1]} : vector<8x384xf32> to vector<8x128xf32>
    %44 = vector.extract_strided_slice %42 {offsets = [0, 128], sizes = [8, 128], strides = [1, 1]} : vector<8x384xf32> to vector<8x128xf32>
    %45 = vector.extract_strided_slice %42 {offsets = [0, 256], sizes = [8, 128], strides = [1, 1]} : vector<8x384xf32> to vector<8x128xf32>
    %46 = vector.extract_strided_slice %34 {offsets = [0, 384], sizes = [8, 128], strides = [1, 1]} : vector<8x512xf32> to vector<8x128xf32>
    %47 = math.tanh %46 : vector<8x128xf32>
    %48 = arith.mulf %44, %8 : vector<8x128xf32>
    %49 = arith.mulf %43, %47 : vector<8x128xf32>
    %50 = arith.addf %48, %49 : vector<8x128xf32>
    %51 = math.tanh %50 : vector<8x128xf32>
    %52 = arith.mulf %45, %51 : vector<8x128xf32>
    %53 = arith.truncf %52 : vector<8x128xf32> to vector<8x128xbf16>
    %c0_23 = arith.constant 0 : index
    %c0_24 = arith.constant 0 : index
    %54 = vector.load %arg7[%c0_23, %c0_24] : memref<128x512xbf16, #tpu.memory_space<vmem>>, vector<128x512xbf16>
    %cst_25 = arith.constant dense<0.000000e+00> : vector<8x512xf32>
    %55 = tpu.matmul %53, %54, %cst_25 {dimension_numbers = #tpu.dot_dimension_numbers<[1], [0], [0], [1], [0, 0, 1, 1], [], []>} : vector<8x128xbf16>, vector<128x512xbf16>, vector<8x512xf32> -> vector<8x512xf32>
    %c0_26 = arith.constant 0 : index
    %c0_27 = arith.constant 0 : index
    %56 = vector.load %arg9[%c0_26, %c0_27] : memref<1x512xf32, #tpu.memory_space<vmem>>, vector<1x512xf32>
    %57 = vector.broadcast %56 : vector<1x512xf32> to vector<8x512xf32>
    %58 = arith.addf %55, %57 : vector<8x512xf32>
    %59 = vector.extract_strided_slice %58 {offsets = [0, 0], sizes = [8, 384], strides = [1, 1]} : vector<8x512xf32> to vector<8x384xf32>
    %cst_28 = arith.constant 5.000000e-01 : f32
    %60 = vector.broadcast %cst_28 : f32 to vector<8x384xf32>
    %61 = arith.mulf %60, %59 : vector<8x384xf32>
    %62 = math.tanh %61 : vector<8x384xf32>
    %cst_29 = arith.constant 5.000000e-01 : f32
    %63 = vector.broadcast %cst_29 : f32 to vector<8x384xf32>
    %64 = arith.mulf %63, %62 : vector<8x384xf32>
    %cst_30 = arith.constant 5.000000e-01 : f32
    %65 = vector.broadcast %cst_30 : f32 to vector<8x384xf32>
    %66 = arith.addf %64, %65 : vector<8x384xf32>
    %67 = vector.extract_strided_slice %66 {offsets = [0, 0], sizes = [8, 128], strides = [1, 1]} : vector<8x384xf32> to vector<8x128xf32>
    %68 = vector.extract_strided_slice %66 {offsets = [0, 128], sizes = [8, 128], strides = [1, 1]} : vector<8x384xf32> to vector<8x128xf32>
    %69 = vector.extract_strided_slice %66 {offsets = [0, 256], sizes = [8, 128], strides = [1, 1]} : vector<8x384xf32> to vector<8x128xf32>
    %70 = vector.extract_strided_slice %58 {offsets = [0, 384], sizes = [8, 128], strides = [1, 1]} : vector<8x512xf32> to vector<8x128xf32>
    %71 = math.tanh %70 : vector<8x128xf32>
    %72 = arith.mulf %68, %9 : vector<8x128xf32>
    %73 = arith.mulf %67, %71 : vector<8x128xf32>
    %74 = arith.addf %72, %73 : vector<8x128xf32>
    %75 = math.tanh %74 : vector<8x128xf32>
    %76 = arith.mulf %69, %75 : vector<8x128xf32>
    %77 = arith.truncf %76 : vector<8x128xf32> to vector<8x128xbf16>
    %c8 = arith.constant 8 : index
    %c0_31 = arith.constant 0 : index
    %78 = vector.load %arg13[%c8, %c0_31] : memref<64x512xf32, #tpu.memory_space<vmem>>, vector<8x512xf32>
    %c0_32 = arith.constant 0 : index
    %c0_33 = arith.constant 0 : index
    %79 = vector.load %arg2[%c0_32, %c0_33] : memref<128x512xbf16, #tpu.memory_space<vmem>>, vector<128x512xbf16>
    %cst_34 = arith.constant dense<0.000000e+00> : vector<8x512xf32>
    %80 = tpu.matmul %29, %79, %cst_34 {dimension_numbers = #tpu.dot_dimension_numbers<[1], [0], [0], [1], [0, 0, 1, 1], [], []>} : vector<8x128xbf16>, vector<128x512xbf16>, vector<8x512xf32> -> vector<8x512xf32>
    %81 = arith.addf %78, %80 : vector<8x512xf32>
    %82 = vector.extract_strided_slice %81 {offsets = [0, 0], sizes = [8, 384], strides = [1, 1]} : vector<8x512xf32> to vector<8x384xf32>
    %cst_35 = arith.constant 5.000000e-01 : f32
    %83 = vector.broadcast %cst_35 : f32 to vector<8x384xf32>
    %84 = arith.mulf %83, %82 : vector<8x384xf32>
    %85 = math.tanh %84 : vector<8x384xf32>
    %cst_36 = arith.constant 5.000000e-01 : f32
    %86 = vector.broadcast %cst_36 : f32 to vector<8x384xf32>
    %87 = arith.mulf %86, %85 : vector<8x384xf32>
    %cst_37 = arith.constant 5.000000e-01 : f32
    %88 = vector.broadcast %cst_37 : f32 to vector<8x384xf32>
    %89 = arith.addf %87, %88 : vector<8x384xf32>
    %90 = vector.extract_strided_slice %89 {offsets = [0, 0], sizes = [8, 128], strides = [1, 1]} : vector<8x384xf32> to vector<8x128xf32>
    %91 = vector.extract_strided_slice %89 {offsets = [0, 128], sizes = [8, 128], strides = [1, 1]} : vector<8x384xf32> to vector<8x128xf32>
    %92 = vector.extract_strided_slice %89 {offsets = [0, 256], sizes = [8, 128], strides = [1, 1]} : vector<8x384xf32> to vector<8x128xf32>
    %93 = vector.extract_strided_slice %81 {offsets = [0, 384], sizes = [8, 128], strides = [1, 1]} : vector<8x512xf32> to vector<8x128xf32>
    %94 = math.tanh %93 : vector<8x128xf32>
    %95 = arith.mulf %91, %26 : vector<8x128xf32>
    %96 = arith.mulf %90, %94 : vector<8x128xf32>
    %97 = arith.addf %95, %96 : vector<8x128xf32>
    %98 = math.tanh %97 : vector<8x128xf32>
    %99 = arith.mulf %92, %98 : vector<8x128xf32>
    %100 = arith.truncf %99 : vector<8x128xf32> to vector<8x128xbf16>
    %c0_38 = arith.constant 0 : index
    %c0_39 = arith.constant 0 : index
    %101 = vector.load %arg4[%c0_38, %c0_39] : memref<128x512xbf16, #tpu.memory_space<vmem>>, vector<128x512xbf16>
    %cst_40 = arith.constant dense<0.000000e+00> : vector<8x512xf32>
    %102 = tpu.matmul %100, %101, %cst_40 {dimension_numbers = #tpu.dot_dimension_numbers<[1], [0], [0], [1], [0, 0, 1, 1], [], []>} : vector<8x128xbf16>, vector<128x512xbf16>, vector<8x512xf32> -> vector<8x512xf32>
    %c0_41 = arith.constant 0 : index
    %c0_42 = arith.constant 0 : index
    %103 = vector.load %arg6[%c0_41, %c0_42] : memref<1x512xf32, #tpu.memory_space<vmem>>, vector<1x512xf32>
    %104 = vector.broadcast %103 : vector<1x512xf32> to vector<8x512xf32>
    %105 = arith.addf %102, %104 : vector<8x512xf32>
    %c0_43 = arith.constant 0 : index
    %c0_44 = arith.constant 0 : index
    %106 = vector.load %arg5[%c0_43, %c0_44] : memref<128x512xbf16, #tpu.memory_space<vmem>>, vector<128x512xbf16>
    %cst_45 = arith.constant dense<0.000000e+00> : vector<8x512xf32>
    %107 = tpu.matmul %53, %106, %cst_45 {dimension_numbers = #tpu.dot_dimension_numbers<[1], [0], [0], [1], [0, 0, 1, 1], [], []>} : vector<8x128xbf16>, vector<128x512xbf16>, vector<8x512xf32> -> vector<8x512xf32>
    %108 = arith.addf %105, %107 : vector<8x512xf32>
    %109 = vector.extract_strided_slice %108 {offsets = [0, 0], sizes = [8, 384], strides = [1, 1]} : vector<8x512xf32> to vector<8x384xf32>
    %cst_46 = arith.constant 5.000000e-01 : f32
    %110 = vector.broadcast %cst_46 : f32 to vector<8x384xf32>
    %111 = arith.mulf %110, %109 : vector<8x384xf32>
    %112 = math.tanh %111 : vector<8x384xf32>
    %cst_47 = arith.constant 5.000000e-01 : f32
    %113 = vector.broadcast %cst_47 : f32 to vector<8x384xf32>
    %114 = arith.mulf %113, %112 : vector<8x384xf32>
    %cst_48 = arith.constant 5.000000e-01 : f32
    %115 = vector.broadcast %cst_48 : f32 to vector<8x384xf32>
    %116 = arith.addf %114, %115 : vector<8x384xf32>
    %117 = vector.extract_strided_slice %116 {offsets = [0, 0], sizes = [8, 128], strides = [1, 1]} : vector<8x384xf32> to vector<8x128xf32>
    %118 = vector.extract_strided_slice %116 {offsets = [0, 128], sizes = [8, 128], strides = [1, 1]} : vector<8x384xf32> to vector<8x128xf32>
    %119 = vector.extract_strided_slice %116 {offsets = [0, 256], sizes = [8, 128], strides = [1, 1]} : vector<8x384xf32> to vector<8x128xf32>
    %120 = vector.extract_strided_slice %108 {offsets = [0, 384], sizes = [8, 128], strides = [1, 1]} : vector<8x512xf32> to vector<8x128xf32>
    %121 = math.tanh %120 : vector<8x128xf32>
    %122 = arith.mulf %118, %50 : vector<8x128xf32>
    %123 = arith.mulf %117, %121 : vector<8x128xf32>
    %124 = arith.addf %122, %123 : vector<8x128xf32>
    %125 = math.tanh %124 : vector<8x128xf32>
    %126 = arith.mulf %119, %125 : vector<8x128xf32>
    %127 = arith.truncf %126 : vector<8x128xf32> to vector<8x128xbf16>
    %c0_49 = arith.constant 0 : index
    %c0_50 = arith.constant 0 : index
    %128 = vector.load %arg7[%c0_49, %c0_50] : memref<128x512xbf16, #tpu.memory_space<vmem>>, vector<128x512xbf16>
    %cst_51 = arith.constant dense<0.000000e+00> : vector<8x512xf32>
    %129 = tpu.matmul %127, %128, %cst_51 {dimension_numbers = #tpu.dot_dimension_numbers<[1], [0], [0], [1], [0, 0, 1, 1], [], []>} : vector<8x128xbf16>, vector<128x512xbf16>, vector<8x512xf32> -> vector<8x512xf32>
    %c0_52 = arith.constant 0 : index
    %c0_53 = arith.constant 0 : index
    %130 = vector.load %arg9[%c0_52, %c0_53] : memref<1x512xf32, #tpu.memory_space<vmem>>, vector<1x512xf32>
    %131 = vector.broadcast %130 : vector<1x512xf32> to vector<8x512xf32>
    %132 = arith.addf %129, %131 : vector<8x512xf32>
    %c0_54 = arith.constant 0 : index
    %c0_55 = arith.constant 0 : index
    %133 = vector.load %arg8[%c0_54, %c0_55] : memref<128x512xbf16, #tpu.memory_space<vmem>>, vector<128x512xbf16>
    %cst_56 = arith.constant dense<0.000000e+00> : vector<8x512xf32>
    %134 = tpu.matmul %77, %133, %cst_56 {dimension_numbers = #tpu.dot_dimension_numbers<[1], [0], [0], [1], [0, 0, 1, 1], [], []>} : vector<8x128xbf16>, vector<128x512xbf16>, vector<8x512xf32> -> vector<8x512xf32>
    %135 = arith.addf %132, %134 : vector<8x512xf32>
    %136 = vector.extract_strided_slice %135 {offsets = [0, 0], sizes = [8, 384], strides = [1, 1]} : vector<8x512xf32> to vector<8x384xf32>
    %cst_57 = arith.constant 5.000000e-01 : f32
    %137 = vector.broadcast %cst_57 : f32 to vector<8x384xf32>
    %138 = arith.mulf %137, %136 : vector<8x384xf32>
    %139 = math.tanh %138 : vector<8x384xf32>
    %cst_58 = arith.constant 5.000000e-01 : f32
    %140 = vector.broadcast %cst_58 : f32 to vector<8x384xf32>
    %141 = arith.mulf %140, %139 : vector<8x384xf32>
    %cst_59 = arith.constant 5.000000e-01 : f32
    %142 = vector.broadcast %cst_59 : f32 to vector<8x384xf32>
    %143 = arith.addf %141, %142 : vector<8x384xf32>
    %144 = vector.extract_strided_slice %143 {offsets = [0, 0], sizes = [8, 128], strides = [1, 1]} : vector<8x384xf32> to vector<8x128xf32>
    %145 = vector.extract_strided_slice %143 {offsets = [0, 128], sizes = [8, 128], strides = [1, 1]} : vector<8x384xf32> to vector<8x128xf32>
    %146 = vector.extract_strided_slice %143 {offsets = [0, 256], sizes = [8, 128], strides = [1, 1]} : vector<8x384xf32> to vector<8x128xf32>
    %147 = vector.extract_strided_slice %135 {offsets = [0, 384], sizes = [8, 128], strides = [1, 1]} : vector<8x512xf32> to vector<8x128xf32>
    %148 = math.tanh %147 : vector<8x128xf32>
    %149 = arith.mulf %145, %74 : vector<8x128xf32>
    %150 = arith.mulf %144, %148 : vector<8x128xf32>
    %151 = arith.addf %149, %150 : vector<8x128xf32>
    %152 = math.tanh %151 : vector<8x128xf32>
    %153 = arith.mulf %146, %152 : vector<8x128xf32>
    %154 = arith.truncf %153 : vector<8x128xf32> to vector<8x128xbf16>
    %c16 = arith.constant 16 : index
    %c0_60 = arith.constant 0 : index
    %155 = vector.load %arg13[%c16, %c0_60] : memref<64x512xf32, #tpu.memory_space<vmem>>, vector<8x512xf32>
    %c0_61 = arith.constant 0 : index
    %c0_62 = arith.constant 0 : index
    %156 = vector.load %arg2[%c0_61, %c0_62] : memref<128x512xbf16, #tpu.memory_space<vmem>>, vector<128x512xbf16>
    %cst_63 = arith.constant dense<0.000000e+00> : vector<8x512xf32>
    %157 = tpu.matmul %100, %156, %cst_63 {dimension_numbers = #tpu.dot_dimension_numbers<[1], [0], [0], [1], [0, 0, 1, 1], [], []>} : vector<8x128xbf16>, vector<128x512xbf16>, vector<8x512xf32> -> vector<8x512xf32>
    %158 = arith.addf %155, %157 : vector<8x512xf32>
    %159 = vector.extract_strided_slice %158 {offsets = [0, 0], sizes = [8, 384], strides = [1, 1]} : vector<8x512xf32> to vector<8x384xf32>
    %cst_64 = arith.constant 5.000000e-01 : f32
    %160 = vector.broadcast %cst_64 : f32 to vector<8x384xf32>
    %161 = arith.mulf %160, %159 : vector<8x384xf32>
    %162 = math.tanh %161 : vector<8x384xf32>
    %cst_65 = arith.constant 5.000000e-01 : f32
    %163 = vector.broadcast %cst_65 : f32 to vector<8x384xf32>
    %164 = arith.mulf %163, %162 : vector<8x384xf32>
    %cst_66 = arith.constant 5.000000e-01 : f32
    %165 = vector.broadcast %cst_66 : f32 to vector<8x384xf32>
    %166 = arith.addf %164, %165 : vector<8x384xf32>
    %167 = vector.extract_strided_slice %166 {offsets = [0, 0], sizes = [8, 128], strides = [1, 1]} : vector<8x384xf32> to vector<8x128xf32>
    %168 = vector.extract_strided_slice %166 {offsets = [0, 128], sizes = [8, 128], strides = [1, 1]} : vector<8x384xf32> to vector<8x128xf32>
    %169 = vector.extract_strided_slice %166 {offsets = [0, 256], sizes = [8, 128], strides = [1, 1]} : vector<8x384xf32> to vector<8x128xf32>
    %170 = vector.extract_strided_slice %158 {offsets = [0, 384], sizes = [8, 128], strides = [1, 1]} : vector<8x512xf32> to vector<8x128xf32>
    %171 = math.tanh %170 : vector<8x128xf32>
    %172 = arith.mulf %168, %97 : vector<8x128xf32>
    %173 = arith.mulf %167, %171 : vector<8x128xf32>
    %174 = arith.addf %172, %173 : vector<8x128xf32>
    %175 = math.tanh %174 : vector<8x128xf32>
    %176 = arith.mulf %169, %175 : vector<8x128xf32>
    %177 = arith.truncf %176 : vector<8x128xf32> to vector<8x128xbf16>
    %c0_67 = arith.constant 0 : index
    %c0_68 = arith.constant 0 : index
    %178 = vector.load %arg4[%c0_67, %c0_68] : memref<128x512xbf16, #tpu.memory_space<vmem>>, vector<128x512xbf16>
    %cst_69 = arith.constant dense<0.000000e+00> : vector<8x512xf32>
    %179 = tpu.matmul %177, %178, %cst_69 {dimension_numbers = #tpu.dot_dimension_numbers<[1], [0], [0], [1], [0, 0, 1, 1], [], []>} : vector<8x128xbf16>, vector<128x512xbf16>, vector<8x512xf32> -> vector<8x512xf32>
    %c0_70 = arith.constant 0 : index
    %c0_71 = arith.constant 0 : index
    %180 = vector.load %arg6[%c0_70, %c0_71] : memref<1x512xf32, #tpu.memory_space<vmem>>, vector<1x512xf32>
    %181 = vector.broadcast %180 : vector<1x512xf32> to vector<8x512xf32>
    %182 = arith.addf %179, %181 : vector<8x512xf32>
    %c0_72 = arith.constant 0 : index
    %c0_73 = arith.constant 0 : index
    %183 = vector.load %arg5[%c0_72, %c0_73] : memref<128x512xbf16, #tpu.memory_space<vmem>>, vector<128x512xbf16>
    %cst_74 = arith.constant dense<0.000000e+00> : vector<8x512xf32>
    %184 = tpu.matmul %127, %183, %cst_74 {dimension_numbers = #tpu.dot_dimension_numbers<[1], [0], [0], [1], [0, 0, 1, 1], [], []>} : vector<8x128xbf16>, vector<128x512xbf16>, vector<8x512xf32> -> vector<8x512xf32>
    %185 = arith.addf %182, %184 : vector<8x512xf32>
    %186 = vector.extract_strided_slice %185 {offsets = [0, 0], sizes = [8, 384], strides = [1, 1]} : vector<8x512xf32> to vector<8x384xf32>
    %cst_75 = arith.constant 5.000000e-01 : f32
    %187 = vector.broadcast %cst_75 : f32 to vector<8x384xf32>
    %188 = arith.mulf %187, %186 : vector<8x384xf32>
    %189 = math.tanh %188 : vector<8x384xf32>
    %cst_76 = arith.constant 5.000000e-01 : f32
    %190 = vector.broadcast %cst_76 : f32 to vector<8x384xf32>
    %191 = arith.mulf %190, %189 : vector<8x384xf32>
    %cst_77 = arith.constant 5.000000e-01 : f32
    %192 = vector.broadcast %cst_77 : f32 to vector<8x384xf32>
    %193 = arith.addf %191, %192 : vector<8x384xf32>
    %194 = vector.extract_strided_slice %193 {offsets = [0, 0], sizes = [8, 128], strides = [1, 1]} : vector<8x384xf32> to vector<8x128xf32>
    %195 = vector.extract_strided_slice %193 {offsets = [0, 128], sizes = [8, 128], strides = [1, 1]} : vector<8x384xf32> to vector<8x128xf32>
    %196 = vector.extract_strided_slice %193 {offsets = [0, 256], sizes = [8, 128], strides = [1, 1]} : vector<8x384xf32> to vector<8x128xf32>
    %197 = vector.extract_strided_slice %185 {offsets = [0, 384], sizes = [8, 128], strides = [1, 1]} : vector<8x512xf32> to vector<8x128xf32>
    %198 = math.tanh %197 : vector<8x128xf32>
    %199 = arith.mulf %195, %124 : vector<8x128xf32>
    %200 = arith.mulf %194, %198 : vector<8x128xf32>
    %201 = arith.addf %199, %200 : vector<8x128xf32>
    %202 = math.tanh %201 : vector<8x128xf32>
    %203 = arith.mulf %196, %202 : vector<8x128xf32>
    %204 = arith.truncf %203 : vector<8x128xf32> to vector<8x128xbf16>
    %c0_78 = arith.constant 0 : index
    %c0_79 = arith.constant 0 : index
    %205 = vector.load %arg7[%c0_78, %c0_79] : memref<128x512xbf16, #tpu.memory_space<vmem>>, vector<128x512xbf16>
    %cst_80 = arith.constant dense<0.000000e+00> : vector<8x512xf32>
    %206 = tpu.matmul %204, %205, %cst_80 {dimension_numbers = #tpu.dot_dimension_numbers<[1], [0], [0], [1], [0, 0, 1, 1], [], []>} : vector<8x128xbf16>, vector<128x512xbf16>, vector<8x512xf32> -> vector<8x512xf32>
    %c0_81 = arith.constant 0 : index
    %c0_82 = arith.constant 0 : index
    %207 = vector.load %arg9[%c0_81, %c0_82] : memref<1x512xf32, #tpu.memory_space<vmem>>, vector<1x512xf32>
    %208 = vector.broadcast %207 : vector<1x512xf32> to vector<8x512xf32>
    %209 = arith.addf %206, %208 : vector<8x512xf32>
    %c0_83 = arith.constant 0 : index
    %c0_84 = arith.constant 0 : index
    %210 = vector.load %arg8[%c0_83, %c0_84] : memref<128x512xbf16, #tpu.memory_space<vmem>>, vector<128x512xbf16>
    %cst_85 = arith.constant dense<0.000000e+00> : vector<8x512xf32>
    %211 = tpu.matmul %154, %210, %cst_85 {dimension_numbers = #tpu.dot_dimension_numbers<[1], [0], [0], [1], [0, 0, 1, 1], [], []>} : vector<8x128xbf16>, vector<128x512xbf16>, vector<8x512xf32> -> vector<8x512xf32>
    %212 = arith.addf %209, %211 : vector<8x512xf32>
    %213 = vector.extract_strided_slice %212 {offsets = [0, 0], sizes = [8, 384], strides = [1, 1]} : vector<8x512xf32> to vector<8x384xf32>
    %cst_86 = arith.constant 5.000000e-01 : f32
    %214 = vector.broadcast %cst_86 : f32 to vector<8x384xf32>
    %215 = arith.mulf %214, %213 : vector<8x384xf32>
    %216 = math.tanh %215 : vector<8x384xf32>
    %cst_87 = arith.constant 5.000000e-01 : f32
    %217 = vector.broadcast %cst_87 : f32 to vector<8x384xf32>
    %218 = arith.mulf %217, %216 : vector<8x384xf32>
    %cst_88 = arith.constant 5.000000e-01 : f32
    %219 = vector.broadcast %cst_88 : f32 to vector<8x384xf32>
    %220 = arith.addf %218, %219 : vector<8x384xf32>
    %221 = vector.extract_strided_slice %220 {offsets = [0, 0], sizes = [8, 128], strides = [1, 1]} : vector<8x384xf32> to vector<8x128xf32>
    %222 = vector.extract_strided_slice %220 {offsets = [0, 128], sizes = [8, 128], strides = [1, 1]} : vector<8x384xf32> to vector<8x128xf32>
    %223 = vector.extract_strided_slice %220 {offsets = [0, 256], sizes = [8, 128], strides = [1, 1]} : vector<8x384xf32> to vector<8x128xf32>
    %224 = vector.extract_strided_slice %212 {offsets = [0, 384], sizes = [8, 128], strides = [1, 1]} : vector<8x512xf32> to vector<8x128xf32>
    %225 = math.tanh %224 : vector<8x128xf32>
    %226 = arith.mulf %222, %151 : vector<8x128xf32>
    %227 = arith.mulf %221, %225 : vector<8x128xf32>
    %228 = arith.addf %226, %227 : vector<8x128xf32>
    %229 = math.tanh %228 : vector<8x128xf32>
    %230 = arith.mulf %223, %229 : vector<8x128xf32>
    %231 = arith.truncf %230 : vector<8x128xf32> to vector<8x128xbf16>
    %c24 = arith.constant 24 : index
    %c0_89 = arith.constant 0 : index
    %232 = vector.load %arg13[%c24, %c0_89] : memref<64x512xf32, #tpu.memory_space<vmem>>, vector<8x512xf32>
    %c0_90 = arith.constant 0 : index
    %c0_91 = arith.constant 0 : index
    %233 = vector.load %arg2[%c0_90, %c0_91] : memref<128x512xbf16, #tpu.memory_space<vmem>>, vector<128x512xbf16>
    %cst_92 = arith.constant dense<0.000000e+00> : vector<8x512xf32>
    %234 = tpu.matmul %177, %233, %cst_92 {dimension_numbers = #tpu.dot_dimension_numbers<[1], [0], [0], [1], [0, 0, 1, 1], [], []>} : vector<8x128xbf16>, vector<128x512xbf16>, vector<8x512xf32> -> vector<8x512xf32>
    %235 = arith.addf %232, %234 : vector<8x512xf32>
    %236 = vector.extract_strided_slice %235 {offsets = [0, 0], sizes = [8, 384], strides = [1, 1]} : vector<8x512xf32> to vector<8x384xf32>
    %cst_93 = arith.constant 5.000000e-01 : f32
    %237 = vector.broadcast %cst_93 : f32 to vector<8x384xf32>
    %238 = arith.mulf %237, %236 : vector<8x384xf32>
    %239 = math.tanh %238 : vector<8x384xf32>
    %cst_94 = arith.constant 5.000000e-01 : f32
    %240 = vector.broadcast %cst_94 : f32 to vector<8x384xf32>
    %241 = arith.mulf %240, %239 : vector<8x384xf32>
    %cst_95 = arith.constant 5.000000e-01 : f32
    %242 = vector.broadcast %cst_95 : f32 to vector<8x384xf32>
    %243 = arith.addf %241, %242 : vector<8x384xf32>
    %244 = vector.extract_strided_slice %243 {offsets = [0, 0], sizes = [8, 128], strides = [1, 1]} : vector<8x384xf32> to vector<8x128xf32>
    %245 = vector.extract_strided_slice %243 {offsets = [0, 128], sizes = [8, 128], strides = [1, 1]} : vector<8x384xf32> to vector<8x128xf32>
    %246 = vector.extract_strided_slice %243 {offsets = [0, 256], sizes = [8, 128], strides = [1, 1]} : vector<8x384xf32> to vector<8x128xf32>
    %247 = vector.extract_strided_slice %235 {offsets = [0, 384], sizes = [8, 128], strides = [1, 1]} : vector<8x512xf32> to vector<8x128xf32>
    %248 = math.tanh %247 : vector<8x128xf32>
    %249 = arith.mulf %245, %174 : vector<8x128xf32>
    %250 = arith.mulf %244, %248 : vector<8x128xf32>
    %251 = arith.addf %249, %250 : vector<8x128xf32>
    %252 = math.tanh %251 : vector<8x128xf32>
    %253 = arith.mulf %246, %252 : vector<8x128xf32>
    %254 = arith.truncf %253 : vector<8x128xf32> to vector<8x128xbf16>
    %c0_96 = arith.constant 0 : index
    %c0_97 = arith.constant 0 : index
    %255 = vector.load %arg4[%c0_96, %c0_97] : memref<128x512xbf16, #tpu.memory_space<vmem>>, vector<128x512xbf16>
    %cst_98 = arith.constant dense<0.000000e+00> : vector<8x512xf32>
    %256 = tpu.matmul %254, %255, %cst_98 {dimension_numbers = #tpu.dot_dimension_numbers<[1], [0], [0], [1], [0, 0, 1, 1], [], []>} : vector<8x128xbf16>, vector<128x512xbf16>, vector<8x512xf32> -> vector<8x512xf32>
    %c0_99 = arith.constant 0 : index
    %c0_100 = arith.constant 0 : index
    %257 = vector.load %arg6[%c0_99, %c0_100] : memref<1x512xf32, #tpu.memory_space<vmem>>, vector<1x512xf32>
    %258 = vector.broadcast %257 : vector<1x512xf32> to vector<8x512xf32>
    %259 = arith.addf %256, %258 : vector<8x512xf32>
    %c0_101 = arith.constant 0 : index
    %c0_102 = arith.constant 0 : index
    %260 = vector.load %arg5[%c0_101, %c0_102] : memref<128x512xbf16, #tpu.memory_space<vmem>>, vector<128x512xbf16>
    %cst_103 = arith.constant dense<0.000000e+00> : vector<8x512xf32>
    %261 = tpu.matmul %204, %260, %cst_103 {dimension_numbers = #tpu.dot_dimension_numbers<[1], [0], [0], [1], [0, 0, 1, 1], [], []>} : vector<8x128xbf16>, vector<128x512xbf16>, vector<8x512xf32> -> vector<8x512xf32>
    %262 = arith.addf %259, %261 : vector<8x512xf32>
    %263 = vector.extract_strided_slice %262 {offsets = [0, 0], sizes = [8, 384], strides = [1, 1]} : vector<8x512xf32> to vector<8x384xf32>
    %cst_104 = arith.constant 5.000000e-01 : f32
    %264 = vector.broadcast %cst_104 : f32 to vector<8x384xf32>
    %265 = arith.mulf %264, %263 : vector<8x384xf32>
    %266 = math.tanh %265 : vector<8x384xf32>
    %cst_105 = arith.constant 5.000000e-01 : f32
    %267 = vector.broadcast %cst_105 : f32 to vector<8x384xf32>
    %268 = arith.mulf %267, %266 : vector<8x384xf32>
    %cst_106 = arith.constant 5.000000e-01 : f32
    %269 = vector.broadcast %cst_106 : f32 to vector<8x384xf32>
    %270 = arith.addf %268, %269 : vector<8x384xf32>
    %271 = vector.extract_strided_slice %270 {offsets = [0, 0], sizes = [8, 128], strides = [1, 1]} : vector<8x384xf32> to vector<8x128xf32>
    %272 = vector.extract_strided_slice %270 {offsets = [0, 128], sizes = [8, 128], strides = [1, 1]} : vector<8x384xf32> to vector<8x128xf32>
    %273 = vector.extract_strided_slice %270 {offsets = [0, 256], sizes = [8, 128], strides = [1, 1]} : vector<8x384xf32> to vector<8x128xf32>
    %274 = vector.extract_strided_slice %262 {offsets = [0, 384], sizes = [8, 128], strides = [1, 1]} : vector<8x512xf32> to vector<8x128xf32>
    %275 = math.tanh %274 : vector<8x128xf32>
    %276 = arith.mulf %272, %201 : vector<8x128xf32>
    %277 = arith.mulf %271, %275 : vector<8x128xf32>
    %278 = arith.addf %276, %277 : vector<8x128xf32>
    %279 = math.tanh %278 : vector<8x128xf32>
    %280 = arith.mulf %273, %279 : vector<8x128xf32>
    %281 = arith.truncf %280 : vector<8x128xf32> to vector<8x128xbf16>
    %c0_107 = arith.constant 0 : index
    %c0_108 = arith.constant 0 : index
    %282 = vector.load %arg7[%c0_107, %c0_108] : memref<128x512xbf16, #tpu.memory_space<vmem>>, vector<128x512xbf16>
    %cst_109 = arith.constant dense<0.000000e+00> : vector<8x512xf32>
    %283 = tpu.matmul %281, %282, %cst_109 {dimension_numbers = #tpu.dot_dimension_numbers<[1], [0], [0], [1], [0, 0, 1, 1], [], []>} : vector<8x128xbf16>, vector<128x512xbf16>, vector<8x512xf32> -> vector<8x512xf32>
    %c0_110 = arith.constant 0 : index
    %c0_111 = arith.constant 0 : index
    %284 = vector.load %arg9[%c0_110, %c0_111] : memref<1x512xf32, #tpu.memory_space<vmem>>, vector<1x512xf32>
    %285 = vector.broadcast %284 : vector<1x512xf32> to vector<8x512xf32>
    %286 = arith.addf %283, %285 : vector<8x512xf32>
    %c0_112 = arith.constant 0 : index
    %c0_113 = arith.constant 0 : index
    %287 = vector.load %arg8[%c0_112, %c0_113] : memref<128x512xbf16, #tpu.memory_space<vmem>>, vector<128x512xbf16>
    %cst_114 = arith.constant dense<0.000000e+00> : vector<8x512xf32>
    %288 = tpu.matmul %231, %287, %cst_114 {dimension_numbers = #tpu.dot_dimension_numbers<[1], [0], [0], [1], [0, 0, 1, 1], [], []>} : vector<8x128xbf16>, vector<128x512xbf16>, vector<8x512xf32> -> vector<8x512xf32>
    %289 = arith.addf %286, %288 : vector<8x512xf32>
    %290 = vector.extract_strided_slice %289 {offsets = [0, 0], sizes = [8, 384], strides = [1, 1]} : vector<8x512xf32> to vector<8x384xf32>
    %cst_115 = arith.constant 5.000000e-01 : f32
    %291 = vector.broadcast %cst_115 : f32 to vector<8x384xf32>
    %292 = arith.mulf %291, %290 : vector<8x384xf32>
    %293 = math.tanh %292 : vector<8x384xf32>
    %cst_116 = arith.constant 5.000000e-01 : f32
    %294 = vector.broadcast %cst_116 : f32 to vector<8x384xf32>
    %295 = arith.mulf %294, %293 : vector<8x384xf32>
    %cst_117 = arith.constant 5.000000e-01 : f32
    %296 = vector.broadcast %cst_117 : f32 to vector<8x384xf32>
    %297 = arith.addf %295, %296 : vector<8x384xf32>
    %298 = vector.extract_strided_slice %297 {offsets = [0, 0], sizes = [8, 128], strides = [1, 1]} : vector<8x384xf32> to vector<8x128xf32>
    %299 = vector.extract_strided_slice %297 {offsets = [0, 128], sizes = [8, 128], strides = [1, 1]} : vector<8x384xf32> to vector<8x128xf32>
    %300 = vector.extract_strided_slice %297 {offsets = [0, 256], sizes = [8, 128], strides = [1, 1]} : vector<8x384xf32> to vector<8x128xf32>
    %301 = vector.extract_strided_slice %289 {offsets = [0, 384], sizes = [8, 128], strides = [1, 1]} : vector<8x512xf32> to vector<8x128xf32>
    %302 = math.tanh %301 : vector<8x128xf32>
    %303 = arith.mulf %299, %228 : vector<8x128xf32>
    %304 = arith.mulf %298, %302 : vector<8x128xf32>
    %305 = arith.addf %303, %304 : vector<8x128xf32>
    %306 = math.tanh %305 : vector<8x128xf32>
    %307 = arith.mulf %300, %306 : vector<8x128xf32>
    %308 = arith.truncf %307 : vector<8x128xf32> to vector<8x128xbf16>
    %c32 = arith.constant 32 : index
    %c0_118 = arith.constant 0 : index
    %309 = vector.load %arg13[%c32, %c0_118] : memref<64x512xf32, #tpu.memory_space<vmem>>, vector<8x512xf32>
    %c0_119 = arith.constant 0 : index
    %c0_120 = arith.constant 0 : index
    %310 = vector.load %arg2[%c0_119, %c0_120] : memref<128x512xbf16, #tpu.memory_space<vmem>>, vector<128x512xbf16>
    %cst_121 = arith.constant dense<0.000000e+00> : vector<8x512xf32>
    %311 = tpu.matmul %254, %310, %cst_121 {dimension_numbers = #tpu.dot_dimension_numbers<[1], [0], [0], [1], [0, 0, 1, 1], [], []>} : vector<8x128xbf16>, vector<128x512xbf16>, vector<8x512xf32> -> vector<8x512xf32>
    %312 = arith.addf %309, %311 : vector<8x512xf32>
    %313 = vector.extract_strided_slice %312 {offsets = [0, 0], sizes = [8, 384], strides = [1, 1]} : vector<8x512xf32> to vector<8x384xf32>
    %cst_122 = arith.constant 5.000000e-01 : f32
    %314 = vector.broadcast %cst_122 : f32 to vector<8x384xf32>
    %315 = arith.mulf %314, %313 : vector<8x384xf32>
    %316 = math.tanh %315 : vector<8x384xf32>
    %cst_123 = arith.constant 5.000000e-01 : f32
    %317 = vector.broadcast %cst_123 : f32 to vector<8x384xf32>
    %318 = arith.mulf %317, %316 : vector<8x384xf32>
    %cst_124 = arith.constant 5.000000e-01 : f32
    %319 = vector.broadcast %cst_124 : f32 to vector<8x384xf32>
    %320 = arith.addf %318, %319 : vector<8x384xf32>
    %321 = vector.extract_strided_slice %320 {offsets = [0, 0], sizes = [8, 128], strides = [1, 1]} : vector<8x384xf32> to vector<8x128xf32>
    %322 = vector.extract_strided_slice %320 {offsets = [0, 128], sizes = [8, 128], strides = [1, 1]} : vector<8x384xf32> to vector<8x128xf32>
    %323 = vector.extract_strided_slice %320 {offsets = [0, 256], sizes = [8, 128], strides = [1, 1]} : vector<8x384xf32> to vector<8x128xf32>
    %324 = vector.extract_strided_slice %312 {offsets = [0, 384], sizes = [8, 128], strides = [1, 1]} : vector<8x512xf32> to vector<8x128xf32>
    %325 = math.tanh %324 : vector<8x128xf32>
    %326 = arith.mulf %322, %251 : vector<8x128xf32>
    %327 = arith.mulf %321, %325 : vector<8x128xf32>
    %328 = arith.addf %326, %327 : vector<8x128xf32>
    %329 = math.tanh %328 : vector<8x128xf32>
    %330 = arith.mulf %323, %329 : vector<8x128xf32>
    %331 = arith.truncf %330 : vector<8x128xf32> to vector<8x128xbf16>
    %c0_125 = arith.constant 0 : index
    %c0_126 = arith.constant 0 : index
    %332 = vector.load %arg4[%c0_125, %c0_126] : memref<128x512xbf16, #tpu.memory_space<vmem>>, vector<128x512xbf16>
    %cst_127 = arith.constant dense<0.000000e+00> : vector<8x512xf32>
    %333 = tpu.matmul %331, %332, %cst_127 {dimension_numbers = #tpu.dot_dimension_numbers<[1], [0], [0], [1], [0, 0, 1, 1], [], []>} : vector<8x128xbf16>, vector<128x512xbf16>, vector<8x512xf32> -> vector<8x512xf32>
    %c0_128 = arith.constant 0 : index
    %c0_129 = arith.constant 0 : index
    %334 = vector.load %arg6[%c0_128, %c0_129] : memref<1x512xf32, #tpu.memory_space<vmem>>, vector<1x512xf32>
    %335 = vector.broadcast %334 : vector<1x512xf32> to vector<8x512xf32>
    %336 = arith.addf %333, %335 : vector<8x512xf32>
    %c0_130 = arith.constant 0 : index
    %c0_131 = arith.constant 0 : index
    %337 = vector.load %arg5[%c0_130, %c0_131] : memref<128x512xbf16, #tpu.memory_space<vmem>>, vector<128x512xbf16>
    %cst_132 = arith.constant dense<0.000000e+00> : vector<8x512xf32>
    %338 = tpu.matmul %281, %337, %cst_132 {dimension_numbers = #tpu.dot_dimension_numbers<[1], [0], [0], [1], [0, 0, 1, 1], [], []>} : vector<8x128xbf16>, vector<128x512xbf16>, vector<8x512xf32> -> vector<8x512xf32>
    %339 = arith.addf %336, %338 : vector<8x512xf32>
    %340 = vector.extract_strided_slice %339 {offsets = [0, 0], sizes = [8, 384], strides = [1, 1]} : vector<8x512xf32> to vector<8x384xf32>
    %cst_133 = arith.constant 5.000000e-01 : f32
    %341 = vector.broadcast %cst_133 : f32 to vector<8x384xf32>
    %342 = arith.mulf %341, %340 : vector<8x384xf32>
    %343 = math.tanh %342 : vector<8x384xf32>
    %cst_134 = arith.constant 5.000000e-01 : f32
    %344 = vector.broadcast %cst_134 : f32 to vector<8x384xf32>
    %345 = arith.mulf %344, %343 : vector<8x384xf32>
    %cst_135 = arith.constant 5.000000e-01 : f32
    %346 = vector.broadcast %cst_135 : f32 to vector<8x384xf32>
    %347 = arith.addf %345, %346 : vector<8x384xf32>
    %348 = vector.extract_strided_slice %347 {offsets = [0, 0], sizes = [8, 128], strides = [1, 1]} : vector<8x384xf32> to vector<8x128xf32>
    %349 = vector.extract_strided_slice %347 {offsets = [0, 128], sizes = [8, 128], strides = [1, 1]} : vector<8x384xf32> to vector<8x128xf32>
    %350 = vector.extract_strided_slice %347 {offsets = [0, 256], sizes = [8, 128], strides = [1, 1]} : vector<8x384xf32> to vector<8x128xf32>
    %351 = vector.extract_strided_slice %339 {offsets = [0, 384], sizes = [8, 128], strides = [1, 1]} : vector<8x512xf32> to vector<8x128xf32>
    %352 = math.tanh %351 : vector<8x128xf32>
    %353 = arith.mulf %349, %278 : vector<8x128xf32>
    %354 = arith.mulf %348, %352 : vector<8x128xf32>
    %355 = arith.addf %353, %354 : vector<8x128xf32>
    %356 = math.tanh %355 : vector<8x128xf32>
    %357 = arith.mulf %350, %356 : vector<8x128xf32>
    %358 = arith.truncf %357 : vector<8x128xf32> to vector<8x128xbf16>
    %c0_136 = arith.constant 0 : index
    %c0_137 = arith.constant 0 : index
    %359 = vector.load %arg7[%c0_136, %c0_137] : memref<128x512xbf16, #tpu.memory_space<vmem>>, vector<128x512xbf16>
    %cst_138 = arith.constant dense<0.000000e+00> : vector<8x512xf32>
    %360 = tpu.matmul %358, %359, %cst_138 {dimension_numbers = #tpu.dot_dimension_numbers<[1], [0], [0], [1], [0, 0, 1, 1], [], []>} : vector<8x128xbf16>, vector<128x512xbf16>, vector<8x512xf32> -> vector<8x512xf32>
    %c0_139 = arith.constant 0 : index
    %c0_140 = arith.constant 0 : index
    %361 = vector.load %arg9[%c0_139, %c0_140] : memref<1x512xf32, #tpu.memory_space<vmem>>, vector<1x512xf32>
    %362 = vector.broadcast %361 : vector<1x512xf32> to vector<8x512xf32>
    %363 = arith.addf %360, %362 : vector<8x512xf32>
    %c0_141 = arith.constant 0 : index
    %c0_142 = arith.constant 0 : index
    %364 = vector.load %arg8[%c0_141, %c0_142] : memref<128x512xbf16, #tpu.memory_space<vmem>>, vector<128x512xbf16>
    %cst_143 = arith.constant dense<0.000000e+00> : vector<8x512xf32>
    %365 = tpu.matmul %308, %364, %cst_143 {dimension_numbers = #tpu.dot_dimension_numbers<[1], [0], [0], [1], [0, 0, 1, 1], [], []>} : vector<8x128xbf16>, vector<128x512xbf16>, vector<8x512xf32> -> vector<8x512xf32>
    %366 = arith.addf %363, %365 : vector<8x512xf32>
    %367 = vector.extract_strided_slice %366 {offsets = [0, 0], sizes = [8, 384], strides = [1, 1]} : vector<8x512xf32> to vector<8x384xf32>
    %cst_144 = arith.constant 5.000000e-01 : f32
    %368 = vector.broadcast %cst_144 : f32 to vector<8x384xf32>
    %369 = arith.mulf %368, %367 : vector<8x384xf32>
    %370 = math.tanh %369 : vector<8x384xf32>
    %cst_145 = arith.constant 5.000000e-01 : f32
    %371 = vector.broadcast %cst_145 : f32 to vector<8x384xf32>
    %372 = arith.mulf %371, %370 : vector<8x384xf32>
    %cst_146 = arith.constant 5.000000e-01 : f32
    %373 = vector.broadcast %cst_146 : f32 to vector<8x384xf32>
    %374 = arith.addf %372, %373 : vector<8x384xf32>
    %375 = vector.extract_strided_slice %374 {offsets = [0, 0], sizes = [8, 128], strides = [1, 1]} : vector<8x384xf32> to vector<8x128xf32>
    %376 = vector.extract_strided_slice %374 {offsets = [0, 128], sizes = [8, 128], strides = [1, 1]} : vector<8x384xf32> to vector<8x128xf32>
    %377 = vector.extract_strided_slice %374 {offsets = [0, 256], sizes = [8, 128], strides = [1, 1]} : vector<8x384xf32> to vector<8x128xf32>
    %378 = vector.extract_strided_slice %366 {offsets = [0, 384], sizes = [8, 128], strides = [1, 1]} : vector<8x512xf32> to vector<8x128xf32>
    %379 = math.tanh %378 : vector<8x128xf32>
    %380 = arith.mulf %376, %305 : vector<8x128xf32>
    %381 = arith.mulf %375, %379 : vector<8x128xf32>
    %382 = arith.addf %380, %381 : vector<8x128xf32>
    %383 = math.tanh %382 : vector<8x128xf32>
    %384 = arith.mulf %377, %383 : vector<8x128xf32>
    %385 = arith.truncf %384 : vector<8x128xf32> to vector<8x128xbf16>
    %c40 = arith.constant 40 : index
    %c0_147 = arith.constant 0 : index
    %386 = vector.load %arg13[%c40, %c0_147] : memref<64x512xf32, #tpu.memory_space<vmem>>, vector<8x512xf32>
    %c0_148 = arith.constant 0 : index
    %c0_149 = arith.constant 0 : index
    %387 = vector.load %arg2[%c0_148, %c0_149] : memref<128x512xbf16, #tpu.memory_space<vmem>>, vector<128x512xbf16>
    %cst_150 = arith.constant dense<0.000000e+00> : vector<8x512xf32>
    %388 = tpu.matmul %331, %387, %cst_150 {dimension_numbers = #tpu.dot_dimension_numbers<[1], [0], [0], [1], [0, 0, 1, 1], [], []>} : vector<8x128xbf16>, vector<128x512xbf16>, vector<8x512xf32> -> vector<8x512xf32>
    %389 = arith.addf %386, %388 : vector<8x512xf32>
    %390 = vector.extract_strided_slice %389 {offsets = [0, 0], sizes = [8, 384], strides = [1, 1]} : vector<8x512xf32> to vector<8x384xf32>
    %cst_151 = arith.constant 5.000000e-01 : f32
    %391 = vector.broadcast %cst_151 : f32 to vector<8x384xf32>
    %392 = arith.mulf %391, %390 : vector<8x384xf32>
    %393 = math.tanh %392 : vector<8x384xf32>
    %cst_152 = arith.constant 5.000000e-01 : f32
    %394 = vector.broadcast %cst_152 : f32 to vector<8x384xf32>
    %395 = arith.mulf %394, %393 : vector<8x384xf32>
    %cst_153 = arith.constant 5.000000e-01 : f32
    %396 = vector.broadcast %cst_153 : f32 to vector<8x384xf32>
    %397 = arith.addf %395, %396 : vector<8x384xf32>
    %398 = vector.extract_strided_slice %397 {offsets = [0, 0], sizes = [8, 128], strides = [1, 1]} : vector<8x384xf32> to vector<8x128xf32>
    %399 = vector.extract_strided_slice %397 {offsets = [0, 128], sizes = [8, 128], strides = [1, 1]} : vector<8x384xf32> to vector<8x128xf32>
    %400 = vector.extract_strided_slice %397 {offsets = [0, 256], sizes = [8, 128], strides = [1, 1]} : vector<8x384xf32> to vector<8x128xf32>
    %401 = vector.extract_strided_slice %389 {offsets = [0, 384], sizes = [8, 128], strides = [1, 1]} : vector<8x512xf32> to vector<8x128xf32>
    %402 = math.tanh %401 : vector<8x128xf32>
    %403 = arith.mulf %399, %328 : vector<8x128xf32>
    %404 = arith.mulf %398, %402 : vector<8x128xf32>
    %405 = arith.addf %403, %404 : vector<8x128xf32>
    %406 = math.tanh %405 : vector<8x128xf32>
    %407 = arith.mulf %400, %406 : vector<8x128xf32>
    %408 = arith.truncf %407 : vector<8x128xf32> to vector<8x128xbf16>
    %c0_154 = arith.constant 0 : index
    %c0_155 = arith.constant 0 : index
    %409 = vector.load %arg4[%c0_154, %c0_155] : memref<128x512xbf16, #tpu.memory_space<vmem>>, vector<128x512xbf16>
    %cst_156 = arith.constant dense<0.000000e+00> : vector<8x512xf32>
    %410 = tpu.matmul %408, %409, %cst_156 {dimension_numbers = #tpu.dot_dimension_numbers<[1], [0], [0], [1], [0, 0, 1, 1], [], []>} : vector<8x128xbf16>, vector<128x512xbf16>, vector<8x512xf32> -> vector<8x512xf32>
    %c0_157 = arith.constant 0 : index
    %c0_158 = arith.constant 0 : index
    %411 = vector.load %arg6[%c0_157, %c0_158] : memref<1x512xf32, #tpu.memory_space<vmem>>, vector<1x512xf32>
    %412 = vector.broadcast %411 : vector<1x512xf32> to vector<8x512xf32>
    %413 = arith.addf %410, %412 : vector<8x512xf32>
    %c0_159 = arith.constant 0 : index
    %c0_160 = arith.constant 0 : index
    %414 = vector.load %arg5[%c0_159, %c0_160] : memref<128x512xbf16, #tpu.memory_space<vmem>>, vector<128x512xbf16>
    %cst_161 = arith.constant dense<0.000000e+00> : vector<8x512xf32>
    %415 = tpu.matmul %358, %414, %cst_161 {dimension_numbers = #tpu.dot_dimension_numbers<[1], [0], [0], [1], [0, 0, 1, 1], [], []>} : vector<8x128xbf16>, vector<128x512xbf16>, vector<8x512xf32> -> vector<8x512xf32>
    %416 = arith.addf %413, %415 : vector<8x512xf32>
    %417 = vector.extract_strided_slice %416 {offsets = [0, 0], sizes = [8, 384], strides = [1, 1]} : vector<8x512xf32> to vector<8x384xf32>
    %cst_162 = arith.constant 5.000000e-01 : f32
    %418 = vector.broadcast %cst_162 : f32 to vector<8x384xf32>
    %419 = arith.mulf %418, %417 : vector<8x384xf32>
    %420 = math.tanh %419 : vector<8x384xf32>
    %cst_163 = arith.constant 5.000000e-01 : f32
    %421 = vector.broadcast %cst_163 : f32 to vector<8x384xf32>
    %422 = arith.mulf %421, %420 : vector<8x384xf32>
    %cst_164 = arith.constant 5.000000e-01 : f32
    %423 = vector.broadcast %cst_164 : f32 to vector<8x384xf32>
    %424 = arith.addf %422, %423 : vector<8x384xf32>
    %425 = vector.extract_strided_slice %424 {offsets = [0, 0], sizes = [8, 128], strides = [1, 1]} : vector<8x384xf32> to vector<8x128xf32>
    %426 = vector.extract_strided_slice %424 {offsets = [0, 128], sizes = [8, 128], strides = [1, 1]} : vector<8x384xf32> to vector<8x128xf32>
    %427 = vector.extract_strided_slice %424 {offsets = [0, 256], sizes = [8, 128], strides = [1, 1]} : vector<8x384xf32> to vector<8x128xf32>
    %428 = vector.extract_strided_slice %416 {offsets = [0, 384], sizes = [8, 128], strides = [1, 1]} : vector<8x512xf32> to vector<8x128xf32>
    %429 = math.tanh %428 : vector<8x128xf32>
    %430 = arith.mulf %426, %355 : vector<8x128xf32>
    %431 = arith.mulf %425, %429 : vector<8x128xf32>
    %432 = arith.addf %430, %431 : vector<8x128xf32>
    %433 = math.tanh %432 : vector<8x128xf32>
    %434 = arith.mulf %427, %433 : vector<8x128xf32>
    %435 = arith.truncf %434 : vector<8x128xf32> to vector<8x128xbf16>
    %c0_165 = arith.constant 0 : index
    %c0_166 = arith.constant 0 : index
    %436 = vector.load %arg7[%c0_165, %c0_166] : memref<128x512xbf16, #tpu.memory_space<vmem>>, vector<128x512xbf16>
    %cst_167 = arith.constant dense<0.000000e+00> : vector<8x512xf32>
    %437 = tpu.matmul %435, %436, %cst_167 {dimension_numbers = #tpu.dot_dimension_numbers<[1], [0], [0], [1], [0, 0, 1, 1], [], []>} : vector<8x128xbf16>, vector<128x512xbf16>, vector<8x512xf32> -> vector<8x512xf32>
    %c0_168 = arith.constant 0 : index
    %c0_169 = arith.constant 0 : index
    %438 = vector.load %arg9[%c0_168, %c0_169] : memref<1x512xf32, #tpu.memory_space<vmem>>, vector<1x512xf32>
    %439 = vector.broadcast %438 : vector<1x512xf32> to vector<8x512xf32>
    %440 = arith.addf %437, %439 : vector<8x512xf32>
    %c0_170 = arith.constant 0 : index
    %c0_171 = arith.constant 0 : index
    %441 = vector.load %arg8[%c0_170, %c0_171] : memref<128x512xbf16, #tpu.memory_space<vmem>>, vector<128x512xbf16>
    %cst_172 = arith.constant dense<0.000000e+00> : vector<8x512xf32>
    %442 = tpu.matmul %385, %441, %cst_172 {dimension_numbers = #tpu.dot_dimension_numbers<[1], [0], [0], [1], [0, 0, 1, 1], [], []>} : vector<8x128xbf16>, vector<128x512xbf16>, vector<8x512xf32> -> vector<8x512xf32>
    %443 = arith.addf %440, %442 : vector<8x512xf32>
    %444 = vector.extract_strided_slice %443 {offsets = [0, 0], sizes = [8, 384], strides = [1, 1]} : vector<8x512xf32> to vector<8x384xf32>
    %cst_173 = arith.constant 5.000000e-01 : f32
    %445 = vector.broadcast %cst_173 : f32 to vector<8x384xf32>
    %446 = arith.mulf %445, %444 : vector<8x384xf32>
    %447 = math.tanh %446 : vector<8x384xf32>
    %cst_174 = arith.constant 5.000000e-01 : f32
    %448 = vector.broadcast %cst_174 : f32 to vector<8x384xf32>
    %449 = arith.mulf %448, %447 : vector<8x384xf32>
    %cst_175 = arith.constant 5.000000e-01 : f32
    %450 = vector.broadcast %cst_175 : f32 to vector<8x384xf32>
    %451 = arith.addf %449, %450 : vector<8x384xf32>
    %452 = vector.extract_strided_slice %451 {offsets = [0, 0], sizes = [8, 128], strides = [1, 1]} : vector<8x384xf32> to vector<8x128xf32>
    %453 = vector.extract_strided_slice %451 {offsets = [0, 128], sizes = [8, 128], strides = [1, 1]} : vector<8x384xf32> to vector<8x128xf32>
    %454 = vector.extract_strided_slice %451 {offsets = [0, 256], sizes = [8, 128], strides = [1, 1]} : vector<8x384xf32> to vector<8x128xf32>
    %455 = vector.extract_strided_slice %443 {offsets = [0, 384], sizes = [8, 128], strides = [1, 1]} : vector<8x512xf32> to vector<8x128xf32>
    %456 = math.tanh %455 : vector<8x128xf32>
    %457 = arith.mulf %453, %382 : vector<8x128xf32>
    %458 = arith.mulf %452, %456 : vector<8x128xf32>
    %459 = arith.addf %457, %458 : vector<8x128xf32>
    %460 = math.tanh %459 : vector<8x128xf32>
    %461 = arith.mulf %454, %460 : vector<8x128xf32>
    %462 = arith.truncf %461 : vector<8x128xf32> to vector<8x128xbf16>
    %c48 = arith.constant 48 : index
    %c0_176 = arith.constant 0 : index
    %463 = vector.load %arg13[%c48, %c0_176] : memref<64x512xf32, #tpu.memory_space<vmem>>, vector<8x512xf32>
    %c0_177 = arith.constant 0 : index
    %c0_178 = arith.constant 0 : index
    %464 = vector.load %arg2[%c0_177, %c0_178] : memref<128x512xbf16, #tpu.memory_space<vmem>>, vector<128x512xbf16>
    %cst_179 = arith.constant dense<0.000000e+00> : vector<8x512xf32>
    %465 = tpu.matmul %408, %464, %cst_179 {dimension_numbers = #tpu.dot_dimension_numbers<[1], [0], [0], [1], [0, 0, 1, 1], [], []>} : vector<8x128xbf16>, vector<128x512xbf16>, vector<8x512xf32> -> vector<8x512xf32>
    %466 = arith.addf %463, %465 : vector<8x512xf32>
    %467 = vector.extract_strided_slice %466 {offsets = [0, 0], sizes = [8, 384], strides = [1, 1]} : vector<8x512xf32> to vector<8x384xf32>
    %cst_180 = arith.constant 5.000000e-01 : f32
    %468 = vector.broadcast %cst_180 : f32 to vector<8x384xf32>
    %469 = arith.mulf %468, %467 : vector<8x384xf32>
    %470 = math.tanh %469 : vector<8x384xf32>
    %cst_181 = arith.constant 5.000000e-01 : f32
    %471 = vector.broadcast %cst_181 : f32 to vector<8x384xf32>
    %472 = arith.mulf %471, %470 : vector<8x384xf32>
    %cst_182 = arith.constant 5.000000e-01 : f32
    %473 = vector.broadcast %cst_182 : f32 to vector<8x384xf32>
    %474 = arith.addf %472, %473 : vector<8x384xf32>
    %475 = vector.extract_strided_slice %474 {offsets = [0, 0], sizes = [8, 128], strides = [1, 1]} : vector<8x384xf32> to vector<8x128xf32>
    %476 = vector.extract_strided_slice %474 {offsets = [0, 128], sizes = [8, 128], strides = [1, 1]} : vector<8x384xf32> to vector<8x128xf32>
    %477 = vector.extract_strided_slice %474 {offsets = [0, 256], sizes = [8, 128], strides = [1, 1]} : vector<8x384xf32> to vector<8x128xf32>
    %478 = vector.extract_strided_slice %466 {offsets = [0, 384], sizes = [8, 128], strides = [1, 1]} : vector<8x512xf32> to vector<8x128xf32>
    %479 = math.tanh %478 : vector<8x128xf32>
    %480 = arith.mulf %476, %405 : vector<8x128xf32>
    %481 = arith.mulf %475, %479 : vector<8x128xf32>
    %482 = arith.addf %480, %481 : vector<8x128xf32>
    %483 = math.tanh %482 : vector<8x128xf32>
    %484 = arith.mulf %477, %483 : vector<8x128xf32>
    %485 = arith.truncf %484 : vector<8x128xf32> to vector<8x128xbf16>
    %c0_183 = arith.constant 0 : index
    %c0_184 = arith.constant 0 : index
    %486 = vector.load %arg4[%c0_183, %c0_184] : memref<128x512xbf16, #tpu.memory_space<vmem>>, vector<128x512xbf16>
    %cst_185 = arith.constant dense<0.000000e+00> : vector<8x512xf32>
    %487 = tpu.matmul %485, %486, %cst_185 {dimension_numbers = #tpu.dot_dimension_numbers<[1], [0], [0], [1], [0, 0, 1, 1], [], []>} : vector<8x128xbf16>, vector<128x512xbf16>, vector<8x512xf32> -> vector<8x512xf32>
    %c0_186 = arith.constant 0 : index
    %c0_187 = arith.constant 0 : index
    %488 = vector.load %arg6[%c0_186, %c0_187] : memref<1x512xf32, #tpu.memory_space<vmem>>, vector<1x512xf32>
    %489 = vector.broadcast %488 : vector<1x512xf32> to vector<8x512xf32>
    %490 = arith.addf %487, %489 : vector<8x512xf32>
    %c0_188 = arith.constant 0 : index
    %c0_189 = arith.constant 0 : index
    %491 = vector.load %arg5[%c0_188, %c0_189] : memref<128x512xbf16, #tpu.memory_space<vmem>>, vector<128x512xbf16>
    %cst_190 = arith.constant dense<0.000000e+00> : vector<8x512xf32>
    %492 = tpu.matmul %435, %491, %cst_190 {dimension_numbers = #tpu.dot_dimension_numbers<[1], [0], [0], [1], [0, 0, 1, 1], [], []>} : vector<8x128xbf16>, vector<128x512xbf16>, vector<8x512xf32> -> vector<8x512xf32>
    %493 = arith.addf %490, %492 : vector<8x512xf32>
    %494 = vector.extract_strided_slice %493 {offsets = [0, 0], sizes = [8, 384], strides = [1, 1]} : vector<8x512xf32> to vector<8x384xf32>
    %cst_191 = arith.constant 5.000000e-01 : f32
    %495 = vector.broadcast %cst_191 : f32 to vector<8x384xf32>
    %496 = arith.mulf %495, %494 : vector<8x384xf32>
    %497 = math.tanh %496 : vector<8x384xf32>
    %cst_192 = arith.constant 5.000000e-01 : f32
    %498 = vector.broadcast %cst_192 : f32 to vector<8x384xf32>
    %499 = arith.mulf %498, %497 : vector<8x384xf32>
    %cst_193 = arith.constant 5.000000e-01 : f32
    %500 = vector.broadcast %cst_193 : f32 to vector<8x384xf32>
    %501 = arith.addf %499, %500 : vector<8x384xf32>
    %502 = vector.extract_strided_slice %501 {offsets = [0, 0], sizes = [8, 128], strides = [1, 1]} : vector<8x384xf32> to vector<8x128xf32>
    %503 = vector.extract_strided_slice %501 {offsets = [0, 128], sizes = [8, 128], strides = [1, 1]} : vector<8x384xf32> to vector<8x128xf32>
    %504 = vector.extract_strided_slice %501 {offsets = [0, 256], sizes = [8, 128], strides = [1, 1]} : vector<8x384xf32> to vector<8x128xf32>
    %505 = vector.extract_strided_slice %493 {offsets = [0, 384], sizes = [8, 128], strides = [1, 1]} : vector<8x512xf32> to vector<8x128xf32>
    %506 = math.tanh %505 : vector<8x128xf32>
    %507 = arith.mulf %503, %432 : vector<8x128xf32>
    %508 = arith.mulf %502, %506 : vector<8x128xf32>
    %509 = arith.addf %507, %508 : vector<8x128xf32>
    %510 = math.tanh %509 : vector<8x128xf32>
    %511 = arith.mulf %504, %510 : vector<8x128xf32>
    %512 = arith.truncf %511 : vector<8x128xf32> to vector<8x128xbf16>
    %c0_194 = arith.constant 0 : index
    %c0_195 = arith.constant 0 : index
    %513 = vector.load %arg7[%c0_194, %c0_195] : memref<128x512xbf16, #tpu.memory_space<vmem>>, vector<128x512xbf16>
    %cst_196 = arith.constant dense<0.000000e+00> : vector<8x512xf32>
    %514 = tpu.matmul %512, %513, %cst_196 {dimension_numbers = #tpu.dot_dimension_numbers<[1], [0], [0], [1], [0, 0, 1, 1], [], []>} : vector<8x128xbf16>, vector<128x512xbf16>, vector<8x512xf32> -> vector<8x512xf32>
    %c0_197 = arith.constant 0 : index
    %c0_198 = arith.constant 0 : index
    %515 = vector.load %arg9[%c0_197, %c0_198] : memref<1x512xf32, #tpu.memory_space<vmem>>, vector<1x512xf32>
    %516 = vector.broadcast %515 : vector<1x512xf32> to vector<8x512xf32>
    %517 = arith.addf %514, %516 : vector<8x512xf32>
    %c0_199 = arith.constant 0 : index
    %c0_200 = arith.constant 0 : index
    %518 = vector.load %arg8[%c0_199, %c0_200] : memref<128x512xbf16, #tpu.memory_space<vmem>>, vector<128x512xbf16>
    %cst_201 = arith.constant dense<0.000000e+00> : vector<8x512xf32>
    %519 = tpu.matmul %462, %518, %cst_201 {dimension_numbers = #tpu.dot_dimension_numbers<[1], [0], [0], [1], [0, 0, 1, 1], [], []>} : vector<8x128xbf16>, vector<128x512xbf16>, vector<8x512xf32> -> vector<8x512xf32>
    %520 = arith.addf %517, %519 : vector<8x512xf32>
    %521 = vector.extract_strided_slice %520 {offsets = [0, 0], sizes = [8, 384], strides = [1, 1]} : vector<8x512xf32> to vector<8x384xf32>
    %cst_202 = arith.constant 5.000000e-01 : f32
    %522 = vector.broadcast %cst_202 : f32 to vector<8x384xf32>
    %523 = arith.mulf %522, %521 : vector<8x384xf32>
    %524 = math.tanh %523 : vector<8x384xf32>
    %cst_203 = arith.constant 5.000000e-01 : f32
    %525 = vector.broadcast %cst_203 : f32 to vector<8x384xf32>
    %526 = arith.mulf %525, %524 : vector<8x384xf32>
    %cst_204 = arith.constant 5.000000e-01 : f32
    %527 = vector.broadcast %cst_204 : f32 to vector<8x384xf32>
    %528 = arith.addf %526, %527 : vector<8x384xf32>
    %529 = vector.extract_strided_slice %528 {offsets = [0, 0], sizes = [8, 128], strides = [1, 1]} : vector<8x384xf32> to vector<8x128xf32>
    %530 = vector.extract_strided_slice %528 {offsets = [0, 128], sizes = [8, 128], strides = [1, 1]} : vector<8x384xf32> to vector<8x128xf32>
    %531 = vector.extract_strided_slice %528 {offsets = [0, 256], sizes = [8, 128], strides = [1, 1]} : vector<8x384xf32> to vector<8x128xf32>
    %532 = vector.extract_strided_slice %520 {offsets = [0, 384], sizes = [8, 128], strides = [1, 1]} : vector<8x512xf32> to vector<8x128xf32>
    %533 = math.tanh %532 : vector<8x128xf32>
    %534 = arith.mulf %530, %459 : vector<8x128xf32>
    %535 = arith.mulf %529, %533 : vector<8x128xf32>
    %536 = arith.addf %534, %535 : vector<8x128xf32>
    %537 = math.tanh %536 : vector<8x128xf32>
    %538 = arith.mulf %531, %537 : vector<8x128xf32>
    %539 = arith.truncf %538 : vector<8x128xf32> to vector<8x128xbf16>
    %c56 = arith.constant 56 : index
    %c0_205 = arith.constant 0 : index
    %540 = vector.load %arg13[%c56, %c0_205] : memref<64x512xf32, #tpu.memory_space<vmem>>, vector<8x512xf32>
    %c0_206 = arith.constant 0 : index
    %c0_207 = arith.constant 0 : index
    %541 = vector.load %arg2[%c0_206, %c0_207] : memref<128x512xbf16, #tpu.memory_space<vmem>>, vector<128x512xbf16>
    %cst_208 = arith.constant dense<0.000000e+00> : vector<8x512xf32>
    %542 = tpu.matmul %485, %541, %cst_208 {dimension_numbers = #tpu.dot_dimension_numbers<[1], [0], [0], [1], [0, 0, 1, 1], [], []>} : vector<8x128xbf16>, vector<128x512xbf16>, vector<8x512xf32> -> vector<8x512xf32>
    %543 = arith.addf %540, %542 : vector<8x512xf32>
    %544 = vector.extract_strided_slice %543 {offsets = [0, 0], sizes = [8, 384], strides = [1, 1]} : vector<8x512xf32> to vector<8x384xf32>
    %cst_209 = arith.constant 5.000000e-01 : f32
    %545 = vector.broadcast %cst_209 : f32 to vector<8x384xf32>
    %546 = arith.mulf %545, %544 : vector<8x384xf32>
    %547 = math.tanh %546 : vector<8x384xf32>
    %cst_210 = arith.constant 5.000000e-01 : f32
    %548 = vector.broadcast %cst_210 : f32 to vector<8x384xf32>
    %549 = arith.mulf %548, %547 : vector<8x384xf32>
    %cst_211 = arith.constant 5.000000e-01 : f32
    %550 = vector.broadcast %cst_211 : f32 to vector<8x384xf32>
    %551 = arith.addf %549, %550 : vector<8x384xf32>
    %552 = vector.extract_strided_slice %551 {offsets = [0, 0], sizes = [8, 128], strides = [1, 1]} : vector<8x384xf32> to vector<8x128xf32>
    %553 = vector.extract_strided_slice %551 {offsets = [0, 128], sizes = [8, 128], strides = [1, 1]} : vector<8x384xf32> to vector<8x128xf32>
    %554 = vector.extract_strided_slice %551 {offsets = [0, 256], sizes = [8, 128], strides = [1, 1]} : vector<8x384xf32> to vector<8x128xf32>
    %555 = vector.extract_strided_slice %543 {offsets = [0, 384], sizes = [8, 128], strides = [1, 1]} : vector<8x512xf32> to vector<8x128xf32>
    %556 = math.tanh %555 : vector<8x128xf32>
    %557 = arith.mulf %553, %482 : vector<8x128xf32>
    %558 = arith.mulf %552, %556 : vector<8x128xf32>
    %559 = arith.addf %557, %558 : vector<8x128xf32>
    %560 = math.tanh %559 : vector<8x128xf32>
    %561 = arith.mulf %554, %560 : vector<8x128xf32>
    %562 = arith.truncf %561 : vector<8x128xf32> to vector<8x128xbf16>
    %c0_212 = arith.constant 0 : index
    %c0_213 = arith.constant 0 : index
    %563 = vector.load %arg4[%c0_212, %c0_213] : memref<128x512xbf16, #tpu.memory_space<vmem>>, vector<128x512xbf16>
    %cst_214 = arith.constant dense<0.000000e+00> : vector<8x512xf32>
    %564 = tpu.matmul %562, %563, %cst_214 {dimension_numbers = #tpu.dot_dimension_numbers<[1], [0], [0], [1], [0, 0, 1, 1], [], []>} : vector<8x128xbf16>, vector<128x512xbf16>, vector<8x512xf32> -> vector<8x512xf32>
    %c0_215 = arith.constant 0 : index
    %c0_216 = arith.constant 0 : index
    %565 = vector.load %arg6[%c0_215, %c0_216] : memref<1x512xf32, #tpu.memory_space<vmem>>, vector<1x512xf32>
    %566 = vector.broadcast %565 : vector<1x512xf32> to vector<8x512xf32>
    %567 = arith.addf %564, %566 : vector<8x512xf32>
    %c0_217 = arith.constant 0 : index
    %c0_218 = arith.constant 0 : index
    %568 = vector.load %arg5[%c0_217, %c0_218] : memref<128x512xbf16, #tpu.memory_space<vmem>>, vector<128x512xbf16>
    %cst_219 = arith.constant dense<0.000000e+00> : vector<8x512xf32>
    %569 = tpu.matmul %512, %568, %cst_219 {dimension_numbers = #tpu.dot_dimension_numbers<[1], [0], [0], [1], [0, 0, 1, 1], [], []>} : vector<8x128xbf16>, vector<128x512xbf16>, vector<8x512xf32> -> vector<8x512xf32>
    %570 = arith.addf %567, %569 : vector<8x512xf32>
    %571 = vector.extract_strided_slice %570 {offsets = [0, 0], sizes = [8, 384], strides = [1, 1]} : vector<8x512xf32> to vector<8x384xf32>
    %cst_220 = arith.constant 5.000000e-01 : f32
    %572 = vector.broadcast %cst_220 : f32 to vector<8x384xf32>
    %573 = arith.mulf %572, %571 : vector<8x384xf32>
    %574 = math.tanh %573 : vector<8x384xf32>
    %cst_221 = arith.constant 5.000000e-01 : f32
    %575 = vector.broadcast %cst_221 : f32 to vector<8x384xf32>
    %576 = arith.mulf %575, %574 : vector<8x384xf32>
    %cst_222 = arith.constant 5.000000e-01 : f32
    %577 = vector.broadcast %cst_222 : f32 to vector<8x384xf32>
    %578 = arith.addf %576, %577 : vector<8x384xf32>
    %579 = vector.extract_strided_slice %578 {offsets = [0, 0], sizes = [8, 128], strides = [1, 1]} : vector<8x384xf32> to vector<8x128xf32>
    %580 = vector.extract_strided_slice %578 {offsets = [0, 128], sizes = [8, 128], strides = [1, 1]} : vector<8x384xf32> to vector<8x128xf32>
    %581 = vector.extract_strided_slice %578 {offsets = [0, 256], sizes = [8, 128], strides = [1, 1]} : vector<8x384xf32> to vector<8x128xf32>
    %582 = vector.extract_strided_slice %570 {offsets = [0, 384], sizes = [8, 128], strides = [1, 1]} : vector<8x512xf32> to vector<8x128xf32>
    %583 = math.tanh %582 : vector<8x128xf32>
    %584 = arith.mulf %580, %509 : vector<8x128xf32>
    %585 = arith.mulf %579, %583 : vector<8x128xf32>
    %586 = arith.addf %584, %585 : vector<8x128xf32>
    %587 = math.tanh %586 : vector<8x128xf32>
    %588 = arith.mulf %581, %587 : vector<8x128xf32>
    %589 = arith.truncf %588 : vector<8x128xf32> to vector<8x128xbf16>
    %c0_223 = arith.constant 0 : index
    %c0_224 = arith.constant 0 : index
    %590 = vector.load %arg7[%c0_223, %c0_224] : memref<128x512xbf16, #tpu.memory_space<vmem>>, vector<128x512xbf16>
    %cst_225 = arith.constant dense<0.000000e+00> : vector<8x512xf32>
    %591 = tpu.matmul %589, %590, %cst_225 {dimension_numbers = #tpu.dot_dimension_numbers<[1], [0], [0], [1], [0, 0, 1, 1], [], []>} : vector<8x128xbf16>, vector<128x512xbf16>, vector<8x512xf32> -> vector<8x512xf32>
    %c0_226 = arith.constant 0 : index
    %c0_227 = arith.constant 0 : index
    %592 = vector.load %arg9[%c0_226, %c0_227] : memref<1x512xf32, #tpu.memory_space<vmem>>, vector<1x512xf32>
    %593 = vector.broadcast %592 : vector<1x512xf32> to vector<8x512xf32>
    %594 = arith.addf %591, %593 : vector<8x512xf32>
    %c0_228 = arith.constant 0 : index
    %c0_229 = arith.constant 0 : index
    %595 = vector.load %arg8[%c0_228, %c0_229] : memref<128x512xbf16, #tpu.memory_space<vmem>>, vector<128x512xbf16>
    %cst_230 = arith.constant dense<0.000000e+00> : vector<8x512xf32>
    %596 = tpu.matmul %539, %595, %cst_230 {dimension_numbers = #tpu.dot_dimension_numbers<[1], [0], [0], [1], [0, 0, 1, 1], [], []>} : vector<8x128xbf16>, vector<128x512xbf16>, vector<8x512xf32> -> vector<8x512xf32>
    %597 = arith.addf %594, %596 : vector<8x512xf32>
    %598 = vector.extract_strided_slice %597 {offsets = [0, 0], sizes = [8, 384], strides = [1, 1]} : vector<8x512xf32> to vector<8x384xf32>
    %cst_231 = arith.constant 5.000000e-01 : f32
    %599 = vector.broadcast %cst_231 : f32 to vector<8x384xf32>
    %600 = arith.mulf %599, %598 : vector<8x384xf32>
    %601 = math.tanh %600 : vector<8x384xf32>
    %cst_232 = arith.constant 5.000000e-01 : f32
    %602 = vector.broadcast %cst_232 : f32 to vector<8x384xf32>
    %603 = arith.mulf %602, %601 : vector<8x384xf32>
    %cst_233 = arith.constant 5.000000e-01 : f32
    %604 = vector.broadcast %cst_233 : f32 to vector<8x384xf32>
    %605 = arith.addf %603, %604 : vector<8x384xf32>
    %606 = vector.extract_strided_slice %605 {offsets = [0, 0], sizes = [8, 128], strides = [1, 1]} : vector<8x384xf32> to vector<8x128xf32>
    %607 = vector.extract_strided_slice %605 {offsets = [0, 128], sizes = [8, 128], strides = [1, 1]} : vector<8x384xf32> to vector<8x128xf32>
    %608 = vector.extract_strided_slice %605 {offsets = [0, 256], sizes = [8, 128], strides = [1, 1]} : vector<8x384xf32> to vector<8x128xf32>
    %609 = vector.extract_strided_slice %597 {offsets = [0, 384], sizes = [8, 128], strides = [1, 1]} : vector<8x512xf32> to vector<8x128xf32>
    %610 = math.tanh %609 : vector<8x128xf32>
    %611 = arith.mulf %607, %536 : vector<8x128xf32>
    %612 = arith.mulf %606, %610 : vector<8x128xf32>
    %613 = arith.addf %611, %612 : vector<8x128xf32>
    %614 = math.tanh %613 : vector<8x128xf32>
    %615 = arith.mulf %608, %614 : vector<8x128xf32>
    %616 = arith.truncf %615 : vector<8x128xf32> to vector<8x128xbf16>
    %c0_234 = arith.constant 0 : index
    %c0_235 = arith.constant 0 : index
    %617 = vector.load %arg10[%c0_234, %c0_235] : memref<128x128xbf16, #tpu.memory_space<vmem>>, vector<128x128xbf16>
    %cst_236 = arith.constant dense<0.000000e+00> : vector<8x128xf32>
    %618 = tpu.matmul %616, %617, %cst_236 {dimension_numbers = #tpu.dot_dimension_numbers<[1], [0], [0], [1], [0, 0, 1, 1], [], []>} : vector<8x128xbf16>, vector<128x128xbf16>, vector<8x128xf32> -> vector<8x128xf32>
    %c0_237 = arith.constant 0 : index
    %c0_238 = arith.constant 0 : index
    %619 = vector.load %arg11[%c0_237, %c0_238] : memref<1x128xf32, #tpu.memory_space<vmem>>, vector<1x128xf32>
    %620 = vector.broadcast %619 : vector<1x128xf32> to vector<8x128xf32>
    %621 = arith.addf %618, %620 : vector<8x128xf32>
    %c0_239 = arith.constant 0 : index
    %c0_240 = arith.constant 0 : index
    %622 = vector.load %arg12[%c0_239, %c0_240] : memref<8x128xf32, #tpu.memory_space<vmem>>, vector<8x128xf32>
    tpu.vector_store %arg12[%c0_239, %c0_240], %621 {strides = array<i32>} : memref<8x128xf32, #tpu.memory_space<vmem>>, vector<8x128xf32>,
    return
  }
}

</mosaic_0001>

<llo_original>
// kernel: lstm_model_forward.1
$region0: #{lstm_model_forward.1}
  #allocation0 [shape = 'u32[]', space=smem, size = 0x4, offset = 0x4, fixed_abs, tag = 'smem constant byte address 0x4 - core index']
  #allocation1 [shape = 'u32[144,128]{1,0:T(1,128)}', space=vmem, size = 0x12000, scoped, tag = 'internal scratch']
  #allocation2 [shape = 'f32[64,512]{1,0:T(8,128)}', space=vmem, size = 0x20000, scoped, tag = 'scratch operand']
  %s0 = inlined_call_operand.vmem [shape: bf16[64,128], index: 0, kind: input, shape index: {}]
  %s1 = inlined_call_operand.hbm [shape: bf16[128,512], index: 1, kind: input, shape index: {}]
  %s2 = inlined_call_operand.hbm [shape: bf16[128,512], index: 2, kind: input, shape index: {}]
  %s3 = inlined_call_operand.vmem [shape: f32[1,512], index: 3, kind: input, shape index: {}]
  %s4 = inlined_call_operand.hbm [shape: bf16[128,512], index: 4, kind: input, shape index: {}]
  %s5 = inlined_call_operand.hbm [shape: bf16[128,512], index: 5, kind: input, shape index: {}]
  %s6 = inlined_call_operand.vmem [shape: f32[1,512], index: 6, kind: input, shape index: {}]
  %s7 = inlined_call_operand.hbm [shape: bf16[128,512], index: 7, kind: input, shape index: {}]
  %s8 = inlined_call_operand.hbm [shape: bf16[128,512], index: 8, kind: input, shape index: {}]
  %s9 = inlined_call_operand.vmem [shape: f32[1,512], index: 9, kind: input, shape index: {}]
  %s10 = inlined_call_operand.vmem [shape: bf16[128,128], index: 10, kind: input, shape index: {}]
  %s11 = inlined_call_operand.vmem [shape: f32[1,128], index: 11, kind: input, shape index: {}]
  %s12 = inlined_call_operand.vmem [shape: f32[8,128], index: 12, kind: output, shape index: {}]
  %s13 = sld [smem:[#allocation0]]
  $region82: #{lstm_model_forward.1} parent=0
    _
  %s15 = ssub.s32 1, %s13
  %s16 = scalar_select 0, %s15, %s13
  $region1: #{lstm_model_forward.1} parent=0
    #allocation3 [shape = 'u8[131072]{0}', space=vmem, size = 0x20000, scoped, tag = 'input window, operand 1, single buffered']
    #allocation4 [shape = 's32[1]{0}', space=sflag, size = 0x4, scoped, tag = 'scoped memory for lstm_model_forward.1']
    #allocation5 [shape = 'u8[131072]{0}', space=vmem, size = 0x20000, scoped, tag = 'input window, operand 2, single buffered']
    #allocation6 [shape = 's32[1]{0}', space=sflag, size = 0x4, scoped, tag = 'scoped memory for lstm_model_forward.1']
    #allocation7 [shape = 'u8[131072]{0}', space=vmem, size = 0x20000, scoped, tag = 'input window, operand 4, single buffered']
    #allocation8 [shape = 'u8[131072]{0}', space=vmem, size = 0x20000, scoped, tag = 'input window, operand 5, single buffered']
    #allocation9 [shape = 's32[1]{0}', space=sflag, size = 0x4, scoped, tag = 'scoped memory for lstm_model_forward.1']
    #allocation10 [shape = 'u8[131072]{0}', space=vmem, size = 0x20000, scoped, tag = 'input window, operand 7, single buffered']
    #allocation11 [shape = 'u8[131072]{0}', space=vmem, size = 0x20000, scoped, tag = 'input window, operand 8, single buffered']
    #allocation12 [shape = 's32[1]{0}', space=sflag, size = 0x4, scoped, tag = 'scoped memory for lstm_model_forward.1']
    %17 = vsyncpa [#allocation4], 0
    %18 = vsyncpa [#allocation6], 0
    %19 = vsyncpa [#allocation9], 0
    %20 = vsyncpa [#allocation12], 0
    // Predicated region
    $region2: #{lstm_model_forward.1} parent=1 // pred_check
      _
    $region3: #{lstm_model_forward.1} parent=1 // pred_check_branch
      %22 = sbr.rel (0) target = $region5
    $region4: #{lstm_model_forward.1} parent=1 // pred_region
      _
    $region5: #{lstm_model_forward.1} parent=1 // pred_fallthru
      _
    // Predicated region
    $region6: #{lstm_model_forward.1} parent=1 // pred_check
      _
    $region7: #{lstm_model_forward.1} parent=1 // pred_check_branch
      %24 = sbr.rel (0) target = $region9
    $region8: #{lstm_model_forward.1} parent=1 // pred_region
      %s26 = ssub.s32 4096, 4096
      %27 = vsyncadd [#allocation4], %s26
      %s28 = sshll.u32 [#allocation3], 4
      %s29 = int_to_ptr.vmem [resolvable:$true] %s28
      %34 = dma.hbm_to_vmem [thread:$0]  %s1, 4096, %s29, [#allocation4], 256, 256, 16
    $region9: #{lstm_model_forward.1} parent=1 // pred_fallthru
      _
    // Predicated region
    $region10: #{lstm_model_forward.1} parent=1 // pred_check
      _
    $region11: #{lstm_model_forward.1} parent=1 // pred_check_branch
      %36 = sbr.rel (0) target = $region13
    $region12: #{lstm_model_forward.1} parent=1 // pred_region
      %s38 = ssub.s32 4096, 4096
      %39 = vsyncadd [#allocation6], %s38
      %s40 = sshll.u32 [#allocation5], 4
      %s41 = int_to_ptr.vmem [resolvable:$true] %s40
      %46 = dma.hbm_to_vmem [thread:$0]  %s2, 4096, %s41, [#allocation6], 256, 256, 16
    $region13: #{lstm_model_forward.1} parent=1 // pred_fallthru
      _
    // Predicated region
    $region14: #{lstm_model_forward.1} parent=1 // pred_check
      _
    $region15: #{lstm_model_forward.1} parent=1 // pred_check_branch
      %48 = sbr.rel (0) target = $region17
    $region16: #{lstm_model_forward.1} parent=1 // pred_region
      _
    $region17: #{lstm_model_forward.1} parent=1 // pred_fallthru
      _
    // Predicated region
    $region18: #{lstm_model_forward.1} parent=1 // pred_check
      _
    $region19: #{lstm_model_forward.1} parent=1 // pred_check_branch
      %50 = sbr.rel (0) target = $region21
    $region20: #{lstm_model_forward.1} parent=1 // pred_region
      %s52 = ssub.s32 4096, 4096
      %53 = vsyncadd [#allocation6], %s52
      %s54 = sshll.u32 [#allocation7], 4
      %s55 = int_to_ptr.vmem [resolvable:$true] %s54
      %60 = dma.hbm_to_vmem [thread:$0]  %s4, 4096, %s55, [#allocation6], 256, 256, 16
    $region21: #{lstm_model_forward.1} parent=1 // pred_fallthru
      _
    // Predicated region
    $region22: #{lstm_model_forward.1} parent=1 // pred_check
      _
    $region23: #{lstm_model_forward.1} parent=1 // pred_check_branch
      %62 = sbr.rel (0) target = $region25
    $region24: #{lstm_model_forward.1} parent=1 // pred_region
      %s64 = ssub.s32 4096, 4096
      %65 = vsyncadd [#allocation9], %s64
      %s66 = sshll.u32 [#allocation8], 4
      %s67 = int_to_ptr.vmem [resolvable:$true] %s66
      %72 = dma.hbm_to_vmem [thread:$0]  %s5, 4096, %s67, [#allocation9], 256, 256, 16
    $region25: #{lstm_model_forward.1} parent=1 // pred_fallthru
      _
    // Predicated region
    $region26: #{lstm_model_forward.1} parent=1 // pred_check
      _
    $region27: #{lstm_model_forward.1} parent=1 // pred_check_branch
      %74 = sbr.rel (0) target = $region29
    $region28: #{lstm_model_forward.1} parent=1 // pred_region
      _
    $region29: #{lstm_model_forward.1} parent=1 // pred_fallthru
      _
    // Predicated region
    $region30: #{lstm_model_forward.1} parent=1 // pred_check
      _
    $region31: #{lstm_model_forward.1} parent=1 // pred_check_branch
      %76 = sbr.rel (0) target = $region33
    $region32: #{lstm_model_forward.1} parent=1 // pred_region
      %s78 = ssub.s32 4096, 4096
      %79 = vsyncadd [#allocation9], %s78
      %s80 = sshll.u32 [#allocation10], 4
      %s81 = int_to_ptr.vmem [resolvable:$true] %s80
      %86 = dma.hbm_to_vmem [thread:$0]  %s7, 4096, %s81, [#allocation9], 256, 256, 16
    $region33: #{lstm_model_forward.1} parent=1 // pred_fallthru
      _
    // Predicated region
    $region34: #{lstm_model_forward.1} parent=1 // pred_check
      _
    $region35: #{lstm_model_forward.1} parent=1 // pred_check_branch
      %88 = sbr.rel (0) target = $region37
    $region36: #{lstm_model_forward.1} parent=1 // pred_region
      %s90 = ssub.s32 4096, 4096
      %91 = vsyncadd [#allocation12], %s90
      %s92 = sshll.u32 [#allocation11], 4
      %s93 = int_to_ptr.vmem [resolvable:$true] %s92
      %98 = dma.hbm_to_vmem [thread:$0]  %s8, 4096, %s93, [#allocation12], 256, 256, 16
    $region37: #{lstm_model_forward.1} parent=1 // pred_fallthru
      _
    // Predicated region
    $region38: #{lstm_model_forward.1} parent=1 // pred_check
      _
    $region39: #{lstm_model_forward.1} parent=1 // pred_check_branch
      %100 = sbr.rel (0) target = $region41
    $region40: #{lstm_model_forward.1} parent=1 // pred_region
      _
    $region41: #{lstm_model_forward.1} parent=1 // pred_fallthru
      _
    // Predicated region
    $region42: #{lstm_model_forward.1} parent=1 // pred_check
      _
    $region43: #{lstm_model_forward.1} parent=1 // pred_check_branch
      %102 = sbr.rel (0) target = $region45
    $region44: #{lstm_model_forward.1} parent=1 // pred_region
      _
    $region45: #{lstm_model_forward.1} parent=1 // pred_fallthru
      _
    // Predicated region
    $region46: #{lstm_model_forward.1} parent=1 // pred_check
      _
    $region47: #{lstm_model_forward.1} parent=1 // pred_check_branch
      %104 = sbr.rel (0) target = $region49
    $region48: #{lstm_model_forward.1} parent=1 // pred_region
      _
    $region49: #{lstm_model_forward.1} parent=1 // pred_fallthru
      _
    // Predicated region
    $region50: #{lstm_model_forward.1} parent=1 // pred_check
      _
    $region51: #{lstm_model_forward.1} parent=1 // pred_check_branch
      %106 = sbr.rel (0) target = $region53
    $region52: #{lstm_model_forward.1} parent=1 // pred_region
      %107 = dma.done [#allocation4], 4096
    $region53: #{lstm_model_forward.1} parent=1 // pred_fallthru
      _
    // Predicated region
    $region54: #{lstm_model_forward.1} parent=1 // pred_check
      _
    $region55: #{lstm_model_forward.1} parent=1 // pred_check_branch
      %109 = sbr.rel (0) target = $region57
    $region56: #{lstm_model_forward.1} parent=1 // pred_region
      %110 = dma.done [#allocation6], 4096
    $region57: #{lstm_model_forward.1} parent=1 // pred_fallthru
      _
    // Predicated region
    $region58: #{lstm_model_forward.1} parent=1 // pred_check
      _
    $region59: #{lstm_model_forward.1} parent=1 // pred_check_branch
      %112 = sbr.rel (0) target = $region61
    $region60: #{lstm_model_forward.1} parent=1 // pred_region
      %113 = dma.done [#allocation6], 4096
    $region61: #{lstm_model_forward.1} parent=1 // pred_fallthru
      _
    // Predicated region
    $region62: #{lstm_model_forward.1} parent=1 // pred_check
      _
    $region63: #{lstm_model_forward.1} parent=1 // pred_check_branch
      %115 = sbr.rel (0) target = $region65
    $region64: #{lstm_model_forward.1} parent=1 // pred_region
      %116 = dma.done [#allocation9], 4096
    $region65: #{lstm_model_forward.1} parent=1 // pred_fallthru
      _
    // Predicated region
    $region66: #{lstm_model_forward.1} parent=1 // pred_check
      _
    $region67: #{lstm_model_forward.1} parent=1 // pred_check_branch
      %118 = sbr.rel (0) target = $region69
    $region68: #{lstm_model_forward.1} parent=1 // pred_region
      %119 = dma.done [#allocation9], 4096
    $region69: #{lstm_model_forward.1} parent=1 // pred_fallthru
      _
    // Predicated region
    $region70: #{lstm_model_forward.1} parent=1 // pred_check
      _
    $region71: #{lstm_model_forward.1} parent=1 // pred_check_branch
      %121 = sbr.rel (0) target = $region73
    $region72: #{lstm_model_forward.1} parent=1 // pred_region
      %122 = dma.done [#allocation12], 4096
    $region73: #{lstm_model_forward.1} parent=1 // pred_fallthru
      _
    %v124 = vld [vmem:[%s0] sm:$0xf]
    %v125 = vld [vmem:[%s0 + $0x4] sm:$0xf]
    %v126 = vld [vmem:[%s0 + $0x8] sm:$0xf]
    %v127 = vld [vmem:[%s0 + $0xc] sm:$0xf]
    %v128 = vld [vmem:[%s0 + $0x10] sm:$0xf]
    %v129 = vld [vmem:[%s0 + $0x14] sm:$0xf]
    %v130 = vld [vmem:[%s0 + $0x18] sm:$0xf]
    %v131 = vld [vmem:[%s0 + $0x1c] sm:$0xf]
    %v132 = vld [vmem:[#allocation3] sm:$0xff]
    %v133 = vld [vmem:[#allocation3 + $0x8] sm:$0xff]
    %v134 = vld [vmem:[#allocation3 + $0x10] sm:$0xff]
    %v135 = vld [vmem:[#allocation3 + $0x18] sm:$0xff]
    %v136 = vld [vmem:[#allocation3 + $0x20] sm:$0xff]
    %v137 = vld [vmem:[#allocation3 + $0x28] sm:$0xff]
    %v138 = vld [vmem:[#allocation3 + $0x30] sm:$0xff]
    %v139 = vld [vmem:[#allocation3 + $0x38] sm:$0xff]
    %v140 = vld [vmem:[#allocation3 + $0x40] sm:$0xff]
    %v141 = vld [vmem:[#allocation3 + $0x48] sm:$0xff]
    %v142 = vld [vmem:[#allocation3 + $0x50] sm:$0xff]
    %v143 = vld [vmem:[#allocation3 + $0x58] sm:$0xff]
    %v144 = vld [vmem:[#allocation3 + $0x60] sm:$0xff]
    %v145 = vld [vmem:[#allocation3 + $0x68] sm:$0xff]
    %v146 = vld [vmem:[#allocation3 + $0x70] sm:$0xff]
    %v147 = vld [vmem:[#allocation3 + $0x78] sm:$0xff]
    %v148 = vld [vmem:[#allocation3 + $0x80] sm:$0xff]
    %v149 = vld [vmem:[#allocation3 + $0x88] sm:$0xff]
    %v150 = vld [vmem:[#allocation3 + $0x90] sm:$0xff]
    %v151 = vld [vmem:[#allocation3 + $0x98] sm:$0xff]
    %v152 = vld [vmem:[#allocation3 + $0xa0] sm:$0xff]
    %v153 = vld [vmem:[#allocation3 + $0xa8] sm:$0xff]
    %v154 = vld [vmem:[#allocation3 + $0xb0] sm:$0xff]
    %v155 = vld [vmem:[#allocation3 + $0xb8] sm:$0xff]
    %v156 = vld [vmem:[#allocation3 + $0xc0] sm:$0xff]
    %v157 = vld [vmem:[#allocation3 + $0xc8] sm:$0xff]
    %v158 = vld [vmem:[#allocation3 + $0xd0] sm:$0xff]
    %v159 = vld [vmem:[#allocation3 + $0xd8] sm:$0xff]
    %v160 = vld [vmem:[#allocation3 + $0xe0] sm:$0xff]
    %v161 = vld [vmem:[#allocation3 + $0xe8] sm:$0xff]
    %v162 = vld [vmem:[#allocation3 + $0xf0] sm:$0xff]
    %v163 = vld [vmem:[#allocation3 + $0xf8] sm:$0xff]
    %v164 = vld [vmem:[%s3] sm:$0xf]
    %v166 = vlaneseq
    %v167 = vshrl.u32 %v166, 7
    %v168 = vsub.s32 0, %v167
    %v169 = vrot.slane %v164, %v168
    %v170 = vlaneseq
    %v171 = vshrl.u32 %v170, 7
    %v172 = vsub.s32 1, %v171
    %v173 = vrot.slane %v164, %v172
    %v174 = vlaneseq
    %v175 = vshrl.u32 %v174, 7
    %v176 = vsub.s32 2, %v175
    %v177 = vrot.slane %v164, %v176
    %v178 = vlaneseq
    %v179 = vshrl.u32 %v178, 7
    %v180 = vsub.s32 3, %v179
    %v181 = vrot.slane %v164, %v180
    %v194 = vunpack.c.l.b16 %v124
    %v195 = vunpack.c.l.b16 %v125
    %v196 = vunpack.c.l.b16 %v126
    %v197 = vunpack.c.l.b16 %v127
    %v198 = vunpack.c.l.b16 %v128
    %v199 = vunpack.c.l.b16 %v129
    %v200 = vunpack.c.l.b16 %v130
    %v201 = vunpack.c.l.b16 %v131
    %v202 = vpack.c.b16 %v195, %v194
    %v203 = vpack.c.b16 %v197, %v196
    %v204 = vpack.c.b16 %v199, %v198
    %v205 = vpack.c.b16 %v201, %v200
    %v242 = vunpack.c.l.b16 %v132
    %v243 = vunpack.c.h.b16 %v132
    %v244 = vunpack.c.l.b16 %v133
    %v245 = vunpack.c.h.b16 %v133
    %v246 = vunpack.c.l.b16 %v134
    %v247 = vunpack.c.h.b16 %v134
    %v248 = vunpack.c.l.b16 %v135
    %v249 = vunpack.c.h.b16 %v135
    %v250 = vunpack.c.l.b16 %v136
    %v251 = vunpack.c.h.b16 %v136
    %v252 = vunpack.c.l.b16 %v137
    %v253 = vunpack.c.h.b16 %v137
    %v254 = vunpack.c.l.b16 %v138
    %v255 = vunpack.c.h.b16 %v138
    %v256 = vunpack.c.l.b16 %v139
    %v257 = vunpack.c.h.b16 %v139
    %v258 = vunpack.c.l.b16 %v140
    %v259 = vunpack.c.h.b16 %v140
    %v260 = vunpack.c.l.b16 %v141
    %v261 = vunpack.c.h.b16 %v141
    %v262 = vunpack.c.l.b16 %v142
    %v263 = vunpack.c.h.b16 %v142
    %v264 = vunpack.c.l.b16 %v143
    %v265 = vunpack.c.h.b16 %v143
    %v266 = vunpack.c.l.b16 %v144
    %v267 = vunpack.c.h.b16 %v144
    %v268 = vunpack.c.l.b16 %v145
    %v269 = vunpack.c.h.b16 %v145
    %v270 = vunpack.c.l.b16 %v146
    %v271 = vunpack.c.h.b16 %v146
    %v272 = vunpack.c.l.b16 %v147
    %v273 = vunpack.c.h.b16 %v147
    %v274 = vunpack.c.l.b16 %v148
    %v275 = vunpack.c.h.b16 %v148
    %v276 = vunpack.c.l.b16 %v149
    %v277 = vunpack.c.h.b16 %v149
    %v278 = vunpack.c.l.b16 %v150
    %v279 = vunpack.c.h.b16 %v150
    %v280 = vunpack.c.l.b16 %v151
    %v281 = vunpack.c.h.b16 %v151
    %v282 = vunpack.c.l.b16 %v152
    %v283 = vunpack.c.h.b16 %v152
    %v284 = vunpack.c.l.b16 %v153
    %v285 = vunpack.c.h.b16 %v153
    %v286 = vunpack.c.l.b16 %v154
    %v287 = vunpack.c.h.b16 %v154
    %v288 = vunpack.c.l.b16 %v155
    %v289 = vunpack.c.h.b16 %v155
    %v290 = vunpack.c.l.b16 %v156
    %v291 = vunpack.c.h.b16 %v156
    %v292 = vunpack.c.l.b16 %v157
    %v293 = vunpack.c.h.b16 %v157
    %v294 = vunpack.c.l.b16 %v158
    %v295 = vunpack.c.h.b16 %v158
    %v296 = vunpack.c.l.b16 %v159
    %v297 = vunpack.c.h.b16 %v159
    %v298 = vunpack.c.l.b16 %v160
    %v299 = vunpack.c.h.b16 %v160
    %v300 = vunpack.c.l.b16 %v161
    %v301 = vunpack.c.h.b16 %v161
    %v302 = vunpack.c.l.b16 %v162
    %v303 = vunpack.c.h.b16 %v162
    %v304 = vunpack.c.l.b16 %v163
    %v305 = vunpack.c.h.b16 %v163
    %v306 = vpack.c.b16 %v246, %v242
    %v307 = vpack.c.b16 %v247, %v243
    %v308 = vpack.c.b16 %v248, %v244
    %v309 = vpack.c.b16 %v249, %v245
    %v310 = vpack.c.b16 %v254, %v250
    %v311 = vpack.c.b16 %v255, %v251
    %v312 = vpack.c.b16 %v256, %v252
    %v313 = vpack.c.b16 %v257, %v253
    %v314 = vpack.c.b16 %v262, %v258
    %v315 = vpack.c.b16 %v263, %v259
    %v316 = vpack.c.b16 %v264, %v260
    %v317 = vpack.c.b16 %v265, %v261
    %v318 = vpack.c.b16 %v270, %v266
    %v319 = vpack.c.b16 %v271, %v267
    %v320 = vpack.c.b16 %v272, %v268
    %v321 = vpack.c.b16 %v273, %v269
    %v322 = vpack.c.b16 %v278, %v274
    %v323 = vpack.c.b16 %v279, %v275
    %v324 = vpack.c.b16 %v280, %v276
    %v325 = vpack.c.b16 %v281, %v277
    %v326 = vpack.c.b16 %v286, %v282
    %v327 = vpack.c.b16 %v287, %v283
    %v328 = vpack.c.b16 %v288, %v284
    %v329 = vpack.c.b16 %v289, %v285
    %v330 = vpack.c.b16 %v294, %v290
    %v331 = vpack.c.b16 %v295, %v291
    %v332 = vpack.c.b16 %v296, %v292
    %v333 = vpack.c.b16 %v297, %v293
    %v334 = vpack.c.b16 %v302, %v298
    %v335 = vpack.c.b16 %v303, %v299
    %v336 = vpack.c.b16 %v304, %v300
    %v337 = vpack.c.b16 %v305, %v301
    %370 = vmatprep.subr.bf16.mxu0 %v307
    %371 = vmatpush1.bf16.msra.mxu0 %v306
    %372 = vmatprep.subr.bf16.mxu0 %v311
    %373 = vmatpush1.bf16.msra.mxu0 %v310
    %374 = vmatprep.subr.bf16.mxu0 %v315
    %375 = vmatpush1.bf16.msra.mxu0 %v314
    %376 = vmatprep.subr.bf16.mxu0 %v319
    %377 = vmatpush1.bf16.msra.mxu0 %v318
    %378 = vmatprep.subr.bf16.mxu0 %v323
    %379 = vmatpush1.bf16.msra.mxu0 %v322
    %380 = vmatprep.subr.bf16.mxu0 %v327
    %381 = vmatpush1.bf16.msra.mxu0 %v326
    %382 = vmatprep.subr.bf16.mxu0 %v331
    %383 = vmatpush1.bf16.msra.mxu0 %v330
    %384 = vmatprep.subr.bf16.mxu0 %v335
    %385 = vmatpush1.bf16.msra.mxu0 %v334
    %386 = vmatprep.subr.bf16.mxu0 0
    %387 = vmatpush1.bf16.msra.mxu0 0
    %388 = vmatprep.subr.bf16.mxu0 0
    %389 = vmatpush1.bf16.msra.mxu0 0
    %390 = vmatprep.subr.bf16.mxu0 0
    %391 = vmatpush1.bf16.msra.mxu0 0
    %392 = vmatprep.subr.bf16.mxu0 0
    %393 = vmatpush1.bf16.msra.mxu0 0
    %394 = vmatprep.subr.bf16.mxu0 0
    %395 = vmatpush1.bf16.msra.mxu0 0
    %396 = vmatprep.subr.bf16.mxu0 0
    %397 = vmatpush1.bf16.msra.mxu0 0
    %398 = vmatprep.subr.bf16.mxu0 0
    %399 = vmatpush1.bf16.msra.mxu0 0
    %400 = vmatprep.subr.bf16.mxu0 0
    %401 = vmatpush1.bf16.msra.mxu0 0
    %402 = vmatprep.mubr.bf16.mxu0 0
    %403 = vmatmul.mubr.bf16.gmra.mrb[0].mxu0 %v202
    %v404 = vpop.f32.mrb[0].mxu0
    %v405 = vadd.f32 %v169, %v404
    %v406 = vpop.f32.mrb[0].mxu0
    %v407 = vadd.f32 %v173, %v406
    %v408 = vpop.f32.mrb[0].mxu0
    %v409 = vadd.f32 %v169, %v408
    %v410 = vpop.f32.mrb[0].mxu0
    %v411 = vadd.f32 %v173, %v410
    %412 = vmatprep.mubr.bf16.mxu0 0
    %413 = vmatmul.mubr.bf16.gmra.mrb[0].mxu0 %v203
    %v414 = vpop.f32.mrb[0].mxu0
    %v415 = vadd.f32 %v169, %v414
    %v416 = vpop.f32.mrb[0].mxu0
    %v417 = vadd.f32 %v173, %v416
    %v418 = vpop.f32.mrb[0].mxu0
    %v419 = vadd.f32 %v169, %v418
    %v420 = vpop.f32.mrb[0].mxu0
    %v421 = vadd.f32 %v173, %v420
    %422 = vmatprep.mubr.bf16.mxu0 0
    %423 = vmatmul.mubr.bf16.gmra.mrb[0].mxu0 %v204
    %v424 = vpop.f32.mrb[0].mxu0
    %v425 = vadd.f32 %v169, %v424
    %v426 = vpop.f32.mrb[0].mxu0
    %v427 = vadd.f32 %v173, %v426
    %v428 = vpop.f32.mrb[0].mxu0
    %v429 = vadd.f32 %v169, %v428
    %v430 = vpop.f32.mrb[0].mxu0
    %v431 = vadd.f32 %v173, %v430
    %432 = vmatprep.mubr.bf16.mxu0 0
    %433 = vmatmul.mubr.bf16.gmra.mrb[0].mxu0 %v205
    %v434 = vpop.f32.mrb[0].mxu0
    %v435 = vadd.f32 %v169, %v434
    %v436 = vpop.f32.mrb[0].mxu0
    %v437 = vadd.f32 %v173, %v436
    %v438 = vpop.f32.mrb[0].mxu0
    %v439 = vadd.f32 %v169, %v438
    %v440 = vpop.f32.mrb[0].mxu0
    %v441 = vadd.f32 %v173, %v440
    %442 = vdwg.mxu0
    %443 = vmatprep.subr.bf16.mxu0 %v309
    %444 = vmatpush1.bf16.msra.mxu0 %v308
    %445 = vmatprep.subr.bf16.mxu0 %v313
    %446 = vmatpush1.bf16.msra.mxu0 %v312
    %447 = vmatprep.subr.bf16.mxu0 %v317
    %448 = vmatpush1.bf16.msra.mxu0 %v316
    %449 = vmatprep.subr.bf16.mxu0 %v321
    %450 = vmatpush1.bf16.msra.mxu0 %v320
    %451 = vmatprep.subr.bf16.mxu0 %v325
    %452 = vmatpush1.bf16.msra.mxu0 %v324
    %453 = vmatprep.subr.bf16.mxu0 %v329
    %454 = vmatpush1.bf16.msra.mxu0 %v328
    %455 = vmatprep.subr.bf16.mxu0 %v333
    %456 = vmatpush1.bf16.msra.mxu0 %v332
    %457 = vmatprep.subr.bf16.mxu0 %v337
    %458 = vmatpush1.bf16.msra.mxu0 %v336
    %459 = vmatprep.subr.bf16.mxu0 0
    %460 = vmatpush1.bf16.msra.mxu0 0
    %461 = vmatprep.subr.bf16.mxu0 0
    %462 = vmatpush1.bf16.msra.mxu0 0
    %463 = vmatprep.subr.bf16.mxu0 0
    %464 = vmatpush1.bf16.msra.mxu0 0
    %465 = vmatprep.subr.bf16.mxu0 0
    %466 = vmatpush1.bf16.msra.mxu0 0
    %467 = vmatprep.subr.bf16.mxu0 0
    %468 = vmatpush1.bf16.msra.mxu0 0
    %469 = vmatprep.subr.bf16.mxu0 0
    %470 = vmatpush1.bf16.msra.mxu0 0
    %471 = vmatprep.subr.bf16.mxu0 0
    %472 = vmatpush1.bf16.msra.mxu0 0
    %473 = vmatprep.subr.bf16.mxu0 0
    %474 = vmatpush1.bf16.msra.mxu0 0
    %475 = vmatprep.mubr.bf16.mxu0 0
    %476 = vmatmul.mubr.bf16.gmra.mrb[0].mxu0 %v202
    %v477 = vpop.f32.mrb[0].mxu0
    %v478 = vadd.f32 %v177, %v477
    %v479 = vpop.f32.mrb[0].mxu0
    %v480 = vadd.f32 %v181, %v479
    %v481 = vpop.f32.mrb[0].mxu0
    %v482 = vadd.f32 %v177, %v481
    %v483 = vpop.f32.mrb[0].mxu0
    %v484 = vadd.f32 %v181, %v483
    %485 = vmatprep.mubr.bf16.mxu0 0
    %486 = vmatmul.mubr.bf16.gmra.mrb[0].mxu0 %v203
    %v487 = vpop.f32.mrb[0].mxu0
    %v488 = vadd.f32 %v177, %v487
    %v489 = vpop.f32.mrb[0].mxu0
    %v490 = vadd.f32 %v181, %v489
    %v491 = vpop.f32.mrb[0].mxu0
    %v492 = vadd.f32 %v177, %v491
    %v493 = vpop.f32.mrb[0].mxu0
    %v494 = vadd.f32 %v181, %v493
    %495 = vmatprep.mubr.bf16.mxu0 0
    %496 = vmatmul.mubr.bf16.gmra.mrb[0].mxu0 %v204
    %v497 = vpop.f32.mrb[0].mxu0
    %v498 = vadd.f32 %v177, %v497
    %v499 = vpop.f32.mrb[0].mxu0
    %v500 = vadd.f32 %v181, %v499
    %v501 = vpop.f32.mrb[0].mxu0
    %v502 = vadd.f32 %v177, %v501
    %v503 = vpop.f32.mrb[0].mxu0
    %v504 = vadd.f32 %v181, %v503
    %505 = vmatprep.mubr.bf16.mxu0 0
    %506 = vmatmul.mubr.bf16.gmra.mrb[0].mxu0 %v205
    %v507 = vpop.f32.mrb[0].mxu0
    %v508 = vadd.f32 %v177, %v507
    %v509 = vpop.f32.mrb[0].mxu0
    %v510 = vadd.f32 %v181, %v509
    %v511 = vpop.f32.mrb[0].mxu0
    %v512 = vadd.f32 %v177, %v511
    %v513 = vpop.f32.mrb[0].mxu0
    %v514 = vadd.f32 %v181, %v513
    %515 = vdwg.mxu0
    %516 = vst [vmem:[#allocation2] sm:$0xff] %v405
    %517 = vst [vmem:[#allocation2 + $0x8] sm:$0xff] %v407
    %518 = vst [vmem:[#allocation2 + $0x10] sm:$0xff] %v478
    %519 = vst [vmem:[#allocation2 + $0x18] sm:$0xff] %v480
    %520 = vst [vmem:[#allocation2 + $0x20] sm:$0xff] %v409
    %521 = vst [vmem:[#allocation2 + $0x28] sm:$0xff] %v411
    %522 = vst [vmem:[#allocation2 + $0x30] sm:$0xff] %v482
    %523 = vst [vmem:[#allocation2 + $0x38] sm:$0xff] %v484
    %524 = vst [vmem:[#allocation2 + $0x40] sm:$0xff] %v415
    %525 = vst [vmem:[#allocation2 + $0x48] sm:$0xff] %v417
    %526 = vst [vmem:[#allocation2 + $0x50] sm:$0xff] %v488
    %527 = vst [vmem:[#allocation2 + $0x58] sm:$0xff] %v490
    %528 = vst [vmem:[#allocation2 + $0x60] sm:$0xff] %v419
    %529 = vst [vmem:[#allocation2 + $0x68] sm:$0xff] %v421
    %530 = vst [vmem:[#allocation2 + $0x70] sm:$0xff] %v492
    %531 = vst [vmem:[#allocation2 + $0x78] sm:$0xff] %v494
    %532 = vst [vmem:[#allocation2 + $0x80] sm:$0xff] %v425
    %533 = vst [vmem:[#allocation2 + $0x88] sm:$0xff] %v427
    %534 = vst [vmem:[#allocation2 + $0x90] sm:$0xff] %v498
    %535 = vst [vmem:[#allocation2 + $0x98] sm:$0xff] %v500
    %536 = vst [vmem:[#allocation2 + $0xa0] sm:$0xff] %v429
    %537 = vst [vmem:[#allocation2 + $0xa8] sm:$0xff] %v431
    %538 = vst [vmem:[#allocation2 + $0xb0] sm:$0xff] %v502
    %539 = vst [vmem:[#allocation2 + $0xb8] sm:$0xff] %v504
    %540 = vst [vmem:[#allocation2 + $0xc0] sm:$0xff] %v435
    %541 = vst [vmem:[#allocation2 + $0xc8] sm:$0xff] %v437
    %542 = vst [vmem:[#allocation2 + $0xd0] sm:$0xff] %v508
    %543 = vst [vmem:[#allocation2 + $0xd8] sm:$0xff] %v510
    %544 = vst [vmem:[#allocation2 + $0xe0] sm:$0xff] %v439
    %545 = vst [vmem:[#allocation2 + $0xe8] sm:$0xff] %v441
    %546 = vst [vmem:[#allocation2 + $0xf0] sm:$0xff] %v512
    %547 = vst [vmem:[#allocation2 + $0xf8] sm:$0xff] %v514
    %v548 = vld [vmem:[#allocation2] sm:$0xff]
    %v549 = vld [vmem:[#allocation2 + $0x8] sm:$0xff]
    %v550 = vld [vmem:[#allocation2 + $0x10] sm:$0xff]
    %v551 = vld [vmem:[#allocation2 + $0x18] sm:$0xff]
    %v552 = vmul.f32 %v548, 0.5
    %v553 = vmul.f32 %v549, 0.5
    %v554 = vmul.f32 %v550, 0.5
    %v555 = vtanh.pop %v552
    %v556 = vtanh.pop %v553
    %v557 = vtanh.pop %v554
    %v558 = vmul.f32 %v555, 0.5
    %v559 = vmul.f32 %v556, 0.5
    %v560 = vmul.f32 %v557, 0.5
    %v561 = vadd.f32 %v558, 0.5
    %v562 = vadd.f32 %v559, 0.5
    %v563 = vadd.f32 %v560, 0.5
    %v564 = vtanh.pop %v551
    %v565 = vmul.f32 %v562, 0.0
    %v566 = vmul.f32 %v561, %v564
    %v567 = vadd.f32 %v565, %v566
    %v568 = vtanh.pop %v567
    %v569 = vmul.f32 %v563, %v568
    %v570 = vpack.c.bf16 %v569, %v569
    %v571 = vld [vmem:[#allocation7] sm:$0xff]
    %v572 = vld [vmem:[#allocation7 + $0x8] sm:$0xff]
    %v573 = vld [vmem:[#allocation7 + $0x10] sm:$0xff]
    %v574 = vld [vmem:[#allocation7 + $0x18] sm:$0xff]
    %v575 = vld [vmem:[#allocation7 + $0x20] sm:$0xff]
    %v576 = vld [vmem:[#allocation7 + $0x28] sm:$0xff]
    %v577 = vld [vmem:[#allocation7 + $0x30] sm:$0xff]
    %v578 = vld [vmem:[#allocation7 + $0x38] sm:$0xff]
    %v579 = vld [vmem:[#allocation7 + $0x40] sm:$0xff]
    %v580 = vld [vmem:[#allocation7 + $0x48] sm:$0xff]
    %v581 = vld [vmem:[#allocation7 + $0x50] sm:$0xff]
    %v582 = vld [vmem:[#allocation7 + $0x58] sm:$0xff]
    %v583 = vld [vmem:[#allocation7 + $0x60] sm:$0xff]
    %v584 = vld [vmem:[#allocation7 + $0x68] sm:$0xff]
    %v585 = vld [vmem:[#allocation7 + $0x70] sm:$0xff]
    %v586 = vld [vmem:[#allocation7 + $0x78] sm:$0xff]
    %v587 = vld [vmem:[#allocation7 + $0x80] sm:$0xff]
    %v588 = vld [vmem:[#allocation7 + $0x88] sm:$0xff]
    %v589 = vld [vmem:[#allocation7 + $0x90] sm:$0xff]
    %v590 = vld [vmem:[#allocation7 + $0x98] sm:$0xff]
    %v591 = vld [vmem:[#allocation7 + $0xa0] sm:$0xff]
    %v592 = vld [vmem:[#allocation7 + $0xa8] sm:$0xff]
    %v593 = vld [vmem:[#allocation7 + $0xb0] sm:$0xff]
    %v594 = vld [vmem:[#allocation7 + $0xb8] sm:$0xff]
    %v595 = vld [vmem:[#allocation7 + $0xc0] sm:$0xff]
    %v596 = vld [vmem:[#allocation7 + $0xc8] sm:$0xff]
    %v597 = vld [vmem:[#allocation7 + $0xd0] sm:$0xff]
    %v598 = vld [vmem:[#allocation7 + $0xd8] sm:$0xff]
    %v599 = vld [vmem:[#allocation7 + $0xe0] sm:$0xff]
    %v600 = vld [vmem:[#allocation7 + $0xe8] sm:$0xff]
    %v601 = vld [vmem:[#allocation7 + $0xf0] sm:$0xff]
    %v602 = vld [vmem:[#allocation7 + $0xf8] sm:$0xff]
    %v603 = vld [vmem:[%s6] sm:$0xf]
    %v605 = vlaneseq
    %v606 = vshrl.u32 %v605, 7
    %v607 = vsub.s32 0, %v606
    %v608 = vrot.slane %v603, %v607
    %v609 = vlaneseq
    %v610 = vshrl.u32 %v609, 7
    %v611 = vsub.s32 1, %v610
    %v612 = vrot.slane %v603, %v611
    %v613 = vlaneseq
    %v614 = vshrl.u32 %v613, 7
    %v615 = vsub.s32 2, %v614
    %v616 = vrot.slane %v603, %v615
    %v617 = vlaneseq
    %v618 = vshrl.u32 %v617, 7
    %v619 = vsub.s32 3, %v618
    %v620 = vrot.slane %v603, %v619
    %v657 = vunpack.c.l.b16 %v571
    %v658 = vunpack.c.h.b16 %v571
    %v659 = vunpack.c.l.b16 %v572
    %v660 = vunpack.c.h.b16 %v572
    %v661 = vunpack.c.l.b16 %v573
    %v662 = vunpack.c.h.b16 %v573
    %v663 = vunpack.c.l.b16 %v574
    %v664 = vunpack.c.h.b16 %v574
    %v665 = vunpack.c.l.b16 %v575
    %v666 = vunpack.c.h.b16 %v575
    %v667 = vunpack.c.l.b16 %v576
    %v668 = vunpack.c.h.b16 %v576
    %v669 = vunpack.c.l.b16 %v577
    %v670 = vunpack.c.h.b16 %v577
    %v671 = vunpack.c.l.b16 %v578
    %v672 = vunpack.c.h.b16 %v578
    %v673 = vunpack.c.l.b16 %v579
    %v674 = vunpack.c.h.b16 %v579
    %v675 = vunpack.c.l.b16 %v580
    %v676 = vunpack.c.h.b16 %v580
    %v677 = vunpack.c.l.b16 %v581
    %v678 = vunpack.c.h.b16 %v581
    %v679 = vunpack.c.l.b16 %v582
    %v680 = vunpack.c.h.b16 %v582
    %v681 = vunpack.c.l.b16 %v583
    %v682 = vunpack.c.h.b16 %v583
    %v683 = vunpack.c.l.b16 %v584
    %v684 = vunpack.c.h.b16 %v584
    %v685 = vunpack.c.l.b16 %v585
    %v686 = vunpack.c.h.b16 %v585
    %v687 = vunpack.c.l.b16 %v586
    %v688 = vunpack.c.h.b16 %v586
    %v689 = vunpack.c.l.b16 %v587
    %v690 = vunpack.c.h.b16 %v587
    %v691 = vunpack.c.l.b16 %v588
    %v692 = vunpack.c.h.b16 %v588
    %v693 = vunpack.c.l.b16 %v589
    %v694 = vunpack.c.h.b16 %v589
    %v695 = vunpack.c.l.b16 %v590
    %v696 = vunpack.c.h.b16 %v590
    %v697 = vunpack.c.l.b16 %v591
    %v698 = vunpack.c.h.b16 %v591
    %v699 = vunpack.c.l.b16 %v592
    %v700 = vunpack.c.h.b16 %v592
    %v701 = vunpack.c.l.b16 %v593
    %v702 = vunpack.c.h.b16 %v593
    %v703 = vunpack.c.l.b16 %v594
    %v704 = vunpack.c.h.b16 %v594
    %v705 = vunpack.c.l.b16 %v595
    %v706 = vunpack.c.h.b16 %v595
    %v707 = vunpack.c.l.b16 %v596
    %v708 = vunpack.c.h.b16 %v596
    %v709 = vunpack.c.l.b16 %v597
    %v710 = vunpack.c.h.b16 %v597
    %v711 = vunpack.c.l.b16 %v598
    %v712 = vunpack.c.h.b16 %v598
    %v713 = vunpack.c.l.b16 %v599
    %v714 = vunpack.c.h.b16 %v599
    %v715 = vunpack.c.l.b16 %v600
    %v716 = vunpack.c.h.b16 %v600
    %v717 = vunpack.c.l.b16 %v601
    %v718 = vunpack.c.h.b16 %v601
    %v719 = vunpack.c.l.b16 %v602
    %v720 = vunpack.c.h.b16 %v602
    %v721 = vpack.c.b16 %v661, %v657
    %v722 = vpack.c.b16 %v662, %v658
    %v723 = vpack.c.b16 %v663, %v659
    %v724 = vpack.c.b16 %v664, %v660
    %v725 = vpack.c.b16 %v669, %v665
    %v726 = vpack.c.b16 %v670, %v666
    %v727 = vpack.c.b16 %v671, %v667
    %v728 = vpack.c.b16 %v672, %v668
    %v729 = vpack.c.b16 %v677, %v673
    %v730 = vpack.c.b16 %v678, %v674
    %v731 = vpack.c.b16 %v679, %v675
    %v732 = vpack.c.b16 %v680, %v676
    %v733 = vpack.c.b16 %v685, %v681
    %v734 = vpack.c.b16 %v686, %v682
    %v735 = vpack.c.b16 %v687, %v683
    %v736 = vpack.c.b16 %v688, %v684
    %v737 = vpack.c.b16 %v693, %v689
    %v738 = vpack.c.b16 %v694, %v690
    %v739 = vpack.c.b16 %v695, %v691
    %v740 = vpack.c.b16 %v696, %v692
    %v741 = vpack.c.b16 %v701, %v697
    %v742 = vpack.c.b16 %v702, %v698
    %v743 = vpack.c.b16 %v703, %v699
    %v744 = vpack.c.b16 %v704, %v700
    %v745 = vpack.c.b16 %v709, %v705
    %v746 = vpack.c.b16 %v710, %v706
    %v747 = vpack.c.b16 %v711, %v707
    %v748 = vpack.c.b16 %v712, %v708
    %v749 = vpack.c.b16 %v717, %v713
    %v750 = vpack.c.b16 %v718, %v714
    %v751 = vpack.c.b16 %v719, %v715
    %v752 = vpack.c.b16 %v720, %v716
    %785 = vmatprep.subr.bf16.mxu0 %v722
    %786 = vmatpush1.bf16.msra.mxu0 %v721
    %787 = vmatprep.subr.bf16.mxu0 %v726
    %788 = vmatpush1.bf16.msra.mxu0 %v725
    %789 = vmatprep.subr.bf16.mxu0 %v730
    %790 = vmatpush1.bf16.msra.mxu0 %v729
    %791 = vmatprep.subr.bf16.mxu0 %v734
    %792 = vmatpush1.bf16.msra.mxu0 %v733
    %793 = vmatprep.subr.bf16.mxu0 %v738
    %794 = vmatpush1.bf16.msra.mxu0 %v737
    %795 = vmatprep.subr.bf16.mxu0 %v742
    %796 = vmatpush1.bf16.msra.mxu0 %v741
    %797 = vmatprep.subr.bf16.mxu0 %v746
    %798 = vmatpush1.bf16.msra.mxu0 %v745
    %799 = vmatprep.subr.bf16.mxu0 %v750
    %800 = vmatpush1.bf16.msra.mxu0 %v749
    %801 = vmatprep.subr.bf16.mxu0 0
    %802 = vmatpush1.bf16.msra.mxu0 0
    %803 = vmatprep.subr.bf16.mxu0 0
    %804 = vmatpush1.bf16.msra.mxu0 0
    %805 = vmatprep.subr.bf16.mxu0 0
    %806 = vmatpush1.bf16.msra.mxu0 0
    %807 = vmatprep.subr.bf16.mxu0 0
    %808 = vmatpush1.bf16.msra.mxu0 0
    %809 = vmatprep.subr.bf16.mxu0 0
    %810 = vmatpush1.bf16.msra.mxu0 0
    %811 = vmatprep.subr.bf16.mxu0 0
    %812 = vmatpush1.bf16.msra.mxu0 0
    %813 = vmatprep.subr.bf16.mxu0 0
    %814 = vmatpush1.bf16.msra.mxu0 0
    %815 = vmatprep.subr.bf16.mxu0 0
    %816 = vmatpush1.bf16.msra.mxu0 0
    %817 = vmatprep.mubr.bf16.mxu0 0
    %818 = vmatmul.mubr.bf16.gmra.mrb[0].mxu0 %v570
    %v819 = vpop.f32.mrb[0].mxu0
    %v820 = vadd.f32 %v608, %v819
    %v821 = vpop.f32.mrb[0].mxu0
    %v822 = vadd.f32 %v612, %v821
    %v823 = vpop.f32.mrb[0].mxu0
    %v824 = vpop.f32.mrb[0].mxu0
    %825 = vdwg.mxu0
    %826 = vmatprep.subr.bf16.mxu0 %v724
    %827 = vmatpush1.bf16.msra.mxu0 %v723
    %828 = vmatprep.subr.bf16.mxu0 %v728
    %829 = vmatpush1.bf16.msra.mxu0 %v727
    %830 = vmatprep.subr.bf16.mxu0 %v732
    %831 = vmatpush1.bf16.msra.mxu0 %v731
    %832 = vmatprep.subr.bf16.mxu0 %v736
    %833 = vmatpush1.bf16.msra.mxu0 %v735
    %834 = vmatprep.subr.bf16.mxu0 %v740
    %835 = vmatpush1.bf16.msra.mxu0 %v739
    %836 = vmatprep.subr.bf16.mxu0 %v744
    %837 = vmatpush1.bf16.msra.mxu0 %v743
    %838 = vmatprep.subr.bf16.mxu0 %v748
    %839 = vmatpush1.bf16.msra.mxu0 %v747
    %840 = vmatprep.subr.bf16.mxu0 %v752
    %841 = vmatpush1.bf16.msra.mxu0 %v751
    %842 = vmatprep.subr.bf16.mxu0 0
    %843 = vmatpush1.bf16.msra.mxu0 0
    %844 = vmatprep.subr.bf16.mxu0 0
    %845 = vmatpush1.bf16.msra.mxu0 0
    %846 = vmatprep.subr.bf16.mxu0 0
    %847 = vmatpush1.bf16.msra.mxu0 0
    %848 = vmatprep.subr.bf16.mxu0 0
    %849 = vmatpush1.bf16.msra.mxu0 0
    %850 = vmatprep.subr.bf16.mxu0 0
    %851 = vmatpush1.bf16.msra.mxu0 0
    %852 = vmatprep.subr.bf16.mxu0 0
    %853 = vmatpush1.bf16.msra.mxu0 0
    %854 = vmatprep.subr.bf16.mxu0 0
    %855 = vmatpush1.bf16.msra.mxu0 0
    %856 = vmatprep.subr.bf16.mxu0 0
    %857 = vmatpush1.bf16.msra.mxu0 0
    %858 = vmatprep.mubr.bf16.mxu0 0
    %859 = vmatmul.mubr.bf16.gmra.mrb[0].mxu0 %v570
    %v860 = vpop.f32.mrb[0].mxu0
    %v861 = vadd.f32 %v616, %v860
    %v862 = vpop.f32.mrb[0].mxu0
    %v863 = vadd.f32 %v620, %v862
    %v864 = vpop.f32.mrb[0].mxu0
    %v865 = vpop.f32.mrb[0].mxu0
    %866 = vdwg.mxu0
    %v867 = vmul.f32 %v820, 0.5
    %v868 = vmul.f32 %v822, 0.5
    %v869 = vmul.f32 %v861, 0.5
    %v870 = vtanh.pop %v867
    %v871 = vtanh.pop %v868
    %v872 = vtanh.pop %v869
    %v873 = vmul.f32 %v870, 0.5
    %v874 = vmul.f32 %v871, 0.5
    %v875 = vmul.f32 %v872, 0.5
    %v876 = vadd.f32 %v873, 0.5
    %v877 = vadd.f32 %v874, 0.5
    %v878 = vadd.f32 %v875, 0.5
    %v879 = vtanh.pop %v863
    %v880 = vmul.f32 %v877, 0.0
    %v881 = vmul.f32 %v876, %v879
    %v882 = vadd.f32 %v880, %v881
    %v883 = vtanh.pop %v882
    %v884 = vmul.f32 %v878, %v883
    %v885 = vpack.c.bf16 %v884, %v884
    %v886 = vld [vmem:[#allocation10] sm:$0xff]
    %v887 = vld [vmem:[#allocation10 + $0x8] sm:$0xff]
    %v888 = vld [vmem:[#allocation10 + $0x10] sm:$0xff]
    %v889 = vld [vmem:[#allocation10 + $0x18] sm:$0xff]
    %v890 = vld [vmem:[#allocation10 + $0x20] sm:$0xff]
    %v891 = vld [vmem:[#allocation10 + $0x28] sm:$0xff]
    %v892 = vld [vmem:[#allocation10 + $0x30] sm:$0xff]
    %v893 = vld [vmem:[#allocation10 + $0x38] sm:$0xff]
    %v894 = vld [vmem:[#allocation10 + $0x40] sm:$0xff]
    %v895 = vld [vmem:[#allocation10 + $0x48] sm:$0xff]
    %v896 = vld [vmem:[#allocation10 + $0x50] sm:$0xff]
    %v897 = vld [vmem:[#allocation10 + $0x58] sm:$0xff]
    %v898 = vld [vmem:[#allocation10 + $0x60] sm:$0xff]
    %v899 = vld [vmem:[#allocation10 + $0x68] sm:$0xff]
    %v900 = vld [vmem:[#allocation10 + $0x70] sm:$0xff]
    %v901 = vld [vmem:[#allocation10 + $0x78] sm:$0xff]
    %v902 = vld [vmem:[#allocation10 + $0x80] sm:$0xff]
    %v903 = vld [vmem:[#allocation10 + $0x88] sm:$0xff]
    %v904 = vld [vmem:[#allocation10 + $0x90] sm:$0xff]
    %v905 = vld [vmem:[#allocation10 + $0x98] sm:$0xff]
    %v906 = vld [vmem:[#allocation10 + $0xa0] sm:$0xff]
    %v907 = vld [vmem:[#allocation10 + $0xa8] sm:$0xff]
    %v908 = vld [vmem:[#allocation10 + $0xb0] sm:$0xff]
    %v909 = vld [vmem:[#allocation10 + $0xb8] sm:$0xff]
    %v910 = vld [vmem:[#allocation10 + $0xc0] sm:$0xff]
    %v911 = vld [vmem:[#allocation10 + $0xc8] sm:$0xff]
    %v912 = vld [vmem:[#allocation10 + $0xd0] sm:$0xff]
    %v913 = vld [vmem:[#allocation10 + $0xd8] sm:$0xff]
    %v914 = vld [vmem:[#allocation10 + $0xe0] sm:$0xff]
    %v915 = vld [vmem:[#allocation10 + $0xe8] sm:$0xff]
    %v916 = vld [vmem:[#allocation10 + $0xf0] sm:$0xff]
    %v917 = vld [vmem:[#allocation10 + $0xf8] sm:$0xff]
    %v918 = vld [vmem:[%s9] sm:$0xf]
    %v920 = vlaneseq
    %v921 = vshrl.u32 %v920, 7
    %v922 = vsub.s32 0, %v921
    %v923 = vrot.slane %v918, %v922
    %v924 = vlaneseq
    %v925 = vshrl.u32 %v924, 7
    %v926 = vsub.s32 1, %v925
    %v927 = vrot.slane %v918, %v926
    %v928 = vlaneseq
    %v929 = vshrl.u32 %v928, 7
    %v930 = vsub.s32 2, %v929
    %v931 = vrot.slane %v918, %v930
    %v932 = vlaneseq
    %v933 = vshrl.u32 %v932, 7
    %v934 = vsub.s32 3, %v933
    %v935 = vrot.slane %v918, %v934
    %v972 = vunpack.c.l.b16 %v886
    %v973 = vunpack.c.h.b16 %v886
    %v974 = vunpack.c.l.b16 %v887
    %v975 = vunpack.c.h.b16 %v887
    %v976 = vunpack.c.l.b16 %v888
    %v977 = vunpack.c.h.b16 %v888
    %v978 = vunpack.c.l.b16 %v889
    %v979 = vunpack.c.h.b16 %v889
    %v980 = vunpack.c.l.b16 %v890
    %v981 = vunpack.c.h.b16 %v890
    %v982 = vunpack.c.l.b16 %v891
    %v983 = vunpack.c.h.b16 %v891
    %v984 = vunpack.c.l.b16 %v892
    %v985 = vunpack.c.h.b16 %v892
    %v986 = vunpack.c.l.b16 %v893
    %v987 = vunpack.c.h.b16 %v893
    %v988 = vunpack.c.l.b16 %v894
    %v989 = vunpack.c.h.b16 %v894
    %v990 = vunpack.c.l.b16 %v895
    %v991 = vunpack.c.h.b16 %v895
    %v992 = vunpack.c.l.b16 %v896
    %v993 = vunpack.c.h.b16 %v896
    %v994 = vunpack.c.l.b16 %v897
    %v995 = vunpack.c.h.b16 %v897
    %v996 = vunpack.c.l.b16 %v898
    %v997 = vunpack.c.h.b16 %v898
    %v998 = vunpack.c.l.b16 %v899
    %v999 = vunpack.c.h.b16 %v899
    %v1000 = vunpack.c.l.b16 %v900
    %v1001 = vunpack.c.h.b16 %v900
    %v1002 = vunpack.c.l.b16 %v901
    %v1003 = vunpack.c.h.b16 %v901
    %v1004 = vunpack.c.l.b16 %v902
    %v1005 = vunpack.c.h.b16 %v902
    %v1006 = vunpack.c.l.b16 %v903
    %v1007 = vunpack.c.h.b16 %v903
    %v1008 = vunpack.c.l.b16 %v904
    %v1009 = vunpack.c.h.b16 %v904
    %v1010 = vunpack.c.l.b16 %v905
    %v1011 = vunpack.c.h.b16 %v905
    %v1012 = vunpack.c.l.b16 %v906
    %v1013 = vunpack.c.h.b16 %v906
    %v1014 = vunpack.c.l.b16 %v907
    %v1015 = vunpack.c.h.b16 %v907
    %v1016 = vunpack.c.l.b16 %v908
    %v1017 = vunpack.c.h.b16 %v908
    %v1018 = vunpack.c.l.b16 %v909
    %v1019 = vunpack.c.h.b16 %v909
    %v1020 = vunpack.c.l.b16 %v910
    %v1021 = vunpack.c.h.b16 %v910
    %v1022 = vunpack.c.l.b16 %v911
    %v1023 = vunpack.c.h.b16 %v911
    %v1024 = vunpack.c.l.b16 %v912
    %v1025 = vunpack.c.h.b16 %v912
    %v1026 = vunpack.c.l.b16 %v913
    %v1027 = vunpack.c.h.b16 %v913
    %v1028 = vunpack.c.l.b16 %v914
    %v1029 = vunpack.c.h.b16 %v914
    %v1030 = vunpack.c.l.b16 %v915
    %v1031 = vunpack.c.h.b16 %v915
    %v1032 = vunpack.c.l.b16 %v916
    %v1033 = vunpack.c.h.b16 %v916
    %v1034 = vunpack.c.l.b16 %v917
    %v1035 = vunpack.c.h.b16 %v917
    %v1036 = vpack.c.b16 %v976, %v972
    %v1037 = vpack.c.b16 %v977, %v973
    %v1038 = vpack.c.b16 %v978, %v974
    %v1039 = vpack.c.b16 %v979, %v975
    %v1040 = vpack.c.b16 %v984, %v980
    %v1041 = vpack.c.b16 %v985, %v981
    %v1042 = vpack.c.b16 %v986, %v982
    %v1043 = vpack.c.b16 %v987, %v983
    %v1044 = vpack.c.b16 %v992, %v988
    %v1045 = vpack.c.b16 %v993, %v989
    %v1046 = vpack.c.b16 %v994, %v990
    %v1047 = vpack.c.b16 %v995, %v991
    %v1048 = vpack.c.b16 %v1000, %v996
    %v1049 = vpack.c.b16 %v1001, %v997
    %v1050 = vpack.c.b16 %v1002, %v998
    %v1051 = vpack.c.b16 %v1003, %v999
    %v1052 = vpack.c.b16 %v1008, %v1004
    %v1053 = vpack.c.b16 %v1009, %v1005
    %v1054 = vpack.c.b16 %v1010, %v1006
    %v1055 = vpack.c.b16 %v1011, %v1007
    %v1056 = vpack.c.b16 %v1016, %v1012
    %v1057 = vpack.c.b16 %v1017, %v1013
    %v1058 = vpack.c.b16 %v1018, %v1014
    %v1059 = vpack.c.b16 %v1019, %v1015
    %v1060 = vpack.c.b16 %v1024, %v1020
    %v1061 = vpack.c.b16 %v1025, %v1021
    %v1062 = vpack.c.b16 %v1026, %v1022
    %v1063 = vpack.c.b16 %v1027, %v1023
    %v1064 = vpack.c.b16 %v1032, %v1028
    %v1065 = vpack.c.b16 %v1033, %v1029
    %v1066 = vpack.c.b16 %v1034, %v1030
    %v1067 = vpack.c.b16 %v1035, %v1031
    %1100 = vmatprep.subr.bf16.mxu0 %v1037
    %1101 = vmatpush1.bf16.msra.mxu0 %v1036
    %1102 = vmatprep.subr.bf16.mxu0 %v1041
    %1103 = vmatpush1.bf16.msra.mxu0 %v1040
    %1104 = vmatprep.subr.bf16.mxu0 %v1045
    %1105 = vmatpush1.bf16.msra.mxu0 %v1044
    %1106 = vmatprep.subr.bf16.mxu0 %v1049
    %1107 = vmatpush1.bf16.msra.mxu0 %v1048
    %1108 = vmatprep.subr.bf16.mxu0 %v1053
    %1109 = vmatpush1.bf16.msra.mxu0 %v1052
    %1110 = vmatprep.subr.bf16.mxu0 %v1057
    %1111 = vmatpush1.bf16.msra.mxu0 %v1056
    %1112 = vmatprep.subr.bf16.mxu0 %v1061
    %1113 = vmatpush1.bf16.msra.mxu0 %v1060
    %1114 = vmatprep.subr.bf16.mxu0 %v1065
    %1115 = vmatpush1.bf16.msra.mxu0 %v1064
    %1116 = vmatprep.subr.bf16.mxu0 0
    %1117 = vmatpush1.bf16.msra.mxu0 0
    %1118 = vmatprep.subr.bf16.mxu0 0
    %1119 = vmatpush1.bf16.msra.mxu0 0
    %1120 = vmatprep.subr.bf16.mxu0 0
    %1121 = vmatpush1.bf16.msra.mxu0 0
    %1122 = vmatprep.subr.bf16.mxu0 0
    %1123 = vmatpush1.bf16.msra.mxu0 0
    %1124 = vmatprep.subr.bf16.mxu0 0
    %1125 = vmatpush1.bf16.msra.mxu0 0
    %1126 = vmatprep.subr.bf16.mxu0 0
    %1127 = vmatpush1.bf16.msra.mxu0 0
    %1128 = vmatprep.subr.bf16.mxu0 0
    %1129 = vmatpush1.bf16.msra.mxu0 0
    %1130 = vmatprep.subr.bf16.mxu0 0
    %1131 = vmatpush1.bf16.msra.mxu0 0
    %1132 = vmatprep.mubr.bf16.mxu0 0
    %1133 = vmatmul.mubr.bf16.gmra.mrb[0].mxu0 %v885
    %v1134 = vpop.f32.mrb[0].mxu0
    %v1135 = vadd.f32 %v923, %v1134
    %v1136 = vpop.f32.mrb[0].mxu0
    %v1137 = vadd.f32 %v927, %v1136
    %v1138 = vpop.f32.mrb[0].mxu0
    %v1139 = vpop.f32.mrb[0].mxu0
    %1140 = vdwg.mxu0
    %1141 = vmatprep.subr.bf16.mxu0 %v1039
    %1142 = vmatpush1.bf16.msra.mxu0 %v1038
    %1143 = vmatprep.subr.bf16.mxu0 %v1043
    %1144 = vmatpush1.bf16.msra.mxu0 %v1042
    %1145 = vmatprep.subr.bf16.mxu0 %v1047
    %1146 = vmatpush1.bf16.msra.mxu0 %v1046
    %1147 = vmatprep.subr.bf16.mxu0 %v1051
    %1148 = vmatpush1.bf16.msra.mxu0 %v1050
    %1149 = vmatprep.subr.bf16.mxu0 %v1055
    %1150 = vmatpush1.bf16.msra.mxu0 %v1054
    %1151 = vmatprep.subr.bf16.mxu0 %v1059
    %1152 = vmatpush1.bf16.msra.mxu0 %v1058
    %1153 = vmatprep.subr.bf16.mxu0 %v1063
    %1154 = vmatpush1.bf16.msra.mxu0 %v1062
    %1155 = vmatprep.subr.bf16.mxu0 %v1067
    %1156 = vmatpush1.bf16.msra.mxu0 %v1066
    %1157 = vmatprep.subr.bf16.mxu0 0
    %1158 = vmatpush1.bf16.msra.mxu0 0
    %1159 = vmatprep.subr.bf16.mxu0 0
    %1160 = vmatpush1.bf16.msra.mxu0 0
    %1161 = vmatprep.subr.bf16.mxu0 0
    %1162 = vmatpush1.bf16.msra.mxu0 0
    %1163 = vmatprep.subr.bf16.mxu0 0
    %1164 = vmatpush1.bf16.msra.mxu0 0
    %1165 = vmatprep.subr.bf16.mxu0 0
    %1166 = vmatpush1.bf16.msra.mxu0 0
    %1167 = vmatprep.subr.bf16.mxu0 0
    %1168 = vmatpush1.bf16.msra.mxu0 0
    %1169 = vmatprep.subr.bf16.mxu0 0
    %1170 = vmatpush1.bf16.msra.mxu0 0
    %1171 = vmatprep.subr.bf16.mxu0 0
    %1172 = vmatpush1.bf16.msra.mxu0 0
    %1173 = vmatprep.mubr.bf16.mxu0 0
    %1174 = vmatmul.mubr.bf16.gmra.mrb[0].mxu0 %v885
    %v1175 = vpop.f32.mrb[0].mxu0
    %v1176 = vadd.f32 %v931, %v1175
    %v1177 = vpop.f32.mrb[0].mxu0
    %v1178 = vadd.f32 %v935, %v1177
    %v1179 = vpop.f32.mrb[0].mxu0
    %v1180 = vpop.f32.mrb[0].mxu0
    %1181 = vdwg.mxu0
    %v1182 = vmul.f32 %v1135, 0.5
    %v1183 = vmul.f32 %v1137, 0.5
    %v1184 = vmul.f32 %v1176, 0.5
    %v1185 = vtanh.pop %v1182
    %v1186 = vtanh.pop %v1183
    %v1187 = vtanh.pop %v1184
    %v1188 = vmul.f32 %v1185, 0.5
    %v1189 = vmul.f32 %v1186, 0.5
    %v1190 = vmul.f32 %v1187, 0.5
    %v1191 = vadd.f32 %v1188, 0.5
    %v1192 = vadd.f32 %v1189, 0.5
    %v1193 = vadd.f32 %v1190, 0.5
    %v1194 = vtanh.pop %v1178
    %v1195 = vmul.f32 %v1192, 0.0
    %v1196 = vmul.f32 %v1191, %v1194
    %v1197 = vadd.f32 %v1195, %v1196
    %v1198 = vtanh.pop %v1197
    %v1199 = vmul.f32 %v1193, %v1198
    %v1200 = vpack.c.bf16 %v1199, %v1199
    %v1201 = vld [vmem:[#allocation2 + $0x20] sm:$0xff]
    %v1202 = vld [vmem:[#allocation2 + $0x28] sm:$0xff]
    %v1203 = vld [vmem:[#allocation2 + $0x30] sm:$0xff]
    %v1204 = vld [vmem:[#allocation2 + $0x38] sm:$0xff]
    %v1205 = vld [vmem:[#allocation5] sm:$0xff]
    %v1206 = vld [vmem:[#allocation5 + $0x8] sm:$0xff]
    %v1207 = vld [vmem:[#allocation5 + $0x10] sm:$0xff]
    %v1208 = vld [vmem:[#allocation5 + $0x18] sm:$0xff]
    %v1209 = vld [vmem:[#allocation5 + $0x20] sm:$0xff]
    %v1210 = vld [vmem:[#allocation5 + $0x28] sm:$0xff]
    %v1211 = vld [vmem:[#allocation5 + $0x30] sm:$0xff]
    %v1212 = vld [vmem:[#allocation5 + $0x38] sm:$0xff]
    %v1213 = vld [vmem:[#allocation5 + $0x40] sm:$0xff]
    %v1214 = vld [vmem:[#allocation5 + $0x48] sm:$0xff]
    %v1215 = vld [vmem:[#allocation5 + $0x50] sm:$0xff]
    %v1216 = vld [vmem:[#allocation5 + $0x58] sm:$0xff]
    %v1217 = vld [vmem:[#allocation5 + $0x60] sm:$0xff]
    %v1218 = vld [vmem:[#allocation5 + $0x68] sm:$0xff]
    %v1219 = vld [vmem:[#allocation5 + $0x70] sm:$0xff]
    %v1220 = vld [vmem:[#allocation5 + $0x78] sm:$0xff]
    %v1221 = vld [vmem:[#allocation5 + $0x80] sm:$0xff]
    %v1222 = vld [vmem:[#allocation5 + $0x88] sm:$0xff]
    %v1223 = vld [vmem:[#allocation5 + $0x90] sm:$0xff]
    %v1224 = vld [vmem:[#allocation5 + $0x98] sm:$0xff]
    %v1225 = vld [vmem:[#allocation5 + $0xa0] sm:$0xff]
    %v1226 = vld [vmem:[#allocation5 + $0xa8] sm:$0xff]
    %v1227 = vld [vmem:[#allocation5 + $0xb0] sm:$0xff]
    %v1228 = vld [vmem:[#allocation5 + $0xb8] sm:$0xff]
    %v1229 = vld [vmem:[#allocation5 + $0xc0] sm:$0xff]
    %v1230 = vld [vmem:[#allocation5 + $0xc8] sm:$0xff]
    %v1231 = vld [vmem:[#allocation5 + $0xd0] sm:$0xff]
    %v1232 = vld [vmem:[#allocation5 + $0xd8] sm:$0xff]
    %v1233 = vld [vmem:[#allocation5 + $0xe0] sm:$0xff]
    %v1234 = vld [vmem:[#allocation5 + $0xe8] sm:$0xff]
    %v1235 = vld [vmem:[#allocation5 + $0xf0] sm:$0xff]
    %v1236 = vld [vmem:[#allocation5 + $0xf8] sm:$0xff]
    %v1269 = vunpack.c.l.b16 %v1205
    %v1270 = vunpack.c.h.b16 %v1205
    %v1271 = vunpack.c.l.b16 %v1206
    %v1272 = vunpack.c.h.b16 %v1206
    %v1273 = vunpack.c.l.b16 %v1207
    %v1274 = vunpack.c.h.b16 %v1207
    %v1275 = vunpack.c.l.b16 %v1208
    %v1276 = vunpack.c.h.b16 %v1208
    %v1277 = vunpack.c.l.b16 %v1209
    %v1278 = vunpack.c.h.b16 %v1209
    %v1279 = vunpack.c.l.b16 %v1210
    %v1280 = vunpack.c.h.b16 %v1210
    %v1281 = vunpack.c.l.b16 %v1211
    %v1282 = vunpack.c.h.b16 %v1211
    %v1283 = vunpack.c.l.b16 %v1212
    %v1284 = vunpack.c.h.b16 %v1212
    %v1285 = vunpack.c.l.b16 %v1213
    %v1286 = vunpack.c.h.b16 %v1213
    %v1287 = vunpack.c.l.b16 %v1214
    %v1288 = vunpack.c.h.b16 %v1214
    %v1289 = vunpack.c.l.b16 %v1215
    %v1290 = vunpack.c.h.b16 %v1215
    %v1291 = vunpack.c.l.b16 %v1216
    %v1292 = vunpack.c.h.b16 %v1216
    %v1293 = vunpack.c.l.b16 %v1217
    %v1294 = vunpack.c.h.b16 %v1217
    %v1295 = vunpack.c.l.b16 %v1218
    %v1296 = vunpack.c.h.b16 %v1218
    %v1297 = vunpack.c.l.b16 %v1219
    %v1298 = vunpack.c.h.b16 %v1219
    %v1299 = vunpack.c.l.b16 %v1220
    %v1300 = vunpack.c.h.b16 %v1220
    %v1301 = vunpack.c.l.b16 %v1221
    %v1302 = vunpack.c.h.b16 %v1221
    %v1303 = vunpack.c.l.b16 %v1222
    %v1304 = vunpack.c.h.b16 %v1222
    %v1305 = vunpack.c.l.b16 %v1223
    %v1306 = vunpack.c.h.b16 %v1223
    %v1307 = vunpack.c.l.b16 %v1224
    %v1308 = vunpack.c.h.b16 %v1224
    %v1309 = vunpack.c.l.b16 %v1225
    %v1310 = vunpack.c.h.b16 %v1225
    %v1311 = vunpack.c.l.b16 %v1226
    %v1312 = vunpack.c.h.b16 %v1226
    %v1313 = vunpack.c.l.b16 %v1227
    %v1314 = vunpack.c.h.b16 %v1227
    %v1315 = vunpack.c.l.b16 %v1228
    %v1316 = vunpack.c.h.b16 %v1228
    %v1317 = vunpack.c.l.b16 %v1229
    %v1318 = vunpack.c.h.b16 %v1229
    %v1319 = vunpack.c.l.b16 %v1230
    %v1320 = vunpack.c.h.b16 %v1230
    %v1321 = vunpack.c.l.b16 %v1231
    %v1322 = vunpack.c.h.b16 %v1231
    %v1323 = vunpack.c.l.b16 %v1232
    %v1324 = vunpack.c.h.b16 %v1232
    %v1325 = vunpack.c.l.b16 %v1233
    %v1326 = vunpack.c.h.b16 %v1233
    %v1327 = vunpack.c.l.b16 %v1234
    %v1328 = vunpack.c.h.b16 %v1234
    %v1329 = vunpack.c.l.b16 %v1235
    %v1330 = vunpack.c.h.b16 %v1235
    %v1331 = vunpack.c.l.b16 %v1236
    %v1332 = vunpack.c.h.b16 %v1236
    %v1333 = vpack.c.b16 %v1273, %v1269
    %v1334 = vpack.c.b16 %v1274, %v1270
    %v1335 = vpack.c.b16 %v1275, %v1271
    %v1336 = vpack.c.b16 %v1276, %v1272
    %v1337 = vpack.c.b16 %v1281, %v1277
    %v1338 = vpack.c.b16 %v1282, %v1278
    %v1339 = vpack.c.b16 %v1283, %v1279
    %v1340 = vpack.c.b16 %v1284, %v1280
    %v1341 = vpack.c.b16 %v1289, %v1285
    %v1342 = vpack.c.b16 %v1290, %v1286
    %v1343 = vpack.c.b16 %v1291, %v1287
    %v1344 = vpack.c.b16 %v1292, %v1288
    %v1345 = vpack.c.b16 %v1297, %v1293
    %v1346 = vpack.c.b16 %v1298, %v1294
    %v1347 = vpack.c.b16 %v1299, %v1295
    %v1348 = vpack.c.b16 %v1300, %v1296
    %v1349 = vpack.c.b16 %v1305, %v1301
    %v1350 = vpack.c.b16 %v1306, %v1302
    %v1351 = vpack.c.b16 %v1307, %v1303
    %v1352 = vpack.c.b16 %v1308, %v1304
    %v1353 = vpack.c.b16 %v1313, %v1309
    %v1354 = vpack.c.b16 %v1314, %v1310
    %v1355 = vpack.c.b16 %v1315, %v1311
    %v1356 = vpack.c.b16 %v1316, %v1312
    %v1357 = vpack.c.b16 %v1321, %v1317
    %v1358 = vpack.c.b16 %v1322, %v1318
    %v1359 = vpack.c.b16 %v1323, %v1319
    %v1360 = vpack.c.b16 %v1324, %v1320
    %v1361 = vpack.c.b16 %v1329, %v1325
    %v1362 = vpack.c.b16 %v1330, %v1326
    %v1363 = vpack.c.b16 %v1331, %v1327
    %v1364 = vpack.c.b16 %v1332, %v1328
    %1397 = vmatprep.subr.bf16.mxu0 %v1334
    %1398 = vmatpush1.bf16.msra.mxu0 %v1333
    %1399 = vmatprep.subr.bf16.mxu0 %v1338
    %1400 = vmatpush1.bf16.msra.mxu0 %v1337
    %1401 = vmatprep.subr.bf16.mxu0 %v1342
    %1402 = vmatpush1.bf16.msra.mxu0 %v1341
    %1403 = vmatprep.subr.bf16.mxu0 %v1346
    %1404 = vmatpush1.bf16.msra.mxu0 %v1345
    %1405 = vmatprep.subr.bf16.mxu0 %v1350
    %1406 = vmatpush1.bf16.msra.mxu0 %v1349
    %1407 = vmatprep.subr.bf16.mxu0 %v1354
    %1408 = vmatpush1.bf16.msra.mxu0 %v1353
    %1409 = vmatprep.subr.bf16.mxu0 %v1358
    %1410 = vmatpush1.bf16.msra.mxu0 %v1357
    %1411 = vmatprep.subr.bf16.mxu0 %v1362
    %1412 = vmatpush1.bf16.msra.mxu0 %v1361
    %1413 = vmatprep.subr.bf16.mxu0 0
    %1414 = vmatpush1.bf16.msra.mxu0 0
    %1415 = vmatprep.subr.bf16.mxu0 0
    %1416 = vmatpush1.bf16.msra.mxu0 0
    %1417 = vmatprep.subr.bf16.mxu0 0
    %1418 = vmatpush1.bf16.msra.mxu0 0
    %1419 = vmatprep.subr.bf16.mxu0 0
    %1420 = vmatpush1.bf16.msra.mxu0 0
    %1421 = vmatprep.subr.bf16.mxu0 0
    %1422 = vmatpush1.bf16.msra.mxu0 0
    %1423 = vmatprep.subr.bf16.mxu0 0
    %1424 = vmatpush1.bf16.msra.mxu0 0
    %1425 = vmatprep.subr.bf16.mxu0 0
    %1426 = vmatpush1.bf16.msra.mxu0 0
    %1427 = vmatprep.subr.bf16.mxu0 0
    %1428 = vmatpush1.bf16.msra.mxu0 0
    %1429 = vmatprep.mubr.bf16.mxu0 0
    %1430 = vmatmul.mubr.bf16.gmra.mrb[0].mxu0 %v570
    %v1431 = vpop.f32.mrb[0].mxu0
    %v1432 = vadd.f32 0.0, %v1431
    %v1433 = vpop.f32.mrb[0].mxu0
    %v1434 = vadd.f32 0.0, %v1433
    %v1435 = vpop.f32.mrb[0].mxu0
    %v1436 = vpop.f32.mrb[0].mxu0
    %1437 = vdwg.mxu0
    %1438 = vmatprep.subr.bf16.mxu0 %v1336
    %1439 = vmatpush1.bf16.msra.mxu0 %v1335
    %1440 = vmatprep.subr.bf16.mxu0 %v1340
    %1441 = vmatpush1.bf16.msra.mxu0 %v1339
    %1442 = vmatprep.subr.bf16.mxu0 %v1344
    %1443 = vmatpush1.bf16.msra.mxu0 %v1343
    %1444 = vmatprep.subr.bf16.mxu0 %v1348
    %1445 = vmatpush1.bf16.msra.mxu0 %v1347
    %1446 = vmatprep.subr.bf16.mxu0 %v1352
    %1447 = vmatpush1.bf16.msra.mxu0 %v1351
    %1448 = vmatprep.subr.bf16.mxu0 %v1356
    %1449 = vmatpush1.bf16.msra.mxu0 %v1355
    %1450 = vmatprep.subr.bf16.mxu0 %v1360
    %1451 = vmatpush1.bf16.msra.mxu0 %v1359
    %1452 = vmatprep.subr.bf16.mxu0 %v1364
    %1453 = vmatpush1.bf16.msra.mxu0 %v1363
    %1454 = vmatprep.subr.bf16.mxu0 0
    %1455 = vmatpush1.bf16.msra.mxu0 0
    %1456 = vmatprep.subr.bf16.mxu0 0
    %1457 = vmatpush1.bf16.msra.mxu0 0
    %1458 = vmatprep.subr.bf16.mxu0 0
    %1459 = vmatpush1.bf16.msra.mxu0 0
    %1460 = vmatprep.subr.bf16.mxu0 0
    %1461 = vmatpush1.bf16.msra.mxu0 0
    %1462 = vmatprep.subr.bf16.mxu0 0
    %1463 = vmatpush1.bf16.msra.mxu0 0
    %1464 = vmatprep.subr.bf16.mxu0 0
    %1465 = vmatpush1.bf16.msra.mxu0 0
    %1466 = vmatprep.subr.bf16.mxu0 0
    %1467 = vmatpush1.bf16.msra.mxu0 0
    %1468 = vmatprep.subr.bf16.mxu0 0
    %1469 = vmatpush1.bf16.msra.mxu0 0
    %1470 = vmatprep.mubr.bf16.mxu0 0
    %1471 = vmatmul.mubr.bf16.gmra.mrb[0].mxu0 %v570
    %v1472 = vpop.f32.mrb[0].mxu0
    %v1473 = vadd.f32 0.0, %v1472
    %v1474 = vpop.f32.mrb[0].mxu0
    %v1475 = vadd.f32 0.0, %v1474
    %v1476 = vpop.f32.mrb[0].mxu0
    %v1477 = vpop.f32.mrb[0].mxu0
    %1478 = vdwg.mxu0
    %v1479 = vadd.f32 %v1201, %v1432
    %v1480 = vadd.f32 %v1202, %v1434
    %v1481 = vadd.f32 %v1203, %v1473
    %v1482 = vadd.f32 %v1204, %v1475
    %v1483 = vmul.f32 %v1479, 0.5
    %v1484 = vmul.f32 %v1480, 0.5
    %v1485 = vmul.f32 %v1481, 0.5
    %v1486 = vtanh.pop %v1483
    %v1487 = vtanh.pop %v1484
    %v1488 = vtanh.pop %v1485
    %v1489 = vmul.f32 %v1486, 0.5
    %v1490 = vmul.f32 %v1487, 0.5
    %v1491 = vmul.f32 %v1488, 0.5
    %v1492 = vadd.f32 %v1489, 0.5
    %v1493 = vadd.f32 %v1490, 0.5
    %v1494 = vadd.f32 %v1491, 0.5
    %v1495 = vtanh.pop %v1482
    %v1496 = vmul.f32 %v1493, %v567
    %v1497 = vmul.f32 %v1492, %v1495
    %v1498 = vadd.f32 %v1496, %v1497
    %v1499 = vtanh.pop %v1498
    %v1500 = vmul.f32 %v1494, %v1499
    %v1501 = vpack.c.bf16 %v1500, %v1500
    %1502 = vmatprep.subr.bf16.mxu0 %v722
    %1503 = vmatpush1.bf16.msra.mxu0 %v721
    %1504 = vmatprep.subr.bf16.mxu0 %v726
    %1505 = vmatpush1.bf16.msra.mxu0 %v725
    %1506 = vmatprep.subr.bf16.mxu0 %v730
    %1507 = vmatpush1.bf16.msra.mxu0 %v729
    %1508 = vmatprep.subr.bf16.mxu0 %v734
    %1509 = vmatpush1.bf16.msra.mxu0 %v733
    %1510 = vmatprep.subr.bf16.mxu0 %v738
    %1511 = vmatpush1.bf16.msra.mxu0 %v737
    %1512 = vmatprep.subr.bf16.mxu0 %v742
    %1513 = vmatpush1.bf16.msra.mxu0 %v741
    %1514 = vmatprep.subr.bf16.mxu0 %v746
    %1515 = vmatpush1.bf16.msra.mxu0 %v745
    %1516 = vmatprep.subr.bf16.mxu0 %v750
    %1517 = vmatpush1.bf16.msra.mxu0 %v749
    %1518 = vmatprep.subr.bf16.mxu0 0
    %1519 = vmatpush1.bf16.msra.mxu0 0
    %1520 = vmatprep.subr.bf16.mxu0 0
    %1521 = vmatpush1.bf16.msra.mxu0 0
    %1522 = vmatprep.subr.bf16.mxu0 0
    %1523 = vmatpush1.bf16.msra.mxu0 0
    %1524 = vmatprep.subr.bf16.mxu0 0
    %1525 = vmatpush1.bf16.msra.mxu0 0
    %1526 = vmatprep.subr.bf16.mxu0 0
    %1527 = vmatpush1.bf16.msra.mxu0 0
    %1528 = vmatprep.subr.bf16.mxu0 0
    %1529 = vmatpush1.bf16.msra.mxu0 0
    %1530 = vmatprep.subr.bf16.mxu0 0
    %1531 = vmatpush1.bf16.msra.mxu0 0
    %1532 = vmatprep.subr.bf16.mxu0 0
    %1533 = vmatpush1.bf16.msra.mxu0 0
    %1534 = vmatprep.mubr.bf16.mxu0 0
    %1535 = vmatmul.mubr.bf16.gmra.mrb[0].mxu0 %v1501
    %v1536 = vpop.f32.mrb[0].mxu0
    %v1537 = vadd.f32 %v608, %v1536
    %v1538 = vpop.f32.mrb[0].mxu0
    %v1539 = vadd.f32 %v612, %v1538
    %v1540 = vpop.f32.mrb[0].mxu0
    %v1541 = vpop.f32.mrb[0].mxu0
    %1542 = vdwg.mxu0
    %1543 = vmatprep.subr.bf16.mxu0 %v724
    %1544 = vmatpush1.bf16.msra.mxu0 %v723
    %1545 = vmatprep.subr.bf16.mxu0 %v728
    %1546 = vmatpush1.bf16.msra.mxu0 %v727
    %1547 = vmatprep.subr.bf16.mxu0 %v732
    %1548 = vmatpush1.bf16.msra.mxu0 %v731
    %1549 = vmatprep.subr.bf16.mxu0 %v736
    %1550 = vmatpush1.bf16.msra.mxu0 %v735
    %1551 = vmatprep.subr.bf16.mxu0 %v740
    %1552 = vmatpush1.bf16.msra.mxu0 %v739
    %1553 = vmatprep.subr.bf16.mxu0 %v744
    %1554 = vmatpush1.bf16.msra.mxu0 %v743
    %1555 = vmatprep.subr.bf16.mxu0 %v748
    %1556 = vmatpush1.bf16.msra.mxu0 %v747
    %1557 = vmatprep.subr.bf16.mxu0 %v752
    %1558 = vmatpush1.bf16.msra.mxu0 %v751
    %1559 = vmatprep.subr.bf16.mxu0 0
    %1560 = vmatpush1.bf16.msra.mxu0 0
    %1561 = vmatprep.subr.bf16.mxu0 0
    %1562 = vmatpush1.bf16.msra.mxu0 0
    %1563 = vmatprep.subr.bf16.mxu0 0
    %1564 = vmatpush1.bf16.msra.mxu0 0
    %1565 = vmatprep.subr.bf16.mxu0 0
    %1566 = vmatpush1.bf16.msra.mxu0 0
    %1567 = vmatprep.subr.bf16.mxu0 0
    %1568 = vmatpush1.bf16.msra.mxu0 0
    %1569 = vmatprep.subr.bf16.mxu0 0
    %1570 = vmatpush1.bf16.msra.mxu0 0
    %1571 = vmatprep.subr.bf16.mxu0 0
    %1572 = vmatpush1.bf16.msra.mxu0 0
    %1573 = vmatprep.subr.bf16.mxu0 0
    %1574 = vmatpush1.bf16.msra.mxu0 0
    %1575 = vmatprep.mubr.bf16.mxu0 0
    %1576 = vmatmul.mubr.bf16.gmra.mrb[0].mxu0 %v1501
    %v1577 = vpop.f32.mrb[0].mxu0
    %v1578 = vadd.f32 %v616, %v1577
    %v1579 = vpop.f32.mrb[0].mxu0
    %v1580 = vadd.f32 %v620, %v1579
    %v1581 = vpop.f32.mrb[0].mxu0
    %v1582 = vpop.f32.mrb[0].mxu0
    %1583 = vdwg.mxu0
    %v1584 = vld [vmem:[#allocation8] sm:$0xff]
    %v1585 = vld [vmem:[#allocation8 + $0x8] sm:$0xff]
    %v1586 = vld [vmem:[#allocation8 + $0x10] sm:$0xff]
    %v1587 = vld [vmem:[#allocation8 + $0x18] sm:$0xff]
    %v1588 = vld [vmem:[#allocation8 + $0x20] sm:$0xff]
    %v1589 = vld [vmem:[#allocation8 + $0x28] sm:$0xff]
    %v1590 = vld [vmem:[#allocation8 + $0x30] sm:$0xff]
    %v1591 = vld [vmem:[#allocation8 + $0x38] sm:$0xff]
    %v1592 = vld [vmem:[#allocation8 + $0x40] sm:$0xff]
    %v1593 = vld [vmem:[#allocation8 + $0x48] sm:$0xff]
    %v1594 = vld [vmem:[#allocation8 + $0x50] sm:$0xff]
    %v1595 = vld [vmem:[#allocation8 + $0x58] sm:$0xff]
    %v1596 = vld [vmem:[#allocation8 + $0x60] sm:$0xff]
    %v1597 = vld [vmem:[#allocation8 + $0x68] sm:$0xff]
    %v1598 = vld [vmem:[#allocation8 + $0x70] sm:$0xff]
    %v1599 = vld [vmem:[#allocation8 + $0x78] sm:$0xff]
    %v1600 = vld [vmem:[#allocation8 + $0x80] sm:$0xff]
    %v1601 = vld [vmem:[#allocation8 + $0x88] sm:$0xff]
    %v1602 = vld [vmem:[#allocation8 + $0x90] sm:$0xff]
    %v1603 = vld [vmem:[#allocation8 + $0x98] sm:$0xff]
    %v1604 = vld [vmem:[#allocation8 + $0xa0] sm:$0xff]
    %v1605 = vld [vmem:[#allocation8 + $0xa8] sm:$0xff]
    %v1606 = vld [vmem:[#allocation8 + $0xb0] sm:$0xff]
    %v1607 = vld [vmem:[#allocation8 + $0xb8] sm:$0xff]
    %v1608 = vld [vmem:[#allocation8 + $0xc0] sm:$0xff]
    %v1609 = vld [vmem:[#allocation8 + $0xc8] sm:$0xff]
    %v1610 = vld [vmem:[#allocation8 + $0xd0] sm:$0xff]
    %v1611 = vld [vmem:[#allocation8 + $0xd8] sm:$0xff]
    %v1612 = vld [vmem:[#allocation8 + $0xe0] sm:$0xff]
    %v1613 = vld [vmem:[#allocation8 + $0xe8] sm:$0xff]
    %v1614 = vld [vmem:[#allocation8 + $0xf0] sm:$0xff]
    %v1615 = vld [vmem:[#allocation8 + $0xf8] sm:$0xff]
    %v1648 = vunpack.c.l.b16 %v1584
    %v1649 = vunpack.c.h.b16 %v1584
    %v1650 = vunpack.c.l.b16 %v1585
    %v1651 = vunpack.c.h.b16 %v1585
    %v1652 = vunpack.c.l.b16 %v1586
    %v1653 = vunpack.c.h.b16 %v1586
    %v1654 = vunpack.c.l.b16 %v1587
    %v1655 = vunpack.c.h.b16 %v1587
    %v1656 = vunpack.c.l.b16 %v1588
    %v1657 = vunpack.c.h.b16 %v1588
    %v1658 = vunpack.c.l.b16 %v1589
    %v1659 = vunpack.c.h.b16 %v1589
    %v1660 = vunpack.c.l.b16 %v1590
    %v1661 = vunpack.c.h.b16 %v1590
    %v1662 = vunpack.c.l.b16 %v1591
    %v1663 = vunpack.c.h.b16 %v1591
    %v1664 = vunpack.c.l.b16 %v1592
    %v1665 = vunpack.c.h.b16 %v1592
    %v1666 = vunpack.c.l.b16 %v1593
    %v1667 = vunpack.c.h.b16 %v1593
    %v1668 = vunpack.c.l.b16 %v1594
    %v1669 = vunpack.c.h.b16 %v1594
    %v1670 = vunpack.c.l.b16 %v1595
    %v1671 = vunpack.c.h.b16 %v1595
    %v1672 = vunpack.c.l.b16 %v1596
    %v1673 = vunpack.c.h.b16 %v1596
    %v1674 = vunpack.c.l.b16 %v1597
    %v1675 = vunpack.c.h.b16 %v1597
    %v1676 = vunpack.c.l.b16 %v1598
    %v1677 = vunpack.c.h.b16 %v1598
    %v1678 = vunpack.c.l.b16 %v1599
    %v1679 = vunpack.c.h.b16 %v1599
    %v1680 = vunpack.c.l.b16 %v1600
    %v1681 = vunpack.c.h.b16 %v1600
    %v1682 = vunpack.c.l.b16 %v1601
    %v1683 = vunpack.c.h.b16 %v1601
    %v1684 = vunpack.c.l.b16 %v1602
    %v1685 = vunpack.c.h.b16 %v1602
    %v1686 = vunpack.c.l.b16 %v1603
    %v1687 = vunpack.c.h.b16 %v1603
    %v1688 = vunpack.c.l.b16 %v1604
    %v1689 = vunpack.c.h.b16 %v1604
    %v1690 = vunpack.c.l.b16 %v1605
    %v1691 = vunpack.c.h.b16 %v1605
    %v1692 = vunpack.c.l.b16 %v1606
    %v1693 = vunpack.c.h.b16 %v1606
    %v1694 = vunpack.c.l.b16 %v1607
    %v1695 = vunpack.c.h.b16 %v1607
    %v1696 = vunpack.c.l.b16 %v1608
    %v1697 = vunpack.c.h.b16 %v1608
    %v1698 = vunpack.c.l.b16 %v1609
    %v1699 = vunpack.c.h.b16 %v1609
    %v1700 = vunpack.c.l.b16 %v1610
    %v1701 = vunpack.c.h.b16 %v1610
    %v1702 = vunpack.c.l.b16 %v1611
    %v1703 = vunpack.c.h.b16 %v1611
    %v1704 = vunpack.c.l.b16 %v1612
    %v1705 = vunpack.c.h.b16 %v1612
    %v1706 = vunpack.c.l.b16 %v1613
    %v1707 = vunpack.c.h.b16 %v1613
    %v1708 = vunpack.c.l.b16 %v1614
    %v1709 = vunpack.c.h.b16 %v1614
    %v1710 = vunpack.c.l.b16 %v1615
    %v1711 = vunpack.c.h.b16 %v1615
    %v1712 = vpack.c.b16 %v1652, %v1648
    %v1713 = vpack.c.b16 %v1653, %v1649
    %v1714 = vpack.c.b16 %v1654, %v1650
    %v1715 = vpack.c.b16 %v1655, %v1651
    %v1716 = vpack.c.b16 %v1660, %v1656
    %v1717 = vpack.c.b16 %v1661, %v1657
    %v1718 = vpack.c.b16 %v1662, %v1658
    %v1719 = vpack.c.b16 %v1663, %v1659
    %v1720 = vpack.c.b16 %v1668, %v1664
    %v1721 = vpack.c.b16 %v1669, %v1665
    %v1722 = vpack.c.b16 %v1670, %v1666
    %v1723 = vpack.c.b16 %v1671, %v1667
    %v1724 = vpack.c.b16 %v1676, %v1672
    %v1725 = vpack.c.b16 %v1677, %v1673
    %v1726 = vpack.c.b16 %v1678, %v1674
    %v1727 = vpack.c.b16 %v1679, %v1675
    %v1728 = vpack.c.b16 %v1684, %v1680
    %v1729 = vpack.c.b16 %v1685, %v1681
    %v1730 = vpack.c.b16 %v1686, %v1682
    %v1731 = vpack.c.b16 %v1687, %v1683
    %v1732 = vpack.c.b16 %v1692, %v1688
    %v1733 = vpack.c.b16 %v1693, %v1689
    %v1734 = vpack.c.b16 %v1694, %v1690
    %v1735 = vpack.c.b16 %v1695, %v1691
    %v1736 = vpack.c.b16 %v1700, %v1696
    %v1737 = vpack.c.b16 %v1701, %v1697
    %v1738 = vpack.c.b16 %v1702, %v1698
    %v1739 = vpack.c.b16 %v1703, %v1699
    %v1740 = vpack.c.b16 %v1708, %v1704
    %v1741 = vpack.c.b16 %v1709, %v1705
    %v1742 = vpack.c.b16 %v1710, %v1706
    %v1743 = vpack.c.b16 %v1711, %v1707
    %1776 = vmatprep.subr.bf16.mxu0 %v1713
    %1777 = vmatpush1.bf16.msra.mxu0 %v1712
    %1778 = vmatprep.subr.bf16.mxu0 %v1717
    %1779 = vmatpush1.bf16.msra.mxu0 %v1716
    %1780 = vmatprep.subr.bf16.mxu0 %v1721
    %1781 = vmatpush1.bf16.msra.mxu0 %v1720
    %1782 = vmatprep.subr.bf16.mxu0 %v1725
    %1783 = vmatpush1.bf16.msra.mxu0 %v1724
    %1784 = vmatprep.subr.bf16.mxu0 %v1729
    %1785 = vmatpush1.bf16.msra.mxu0 %v1728
    %1786 = vmatprep.subr.bf16.mxu0 %v1733
    %1787 = vmatpush1.bf16.msra.mxu0 %v1732
    %1788 = vmatprep.subr.bf16.mxu0 %v1737
    %1789 = vmatpush1.bf16.msra.mxu0 %v1736
    %1790 = vmatprep.subr.bf16.mxu0 %v1741
    %1791 = vmatpush1.bf16.msra.mxu0 %v1740
    %1792 = vmatprep.subr.bf16.mxu0 0
    %1793 = vmatpush1.bf16.msra.mxu0 0
    %1794 = vmatprep.subr.bf16.mxu0 0
    %1795 = vmatpush1.bf16.msra.mxu0 0
    %1796 = vmatprep.subr.bf16.mxu0 0
    %1797 = vmatpush1.bf16.msra.mxu0 0
    %1798 = vmatprep.subr.bf16.mxu0 0
    %1799 = vmatpush1.bf16.msra.mxu0 0
    %1800 = vmatprep.subr.bf16.mxu0 0
    %1801 = vmatpush1.bf16.msra.mxu0 0
    %1802 = vmatprep.subr.bf16.mxu0 0
    %1803 = vmatpush1.bf16.msra.mxu0 0
    %1804 = vmatprep.subr.bf16.mxu0 0
    %1805 = vmatpush1.bf16.msra.mxu0 0
    %1806 = vmatprep.subr.bf16.mxu0 0
    %1807 = vmatpush1.bf16.msra.mxu0 0
    %1808 = vmatprep.mubr.bf16.mxu0 0
    %1809 = vmatmul.mubr.bf16.gmra.mrb[0].mxu0 %v885
    %v1810 = vpop.f32.mrb[0].mxu0
    %v1811 = vadd.f32 0.0, %v1810
    %v1812 = vpop.f32.mrb[0].mxu0
    %v1813 = vadd.f32 0.0, %v1812
    %v1814 = vpop.f32.mrb[0].mxu0
    %v1815 = vpop.f32.mrb[0].mxu0
    %1816 = vdwg.mxu0
    %1817 = vmatprep.subr.bf16.mxu0 %v1715
    %1818 = vmatpush1.bf16.msra.mxu0 %v1714
    %1819 = vmatprep.subr.bf16.mxu0 %v1719
    %1820 = vmatpush1.bf16.msra.mxu0 %v1718
    %1821 = vmatprep.subr.bf16.mxu0 %v1723
    %1822 = vmatpush1.bf16.msra.mxu0 %v1722
    %1823 = vmatprep.subr.bf16.mxu0 %v1727
    %1824 = vmatpush1.bf16.msra.mxu0 %v1726
    %1825 = vmatprep.subr.bf16.mxu0 %v1731
    %1826 = vmatpush1.bf16.msra.mxu0 %v1730
    %1827 = vmatprep.subr.bf16.mxu0 %v1735
    %1828 = vmatpush1.bf16.msra.mxu0 %v1734
    %1829 = vmatprep.subr.bf16.mxu0 %v1739
    %1830 = vmatpush1.bf16.msra.mxu0 %v1738
    %1831 = vmatprep.subr.bf16.mxu0 %v1743
    %1832 = vmatpush1.bf16.msra.mxu0 %v1742
    %1833 = vmatprep.subr.bf16.mxu0 0
    %1834 = vmatpush1.bf16.msra.mxu0 0
    %1835 = vmatprep.subr.bf16.mxu0 0
    %1836 = vmatpush1.bf16.msra.mxu0 0
    %1837 = vmatprep.subr.bf16.mxu0 0
    %1838 = vmatpush1.bf16.msra.mxu0 0
    %1839 = vmatprep.subr.bf16.mxu0 0
    %1840 = vmatpush1.bf16.msra.mxu0 0
    %1841 = vmatprep.subr.bf16.mxu0 0
    %1842 = vmatpush1.bf16.msra.mxu0 0
    %1843 = vmatprep.subr.bf16.mxu0 0
    %1844 = vmatpush1.bf16.msra.mxu0 0
    %1845 = vmatprep.subr.bf16.mxu0 0
    %1846 = vmatpush1.bf16.msra.mxu0 0
    %1847 = vmatprep.subr.bf16.mxu0 0
    %1848 = vmatpush1.bf16.msra.mxu0 0
    %1849 = vmatprep.mubr.bf16.mxu0 0
    %1850 = vmatmul.mubr.bf16.gmra.mrb[0].mxu0 %v885
    %v1851 = vpop.f32.mrb[0].mxu0
    %v1852 = vadd.f32 0.0, %v1851
    %v1853 = vpop.f32.mrb[0].mxu0
    %v1854 = vadd.f32 0.0, %v1853
    %v1855 = vpop.f32.mrb[0].mxu0
    %v1856 = vpop.f32.mrb[0].mxu0
    %1857 = vdwg.mxu0
    %v1858 = vadd.f32 %v1537, %v1811
    %v1859 = vadd.f32 %v1539, %v1813
    %v1860 = vadd.f32 %v1578, %v1852
    %v1861 = vadd.f32 %v1580, %v1854
    %v1862 = vmul.f32 %v1858, 0.5
    %v1863 = vmul.f32 %v1859, 0.5
    %v1864 = vmul.f32 %v1860, 0.5
    %v1865 = vtanh.pop %v1862
    %v1866 = vtanh.pop %v1863
    %v1867 = vtanh.pop %v1864
    %v1868 = vmul.f32 %v1865, 0.5
    %v1869 = vmul.f32 %v1866, 0.5
    %v1870 = vmul.f32 %v1867, 0.5
    %v1871 = vadd.f32 %v1868, 0.5
    %v1872 = vadd.f32 %v1869, 0.5
    %v1873 = vadd.f32 %v1870, 0.5
    %v1874 = vtanh.pop %v1861
    %v1875 = vmul.f32 %v1872, %v882
    %v1876 = vmul.f32 %v1871, %v1874
    %v1877 = vadd.f32 %v1875, %v1876
    %v1878 = vtanh.pop %v1877
    %v1879 = vmul.f32 %v1873, %v1878
    %v1880 = vpack.c.bf16 %v1879, %v1879
    %1881 = vmatprep.subr.bf16.mxu0 %v1037
    %1882 = vmatpush1.bf16.msra.mxu0 %v1036
    %1883 = vmatprep.subr.bf16.mxu0 %v1041
    %1884 = vmatpush1.bf16.msra.mxu0 %v1040
    %1885 = vmatprep.subr.bf16.mxu0 %v1045
    %1886 = vmatpush1.bf16.msra.mxu0 %v1044
    %1887 = vmatprep.subr.bf16.mxu0 %v1049
    %1888 = vmatpush1.bf16.msra.mxu0 %v1048
    %1889 = vmatprep.subr.bf16.mxu0 %v1053
    %1890 = vmatpush1.bf16.msra.mxu0 %v1052
    %1891 = vmatprep.subr.bf16.mxu0 %v1057
    %1892 = vmatpush1.bf16.msra.mxu0 %v1056
    %1893 = vmatprep.subr.bf16.mxu0 %v1061
    %1894 = vmatpush1.bf16.msra.mxu0 %v1060
    %1895 = vmatprep.subr.bf16.mxu0 %v1065
    %1896 = vmatpush1.bf16.msra.mxu0 %v1064
    %1897 = vmatprep.subr.bf16.mxu0 0
    %1898 = vmatpush1.bf16.msra.mxu0 0
    %1899 = vmatprep.subr.bf16.mxu0 0
    %1900 = vmatpush1.bf16.msra.mxu0 0
    %1901 = vmatprep.subr.bf16.mxu0 0
    %1902 = vmatpush1.bf16.msra.mxu0 0
    %1903 = vmatprep.subr.bf16.mxu0 0
    %1904 = vmatpush1.bf16.msra.mxu0 0
    %1905 = vmatprep.subr.bf16.mxu0 0
    %1906 = vmatpush1.bf16.msra.mxu0 0
    %1907 = vmatprep.subr.bf16.mxu0 0
    %1908 = vmatpush1.bf16.msra.mxu0 0
    %1909 = vmatprep.subr.bf16.mxu0 0
    %1910 = vmatpush1.bf16.msra.mxu0 0
    %1911 = vmatprep.subr.bf16.mxu0 0
    %1912 = vmatpush1.bf16.msra.mxu0 0
    %1913 = vmatprep.mubr.bf16.mxu0 0
    %1914 = vmatmul.mubr.bf16.gmra.mrb[0].mxu0 %v1880
    %v1915 = vpop.f32.mrb[0].mxu0
    %v1916 = vadd.f32 %v923, %v1915
    %v1917 = vpop.f32.mrb[0].mxu0
    %v1918 = vadd.f32 %v927, %v1917
    %v1919 = vpop.f32.mrb[0].mxu0
    %v1920 = vpop.f32.mrb[0].mxu0
    %1921 = vdwg.mxu0
    %1922 = vmatprep.subr.bf16.mxu0 %v1039
    %1923 = vmatpush1.bf16.msra.mxu0 %v1038
    %1924 = vmatprep.subr.bf16.mxu0 %v1043
    %1925 = vmatpush1.bf16.msra.mxu0 %v1042
    %1926 = vmatprep.subr.bf16.mxu0 %v1047
    %1927 = vmatpush1.bf16.msra.mxu0 %v1046
    %1928 = vmatprep.subr.bf16.mxu0 %v1051
    %1929 = vmatpush1.bf16.msra.mxu0 %v1050
    %1930 = vmatprep.subr.bf16.mxu0 %v1055
    %1931 = vmatpush1.bf16.msra.mxu0 %v1054
    %1932 = vmatprep.subr.bf16.mxu0 %v1059
    %1933 = vmatpush1.bf16.msra.mxu0 %v1058
    %1934 = vmatprep.subr.bf16.mxu0 %v1063
    %1935 = vmatpush1.bf16.msra.mxu0 %v1062
    %1936 = vmatprep.subr.bf16.mxu0 %v1067
    %1937 = vmatpush1.bf16.msra.mxu0 %v1066
    %1938 = vmatprep.subr.bf16.mxu0 0
    %1939 = vmatpush1.bf16.msra.mxu0 0
    %1940 = vmatprep.subr.bf16.mxu0 0
    %1941 = vmatpush1.bf16.msra.mxu0 0
    %1942 = vmatprep.subr.bf16.mxu0 0
    %1943 = vmatpush1.bf16.msra.mxu0 0
    %1944 = vmatprep.subr.bf16.mxu0 0
    %1945 = vmatpush1.bf16.msra.mxu0 0
    %1946 = vmatprep.subr.bf16.mxu0 0
    %1947 = vmatpush1.bf16.msra.mxu0 0
    %1948 = vmatprep.subr.bf16.mxu0 0
    %1949 = vmatpush1.bf16.msra.mxu0 0
    %1950 = vmatprep.subr.bf16.mxu0 0
    %1951 = vmatpush1.bf16.msra.mxu0 0
    %1952 = vmatprep.subr.bf16.mxu0 0
    %1953 = vmatpush1.bf16.msra.mxu0 0
    %1954 = vmatprep.mubr.bf16.mxu0 0
    %1955 = vmatmul.mubr.bf16.gmra.mrb[0].mxu0 %v1880
    %v1956 = vpop.f32.mrb[0].mxu0
    %v1957 = vadd.f32 %v931, %v1956
    %v1958 = vpop.f32.mrb[0].mxu0
    %v1959 = vadd.f32 %v935, %v1958
    %v1960 = vpop.f32.mrb[0].mxu0
    %v1961 = vpop.f32.mrb[0].mxu0
    %1962 = vdwg.mxu0
    %v1963 = vld [vmem:[#allocation11] sm:$0xff]
    %v1964 = vld [vmem:[#allocation11 + $0x8] sm:$0xff]
    %v1965 = vld [vmem:[#allocation11 + $0x10] sm:$0xff]
    %v1966 = vld [vmem:[#allocation11 + $0x18] sm:$0xff]
    %v1967 = vld [vmem:[#allocation11 + $0x20] sm:$0xff]
    %v1968 = vld [vmem:[#allocation11 + $0x28] sm:$0xff]
    %v1969 = vld [vmem:[#allocation11 + $0x30] sm:$0xff]
    %v1970 = vld [vmem:[#allocation11 + $0x38] sm:$0xff]
    %v1971 = vld [vmem:[#allocation11 + $0x40] sm:$0xff]
    %v1972 = vld [vmem:[#allocation11 + $0x48] sm:$0xff]
    %v1973 = vld [vmem:[#allocation11 + $0x50] sm:$0xff]
    %v1974 = vld [vmem:[#allocation11 + $0x58] sm:$0xff]
    %v1975 = vld [vmem:[#allocation11 + $0x60] sm:$0xff]
    %v1976 = vld [vmem:[#allocation11 + $0x68] sm:$0xff]
    %v1977 = vld [vmem:[#allocation11 + $0x70] sm:$0xff]
    %v1978 = vld [vmem:[#allocation11 + $0x78] sm:$0xff]
    %v1979 = vld [vmem:[#allocation11 + $0x80] sm:$0xff]
    %v1980 = vld [vmem:[#allocation11 + $0x88] sm:$0xff]
    %v1981 = vld [vmem:[#allocation11 + $0x90] sm:$0xff]
    %v1982 = vld [vmem:[#allocation11 + $0x98] sm:$0xff]
    %v1983 = vld [vmem:[#allocation11 + $0xa0] sm:$0xff]
    %v1984 = vld [vmem:[#allocation11 + $0xa8] sm:$0xff]
    %v1985 = vld [vmem:[#allocation11 + $0xb0] sm:$0xff]
    %v1986 = vld [vmem:[#allocation11 + $0xb8] sm:$0xff]
    %v1987 = vld [vmem:[#allocation11 + $0xc0] sm:$0xff]
    %v1988 = vld [vmem:[#allocation11 + $0xc8] sm:$0xff]
    %v1989 = vld [vmem:[#allocation11 + $0xd0] sm:$0xff]
    %v1990 = vld [vmem:[#allocation11 + $0xd8] sm:$0xff]
    %v1991 = vld [vmem:[#allocation11 + $0xe0] sm:$0xff]
    %v1992 = vld [vmem:[#allocation11 + $0xe8] sm:$0xff]
    %v1993 = vld [vmem:[#allocation11 + $0xf0] sm:$0xff]
    %v1994 = vld [vmem:[#allocation11 + $0xf8] sm:$0xff]
    %v2027 = vunpack.c.l.b16 %v1963
    %v2028 = vunpack.c.h.b16 %v1963
    %v2029 = vunpack.c.l.b16 %v1964
    %v2030 = vunpack.c.h.b16 %v1964
    %v2031 = vunpack.c.l.b16 %v1965
    %v2032 = vunpack.c.h.b16 %v1965
    %v2033 = vunpack.c.l.b16 %v1966
    %v2034 = vunpack.c.h.b16 %v1966
    %v2035 = vunpack.c.l.b16 %v1967
    %v2036 = vunpack.c.h.b16 %v1967
    %v2037 = vunpack.c.l.b16 %v1968
    %v2038 = vunpack.c.h.b16 %v1968
    %v2039 = vunpack.c.l.b16 %v1969
    %v2040 = vunpack.c.h.b16 %v1969
    %v2041 = vunpack.c.l.b16 %v1970
    %v2042 = vunpack.c.h.b16 %v1970
    %v2043 = vunpack.c.l.b16 %v1971
    %v2044 = vunpack.c.h.b16 %v1971
    %v2045 = vunpack.c.l.b16 %v1972
    %v2046 = vunpack.c.h.b16 %v1972
    %v2047 = vunpack.c.l.b16 %v1973
    %v2048 = vunpack.c.h.b16 %v1973
    %v2049 = vunpack.c.l.b16 %v1974
    %v2050 = vunpack.c.h.b16 %v1974
    %v2051 = vunpack.c.l.b16 %v1975
    %v2052 = vunpack.c.h.b16 %v1975
    %v2053 = vunpack.c.l.b16 %v1976
    %v2054 = vunpack.c.h.b16 %v1976
    %v2055 = vunpack.c.l.b16 %v1977
    %v2056 = vunpack.c.h.b16 %v1977
    %v2057 = vunpack.c.l.b16 %v1978
    %v2058 = vunpack.c.h.b16 %v1978
    %v2059 = vunpack.c.l.b16 %v1979
    %v2060 = vunpack.c.h.b16 %v1979
    %v2061 = vunpack.c.l.b16 %v1980
    %v2062 = vunpack.c.h.b16 %v1980
    %v2063 = vunpack.c.l.b16 %v1981
    %v2064 = vunpack.c.h.b16 %v1981
    %v2065 = vunpack.c.l.b16 %v1982
    %v2066 = vunpack.c.h.b16 %v1982
    %v2067 = vunpack.c.l.b16 %v1983
    %v2068 = vunpack.c.h.b16 %v1983
    %v2069 = vunpack.c.l.b16 %v1984
    %v2070 = vunpack.c.h.b16 %v1984
    %v2071 = vunpack.c.l.b16 %v1985
    %v2072 = vunpack.c.h.b16 %v1985
    %v2073 = vunpack.c.l.b16 %v1986
    %v2074 = vunpack.c.h.b16 %v1986
    %v2075 = vunpack.c.l.b16 %v1987
    %v2076 = vunpack.c.h.b16 %v1987
    %v2077 = vunpack.c.l.b16 %v1988
    %v2078 = vunpack.c.h.b16 %v1988
    %v2079 = vunpack.c.l.b16 %v1989
    %v2080 = vunpack.c.h.b16 %v1989
    %v2081 = vunpack.c.l.b16 %v1990
    %v2082 = vunpack.c.h.b16 %v1990
    %v2083 = vunpack.c.l.b16 %v1991
    %v2084 = vunpack.c.h.b16 %v1991
    %v2085 = vunpack.c.l.b16 %v1992
    %v2086 = vunpack.c.h.b16 %v1992
    %v2087 = vunpack.c.l.b16 %v1993
    %v2088 = vunpack.c.h.b16 %v1993
    %v2089 = vunpack.c.l.b16 %v1994
    %v2090 = vunpack.c.h.b16 %v1994
    %v2091 = vpack.c.b16 %v2031, %v2027
    %v2092 = vpack.c.b16 %v2032, %v2028
    %v2093 = vpack.c.b16 %v2033, %v2029
    %v2094 = vpack.c.b16 %v2034, %v2030
    %v2095 = vpack.c.b16 %v2039, %v2035
    %v2096 = vpack.c.b16 %v2040, %v2036
    %v2097 = vpack.c.b16 %v2041, %v2037
    %v2098 = vpack.c.b16 %v2042, %v2038
    %v2099 = vpack.c.b16 %v2047, %v2043
    %v2100 = vpack.c.b16 %v2048, %v2044
    %v2101 = vpack.c.b16 %v2049, %v2045
    %v2102 = vpack.c.b16 %v2050, %v2046
    %v2103 = vpack.c.b16 %v2055, %v2051
    %v2104 = vpack.c.b16 %v2056, %v2052
    %v2105 = vpack.c.b16 %v2057, %v2053
    %v2106 = vpack.c.b16 %v2058, %v2054
    %v2107 = vpack.c.b16 %v2063, %v2059
    %v2108 = vpack.c.b16 %v2064, %v2060
    %v2109 = vpack.c.b16 %v2065, %v2061
    %v2110 = vpack.c.b16 %v2066, %v2062
    %v2111 = vpack.c.b16 %v2071, %v2067
    %v2112 = vpack.c.b16 %v2072, %v2068
    %v2113 = vpack.c.b16 %v2073, %v2069
    %v2114 = vpack.c.b16 %v2074, %v2070
    %v2115 = vpack.c.b16 %v2079, %v2075
    %v2116 = vpack.c.b16 %v2080, %v2076
    %v2117 = vpack.c.b16 %v2081, %v2077
    %v2118 = vpack.c.b16 %v2082, %v2078
    %v2119 = vpack.c.b16 %v2087, %v2083
    %v2120 = vpack.c.b16 %v2088, %v2084
    %v2121 = vpack.c.b16 %v2089, %v2085
    %v2122 = vpack.c.b16 %v2090, %v2086
    %2155 = vmatprep.subr.bf16.mxu0 %v2092
    %2156 = vmatpush1.bf16.msra.mxu0 %v2091
    %2157 = vmatprep.subr.bf16.mxu0 %v2096
    %2158 = vmatpush1.bf16.msra.mxu0 %v2095
    %2159 = vmatprep.subr.bf16.mxu0 %v2100
    %2160 = vmatpush1.bf16.msra.mxu0 %v2099
    %2161 = vmatprep.subr.bf16.mxu0 %v2104
    %2162 = vmatpush1.bf16.msra.mxu0 %v2103
    %2163 = vmatprep.subr.bf16.mxu0 %v2108
    %2164 = vmatpush1.bf16.msra.mxu0 %v2107
    %2165 = vmatprep.subr.bf16.mxu0 %v2112
    %2166 = vmatpush1.bf16.msra.mxu0 %v2111
    %2167 = vmatprep.subr.bf16.mxu0 %v2116
    %2168 = vmatpush1.bf16.msra.mxu0 %v2115
    %2169 = vmatprep.subr.bf16.mxu0 %v2120
    %2170 = vmatpush1.bf16.msra.mxu0 %v2119
    %2171 = vmatprep.subr.bf16.mxu0 0
    %2172 = vmatpush1.bf16.msra.mxu0 0
    %2173 = vmatprep.subr.bf16.mxu0 0
    %2174 = vmatpush1.bf16.msra.mxu0 0
    %2175 = vmatprep.subr.bf16.mxu0 0
    %2176 = vmatpush1.bf16.msra.mxu0 0
    %2177 = vmatprep.subr.bf16.mxu0 0
    %2178 = vmatpush1.bf16.msra.mxu0 0
    %2179 = vmatprep.subr.bf16.mxu0 0
    %2180 = vmatpush1.bf16.msra.mxu0 0
    %2181 = vmatprep.subr.bf16.mxu0 0
    %2182 = vmatpush1.bf16.msra.mxu0 0
    %2183 = vmatprep.subr.bf16.mxu0 0
    %2184 = vmatpush1.bf16.msra.mxu0 0
    %2185 = vmatprep.subr.bf16.mxu0 0
    %2186 = vmatpush1.bf16.msra.mxu0 0
    %2187 = vmatprep.mubr.bf16.mxu0 0
    %2188 = vmatmul.mubr.bf16.gmra.mrb[0].mxu0 %v1200
    %v2189 = vpop.f32.mrb[0].mxu0
    %v2190 = vadd.f32 0.0, %v2189
    %v2191 = vpop.f32.mrb[0].mxu0
    %v2192 = vadd.f32 0.0, %v2191
    %v2193 = vpop.f32.mrb[0].mxu0
    %v2194 = vpop.f32.mrb[0].mxu0
    %2195 = vdwg.mxu0
    %2196 = vmatprep.subr.bf16.mxu0 %v2094
    %2197 = vmatpush1.bf16.msra.mxu0 %v2093
    %2198 = vmatprep.subr.bf16.mxu0 %v2098
    %2199 = vmatpush1.bf16.msra.mxu0 %v2097
    %2200 = vmatprep.subr.bf16.mxu0 %v2102
    %2201 = vmatpush1.bf16.msra.mxu0 %v2101
    %2202 = vmatprep.subr.bf16.mxu0 %v2106
    %2203 = vmatpush1.bf16.msra.mxu0 %v2105
    %2204 = vmatprep.subr.bf16.mxu0 %v2110
    %2205 = vmatpush1.bf16.msra.mxu0 %v2109
    %2206 = vmatprep.subr.bf16.mxu0 %v2114
    %2207 = vmatpush1.bf16.msra.mxu0 %v2113
    %2208 = vmatprep.subr.bf16.mxu0 %v2118
    %2209 = vmatpush1.bf16.msra.mxu0 %v2117
    %2210 = vmatprep.subr.bf16.mxu0 %v2122
    %2211 = vmatpush1.bf16.msra.mxu0 %v2121
    %2212 = vmatprep.subr.bf16.mxu0 0
    %2213 = vmatpush1.bf16.msra.mxu0 0
    %2214 = vmatprep.subr.bf16.mxu0 0
    %2215 = vmatpush1.bf16.msra.mxu0 0
    %2216 = vmatprep.subr.bf16.mxu0 0
    %2217 = vmatpush1.bf16.msra.mxu0 0
    %2218 = vmatprep.subr.bf16.mxu0 0
    %2219 = vmatpush1.bf16.msra.mxu0 0
    %2220 = vmatprep.subr.bf16.mxu0 0
    %2221 = vmatpush1.bf16.msra.mxu0 0
    %2222 = vmatprep.subr.bf16.mxu0 0
    %2223 = vmatpush1.bf16.msra.mxu0 0
    %2224 = vmatprep.subr.bf16.mxu0 0
    %2225 = vmatpush1.bf16.msra.mxu0 0
    %2226 = vmatprep.subr.bf16.mxu0 0
    %2227 = vmatpush1.bf16.msra.mxu0 0
    %2228 = vmatprep.mubr.bf16.mxu0 0
    %2229 = vmatmul.mubr.bf16.gmra.mrb[0].mxu0 %v1200
    %v2230 = vpop.f32.mrb[0].mxu0
    %v2231 = vadd.f32 0.0, %v2230
    %v2232 = vpop.f32.mrb[0].mxu0
    %v2233 = vadd.f32 0.0, %v2232
    %v2234 = vpop.f32.mrb[0].mxu0
    %v2235 = vpop.f32.mrb[0].mxu0
    %2236 = vdwg.mxu0
    %v2237 = vadd.f32 %v1916, %v2190
    %v2238 = vadd.f32 %v1918, %v2192
    %v2239 = vadd.f32 %v1957, %v2231
    %v2240 = vadd.f32 %v1959, %v2233
    %v2241 = vmul.f32 %v2237, 0.5
    %v2242 = vmul.f32 %v2238, 0.5
    %v2243 = vmul.f32 %v2239, 0.5
    %v2244 = vtanh.pop %v2241
    %v2245 = vtanh.pop %v2242
    %v2246 = vtanh.pop %v2243
    %v2247 = vmul.f32 %v2244, 0.5
    %v2248 = vmul.f32 %v2245, 0.5
    %v2249 = vmul.f32 %v2246, 0.5
    %v2250 = vadd.f32 %v2247, 0.5
    %v2251 = vadd.f32 %v2248, 0.5
    %v2252 = vadd.f32 %v2249, 0.5
    %v2253 = vtanh.pop %v2240
    %v2254 = vmul.f32 %v2251, %v1197
    %v2255 = vmul.f32 %v2250, %v2253
    %v2256 = vadd.f32 %v2254, %v2255
    %v2257 = vtanh.pop %v2256
    %v2258 = vmul.f32 %v2252, %v2257
    %v2259 = vpack.c.bf16 %v2258, %v2258
    %v2260 = vld [vmem:[#allocation2 + $0x40] sm:$0xff]
    %v2261 = vld [vmem:[#allocation2 + $0x48] sm:$0xff]
    %v2262 = vld [vmem:[#allocation2 + $0x50] sm:$0xff]
    %v2263 = vld [vmem:[#allocation2 + $0x58] sm:$0xff]
    %2264 = vmatprep.subr.bf16.mxu0 %v1334
    %2265 = vmatpush1.bf16.msra.mxu0 %v1333
    %2266 = vmatprep.subr.bf16.mxu0 %v1338
    %2267 = vmatpush1.bf16.msra.mxu0 %v1337
    %2268 = vmatprep.subr.bf16.mxu0 %v1342
    %2269 = vmatpush1.bf16.msra.mxu0 %v1341
    %2270 = vmatprep.subr.bf16.mxu0 %v1346
    %2271 = vmatpush1.bf16.msra.mxu0 %v1345
    %2272 = vmatprep.subr.bf16.mxu0 %v1350
    %2273 = vmatpush1.bf16.msra.mxu0 %v1349
    %2274 = vmatprep.subr.bf16.mxu0 %v1354
    %2275 = vmatpush1.bf16.msra.mxu0 %v1353
    %2276 = vmatprep.subr.bf16.mxu0 %v1358
    %2277 = vmatpush1.bf16.msra.mxu0 %v1357
    %2278 = vmatprep.subr.bf16.mxu0 %v1362
    %2279 = vmatpush1.bf16.msra.mxu0 %v1361
    %2280 = vmatprep.subr.bf16.mxu0 0
    %2281 = vmatpush1.bf16.msra.mxu0 0
    %2282 = vmatprep.subr.bf16.mxu0 0
    %2283 = vmatpush1.bf16.msra.mxu0 0
    %2284 = vmatprep.subr.bf16.mxu0 0
    %2285 = vmatpush1.bf16.msra.mxu0 0
    %2286 = vmatprep.subr.bf16.mxu0 0
    %2287 = vmatpush1.bf16.msra.mxu0 0
    %2288 = vmatprep.subr.bf16.mxu0 0
    %2289 = vmatpush1.bf16.msra.mxu0 0
    %2290 = vmatprep.subr.bf16.mxu0 0
    %2291 = vmatpush1.bf16.msra.mxu0 0
    %2292 = vmatprep.subr.bf16.mxu0 0
    %2293 = vmatpush1.bf16.msra.mxu0 0
    %2294 = vmatprep.subr.bf16.mxu0 0
    %2295 = vmatpush1.bf16.msra.mxu0 0
    %2296 = vmatprep.mubr.bf16.mxu0 0
    %2297 = vmatmul.mubr.bf16.gmra.mrb[0].mxu0 %v1501
    %v2298 = vpop.f32.mrb[0].mxu0
    %v2299 = vadd.f32 0.0, %v2298
    %v2300 = vpop.f32.mrb[0].mxu0
    %v2301 = vadd.f32 0.0, %v2300
    %v2302 = vpop.f32.mrb[0].mxu0
    %v2303 = vpop.f32.mrb[0].mxu0
    %2304 = vdwg.mxu0
    %2305 = vmatprep.subr.bf16.mxu0 %v1336
    %2306 = vmatpush1.bf16.msra.mxu0 %v1335
    %2307 = vmatprep.subr.bf16.mxu0 %v1340
    %2308 = vmatpush1.bf16.msra.mxu0 %v1339
    %2309 = vmatprep.subr.bf16.mxu0 %v1344
    %2310 = vmatpush1.bf16.msra.mxu0 %v1343
    %2311 = vmatprep.subr.bf16.mxu0 %v1348
    %2312 = vmatpush1.bf16.msra.mxu0 %v1347
    %2313 = vmatprep.subr.bf16.mxu0 %v1352
    %2314 = vmatpush1.bf16.msra.mxu0 %v1351
    %2315 = vmatprep.subr.bf16.mxu0 %v1356
    %2316 = vmatpush1.bf16.msra.mxu0 %v1355
    %2317 = vmatprep.subr.bf16.mxu0 %v1360
    %2318 = vmatpush1.bf16.msra.mxu0 %v1359
    %2319 = vmatprep.subr.bf16.mxu0 %v1364
    %2320 = vmatpush1.bf16.msra.mxu0 %v1363
    %2321 = vmatprep.subr.bf16.mxu0 0
    %2322 = vmatpush1.bf16.msra.mxu0 0
    %2323 = vmatprep.subr.bf16.mxu0 0
    %2324 = vmatpush1.bf16.msra.mxu0 0
    %2325 = vmatprep.subr.bf16.mxu0 0
    %2326 = vmatpush1.bf16.msra.mxu0 0
    %2327 = vmatprep.subr.bf16.mxu0 0
    %2328 = vmatpush1.bf16.msra.mxu0 0
    %2329 = vmatprep.subr.bf16.mxu0 0
    %2330 = vmatpush1.bf16.msra.mxu0 0
    %2331 = vmatprep.subr.bf16.mxu0 0
    %2332 = vmatpush1.bf16.msra.mxu0 0
    %2333 = vmatprep.subr.bf16.mxu0 0
    %2334 = vmatpush1.bf16.msra.mxu0 0
    %2335 = vmatprep.subr.bf16.mxu0 0
    %2336 = vmatpush1.bf16.msra.mxu0 0
    %2337 = vmatprep.mubr.bf16.mxu0 0
    %2338 = vmatmul.mubr.bf16.gmra.mrb[0].mxu0 %v1501
    %v2339 = vpop.f32.mrb[0].mxu0
    %v2340 = vadd.f32 0.0, %v2339
    %v2341 = vpop.f32.mrb[0].mxu0
    %v2342 = vadd.f32 0.0, %v2341
    %v2343 = vpop.f32.mrb[0].mxu0
    %v2344 = vpop.f32.mrb[0].mxu0
    %2345 = vdwg.mxu0
    %v2346 = vadd.f32 %v2260, %v2299
    %v2347 = vadd.f32 %v2261, %v2301
    %v2348 = vadd.f32 %v2262, %v2340
    %v2349 = vadd.f32 %v2263, %v2342
    %v2350 = vmul.f32 %v2346, 0.5
    %v2351 = vmul.f32 %v2347, 0.5
    %v2352 = vmul.f32 %v2348, 0.5
    %v2353 = vtanh.pop %v2350
    %v2354 = vtanh.pop %v2351
    %v2355 = vtanh.pop %v2352
    %v2356 = vmul.f32 %v2353, 0.5
    %v2357 = vmul.f32 %v2354, 0.5
    %v2358 = vmul.f32 %v2355, 0.5
    %v2359 = vadd.f32 %v2356, 0.5
    %v2360 = vadd.f32 %v2357, 0.5
    %v2361 = vadd.f32 %v2358, 0.5
    %v2362 = vtanh.pop %v2349
    %v2363 = vmul.f32 %v2360, %v1498
    %v2364 = vmul.f32 %v2359, %v2362
    %v2365 = vadd.f32 %v2363, %v2364
    %v2366 = vtanh.pop %v2365
    %v2367 = vmul.f32 %v2361, %v2366
    %v2368 = vpack.c.bf16 %v2367, %v2367
    %2369 = vmatprep.subr.bf16.mxu0 %v722
    %2370 = vmatpush1.bf16.msra.mxu0 %v721
    %2371 = vmatprep.subr.bf16.mxu0 %v726
    %2372 = vmatpush1.bf16.msra.mxu0 %v725
    %2373 = vmatprep.subr.bf16.mxu0 %v730
    %2374 = vmatpush1.bf16.msra.mxu0 %v729
    %2375 = vmatprep.subr.bf16.mxu0 %v734
    %2376 = vmatpush1.bf16.msra.mxu0 %v733
    %2377 = vmatprep.subr.bf16.mxu0 %v738
    %2378 = vmatpush1.bf16.msra.mxu0 %v737
    %2379 = vmatprep.subr.bf16.mxu0 %v742
    %2380 = vmatpush1.bf16.msra.mxu0 %v741
    %2381 = vmatprep.subr.bf16.mxu0 %v746
    %2382 = vmatpush1.bf16.msra.mxu0 %v745
    %2383 = vmatprep.subr.bf16.mxu0 %v750
    %2384 = vmatpush1.bf16.msra.mxu0 %v749
    %2385 = vmatprep.subr.bf16.mxu0 0
    %2386 = vmatpush1.bf16.msra.mxu0 0
    %2387 = vmatprep.subr.bf16.mxu0 0
    %2388 = vmatpush1.bf16.msra.mxu0 0
    %2389 = vmatprep.subr.bf16.mxu0 0
    %2390 = vmatpush1.bf16.msra.mxu0 0
    %2391 = vmatprep.subr.bf16.mxu0 0
    %2392 = vmatpush1.bf16.msra.mxu0 0
    %2393 = vmatprep.subr.bf16.mxu0 0
    %2394 = vmatpush1.bf16.msra.mxu0 0
    %2395 = vmatprep.subr.bf16.mxu0 0
    %2396 = vmatpush1.bf16.msra.mxu0 0
    %2397 = vmatprep.subr.bf16.mxu0 0
    %2398 = vmatpush1.bf16.msra.mxu0 0
    %2399 = vmatprep.subr.bf16.mxu0 0
    %2400 = vmatpush1.bf16.msra.mxu0 0
    %2401 = vmatprep.mubr.bf16.mxu0 0
    %2402 = vmatmul.mubr.bf16.gmra.mrb[0].mxu0 %v2368
    %v2403 = vpop.f32.mrb[0].mxu0
    %v2404 = vadd.f32 %v608, %v2403
    %v2405 = vpop.f32.mrb[0].mxu0
    %v2406 = vadd.f32 %v612, %v2405
    %v2407 = vpop.f32.mrb[0].mxu0
    %v2408 = vpop.f32.mrb[0].mxu0
    %2409 = vdwg.mxu0
    %2410 = vmatprep.subr.bf16.mxu0 %v724
    %2411 = vmatpush1.bf16.msra.mxu0 %v723
    %2412 = vmatprep.subr.bf16.mxu0 %v728
    %2413 = vmatpush1.bf16.msra.mxu0 %v727
    %2414 = vmatprep.subr.bf16.mxu0 %v732
    %2415 = vmatpush1.bf16.msra.mxu0 %v731
    %2416 = vmatprep.subr.bf16.mxu0 %v736
    %2417 = vmatpush1.bf16.msra.mxu0 %v735
    %2418 = vmatprep.subr.bf16.mxu0 %v740
    %2419 = vmatpush1.bf16.msra.mxu0 %v739
    %2420 = vmatprep.subr.bf16.mxu0 %v744
    %2421 = vmatpush1.bf16.msra.mxu0 %v743
    %2422 = vmatprep.subr.bf16.mxu0 %v748
    %2423 = vmatpush1.bf16.msra.mxu0 %v747
    %2424 = vmatprep.subr.bf16.mxu0 %v752
    %2425 = vmatpush1.bf16.msra.mxu0 %v751
    %2426 = vmatprep.subr.bf16.mxu0 0
    %2427 = vmatpush1.bf16.msra.mxu0 0
    %2428 = vmatprep.subr.bf16.mxu0 0
    %2429 = vmatpush1.bf16.msra.mxu0 0
    %2430 = vmatprep.subr.bf16.mxu0 0
    %2431 = vmatpush1.bf16.msra.mxu0 0
    %2432 = vmatprep.subr.bf16.mxu0 0
    %2433 = vmatpush1.bf16.msra.mxu0 0
    %2434 = vmatprep.subr.bf16.mxu0 0
    %2435 = vmatpush1.bf16.msra.mxu0 0
    %2436 = vmatprep.subr.bf16.mxu0 0
    %2437 = vmatpush1.bf16.msra.mxu0 0
    %2438 = vmatprep.subr.bf16.mxu0 0
    %2439 = vmatpush1.bf16.msra.mxu0 0
    %2440 = vmatprep.subr.bf16.mxu0 0
    %2441 = vmatpush1.bf16.msra.mxu0 0
    %2442 = vmatprep.mubr.bf16.mxu0 0
    %2443 = vmatmul.mubr.bf16.gmra.mrb[0].mxu0 %v2368
    %v2444 = vpop.f32.mrb[0].mxu0
    %v2445 = vadd.f32 %v616, %v2444
    %v2446 = vpop.f32.mrb[0].mxu0
    %v2447 = vadd.f32 %v620, %v2446
    %v2448 = vpop.f32.mrb[0].mxu0
    %v2449 = vpop.f32.mrb[0].mxu0
    %2450 = vdwg.mxu0
    %2451 = vmatprep.subr.bf16.mxu0 %v1713
    %2452 = vmatpush1.bf16.msra.mxu0 %v1712
    %2453 = vmatprep.subr.bf16.mxu0 %v1717
    %2454 = vmatpush1.bf16.msra.mxu0 %v1716
    %2455 = vmatprep.subr.bf16.mxu0 %v1721
    %2456 = vmatpush1.bf16.msra.mxu0 %v1720
    %2457 = vmatprep.subr.bf16.mxu0 %v1725
    %2458 = vmatpush1.bf16.msra.mxu0 %v1724
    %2459 = vmatprep.subr.bf16.mxu0 %v1729
    %2460 = vmatpush1.bf16.msra.mxu0 %v1728
    %2461 = vmatprep.subr.bf16.mxu0 %v1733
    %2462 = vmatpush1.bf16.msra.mxu0 %v1732
    %2463 = vmatprep.subr.bf16.mxu0 %v1737
    %2464 = vmatpush1.bf16.msra.mxu0 %v1736
    %2465 = vmatprep.subr.bf16.mxu0 %v1741
    %2466 = vmatpush1.bf16.msra.mxu0 %v1740
    %2467 = vmatprep.subr.bf16.mxu0 0
    %2468 = vmatpush1.bf16.msra.mxu0 0
    %2469 = vmatprep.subr.bf16.mxu0 0
    %2470 = vmatpush1.bf16.msra.mxu0 0
    %2471 = vmatprep.subr.bf16.mxu0 0
    %2472 = vmatpush1.bf16.msra.mxu0 0
    %2473 = vmatprep.subr.bf16.mxu0 0
    %2474 = vmatpush1.bf16.msra.mxu0 0
    %2475 = vmatprep.subr.bf16.mxu0 0
    %2476 = vmatpush1.bf16.msra.mxu0 0
    %2477 = vmatprep.subr.bf16.mxu0 0
    %2478 = vmatpush1.bf16.msra.mxu0 0
    %2479 = vmatprep.subr.bf16.mxu0 0
    %2480 = vmatpush1.bf16.msra.mxu0 0
    %2481 = vmatprep.subr.bf16.mxu0 0
    %2482 = vmatpush1.bf16.msra.mxu0 0
    %2483 = vmatprep.mubr.bf16.mxu0 0
    %2484 = vmatmul.mubr.bf16.gmra.mrb[0].mxu0 %v1880
    %v2485 = vpop.f32.mrb[0].mxu0
    %v2486 = vadd.f32 0.0, %v2485
    %v2487 = vpop.f32.mrb[0].mxu0
    %v2488 = vadd.f32 0.0, %v2487
    %v2489 = vpop.f32.mrb[0].mxu0
    %v2490 = vpop.f32.mrb[0].mxu0
    %2491 = vdwg.mxu0
    %2492 = vmatprep.subr.bf16.mxu0 %v1715
    %2493 = vmatpush1.bf16.msra.mxu0 %v1714
    %2494 = vmatprep.subr.bf16.mxu0 %v1719
    %2495 = vmatpush1.bf16.msra.mxu0 %v1718
    %2496 = vmatprep.subr.bf16.mxu0 %v1723
    %2497 = vmatpush1.bf16.msra.mxu0 %v1722
    %2498 = vmatprep.subr.bf16.mxu0 %v1727
    %2499 = vmatpush1.bf16.msra.mxu0 %v1726
    %2500 = vmatprep.subr.bf16.mxu0 %v1731
    %2501 = vmatpush1.bf16.msra.mxu0 %v1730
    %2502 = vmatprep.subr.bf16.mxu0 %v1735
    %2503 = vmatpush1.bf16.msra.mxu0 %v1734
    %2504 = vmatprep.subr.bf16.mxu0 %v1739
    %2505 = vmatpush1.bf16.msra.mxu0 %v1738
    %2506 = vmatprep.subr.bf16.mxu0 %v1743
    %2507 = vmatpush1.bf16.msra.mxu0 %v1742
    %2508 = vmatprep.subr.bf16.mxu0 0
    %2509 = vmatpush1.bf16.msra.mxu0 0
    %2510 = vmatprep.subr.bf16.mxu0 0
    %2511 = vmatpush1.bf16.msra.mxu0 0
    %2512 = vmatprep.subr.bf16.mxu0 0
    %2513 = vmatpush1.bf16.msra.mxu0 0
    %2514 = vmatprep.subr.bf16.mxu0 0
    %2515 = vmatpush1.bf16.msra.mxu0 0
    %2516 = vmatprep.subr.bf16.mxu0 0
    %2517 = vmatpush1.bf16.msra.mxu0 0
    %2518 = vmatprep.subr.bf16.mxu0 0
    %2519 = vmatpush1.bf16.msra.mxu0 0
    %2520 = vmatprep.subr.bf16.mxu0 0
    %2521 = vmatpush1.bf16.msra.mxu0 0
    %2522 = vmatprep.subr.bf16.mxu0 0
    %2523 = vmatpush1.bf16.msra.mxu0 0
    %2524 = vmatprep.mubr.bf16.mxu0 0
    %2525 = vmatmul.mubr.bf16.gmra.mrb[0].mxu0 %v1880
    %v2526 = vpop.f32.mrb[0].mxu0
    %v2527 = vadd.f32 0.0, %v2526
    %v2528 = vpop.f32.mrb[0].mxu0
    %v2529 = vadd.f32 0.0, %v2528
    %v2530 = vpop.f32.mrb[0].mxu0
    %v2531 = vpop.f32.mrb[0].mxu0
    %2532 = vdwg.mxu0
    %v2533 = vadd.f32 %v2404, %v2486
    %v2534 = vadd.f32 %v2406, %v2488
    %v2535 = vadd.f32 %v2445, %v2527
    %v2536 = vadd.f32 %v2447, %v2529
    %v2537 = vmul.f32 %v2533, 0.5
    %v2538 = vmul.f32 %v2534, 0.5
    %v2539 = vmul.f32 %v2535, 0.5
    %v2540 = vtanh.pop %v2537
    %v2541 = vtanh.pop %v2538
    %v2542 = vtanh.pop %v2539
    %v2543 = vmul.f32 %v2540, 0.5
    %v2544 = vmul.f32 %v2541, 0.5
    %v2545 = vmul.f32 %v2542, 0.5
    %v2546 = vadd.f32 %v2543, 0.5
    %v2547 = vadd.f32 %v2544, 0.5
    %v2548 = vadd.f32 %v2545, 0.5
    %v2549 = vtanh.pop %v2536
    %v2550 = vmul.f32 %v2547, %v1877
    %v2551 = vmul.f32 %v2546, %v2549
    %v2552 = vadd.f32 %v2550, %v2551
    %v2553 = vtanh.pop %v2552
    %v2554 = vmul.f32 %v2548, %v2553
    %v2555 = vpack.c.bf16 %v2554, %v2554
    %2556 = vmatprep.subr.bf16.mxu0 %v1037
    %2557 = vmatpush1.bf16.msra.mxu0 %v1036
    %2558 = vmatprep.subr.bf16.mxu0 %v1041
    %2559 = vmatpush1.bf16.msra.mxu0 %v1040
    %2560 = vmatprep.subr.bf16.mxu0 %v1045
    %2561 = vmatpush1.bf16.msra.mxu0 %v1044
    %2562 = vmatprep.subr.bf16.mxu0 %v1049
    %2563 = vmatpush1.bf16.msra.mxu0 %v1048
    %2564 = vmatprep.subr.bf16.mxu0 %v1053
    %2565 = vmatpush1.bf16.msra.mxu0 %v1052
    %2566 = vmatprep.subr.bf16.mxu0 %v1057
    %2567 = vmatpush1.bf16.msra.mxu0 %v1056
    %2568 = vmatprep.subr.bf16.mxu0 %v1061
    %2569 = vmatpush1.bf16.msra.mxu0 %v1060
    %2570 = vmatprep.subr.bf16.mxu0 %v1065
    %2571 = vmatpush1.bf16.msra.mxu0 %v1064
    %2572 = vmatprep.subr.bf16.mxu0 0
    %2573 = vmatpush1.bf16.msra.mxu0 0
    %2574 = vmatprep.subr.bf16.mxu0 0
    %2575 = vmatpush1.bf16.msra.mxu0 0
    %2576 = vmatprep.subr.bf16.mxu0 0
    %2577 = vmatpush1.bf16.msra.mxu0 0
    %2578 = vmatprep.subr.bf16.mxu0 0
    %2579 = vmatpush1.bf16.msra.mxu0 0
    %2580 = vmatprep.subr.bf16.mxu0 0
    %2581 = vmatpush1.bf16.msra.mxu0 0
    %2582 = vmatprep.subr.bf16.mxu0 0
    %2583 = vmatpush1.bf16.msra.mxu0 0
    %2584 = vmatprep.subr.bf16.mxu0 0
    %2585 = vmatpush1.bf16.msra.mxu0 0
    %2586 = vmatprep.subr.bf16.mxu0 0
    %2587 = vmatpush1.bf16.msra.mxu0 0
    %2588 = vmatprep.mubr.bf16.mxu0 0
    %2589 = vmatmul.mubr.bf16.gmra.mrb[0].mxu0 %v2555
    %v2590 = vpop.f32.mrb[0].mxu0
    %v2591 = vadd.f32 %v923, %v2590
    %v2592 = vpop.f32.mrb[0].mxu0
    %v2593 = vadd.f32 %v927, %v2592
    %v2594 = vpop.f32.mrb[0].mxu0
    %v2595 = vpop.f32.mrb[0].mxu0
    %2596 = vdwg.mxu0
    %2597 = vmatprep.subr.bf16.mxu0 %v1039
    %2598 = vmatpush1.bf16.msra.mxu0 %v1038
    %2599 = vmatprep.subr.bf16.mxu0 %v1043
    %2600 = vmatpush1.bf16.msra.mxu0 %v1042
    %2601 = vmatprep.subr.bf16.mxu0 %v1047
    %2602 = vmatpush1.bf16.msra.mxu0 %v1046
    %2603 = vmatprep.subr.bf16.mxu0 %v1051
    %2604 = vmatpush1.bf16.msra.mxu0 %v1050
    %2605 = vmatprep.subr.bf16.mxu0 %v1055
    %2606 = vmatpush1.bf16.msra.mxu0 %v1054
    %2607 = vmatprep.subr.bf16.mxu0 %v1059
    %2608 = vmatpush1.bf16.msra.mxu0 %v1058
    %2609 = vmatprep.subr.bf16.mxu0 %v1063
    %2610 = vmatpush1.bf16.msra.mxu0 %v1062
    %2611 = vmatprep.subr.bf16.mxu0 %v1067
    %2612 = vmatpush1.bf16.msra.mxu0 %v1066
    %2613 = vmatprep.subr.bf16.mxu0 0
    %2614 = vmatpush1.bf16.msra.mxu0 0
    %2615 = vmatprep.subr.bf16.mxu0 0
    %2616 = vmatpush1.bf16.msra.mxu0 0
    %2617 = vmatprep.subr.bf16.mxu0 0
    %2618 = vmatpush1.bf16.msra.mxu0 0
    %2619 = vmatprep.subr.bf16.mxu0 0
    %2620 = vmatpush1.bf16.msra.mxu0 0
    %2621 = vmatprep.subr.bf16.mxu0 0
    %2622 = vmatpush1.bf16.msra.mxu0 0
    %2623 = vmatprep.subr.bf16.mxu0 0
    %2624 = vmatpush1.bf16.msra.mxu0 0
    %2625 = vmatprep.subr.bf16.mxu0 0
    %2626 = vmatpush1.bf16.msra.mxu0 0
    %2627 = vmatprep.subr.bf16.mxu0 0
    %2628 = vmatpush1.bf16.msra.mxu0 0
    %2629 = vmatprep.mubr.bf16.mxu0 0
    %2630 = vmatmul.mubr.bf16.gmra.mrb[0].mxu0 %v2555
    %v2631 = vpop.f32.mrb[0].mxu0
    %v2632 = vadd.f32 %v931, %v2631
    %v2633 = vpop.f32.mrb[0].mxu0
    %v2634 = vadd.f32 %v935, %v2633
    %v2635 = vpop.f32.mrb[0].mxu0
    %v2636 = vpop.f32.mrb[0].mxu0
    %2637 = vdwg.mxu0
    %2638 = vmatprep.subr.bf16.mxu0 %v2092
    %2639 = vmatpush1.bf16.msra.mxu0 %v2091
    %2640 = vmatprep.subr.bf16.mxu0 %v2096
    %2641 = vmatpush1.bf16.msra.mxu0 %v2095
    %2642 = vmatprep.subr.bf16.mxu0 %v2100
    %2643 = vmatpush1.bf16.msra.mxu0 %v2099
    %2644 = vmatprep.subr.bf16.mxu0 %v2104
    %2645 = vmatpush1.bf16.msra.mxu0 %v2103
    %2646 = vmatprep.subr.bf16.mxu0 %v2108
    %2647 = vmatpush1.bf16.msra.mxu0 %v2107
    %2648 = vmatprep.subr.bf16.mxu0 %v2112
    %2649 = vmatpush1.bf16.msra.mxu0 %v2111
    %2650 = vmatprep.subr.bf16.mxu0 %v2116
    %2651 = vmatpush1.bf16.msra.mxu0 %v2115
    %2652 = vmatprep.subr.bf16.mxu0 %v2120
    %2653 = vmatpush1.bf16.msra.mxu0 %v2119
    %2654 = vmatprep.subr.bf16.mxu0 0
    %2655 = vmatpush1.bf16.msra.mxu0 0
    %2656 = vmatprep.subr.bf16.mxu0 0
    %2657 = vmatpush1.bf16.msra.mxu0 0
    %2658 = vmatprep.subr.bf16.mxu0 0
    %2659 = vmatpush1.bf16.msra.mxu0 0
    %2660 = vmatprep.subr.bf16.mxu0 0
    %2661 = vmatpush1.bf16.msra.mxu0 0
    %2662 = vmatprep.subr.bf16.mxu0 0
    %2663 = vmatpush1.bf16.msra.mxu0 0
    %2664 = vmatprep.subr.bf16.mxu0 0
    %2665 = vmatpush1.bf16.msra.mxu0 0
    %2666 = vmatprep.subr.bf16.mxu0 0
    %2667 = vmatpush1.bf16.msra.mxu0 0
    %2668 = vmatprep.subr.bf16.mxu0 0
    %2669 = vmatpush1.bf16.msra.mxu0 0
    %2670 = vmatprep.mubr.bf16.mxu0 0
    %2671 = vmatmul.mubr.bf16.gmra.mrb[0].mxu0 %v2259
    %v2672 = vpop.f32.mrb[0].mxu0
    %v2673 = vadd.f32 0.0, %v2672
    %v2674 = vpop.f32.mrb[0].mxu0
    %v2675 = vadd.f32 0.0, %v2674
    %v2676 = vpop.f32.mrb[0].mxu0
    %v2677 = vpop.f32.mrb[0].mxu0
    %2678 = vdwg.mxu0
    %2679 = vmatprep.subr.bf16.mxu0 %v2094
    %2680 = vmatpush1.bf16.msra.mxu0 %v2093
    %2681 = vmatprep.subr.bf16.mxu0 %v2098
    %2682 = vmatpush1.bf16.msra.mxu0 %v2097
    %2683 = vmatprep.subr.bf16.mxu0 %v2102
    %2684 = vmatpush1.bf16.msra.mxu0 %v2101
    %2685 = vmatprep.subr.bf16.mxu0 %v2106
    %2686 = vmatpush1.bf16.msra.mxu0 %v2105
    %2687 = vmatprep.subr.bf16.mxu0 %v2110
    %2688 = vmatpush1.bf16.msra.mxu0 %v2109
    %2689 = vmatprep.subr.bf16.mxu0 %v2114
    %2690 = vmatpush1.bf16.msra.mxu0 %v2113
    %2691 = vmatprep.subr.bf16.mxu0 %v2118
    %2692 = vmatpush1.bf16.msra.mxu0 %v2117
    %2693 = vmatprep.subr.bf16.mxu0 %v2122
    %2694 = vmatpush1.bf16.msra.mxu0 %v2121
    %2695 = vmatprep.subr.bf16.mxu0 0
    %2696 = vmatpush1.bf16.msra.mxu0 0
    %2697 = vmatprep.subr.bf16.mxu0 0
    %2698 = vmatpush1.bf16.msra.mxu0 0
    %2699 = vmatprep.subr.bf16.mxu0 0
    %2700 = vmatpush1.bf16.msra.mxu0 0
    %2701 = vmatprep.subr.bf16.mxu0 0
    %2702 = vmatpush1.bf16.msra.mxu0 0
    %2703 = vmatprep.subr.bf16.mxu0 0
    %2704 = vmatpush1.bf16.msra.mxu0 0
    %2705 = vmatprep.subr.bf16.mxu0 0
    %2706 = vmatpush1.bf16.msra.mxu0 0
    %2707 = vmatprep.subr.bf16.mxu0 0
    %2708 = vmatpush1.bf16.msra.mxu0 0
    %2709 = vmatprep.subr.bf16.mxu0 0
    %2710 = vmatpush1.bf16.msra.mxu0 0
    %2711 = vmatprep.mubr.bf16.mxu0 0
    %2712 = vmatmul.mubr.bf16.gmra.mrb[0].mxu0 %v2259
    %v2713 = vpop.f32.mrb[0].mxu0
    %v2714 = vadd.f32 0.0, %v2713
    %v2715 = vpop.f32.mrb[0].mxu0
    %v2716 = vadd.f32 0.0, %v2715
    %v2717 = vpop.f32.mrb[0].mxu0
    %v2718 = vpop.f32.mrb[0].mxu0
    %2719 = vdwg.mxu0
    %v2720 = vadd.f32 %v2591, %v2673
    %v2721 = vadd.f32 %v2593, %v2675
    %v2722 = vadd.f32 %v2632, %v2714
    %v2723 = vadd.f32 %v2634, %v2716
    %v2724 = vmul.f32 %v2720, 0.5
    %v2725 = vmul.f32 %v2721, 0.5
    %v2726 = vmul.f32 %v2722, 0.5
    %v2727 = vtanh.pop %v2724
    %v2728 = vtanh.pop %v2725
    %v2729 = vtanh.pop %v2726
    %v2730 = vmul.f32 %v2727, 0.5
    %v2731 = vmul.f32 %v2728, 0.5
    %v2732 = vmul.f32 %v2729, 0.5
    %v2733 = vadd.f32 %v2730, 0.5
    %v2734 = vadd.f32 %v2731, 0.5
    %v2735 = vadd.f32 %v2732, 0.5
    %v2736 = vtanh.pop %v2723
    %v2737 = vmul.f32 %v2734, %v2256
    %v2738 = vmul.f32 %v2733, %v2736
    %v2739 = vadd.f32 %v2737, %v2738
    %v2740 = vtanh.pop %v2739
    %v2741 = vmul.f32 %v2735, %v2740
    %v2742 = vpack.c.bf16 %v2741, %v2741
    %v2743 = vld [vmem:[#allocation2 + $0x60] sm:$0xff]
    %v2744 = vld [vmem:[#allocation2 + $0x68] sm:$0xff]
    %v2745 = vld [vmem:[#allocation2 + $0x70] sm:$0xff]
    %v2746 = vld [vmem:[#allocation2 + $0x78] sm:$0xff]
    %2747 = vmatprep.subr.bf16.mxu0 %v1334
    %2748 = vmatpush1.bf16.msra.mxu0 %v1333
    %2749 = vmatprep.subr.bf16.mxu0 %v1338
    %2750 = vmatpush1.bf16.msra.mxu0 %v1337
    %2751 = vmatprep.subr.bf16.mxu0 %v1342
    %2752 = vmatpush1.bf16.msra.mxu0 %v1341
    %2753 = vmatprep.subr.bf16.mxu0 %v1346
    %2754 = vmatpush1.bf16.msra.mxu0 %v1345
    %2755 = vmatprep.subr.bf16.mxu0 %v1350
    %2756 = vmatpush1.bf16.msra.mxu0 %v1349
    %2757 = vmatprep.subr.bf16.mxu0 %v1354
    %2758 = vmatpush1.bf16.msra.mxu0 %v1353
    %2759 = vmatprep.subr.bf16.mxu0 %v1358
    %2760 = vmatpush1.bf16.msra.mxu0 %v1357
    %2761 = vmatprep.subr.bf16.mxu0 %v1362
    %2762 = vmatpush1.bf16.msra.mxu0 %v1361
    %2763 = vmatprep.subr.bf16.mxu0 0
    %2764 = vmatpush1.bf16.msra.mxu0 0
    %2765 = vmatprep.subr.bf16.mxu0 0
    %2766 = vmatpush1.bf16.msra.mxu0 0
    %2767 = vmatprep.subr.bf16.mxu0 0
    %2768 = vmatpush1.bf16.msra.mxu0 0
    %2769 = vmatprep.subr.bf16.mxu0 0
    %2770 = vmatpush1.bf16.msra.mxu0 0
    %2771 = vmatprep.subr.bf16.mxu0 0
    %2772 = vmatpush1.bf16.msra.mxu0 0
    %2773 = vmatprep.subr.bf16.mxu0 0
    %2774 = vmatpush1.bf16.msra.mxu0 0
    %2775 = vmatprep.subr.bf16.mxu0 0
    %2776 = vmatpush1.bf16.msra.mxu0 0
    %2777 = vmatprep.subr.bf16.mxu0 0
    %2778 = vmatpush1.bf16.msra.mxu0 0
    %2779 = vmatprep.mubr.bf16.mxu0 0
    %2780 = vmatmul.mubr.bf16.gmra.mrb[0].mxu0 %v2368
    %v2781 = vpop.f32.mrb[0].mxu0
    %v2782 = vadd.f32 0.0, %v2781
    %v2783 = vpop.f32.mrb[0].mxu0
    %v2784 = vadd.f32 0.0, %v2783
    %v2785 = vpop.f32.mrb[0].mxu0
    %v2786 = vpop.f32.mrb[0].mxu0
    %2787 = vdwg.mxu0
    %2788 = vmatprep.subr.bf16.mxu0 %v1336
    %2789 = vmatpush1.bf16.msra.mxu0 %v1335
    %2790 = vmatprep.subr.bf16.mxu0 %v1340
    %2791 = vmatpush1.bf16.msra.mxu0 %v1339
    %2792 = vmatprep.subr.bf16.mxu0 %v1344
    %2793 = vmatpush1.bf16.msra.mxu0 %v1343
    %2794 = vmatprep.subr.bf16.mxu0 %v1348
    %2795 = vmatpush1.bf16.msra.mxu0 %v1347
    %2796 = vmatprep.subr.bf16.mxu0 %v1352
    %2797 = vmatpush1.bf16.msra.mxu0 %v1351
    %2798 = vmatprep.subr.bf16.mxu0 %v1356
    %2799 = vmatpush1.bf16.msra.mxu0 %v1355
    %2800 = vmatprep.subr.bf16.mxu0 %v1360
    %2801 = vmatpush1.bf16.msra.mxu0 %v1359
    %2802 = vmatprep.subr.bf16.mxu0 %v1364
    %2803 = vmatpush1.bf16.msra.mxu0 %v1363
    %2804 = vmatprep.subr.bf16.mxu0 0
    %2805 = vmatpush1.bf16.msra.mxu0 0
    %2806 = vmatprep.subr.bf16.mxu0 0
    %2807 = vmatpush1.bf16.msra.mxu0 0
    %2808 = vmatprep.subr.bf16.mxu0 0
    %2809 = vmatpush1.bf16.msra.mxu0 0
    %2810 = vmatprep.subr.bf16.mxu0 0
    %2811 = vmatpush1.bf16.msra.mxu0 0
    %2812 = vmatprep.subr.bf16.mxu0 0
    %2813 = vmatpush1.bf16.msra.mxu0 0
    %2814 = vmatprep.subr.bf16.mxu0 0
    %2815 = vmatpush1.bf16.msra.mxu0 0
    %2816 = vmatprep.subr.bf16.mxu0 0
    %2817 = vmatpush1.bf16.msra.mxu0 0
    %2818 = vmatprep.subr.bf16.mxu0 0
    %2819 = vmatpush1.bf16.msra.mxu0 0
    %2820 = vmatprep.mubr.bf16.mxu0 0
    %2821 = vmatmul.mubr.bf16.gmra.mrb[0].mxu0 %v2368
    %v2822 = vpop.f32.mrb[0].mxu0
    %v2823 = vadd.f32 0.0, %v2822
    %v2824 = vpop.f32.mrb[0].mxu0
    %v2825 = vadd.f32 0.0, %v2824
    %v2826 = vpop.f32.mrb[0].mxu0
    %v2827 = vpop.f32.mrb[0].mxu0
    %2828 = vdwg.mxu0
    %v2829 = vadd.f32 %v2743, %v2782
    %v2830 = vadd.f32 %v2744, %v2784
    %v2831 = vadd.f32 %v2745, %v2823
    %v2832 = vadd.f32 %v2746, %v2825
    %v2833 = vmul.f32 %v2829, 0.5
    %v2834 = vmul.f32 %v2830, 0.5
    %v2835 = vmul.f32 %v2831, 0.5
    %v2836 = vtanh.pop %v2833
    %v2837 = vtanh.pop %v2834
    %v2838 = vtanh.pop %v2835
    %v2839 = vmul.f32 %v2836, 0.5
    %v2840 = vmul.f32 %v2837, 0.5
    %v2841 = vmul.f32 %v2838, 0.5
    %v2842 = vadd.f32 %v2839, 0.5
    %v2843 = vadd.f32 %v2840, 0.5
    %v2844 = vadd.f32 %v2841, 0.5
    %v2845 = vtanh.pop %v2832
    %v2846 = vmul.f32 %v2843, %v2365
    %v2847 = vmul.f32 %v2842, %v2845
    %v2848 = vadd.f32 %v2846, %v2847
    %v2849 = vtanh.pop %v2848
    %v2850 = vmul.f32 %v2844, %v2849
    %v2851 = vpack.c.bf16 %v2850, %v2850
    %2852 = vmatprep.subr.bf16.mxu0 %v722
    %2853 = vmatpush1.bf16.msra.mxu0 %v721
    %2854 = vmatprep.subr.bf16.mxu0 %v726
    %2855 = vmatpush1.bf16.msra.mxu0 %v725
    %2856 = vmatprep.subr.bf16.mxu0 %v730
    %2857 = vmatpush1.bf16.msra.mxu0 %v729
    %2858 = vmatprep.subr.bf16.mxu0 %v734
    %2859 = vmatpush1.bf16.msra.mxu0 %v733
    %2860 = vmatprep.subr.bf16.mxu0 %v738
    %2861 = vmatpush1.bf16.msra.mxu0 %v737
    %2862 = vmatprep.subr.bf16.mxu0 %v742
    %2863 = vmatpush1.bf16.msra.mxu0 %v741
    %2864 = vmatprep.subr.bf16.mxu0 %v746
    %2865 = vmatpush1.bf16.msra.mxu0 %v745
    %2866 = vmatprep.subr.bf16.mxu0 %v750
    %2867 = vmatpush1.bf16.msra.mxu0 %v749
    %2868 = vmatprep.subr.bf16.mxu0 0
    %2869 = vmatpush1.bf16.msra.mxu0 0
    %2870 = vmatprep.subr.bf16.mxu0 0
    %2871 = vmatpush1.bf16.msra.mxu0 0
    %2872 = vmatprep.subr.bf16.mxu0 0
    %2873 = vmatpush1.bf16.msra.mxu0 0
    %2874 = vmatprep.subr.bf16.mxu0 0
    %2875 = vmatpush1.bf16.msra.mxu0 0
    %2876 = vmatprep.subr.bf16.mxu0 0
    %2877 = vmatpush1.bf16.msra.mxu0 0
    %2878 = vmatprep.subr.bf16.mxu0 0
    %2879 = vmatpush1.bf16.msra.mxu0 0
    %2880 = vmatprep.subr.bf16.mxu0 0
    %2881 = vmatpush1.bf16.msra.mxu0 0
    %2882 = vmatprep.subr.bf16.mxu0 0
    %2883 = vmatpush1.bf16.msra.mxu0 0
    %2884 = vmatprep.mubr.bf16.mxu0 0
    %2885 = vmatmul.mubr.bf16.gmra.mrb[0].mxu0 %v2851
    %v2886 = vpop.f32.mrb[0].mxu0
    %v2887 = vadd.f32 %v608, %v2886
    %v2888 = vpop.f32.mrb[0].mxu0
    %v2889 = vadd.f32 %v612, %v2888
    %v2890 = vpop.f32.mrb[0].mxu0
    %v2891 = vpop.f32.mrb[0].mxu0
    %2892 = vdwg.mxu0
    %2893 = vmatprep.subr.bf16.mxu0 %v724
    %2894 = vmatpush1.bf16.msra.mxu0 %v723
    %2895 = vmatprep.subr.bf16.mxu0 %v728
    %2896 = vmatpush1.bf16.msra.mxu0 %v727
    %2897 = vmatprep.subr.bf16.mxu0 %v732
    %2898 = vmatpush1.bf16.msra.mxu0 %v731
    %2899 = vmatprep.subr.bf16.mxu0 %v736
    %2900 = vmatpush1.bf16.msra.mxu0 %v735
    %2901 = vmatprep.subr.bf16.mxu0 %v740
    %2902 = vmatpush1.bf16.msra.mxu0 %v739
    %2903 = vmatprep.subr.bf16.mxu0 %v744
    %2904 = vmatpush1.bf16.msra.mxu0 %v743
    %2905 = vmatprep.subr.bf16.mxu0 %v748
    %2906 = vmatpush1.bf16.msra.mxu0 %v747
    %2907 = vmatprep.subr.bf16.mxu0 %v752
    %2908 = vmatpush1.bf16.msra.mxu0 %v751
    %2909 = vmatprep.subr.bf16.mxu0 0
    %2910 = vmatpush1.bf16.msra.mxu0 0
    %2911 = vmatprep.subr.bf16.mxu0 0
    %2912 = vmatpush1.bf16.msra.mxu0 0
    %2913 = vmatprep.subr.bf16.mxu0 0
    %2914 = vmatpush1.bf16.msra.mxu0 0
    %2915 = vmatprep.subr.bf16.mxu0 0
    %2916 = vmatpush1.bf16.msra.mxu0 0
    %2917 = vmatprep.subr.bf16.mxu0 0
    %2918 = vmatpush1.bf16.msra.mxu0 0
    %2919 = vmatprep.subr.bf16.mxu0 0
    %2920 = vmatpush1.bf16.msra.mxu0 0
    %2921 = vmatprep.subr.bf16.mxu0 0
    %2922 = vmatpush1.bf16.msra.mxu0 0
    %2923 = vmatprep.subr.bf16.mxu0 0
    %2924 = vmatpush1.bf16.msra.mxu0 0
    %2925 = vmatprep.mubr.bf16.mxu0 0
    %2926 = vmatmul.mubr.bf16.gmra.mrb[0].mxu0 %v2851
    %v2927 = vpop.f32.mrb[0].mxu0
    %v2928 = vadd.f32 %v616, %v2927
    %v2929 = vpop.f32.mrb[0].mxu0
    %v2930 = vadd.f32 %v620, %v2929
    %v2931 = vpop.f32.mrb[0].mxu0
    %v2932 = vpop.f32.mrb[0].mxu0
    %2933 = vdwg.mxu0
    %2934 = vmatprep.subr.bf16.mxu0 %v1713
    %2935 = vmatpush1.bf16.msra.mxu0 %v1712
    %2936 = vmatprep.subr.bf16.mxu0 %v1717
    %2937 = vmatpush1.bf16.msra.mxu0 %v1716
    %2938 = vmatprep.subr.bf16.mxu0 %v1721
    %2939 = vmatpush1.bf16.msra.mxu0 %v1720
    %2940 = vmatprep.subr.bf16.mxu0 %v1725
    %2941 = vmatpush1.bf16.msra.mxu0 %v1724
    %2942 = vmatprep.subr.bf16.mxu0 %v1729
    %2943 = vmatpush1.bf16.msra.mxu0 %v1728
    %2944 = vmatprep.subr.bf16.mxu0 %v1733
    %2945 = vmatpush1.bf16.msra.mxu0 %v1732
    %2946 = vmatprep.subr.bf16.mxu0 %v1737
    %2947 = vmatpush1.bf16.msra.mxu0 %v1736
    %2948 = vmatprep.subr.bf16.mxu0 %v1741
    %2949 = vmatpush1.bf16.msra.mxu0 %v1740
    %2950 = vmatprep.subr.bf16.mxu0 0
    %2951 = vmatpush1.bf16.msra.mxu0 0
    %2952 = vmatprep.subr.bf16.mxu0 0
    %2953 = vmatpush1.bf16.msra.mxu0 0
    %2954 = vmatprep.subr.bf16.mxu0 0
    %2955 = vmatpush1.bf16.msra.mxu0 0
    %2956 = vmatprep.subr.bf16.mxu0 0
    %2957 = vmatpush1.bf16.msra.mxu0 0
    %2958 = vmatprep.subr.bf16.mxu0 0
    %2959 = vmatpush1.bf16.msra.mxu0 0
    %2960 = vmatprep.subr.bf16.mxu0 0
    %2961 = vmatpush1.bf16.msra.mxu0 0
    %2962 = vmatprep.subr.bf16.mxu0 0
    %2963 = vmatpush1.bf16.msra.mxu0 0
    %2964 = vmatprep.subr.bf16.mxu0 0
    %2965 = vmatpush1.bf16.msra.mxu0 0
    %2966 = vmatprep.mubr.bf16.mxu0 0
    %2967 = vmatmul.mubr.bf16.gmra.mrb[0].mxu0 %v2555
    %v2968 = vpop.f32.mrb[0].mxu0
    %v2969 = vadd.f32 0.0, %v2968
    %v2970 = vpop.f32.mrb[0].mxu0
    %v2971 = vadd.f32 0.0, %v2970
    %v2972 = vpop.f32.mrb[0].mxu0
    %v2973 = vpop.f32.mrb[0].mxu0
    %2974 = vdwg.mxu0
    %2975 = vmatprep.subr.bf16.mxu0 %v1715
    %2976 = vmatpush1.bf16.msra.mxu0 %v1714
    %2977 = vmatprep.subr.bf16.mxu0 %v1719
    %2978 = vmatpush1.bf16.msra.mxu0 %v1718
    %2979 = vmatprep.subr.bf16.mxu0 %v1723
    %2980 = vmatpush1.bf16.msra.mxu0 %v1722
    %2981 = vmatprep.subr.bf16.mxu0 %v1727
    %2982 = vmatpush1.bf16.msra.mxu0 %v1726
    %2983 = vmatprep.subr.bf16.mxu0 %v1731
    %2984 = vmatpush1.bf16.msra.mxu0 %v1730
    %2985 = vmatprep.subr.bf16.mxu0 %v1735
    %2986 = vmatpush1.bf16.msra.mxu0 %v1734
    %2987 = vmatprep.subr.bf16.mxu0 %v1739
    %2988 = vmatpush1.bf16.msra.mxu0 %v1738
    %2989 = vmatprep.subr.bf16.mxu0 %v1743
    %2990 = vmatpush1.bf16.msra.mxu0 %v1742
    %2991 = vmatprep.subr.bf16.mxu0 0
    %2992 = vmatpush1.bf16.msra.mxu0 0
    %2993 = vmatprep.subr.bf16.mxu0 0
    %2994 = vmatpush1.bf16.msra.mxu0 0
    %2995 = vmatprep.subr.bf16.mxu0 0
    %2996 = vmatpush1.bf16.msra.mxu0 0
    %2997 = vmatprep.subr.bf16.mxu0 0
    %2998 = vmatpush1.bf16.msra.mxu0 0
    %2999 = vmatprep.subr.bf16.mxu0 0
    %3000 = vmatpush1.bf16.msra.mxu0 0
    %3001 = vmatprep.subr.bf16.mxu0 0
    %3002 = vmatpush1.bf16.msra.mxu0 0
    %3003 = vmatprep.subr.bf16.mxu0 0
    %3004 = vmatpush1.bf16.msra.mxu0 0
    %3005 = vmatprep.subr.bf16.mxu0 0
    %3006 = vmatpush1.bf16.msra.mxu0 0
    %3007 = vmatprep.mubr.bf16.mxu0 0
    %3008 = vmatmul.mubr.bf16.gmra.mrb[0].mxu0 %v2555
    %v3009 = vpop.f32.mrb[0].mxu0
    %v3010 = vadd.f32 0.0, %v3009
    %v3011 = vpop.f32.mrb[0].mxu0
    %v3012 = vadd.f32 0.0, %v3011
    %v3013 = vpop.f32.mrb[0].mxu0
    %v3014 = vpop.f32.mrb[0].mxu0
    %3015 = vdwg.mxu0
    %v3016 = vadd.f32 %v2887, %v2969
    %v3017 = vadd.f32 %v2889, %v2971
    %v3018 = vadd.f32 %v2928, %v3010
    %v3019 = vadd.f32 %v2930, %v3012
    %v3020 = vmul.f32 %v3016, 0.5
    %v3021 = vmul.f32 %v3017, 0.5
    %v3022 = vmul.f32 %v3018, 0.5
    %v3023 = vtanh.pop %v3020
    %v3024 = vtanh.pop %v3021
    %v3025 = vtanh.pop %v3022
    %v3026 = vmul.f32 %v3023, 0.5
    %v3027 = vmul.f32 %v3024, 0.5
    %v3028 = vmul.f32 %v3025, 0.5
    %v3029 = vadd.f32 %v3026, 0.5
    %v3030 = vadd.f32 %v3027, 0.5
    %v3031 = vadd.f32 %v3028, 0.5
    %v3032 = vtanh.pop %v3019
    %v3033 = vmul.f32 %v3030, %v2552
    %v3034 = vmul.f32 %v3029, %v3032
    %v3035 = vadd.f32 %v3033, %v3034
    %v3036 = vtanh.pop %v3035
    %v3037 = vmul.f32 %v3031, %v3036
    %v3038 = vpack.c.bf16 %v3037, %v3037
    %3039 = vmatprep.subr.bf16.mxu0 %v1037
    %3040 = vmatpush1.bf16.msra.mxu0 %v1036
    %3041 = vmatprep.subr.bf16.mxu0 %v1041
    %3042 = vmatpush1.bf16.msra.mxu0 %v1040
    %3043 = vmatprep.subr.bf16.mxu0 %v1045
    %3044 = vmatpush1.bf16.msra.mxu0 %v1044
    %3045 = vmatprep.subr.bf16.mxu0 %v1049
    %3046 = vmatpush1.bf16.msra.mxu0 %v1048
    %3047 = vmatprep.subr.bf16.mxu0 %v1053
    %3048 = vmatpush1.bf16.msra.mxu0 %v1052
    %3049 = vmatprep.subr.bf16.mxu0 %v1057
    %3050 = vmatpush1.bf16.msra.mxu0 %v1056
    %3051 = vmatprep.subr.bf16.mxu0 %v1061
    %3052 = vmatpush1.bf16.msra.mxu0 %v1060
    %3053 = vmatprep.subr.bf16.mxu0 %v1065
    %3054 = vmatpush1.bf16.msra.mxu0 %v1064
    %3055 = vmatprep.subr.bf16.mxu0 0
    %3056 = vmatpush1.bf16.msra.mxu0 0
    %3057 = vmatprep.subr.bf16.mxu0 0
    %3058 = vmatpush1.bf16.msra.mxu0 0
    %3059 = vmatprep.subr.bf16.mxu0 0
    %3060 = vmatpush1.bf16.msra.mxu0 0
    %3061 = vmatprep.subr.bf16.mxu0 0
    %3062 = vmatpush1.bf16.msra.mxu0 0
    %3063 = vmatprep.subr.bf16.mxu0 0
    %3064 = vmatpush1.bf16.msra.mxu0 0
    %3065 = vmatprep.subr.bf16.mxu0 0
    %3066 = vmatpush1.bf16.msra.mxu0 0
    %3067 = vmatprep.subr.bf16.mxu0 0
    %3068 = vmatpush1.bf16.msra.mxu0 0
    %3069 = vmatprep.subr.bf16.mxu0 0
    %3070 = vmatpush1.bf16.msra.mxu0 0
    %3071 = vmatprep.mubr.bf16.mxu0 0
    %3072 = vmatmul.mubr.bf16.gmra.mrb[0].mxu0 %v3038
    %v3073 = vpop.f32.mrb[0].mxu0
    %v3074 = vadd.f32 %v923, %v3073
    %v3075 = vpop.f32.mrb[0].mxu0
    %v3076 = vadd.f32 %v927, %v3075
    %v3077 = vpop.f32.mrb[0].mxu0
    %v3078 = vpop.f32.mrb[0].mxu0
    %3079 = vdwg.mxu0
    %3080 = vmatprep.subr.bf16.mxu0 %v1039
    %3081 = vmatpush1.bf16.msra.mxu0 %v1038
    %3082 = vmatprep.subr.bf16.mxu0 %v1043
    %3083 = vmatpush1.bf16.msra.mxu0 %v1042
    %3084 = vmatprep.subr.bf16.mxu0 %v1047
    %3085 = vmatpush1.bf16.msra.mxu0 %v1046
    %3086 = vmatprep.subr.bf16.mxu0 %v1051
    %3087 = vmatpush1.bf16.msra.mxu0 %v1050
    %3088 = vmatprep.subr.bf16.mxu0 %v1055
    %3089 = vmatpush1.bf16.msra.mxu0 %v1054
    %3090 = vmatprep.subr.bf16.mxu0 %v1059
    %3091 = vmatpush1.bf16.msra.mxu0 %v1058
    %3092 = vmatprep.subr.bf16.mxu0 %v1063
    %3093 = vmatpush1.bf16.msra.mxu0 %v1062
    %3094 = vmatprep.subr.bf16.mxu0 %v1067
    %3095 = vmatpush1.bf16.msra.mxu0 %v1066
    %3096 = vmatprep.subr.bf16.mxu0 0
    %3097 = vmatpush1.bf16.msra.mxu0 0
    %3098 = vmatprep.subr.bf16.mxu0 0
    %3099 = vmatpush1.bf16.msra.mxu0 0
    %3100 = vmatprep.subr.bf16.mxu0 0
    %3101 = vmatpush1.bf16.msra.mxu0 0
    %3102 = vmatprep.subr.bf16.mxu0 0
    %3103 = vmatpush1.bf16.msra.mxu0 0
    %3104 = vmatprep.subr.bf16.mxu0 0
    %3105 = vmatpush1.bf16.msra.mxu0 0
    %3106 = vmatprep.subr.bf16.mxu0 0
    %3107 = vmatpush1.bf16.msra.mxu0 0
    %3108 = vmatprep.subr.bf16.mxu0 0
    %3109 = vmatpush1.bf16.msra.mxu0 0
    %3110 = vmatprep.subr.bf16.mxu0 0
    %3111 = vmatpush1.bf16.msra.mxu0 0
    %3112 = vmatprep.mubr.bf16.mxu0 0
    %3113 = vmatmul.mubr.bf16.gmra.mrb[0].mxu0 %v3038
    %v3114 = vpop.f32.mrb[0].mxu0
    %v3115 = vadd.f32 %v931, %v3114
    %v3116 = vpop.f32.mrb[0].mxu0
    %v3117 = vadd.f32 %v935, %v3116
    %v3118 = vpop.f32.mrb[0].mxu0
    %v3119 = vpop.f32.mrb[0].mxu0
    %3120 = vdwg.mxu0
    %3121 = vmatprep.subr.bf16.mxu0 %v2092
    %3122 = vmatpush1.bf16.msra.mxu0 %v2091
    %3123 = vmatprep.subr.bf16.mxu0 %v2096
    %3124 = vmatpush1.bf16.msra.mxu0 %v2095
    %3125 = vmatprep.subr.bf16.mxu0 %v2100
    %3126 = vmatpush1.bf16.msra.mxu0 %v2099
    %3127 = vmatprep.subr.bf16.mxu0 %v2104
    %3128 = vmatpush1.bf16.msra.mxu0 %v2103
    %3129 = vmatprep.subr.bf16.mxu0 %v2108
    %3130 = vmatpush1.bf16.msra.mxu0 %v2107
    %3131 = vmatprep.subr.bf16.mxu0 %v2112
    %3132 = vmatpush1.bf16.msra.mxu0 %v2111
    %3133 = vmatprep.subr.bf16.mxu0 %v2116
    %3134 = vmatpush1.bf16.msra.mxu0 %v2115
    %3135 = vmatprep.subr.bf16.mxu0 %v2120
    %3136 = vmatpush1.bf16.msra.mxu0 %v2119
    %3137 = vmatprep.subr.bf16.mxu0 0
    %3138 = vmatpush1.bf16.msra.mxu0 0
    %3139 = vmatprep.subr.bf16.mxu0 0
    %3140 = vmatpush1.bf16.msra.mxu0 0
    %3141 = vmatprep.subr.bf16.mxu0 0
    %3142 = vmatpush1.bf16.msra.mxu0 0
    %3143 = vmatprep.subr.bf16.mxu0 0
    %3144 = vmatpush1.bf16.msra.mxu0 0
    %3145 = vmatprep.subr.bf16.mxu0 0
    %3146 = vmatpush1.bf16.msra.mxu0 0
    %3147 = vmatprep.subr.bf16.mxu0 0
    %3148 = vmatpush1.bf16.msra.mxu0 0
    %3149 = vmatprep.subr.bf16.mxu0 0
    %3150 = vmatpush1.bf16.msra.mxu0 0
    %3151 = vmatprep.subr.bf16.mxu0 0
    %3152 = vmatpush1.bf16.msra.mxu0 0
    %3153 = vmatprep.mubr.bf16.mxu0 0
    %3154 = vmatmul.mubr.bf16.gmra.mrb[0].mxu0 %v2742
    %v3155 = vpop.f32.mrb[0].mxu0
    %v3156 = vadd.f32 0.0, %v3155
    %v3157 = vpop.f32.mrb[0].mxu0
    %v3158 = vadd.f32 0.0, %v3157
    %v3159 = vpop.f32.mrb[0].mxu0
    %v3160 = vpop.f32.mrb[0].mxu0
    %3161 = vdwg.mxu0
    %3162 = vmatprep.subr.bf16.mxu0 %v2094
    %3163 = vmatpush1.bf16.msra.mxu0 %v2093
    %3164 = vmatprep.subr.bf16.mxu0 %v2098
    %3165 = vmatpush1.bf16.msra.mxu0 %v2097
    %3166 = vmatprep.subr.bf16.mxu0 %v2102
    %3167 = vmatpush1.bf16.msra.mxu0 %v2101
    %3168 = vmatprep.subr.bf16.mxu0 %v2106
    %3169 = vmatpush1.bf16.msra.mxu0 %v2105
    %3170 = vmatprep.subr.bf16.mxu0 %v2110
    %3171 = vmatpush1.bf16.msra.mxu0 %v2109
    %3172 = vmatprep.subr.bf16.mxu0 %v2114
    %3173 = vmatpush1.bf16.msra.mxu0 %v2113
    %3174 = vmatprep.subr.bf16.mxu0 %v2118
    %3175 = vmatpush1.bf16.msra.mxu0 %v2117
    %3176 = vmatprep.subr.bf16.mxu0 %v2122
    %3177 = vmatpush1.bf16.msra.mxu0 %v2121
    %3178 = vmatprep.subr.bf16.mxu0 0
    %3179 = vmatpush1.bf16.msra.mxu0 0
    %3180 = vmatprep.subr.bf16.mxu0 0
    %3181 = vmatpush1.bf16.msra.mxu0 0
    %3182 = vmatprep.subr.bf16.mxu0 0
    %3183 = vmatpush1.bf16.msra.mxu0 0
    %3184 = vmatprep.subr.bf16.mxu0 0
    %3185 = vmatpush1.bf16.msra.mxu0 0
    %3186 = vmatprep.subr.bf16.mxu0 0
    %3187 = vmatpush1.bf16.msra.mxu0 0
    %3188 = vmatprep.subr.bf16.mxu0 0
    %3189 = vmatpush1.bf16.msra.mxu0 0
    %3190 = vmatprep.subr.bf16.mxu0 0
    %3191 = vmatpush1.bf16.msra.mxu0 0
    %3192 = vmatprep.subr.bf16.mxu0 0
    %3193 = vmatpush1.bf16.msra.mxu0 0
    %3194 = vmatprep.mubr.bf16.mxu0 0
    %3195 = vmatmul.mubr.bf16.gmra.mrb[0].mxu0 %v2742
    %v3196 = vpop.f32.mrb[0].mxu0
    %v3197 = vadd.f32 0.0, %v3196
    %v3198 = vpop.f32.mrb[0].mxu0
    %v3199 = vadd.f32 0.0, %v3198
    %v3200 = vpop.f32.mrb[0].mxu0
    %v3201 = vpop.f32.mrb[0].mxu0
    %3202 = vdwg.mxu0
    %v3203 = vadd.f32 %v3074, %v3156
    %v3204 = vadd.f32 %v3076, %v3158
    %v3205 = vadd.f32 %v3115, %v3197
    %v3206 = vadd.f32 %v3117, %v3199
    %v3207 = vmul.f32 %v3203, 0.5
    %v3208 = vmul.f32 %v3204, 0.5
    %v3209 = vmul.f32 %v3205, 0.5
    %v3210 = vtanh.pop %v3207
    %v3211 = vtanh.pop %v3208
    %v3212 = vtanh.pop %v3209
    %v3213 = vmul.f32 %v3210, 0.5
    %v3214 = vmul.f32 %v3211, 0.5
    %v3215 = vmul.f32 %v3212, 0.5
    %v3216 = vadd.f32 %v3213, 0.5
    %v3217 = vadd.f32 %v3214, 0.5
    %v3218 = vadd.f32 %v3215, 0.5
    %v3219 = vtanh.pop %v3206
    %v3220 = vmul.f32 %v3217, %v2739
    %v3221 = vmul.f32 %v3216, %v3219
    %v3222 = vadd.f32 %v3220, %v3221
    %v3223 = vtanh.pop %v3222
    %v3224 = vmul.f32 %v3218, %v3223
    %v3225 = vpack.c.bf16 %v3224, %v3224
    %v3226 = vld [vmem:[#allocation2 + $0x80] sm:$0xff]
    %v3227 = vld [vmem:[#allocation2 + $0x88] sm:$0xff]
    %v3228 = vld [vmem:[#allocation2 + $0x90] sm:$0xff]
    %v3229 = vld [vmem:[#allocation2 + $0x98] sm:$0xff]
    %3230 = vmatprep.subr.bf16.mxu0 %v1334
    %3231 = vmatpush1.bf16.msra.mxu0 %v1333
    %3232 = vmatprep.subr.bf16.mxu0 %v1338
    %3233 = vmatpush1.bf16.msra.mxu0 %v1337
    %3234 = vmatprep.subr.bf16.mxu0 %v1342
    %3235 = vmatpush1.bf16.msra.mxu0 %v1341
    %3236 = vmatprep.subr.bf16.mxu0 %v1346
    %3237 = vmatpush1.bf16.msra.mxu0 %v1345
    %3238 = vmatprep.subr.bf16.mxu0 %v1350
    %3239 = vmatpush1.bf16.msra.mxu0 %v1349
    %3240 = vmatprep.subr.bf16.mxu0 %v1354
    %3241 = vmatpush1.bf16.msra.mxu0 %v1353
    %3242 = vmatprep.subr.bf16.mxu0 %v1358
    %3243 = vmatpush1.bf16.msra.mxu0 %v1357
    %3244 = vmatprep.subr.bf16.mxu0 %v1362
    %3245 = vmatpush1.bf16.msra.mxu0 %v1361
    %3246 = vmatprep.subr.bf16.mxu0 0
    %3247 = vmatpush1.bf16.msra.mxu0 0
    %3248 = vmatprep.subr.bf16.mxu0 0
    %3249 = vmatpush1.bf16.msra.mxu0 0
    %3250 = vmatprep.subr.bf16.mxu0 0
    %3251 = vmatpush1.bf16.msra.mxu0 0
    %3252 = vmatprep.subr.bf16.mxu0 0
    %3253 = vmatpush1.bf16.msra.mxu0 0
    %3254 = vmatprep.subr.bf16.mxu0 0
    %3255 = vmatpush1.bf16.msra.mxu0 0
    %3256 = vmatprep.subr.bf16.mxu0 0
    %3257 = vmatpush1.bf16.msra.mxu0 0
    %3258 = vmatprep.subr.bf16.mxu0 0
    %3259 = vmatpush1.bf16.msra.mxu0 0
    %3260 = vmatprep.subr.bf16.mxu0 0
    %3261 = vmatpush1.bf16.msra.mxu0 0
    %3262 = vmatprep.mubr.bf16.mxu0 0
    %3263 = vmatmul.mubr.bf16.gmra.mrb[0].mxu0 %v2851
    %v3264 = vpop.f32.mrb[0].mxu0
    %v3265 = vadd.f32 0.0, %v3264
    %v3266 = vpop.f32.mrb[0].mxu0
    %v3267 = vadd.f32 0.0, %v3266
    %v3268 = vpop.f32.mrb[0].mxu0
    %v3269 = vpop.f32.mrb[0].mxu0
    %3270 = vdwg.mxu0
    %3271 = vmatprep.subr.bf16.mxu0 %v1336
    %3272 = vmatpush1.bf16.msra.mxu0 %v1335
    %3273 = vmatprep.subr.bf16.mxu0 %v1340
    %3274 = vmatpush1.bf16.msra.mxu0 %v1339
    %3275 = vmatprep.subr.bf16.mxu0 %v1344
    %3276 = vmatpush1.bf16.msra.mxu0 %v1343
    %3277 = vmatprep.subr.bf16.mxu0 %v1348
    %3278 = vmatpush1.bf16.msra.mxu0 %v1347
    %3279 = vmatprep.subr.bf16.mxu0 %v1352
    %3280 = vmatpush1.bf16.msra.mxu0 %v1351
    %3281 = vmatprep.subr.bf16.mxu0 %v1356
    %3282 = vmatpush1.bf16.msra.mxu0 %v1355
    %3283 = vmatprep.subr.bf16.mxu0 %v1360
    %3284 = vmatpush1.bf16.msra.mxu0 %v1359
    %3285 = vmatprep.subr.bf16.mxu0 %v1364
    %3286 = vmatpush1.bf16.msra.mxu0 %v1363
    %3287 = vmatprep.subr.bf16.mxu0 0
    %3288 = vmatpush1.bf16.msra.mxu0 0
    %3289 = vmatprep.subr.bf16.mxu0 0
    %3290 = vmatpush1.bf16.msra.mxu0 0
    %3291 = vmatprep.subr.bf16.mxu0 0
    %3292 = vmatpush1.bf16.msra.mxu0 0
    %3293 = vmatprep.subr.bf16.mxu0 0
    %3294 = vmatpush1.bf16.msra.mxu0 0
    %3295 = vmatprep.subr.bf16.mxu0 0
    %3296 = vmatpush1.bf16.msra.mxu0 0
    %3297 = vmatprep.subr.bf16.mxu0 0
    %3298 = vmatpush1.bf16.msra.mxu0 0
    %3299 = vmatprep.subr.bf16.mxu0 0
    %3300 = vmatpush1.bf16.msra.mxu0 0
    %3301 = vmatprep.subr.bf16.mxu0 0
    %3302 = vmatpush1.bf16.msra.mxu0 0
    %3303 = vmatprep.mubr.bf16.mxu0 0
    %3304 = vmatmul.mubr.bf16.gmra.mrb[0].mxu0 %v2851
    %v3305 = vpop.f32.mrb[0].mxu0
    %v3306 = vadd.f32 0.0, %v3305
    %v3307 = vpop.f32.mrb[0].mxu0
    %v3308 = vadd.f32 0.0, %v3307
    %v3309 = vpop.f32.mrb[0].mxu0
    %v3310 = vpop.f32.mrb[0].mxu0
    %3311 = vdwg.mxu0
    %v3312 = vadd.f32 %v3226, %v3265
    %v3313 = vadd.f32 %v3227, %v3267
    %v3314 = vadd.f32 %v3228, %v3306
    %v3315 = vadd.f32 %v3229, %v3308
    %v3316 = vmul.f32 %v3312, 0.5
    %v3317 = vmul.f32 %v3313, 0.5
    %v3318 = vmul.f32 %v3314, 0.5
    %v3319 = vtanh.pop %v3316
    %v3320 = vtanh.pop %v3317
    %v3321 = vtanh.pop %v3318
    %v3322 = vmul.f32 %v3319, 0.5
    %v3323 = vmul.f32 %v3320, 0.5
    %v3324 = vmul.f32 %v3321, 0.5
    %v3325 = vadd.f32 %v3322, 0.5
    %v3326 = vadd.f32 %v3323, 0.5
    %v3327 = vadd.f32 %v3324, 0.5
    %v3328 = vtanh.pop %v3315
    %v3329 = vmul.f32 %v3326, %v2848
    %v3330 = vmul.f32 %v3325, %v3328
    %v3331 = vadd.f32 %v3329, %v3330
    %v3332 = vtanh.pop %v3331
    %v3333 = vmul.f32 %v3327, %v3332
    %v3334 = vpack.c.bf16 %v3333, %v3333
    %3335 = vmatprep.subr.bf16.mxu0 %v722
    %3336 = vmatpush1.bf16.msra.mxu0 %v721
    %3337 = vmatprep.subr.bf16.mxu0 %v726
    %3338 = vmatpush1.bf16.msra.mxu0 %v725
    %3339 = vmatprep.subr.bf16.mxu0 %v730
    %3340 = vmatpush1.bf16.msra.mxu0 %v729
    %3341 = vmatprep.subr.bf16.mxu0 %v734
    %3342 = vmatpush1.bf16.msra.mxu0 %v733
    %3343 = vmatprep.subr.bf16.mxu0 %v738
    %3344 = vmatpush1.bf16.msra.mxu0 %v737
    %3345 = vmatprep.subr.bf16.mxu0 %v742
    %3346 = vmatpush1.bf16.msra.mxu0 %v741
    %3347 = vmatprep.subr.bf16.mxu0 %v746
    %3348 = vmatpush1.bf16.msra.mxu0 %v745
    %3349 = vmatprep.subr.bf16.mxu0 %v750
    %3350 = vmatpush1.bf16.msra.mxu0 %v749
    %3351 = vmatprep.subr.bf16.mxu0 0
    %3352 = vmatpush1.bf16.msra.mxu0 0
    %3353 = vmatprep.subr.bf16.mxu0 0
    %3354 = vmatpush1.bf16.msra.mxu0 0
    %3355 = vmatprep.subr.bf16.mxu0 0
    %3356 = vmatpush1.bf16.msra.mxu0 0
    %3357 = vmatprep.subr.bf16.mxu0 0
    %3358 = vmatpush1.bf16.msra.mxu0 0
    %3359 = vmatprep.subr.bf16.mxu0 0
    %3360 = vmatpush1.bf16.msra.mxu0 0
    %3361 = vmatprep.subr.bf16.mxu0 0
    %3362 = vmatpush1.bf16.msra.mxu0 0
    %3363 = vmatprep.subr.bf16.mxu0 0
    %3364 = vmatpush1.bf16.msra.mxu0 0
    %3365 = vmatprep.subr.bf16.mxu0 0
    %3366 = vmatpush1.bf16.msra.mxu0 0
    %3367 = vmatprep.mubr.bf16.mxu0 0
    %3368 = vmatmul.mubr.bf16.gmra.mrb[0].mxu0 %v3334
    %v3369 = vpop.f32.mrb[0].mxu0
    %v3370 = vadd.f32 %v608, %v3369
    %v3371 = vpop.f32.mrb[0].mxu0
    %v3372 = vadd.f32 %v612, %v3371
    %v3373 = vpop.f32.mrb[0].mxu0
    %v3374 = vpop.f32.mrb[0].mxu0
    %3375 = vdwg.mxu0
    %3376 = vmatprep.subr.bf16.mxu0 %v724
    %3377 = vmatpush1.bf16.msra.mxu0 %v723
    %3378 = vmatprep.subr.bf16.mxu0 %v728
    %3379 = vmatpush1.bf16.msra.mxu0 %v727
    %3380 = vmatprep.subr.bf16.mxu0 %v732
    %3381 = vmatpush1.bf16.msra.mxu0 %v731
    %3382 = vmatprep.subr.bf16.mxu0 %v736
    %3383 = vmatpush1.bf16.msra.mxu0 %v735
    %3384 = vmatprep.subr.bf16.mxu0 %v740
    %3385 = vmatpush1.bf16.msra.mxu0 %v739
    %3386 = vmatprep.subr.bf16.mxu0 %v744
    %3387 = vmatpush1.bf16.msra.mxu0 %v743
    %3388 = vmatprep.subr.bf16.mxu0 %v748
    %3389 = vmatpush1.bf16.msra.mxu0 %v747
    %3390 = vmatprep.subr.bf16.mxu0 %v752
    %3391 = vmatpush1.bf16.msra.mxu0 %v751
    %3392 = vmatprep.subr.bf16.mxu0 0
    %3393 = vmatpush1.bf16.msra.mxu0 0
    %3394 = vmatprep.subr.bf16.mxu0 0
    %3395 = vmatpush1.bf16.msra.mxu0 0
    %3396 = vmatprep.subr.bf16.mxu0 0
    %3397 = vmatpush1.bf16.msra.mxu0 0
    %3398 = vmatprep.subr.bf16.mxu0 0
    %3399 = vmatpush1.bf16.msra.mxu0 0
    %3400 = vmatprep.subr.bf16.mxu0 0
    %3401 = vmatpush1.bf16.msra.mxu0 0
    %3402 = vmatprep.subr.bf16.mxu0 0
    %3403 = vmatpush1.bf16.msra.mxu0 0
    %3404 = vmatprep.subr.bf16.mxu0 0
    %3405 = vmatpush1.bf16.msra.mxu0 0
    %3406 = vmatprep.subr.bf16.mxu0 0
    %3407 = vmatpush1.bf16.msra.mxu0 0
    %3408 = vmatprep.mubr.bf16.mxu0 0
    %3409 = vmatmul.mubr.bf16.gmra.mrb[0].mxu0 %v3334
    %v3410 = vpop.f32.mrb[0].mxu0
    %v3411 = vadd.f32 %v616, %v3410
    %v3412 = vpop.f32.mrb[0].mxu0
    %v3413 = vadd.f32 %v620, %v3412
    %v3414 = vpop.f32.mrb[0].mxu0
    %v3415 = vpop.f32.mrb[0].mxu0
    %3416 = vdwg.mxu0
    %3417 = vmatprep.subr.bf16.mxu0 %v1713
    %3418 = vmatpush1.bf16.msra.mxu0 %v1712
    %3419 = vmatprep.subr.bf16.mxu0 %v1717
    %3420 = vmatpush1.bf16.msra.mxu0 %v1716
    %3421 = vmatprep.subr.bf16.mxu0 %v1721
    %3422 = vmatpush1.bf16.msra.mxu0 %v1720
    %3423 = vmatprep.subr.bf16.mxu0 %v1725
    %3424 = vmatpush1.bf16.msra.mxu0 %v1724
    %3425 = vmatprep.subr.bf16.mxu0 %v1729
    %3426 = vmatpush1.bf16.msra.mxu0 %v1728
    %3427 = vmatprep.subr.bf16.mxu0 %v1733
    %3428 = vmatpush1.bf16.msra.mxu0 %v1732
    %3429 = vmatprep.subr.bf16.mxu0 %v1737
    %3430 = vmatpush1.bf16.msra.mxu0 %v1736
    %3431 = vmatprep.subr.bf16.mxu0 %v1741
    %3432 = vmatpush1.bf16.msra.mxu0 %v1740
    %3433 = vmatprep.subr.bf16.mxu0 0
    %3434 = vmatpush1.bf16.msra.mxu0 0
    %3435 = vmatprep.subr.bf16.mxu0 0
    %3436 = vmatpush1.bf16.msra.mxu0 0
    %3437 = vmatprep.subr.bf16.mxu0 0
    %3438 = vmatpush1.bf16.msra.mxu0 0
    %3439 = vmatprep.subr.bf16.mxu0 0
    %3440 = vmatpush1.bf16.msra.mxu0 0
    %3441 = vmatprep.subr.bf16.mxu0 0
    %3442 = vmatpush1.bf16.msra.mxu0 0
    %3443 = vmatprep.subr.bf16.mxu0 0
    %3444 = vmatpush1.bf16.msra.mxu0 0
    %3445 = vmatprep.subr.bf16.mxu0 0
    %3446 = vmatpush1.bf16.msra.mxu0 0
    %3447 = vmatprep.subr.bf16.mxu0 0
    %3448 = vmatpush1.bf16.msra.mxu0 0
    %3449 = vmatprep.mubr.bf16.mxu0 0
    %3450 = vmatmul.mubr.bf16.gmra.mrb[0].mxu0 %v3038
    %v3451 = vpop.f32.mrb[0].mxu0
    %v3452 = vadd.f32 0.0, %v3451
    %v3453 = vpop.f32.mrb[0].mxu0
    %v3454 = vadd.f32 0.0, %v3453
    %v3455 = vpop.f32.mrb[0].mxu0
    %v3456 = vpop.f32.mrb[0].mxu0
    %3457 = vdwg.mxu0
    %3458 = vmatprep.subr.bf16.mxu0 %v1715
    %3459 = vmatpush1.bf16.msra.mxu0 %v1714
    %3460 = vmatprep.subr.bf16.mxu0 %v1719
    %3461 = vmatpush1.bf16.msra.mxu0 %v1718
    %3462 = vmatprep.subr.bf16.mxu0 %v1723
    %3463 = vmatpush1.bf16.msra.mxu0 %v1722
    %3464 = vmatprep.subr.bf16.mxu0 %v1727
    %3465 = vmatpush1.bf16.msra.mxu0 %v1726
    %3466 = vmatprep.subr.bf16.mxu0 %v1731
    %3467 = vmatpush1.bf16.msra.mxu0 %v1730
    %3468 = vmatprep.subr.bf16.mxu0 %v1735
    %3469 = vmatpush1.bf16.msra.mxu0 %v1734
    %3470 = vmatprep.subr.bf16.mxu0 %v1739
    %3471 = vmatpush1.bf16.msra.mxu0 %v1738
    %3472 = vmatprep.subr.bf16.mxu0 %v1743
    %3473 = vmatpush1.bf16.msra.mxu0 %v1742
    %3474 = vmatprep.subr.bf16.mxu0 0
    %3475 = vmatpush1.bf16.msra.mxu0 0
    %3476 = vmatprep.subr.bf16.mxu0 0
    %3477 = vmatpush1.bf16.msra.mxu0 0
    %3478 = vmatprep.subr.bf16.mxu0 0
    %3479 = vmatpush1.bf16.msra.mxu0 0
    %3480 = vmatprep.subr.bf16.mxu0 0
    %3481 = vmatpush1.bf16.msra.mxu0 0
    %3482 = vmatprep.subr.bf16.mxu0 0
    %3483 = vmatpush1.bf16.msra.mxu0 0
    %3484 = vmatprep.subr.bf16.mxu0 0
    %3485 = vmatpush1.bf16.msra.mxu0 0
    %3486 = vmatprep.subr.bf16.mxu0 0
    %3487 = vmatpush1.bf16.msra.mxu0 0
    %3488 = vmatprep.subr.bf16.mxu0 0
    %3489 = vmatpush1.bf16.msra.mxu0 0
    %3490 = vmatprep.mubr.bf16.mxu0 0
    %3491 = vmatmul.mubr.bf16.gmra.mrb[0].mxu0 %v3038
    %v3492 = vpop.f32.mrb[0].mxu0
    %v3493 = vadd.f32 0.0, %v3492
    %v3494 = vpop.f32.mrb[0].mxu0
    %v3495 = vadd.f32 0.0, %v3494
    %v3496 = vpop.f32.mrb[0].mxu0
    %v3497 = vpop.f32.mrb[0].mxu0
    %3498 = vdwg.mxu0
    %v3499 = vadd.f32 %v3370, %v3452
    %v3500 = vadd.f32 %v3372, %v3454
    %v3501 = vadd.f32 %v3411, %v3493
    %v3502 = vadd.f32 %v3413, %v3495
    %v3503 = vmul.f32 %v3499, 0.5
    %v3504 = vmul.f32 %v3500, 0.5
    %v3505 = vmul.f32 %v3501, 0.5
    %v3506 = vtanh.pop %v3503
    %v3507 = vtanh.pop %v3504
    %v3508 = vtanh.pop %v3505
    %v3509 = vmul.f32 %v3506, 0.5
    %v3510 = vmul.f32 %v3507, 0.5
    %v3511 = vmul.f32 %v3508, 0.5
    %v3512 = vadd.f32 %v3509, 0.5
    %v3513 = vadd.f32 %v3510, 0.5
    %v3514 = vadd.f32 %v3511, 0.5
    %v3515 = vtanh.pop %v3502
    %v3516 = vmul.f32 %v3513, %v3035
    %v3517 = vmul.f32 %v3512, %v3515
    %v3518 = vadd.f32 %v3516, %v3517
    %v3519 = vtanh.pop %v3518
    %v3520 = vmul.f32 %v3514, %v3519
    %v3521 = vpack.c.bf16 %v3520, %v3520
    %3522 = vmatprep.subr.bf16.mxu0 %v1037
    %3523 = vmatpush1.bf16.msra.mxu0 %v1036
    %3524 = vmatprep.subr.bf16.mxu0 %v1041
    %3525 = vmatpush1.bf16.msra.mxu0 %v1040
    %3526 = vmatprep.subr.bf16.mxu0 %v1045
    %3527 = vmatpush1.bf16.msra.mxu0 %v1044
    %3528 = vmatprep.subr.bf16.mxu0 %v1049
    %3529 = vmatpush1.bf16.msra.mxu0 %v1048
    %3530 = vmatprep.subr.bf16.mxu0 %v1053
    %3531 = vmatpush1.bf16.msra.mxu0 %v1052
    %3532 = vmatprep.subr.bf16.mxu0 %v1057
    %3533 = vmatpush1.bf16.msra.mxu0 %v1056
    %3534 = vmatprep.subr.bf16.mxu0 %v1061
    %3535 = vmatpush1.bf16.msra.mxu0 %v1060
    %3536 = vmatprep.subr.bf16.mxu0 %v1065
    %3537 = vmatpush1.bf16.msra.mxu0 %v1064
    %3538 = vmatprep.subr.bf16.mxu0 0
    %3539 = vmatpush1.bf16.msra.mxu0 0
    %3540 = vmatprep.subr.bf16.mxu0 0
    %3541 = vmatpush1.bf16.msra.mxu0 0
    %3542 = vmatprep.subr.bf16.mxu0 0
    %3543 = vmatpush1.bf16.msra.mxu0 0
    %3544 = vmatprep.subr.bf16.mxu0 0
    %3545 = vmatpush1.bf16.msra.mxu0 0
    %3546 = vmatprep.subr.bf16.mxu0 0
    %3547 = vmatpush1.bf16.msra.mxu0 0
    %3548 = vmatprep.subr.bf16.mxu0 0
    %3549 = vmatpush1.bf16.msra.mxu0 0
    %3550 = vmatprep.subr.bf16.mxu0 0
    %3551 = vmatpush1.bf16.msra.mxu0 0
    %3552 = vmatprep.subr.bf16.mxu0 0
    %3553 = vmatpush1.bf16.msra.mxu0 0
    %3554 = vmatprep.mubr.bf16.mxu0 0
    %3555 = vmatmul.mubr.bf16.gmra.mrb[0].mxu0 %v3521
    %v3556 = vpop.f32.mrb[0].mxu0
    %v3557 = vadd.f32 %v923, %v3556
    %v3558 = vpop.f32.mrb[0].mxu0
    %v3559 = vadd.f32 %v927, %v3558
    %v3560 = vpop.f32.mrb[0].mxu0
    %v3561 = vpop.f32.mrb[0].mxu0
    %3562 = vdwg.mxu0
    %3563 = vmatprep.subr.bf16.mxu0 %v1039
    %3564 = vmatpush1.bf16.msra.mxu0 %v1038
    %3565 = vmatprep.subr.bf16.mxu0 %v1043
    %3566 = vmatpush1.bf16.msra.mxu0 %v1042
    %3567 = vmatprep.subr.bf16.mxu0 %v1047
    %3568 = vmatpush1.bf16.msra.mxu0 %v1046
    %3569 = vmatprep.subr.bf16.mxu0 %v1051
    %3570 = vmatpush1.bf16.msra.mxu0 %v1050
    %3571 = vmatprep.subr.bf16.mxu0 %v1055
    %3572 = vmatpush1.bf16.msra.mxu0 %v1054
    %3573 = vmatprep.subr.bf16.mxu0 %v1059
    %3574 = vmatpush1.bf16.msra.mxu0 %v1058
    %3575 = vmatprep.subr.bf16.mxu0 %v1063
    %3576 = vmatpush1.bf16.msra.mxu0 %v1062
    %3577 = vmatprep.subr.bf16.mxu0 %v1067
    %3578 = vmatpush1.bf16.msra.mxu0 %v1066
    %3579 = vmatprep.subr.bf16.mxu0 0
    %3580 = vmatpush1.bf16.msra.mxu0 0
    %3581 = vmatprep.subr.bf16.mxu0 0
    %3582 = vmatpush1.bf16.msra.mxu0 0
    %3583 = vmatprep.subr.bf16.mxu0 0
    %3584 = vmatpush1.bf16.msra.mxu0 0
    %3585 = vmatprep.subr.bf16.mxu0 0
    %3586 = vmatpush1.bf16.msra.mxu0 0
    %3587 = vmatprep.subr.bf16.mxu0 0
    %3588 = vmatpush1.bf16.msra.mxu0 0
    %3589 = vmatprep.subr.bf16.mxu0 0
    %3590 = vmatpush1.bf16.msra.mxu0 0
    %3591 = vmatprep.subr.bf16.mxu0 0
    %3592 = vmatpush1.bf16.msra.mxu0 0
    %3593 = vmatprep.subr.bf16.mxu0 0
    %3594 = vmatpush1.bf16.msra.mxu0 0
    %3595 = vmatprep.mubr.bf16.mxu0 0
    %3596 = vmatmul.mubr.bf16.gmra.mrb[0].mxu0 %v3521
    %v3597 = vpop.f32.mrb[0].mxu0
    %v3598 = vadd.f32 %v931, %v3597
    %v3599 = vpop.f32.mrb[0].mxu0
    %v3600 = vadd.f32 %v935, %v3599
    %v3601 = vpop.f32.mrb[0].mxu0
    %v3602 = vpop.f32.mrb[0].mxu0
    %3603 = vdwg.mxu0
    %3604 = vmatprep.subr.bf16.mxu0 %v2092
    %3605 = vmatpush1.bf16.msra.mxu0 %v2091
    %3606 = vmatprep.subr.bf16.mxu0 %v2096
    %3607 = vmatpush1.bf16.msra.mxu0 %v2095
    %3608 = vmatprep.subr.bf16.mxu0 %v2100
    %3609 = vmatpush1.bf16.msra.mxu0 %v2099
    %3610 = vmatprep.subr.bf16.mxu0 %v2104
    %3611 = vmatpush1.bf16.msra.mxu0 %v2103
    %3612 = vmatprep.subr.bf16.mxu0 %v2108
    %3613 = vmatpush1.bf16.msra.mxu0 %v2107
    %3614 = vmatprep.subr.bf16.mxu0 %v2112
    %3615 = vmatpush1.bf16.msra.mxu0 %v2111
    %3616 = vmatprep.subr.bf16.mxu0 %v2116
    %3617 = vmatpush1.bf16.msra.mxu0 %v2115
    %3618 = vmatprep.subr.bf16.mxu0 %v2120
    %3619 = vmatpush1.bf16.msra.mxu0 %v2119
    %3620 = vmatprep.subr.bf16.mxu0 0
    %3621 = vmatpush1.bf16.msra.mxu0 0
    %3622 = vmatprep.subr.bf16.mxu0 0
    %3623 = vmatpush1.bf16.msra.mxu0 0
    %3624 = vmatprep.subr.bf16.mxu0 0
    %3625 = vmatpush1.bf16.msra.mxu0 0
    %3626 = vmatprep.subr.bf16.mxu0 0
    %3627 = vmatpush1.bf16.msra.mxu0 0
    %3628 = vmatprep.subr.bf16.mxu0 0
    %3629 = vmatpush1.bf16.msra.mxu0 0
    %3630 = vmatprep.subr.bf16.mxu0 0
    %3631 = vmatpush1.bf16.msra.mxu0 0
    %3632 = vmatprep.subr.bf16.mxu0 0
    %3633 = vmatpush1.bf16.msra.mxu0 0
    %3634 = vmatprep.subr.bf16.mxu0 0
    %3635 = vmatpush1.bf16.msra.mxu0 0
    %3636 = vmatprep.mubr.bf16.mxu0 0
    %3637 = vmatmul.mubr.bf16.gmra.mrb[0].mxu0 %v3225
    %v3638 = vpop.f32.mrb[0].mxu0
    %v3639 = vadd.f32 0.0, %v3638
    %v3640 = vpop.f32.mrb[0].mxu0
    %v3641 = vadd.f32 0.0, %v3640
    %v3642 = vpop.f32.mrb[0].mxu0
    %v3643 = vpop.f32.mrb[0].mxu0
    %3644 = vdwg.mxu0
    %3645 = vmatprep.subr.bf16.mxu0 %v2094
    %3646 = vmatpush1.bf16.msra.mxu0 %v2093
    %3647 = vmatprep.subr.bf16.mxu0 %v2098
    %3648 = vmatpush1.bf16.msra.mxu0 %v2097
    %3649 = vmatprep.subr.bf16.mxu0 %v2102
    %3650 = vmatpush1.bf16.msra.mxu0 %v2101
    %3651 = vmatprep.subr.bf16.mxu0 %v2106
    %3652 = vmatpush1.bf16.msra.mxu0 %v2105
    %3653 = vmatprep.subr.bf16.mxu0 %v2110
    %3654 = vmatpush1.bf16.msra.mxu0 %v2109
    %3655 = vmatprep.subr.bf16.mxu0 %v2114
    %3656 = vmatpush1.bf16.msra.mxu0 %v2113
    %3657 = vmatprep.subr.bf16.mxu0 %v2118
    %3658 = vmatpush1.bf16.msra.mxu0 %v2117
    %3659 = vmatprep.subr.bf16.mxu0 %v2122
    %3660 = vmatpush1.bf16.msra.mxu0 %v2121
    %3661 = vmatprep.subr.bf16.mxu0 0
    %3662 = vmatpush1.bf16.msra.mxu0 0
    %3663 = vmatprep.subr.bf16.mxu0 0
    %3664 = vmatpush1.bf16.msra.mxu0 0
    %3665 = vmatprep.subr.bf16.mxu0 0
    %3666 = vmatpush1.bf16.msra.mxu0 0
    %3667 = vmatprep.subr.bf16.mxu0 0
    %3668 = vmatpush1.bf16.msra.mxu0 0
    %3669 = vmatprep.subr.bf16.mxu0 0
    %3670 = vmatpush1.bf16.msra.mxu0 0
    %3671 = vmatprep.subr.bf16.mxu0 0
    %3672 = vmatpush1.bf16.msra.mxu0 0
    %3673 = vmatprep.subr.bf16.mxu0 0
    %3674 = vmatpush1.bf16.msra.mxu0 0
    %3675 = vmatprep.subr.bf16.mxu0 0
    %3676 = vmatpush1.bf16.msra.mxu0 0
    %3677 = vmatprep.mubr.bf16.mxu0 0
    %3678 = vmatmul.mubr.bf16.gmra.mrb[0].mxu0 %v3225
    %v3679 = vpop.f32.mrb[0].mxu0
    %v3680 = vadd.f32 0.0, %v3679
    %v3681 = vpop.f32.mrb[0].mxu0
    %v3682 = vadd.f32 0.0, %v3681
    %v3683 = vpop.f32.mrb[0].mxu0
    %v3684 = vpop.f32.mrb[0].mxu0
    %3685 = vdwg.mxu0
    %v3686 = vadd.f32 %v3557, %v3639
    %v3687 = vadd.f32 %v3559, %v3641
    %v3688 = vadd.f32 %v3598, %v3680
    %v3689 = vadd.f32 %v3600, %v3682
    %v3690 = vmul.f32 %v3686, 0.5
    %v3691 = vmul.f32 %v3687, 0.5
    %v3692 = vmul.f32 %v3688, 0.5
    %v3693 = vtanh.pop %v3690
    %v3694 = vtanh.pop %v3691
    %v3695 = vtanh.pop %v3692
    %v3696 = vmul.f32 %v3693, 0.5
    %v3697 = vmul.f32 %v3694, 0.5
    %v3698 = vmul.f32 %v3695, 0.5
    %v3699 = vadd.f32 %v3696, 0.5
    %v3700 = vadd.f32 %v3697, 0.5
    %v3701 = vadd.f32 %v3698, 0.5
    %v3702 = vtanh.pop %v3689
    %v3703 = vmul.f32 %v3700, %v3222
    %v3704 = vmul.f32 %v3699, %v3702
    %v3705 = vadd.f32 %v3703, %v3704
    %v3706 = vtanh.pop %v3705
    %v3707 = vmul.f32 %v3701, %v3706
    %v3708 = vpack.c.bf16 %v3707, %v3707
    %v3709 = vld [vmem:[#allocation2 + $0xa0] sm:$0xff]
    %v3710 = vld [vmem:[#allocation2 + $0xa8] sm:$0xff]
    %v3711 = vld [vmem:[#allocation2 + $0xb0] sm:$0xff]
    %v3712 = vld [vmem:[#allocation2 + $0xb8] sm:$0xff]
    %3713 = vmatprep.subr.bf16.mxu0 %v1334
    %3714 = vmatpush1.bf16.msra.mxu0 %v1333
    %3715 = vmatprep.subr.bf16.mxu0 %v1338
    %3716 = vmatpush1.bf16.msra.mxu0 %v1337
    %3717 = vmatprep.subr.bf16.mxu0 %v1342
    %3718 = vmatpush1.bf16.msra.mxu0 %v1341
    %3719 = vmatprep.subr.bf16.mxu0 %v1346
    %3720 = vmatpush1.bf16.msra.mxu0 %v1345
    %3721 = vmatprep.subr.bf16.mxu0 %v1350
    %3722 = vmatpush1.bf16.msra.mxu0 %v1349
    %3723 = vmatprep.subr.bf16.mxu0 %v1354
    %3724 = vmatpush1.bf16.msra.mxu0 %v1353
    %3725 = vmatprep.subr.bf16.mxu0 %v1358
    %3726 = vmatpush1.bf16.msra.mxu0 %v1357
    %3727 = vmatprep.subr.bf16.mxu0 %v1362
    %3728 = vmatpush1.bf16.msra.mxu0 %v1361
    %3729 = vmatprep.subr.bf16.mxu0 0
    %3730 = vmatpush1.bf16.msra.mxu0 0
    %3731 = vmatprep.subr.bf16.mxu0 0
    %3732 = vmatpush1.bf16.msra.mxu0 0
    %3733 = vmatprep.subr.bf16.mxu0 0
    %3734 = vmatpush1.bf16.msra.mxu0 0
    %3735 = vmatprep.subr.bf16.mxu0 0
    %3736 = vmatpush1.bf16.msra.mxu0 0
    %3737 = vmatprep.subr.bf16.mxu0 0
    %3738 = vmatpush1.bf16.msra.mxu0 0
    %3739 = vmatprep.subr.bf16.mxu0 0
    %3740 = vmatpush1.bf16.msra.mxu0 0
    %3741 = vmatprep.subr.bf16.mxu0 0
    %3742 = vmatpush1.bf16.msra.mxu0 0
    %3743 = vmatprep.subr.bf16.mxu0 0
    %3744 = vmatpush1.bf16.msra.mxu0 0
    %3745 = vmatprep.mubr.bf16.mxu0 0
    %3746 = vmatmul.mubr.bf16.gmra.mrb[0].mxu0 %v3334
    %v3747 = vpop.f32.mrb[0].mxu0
    %v3748 = vadd.f32 0.0, %v3747
    %v3749 = vpop.f32.mrb[0].mxu0
    %v3750 = vadd.f32 0.0, %v3749
    %v3751 = vpop.f32.mrb[0].mxu0
    %v3752 = vpop.f32.mrb[0].mxu0
    %3753 = vdwg.mxu0
    %3754 = vmatprep.subr.bf16.mxu0 %v1336
    %3755 = vmatpush1.bf16.msra.mxu0 %v1335
    %3756 = vmatprep.subr.bf16.mxu0 %v1340
    %3757 = vmatpush1.bf16.msra.mxu0 %v1339
    %3758 = vmatprep.subr.bf16.mxu0 %v1344
    %3759 = vmatpush1.bf16.msra.mxu0 %v1343
    %3760 = vmatprep.subr.bf16.mxu0 %v1348
    %3761 = vmatpush1.bf16.msra.mxu0 %v1347
    %3762 = vmatprep.subr.bf16.mxu0 %v1352
    %3763 = vmatpush1.bf16.msra.mxu0 %v1351
    %3764 = vmatprep.subr.bf16.mxu0 %v1356
    %3765 = vmatpush1.bf16.msra.mxu0 %v1355
    %3766 = vmatprep.subr.bf16.mxu0 %v1360
    %3767 = vmatpush1.bf16.msra.mxu0 %v1359
    %3768 = vmatprep.subr.bf16.mxu0 %v1364
    %3769 = vmatpush1.bf16.msra.mxu0 %v1363
    %3770 = vmatprep.subr.bf16.mxu0 0
    %3771 = vmatpush1.bf16.msra.mxu0 0
    %3772 = vmatprep.subr.bf16.mxu0 0
    %3773 = vmatpush1.bf16.msra.mxu0 0
    %3774 = vmatprep.subr.bf16.mxu0 0
    %3775 = vmatpush1.bf16.msra.mxu0 0
    %3776 = vmatprep.subr.bf16.mxu0 0
    %3777 = vmatpush1.bf16.msra.mxu0 0
    %3778 = vmatprep.subr.bf16.mxu0 0
    %3779 = vmatpush1.bf16.msra.mxu0 0
    %3780 = vmatprep.subr.bf16.mxu0 0
    %3781 = vmatpush1.bf16.msra.mxu0 0
    %3782 = vmatprep.subr.bf16.mxu0 0
    %3783 = vmatpush1.bf16.msra.mxu0 0
    %3784 = vmatprep.subr.bf16.mxu0 0
    %3785 = vmatpush1.bf16.msra.mxu0 0
    %3786 = vmatprep.mubr.bf16.mxu0 0
    %3787 = vmatmul.mubr.bf16.gmra.mrb[0].mxu0 %v3334
    %v3788 = vpop.f32.mrb[0].mxu0
    %v3789 = vadd.f32 0.0, %v3788
    %v3790 = vpop.f32.mrb[0].mxu0
    %v3791 = vadd.f32 0.0, %v3790
    %v3792 = vpop.f32.mrb[0].mxu0
    %v3793 = vpop.f32.mrb[0].mxu0
    %3794 = vdwg.mxu0
    %v3795 = vadd.f32 %v3709, %v3748
    %v3796 = vadd.f32 %v3710, %v3750
    %v3797 = vadd.f32 %v3711, %v3789
    %v3798 = vadd.f32 %v3712, %v3791
    %v3799 = vmul.f32 %v3795, 0.5
    %v3800 = vmul.f32 %v3796, 0.5
    %v3801 = vmul.f32 %v3797, 0.5
    %v3802 = vtanh.pop %v3799
    %v3803 = vtanh.pop %v3800
    %v3804 = vtanh.pop %v3801
    %v3805 = vmul.f32 %v3802, 0.5
    %v3806 = vmul.f32 %v3803, 0.5
    %v3807 = vmul.f32 %v3804, 0.5
    %v3808 = vadd.f32 %v3805, 0.5
    %v3809 = vadd.f32 %v3806, 0.5
    %v3810 = vadd.f32 %v3807, 0.5
    %v3811 = vtanh.pop %v3798
    %v3812 = vmul.f32 %v3809, %v3331
    %v3813 = vmul.f32 %v3808, %v3811
    %v3814 = vadd.f32 %v3812, %v3813
    %v3815 = vtanh.pop %v3814
    %v3816 = vmul.f32 %v3810, %v3815
    %v3817 = vpack.c.bf16 %v3816, %v3816
    %3818 = vmatprep.subr.bf16.mxu0 %v722
    %3819 = vmatpush1.bf16.msra.mxu0 %v721
    %3820 = vmatprep.subr.bf16.mxu0 %v726
    %3821 = vmatpush1.bf16.msra.mxu0 %v725
    %3822 = vmatprep.subr.bf16.mxu0 %v730
    %3823 = vmatpush1.bf16.msra.mxu0 %v729
    %3824 = vmatprep.subr.bf16.mxu0 %v734
    %3825 = vmatpush1.bf16.msra.mxu0 %v733
    %3826 = vmatprep.subr.bf16.mxu0 %v738
    %3827 = vmatpush1.bf16.msra.mxu0 %v737
    %3828 = vmatprep.subr.bf16.mxu0 %v742
    %3829 = vmatpush1.bf16.msra.mxu0 %v741
    %3830 = vmatprep.subr.bf16.mxu0 %v746
    %3831 = vmatpush1.bf16.msra.mxu0 %v745
    %3832 = vmatprep.subr.bf16.mxu0 %v750
    %3833 = vmatpush1.bf16.msra.mxu0 %v749
    %3834 = vmatprep.subr.bf16.mxu0 0
    %3835 = vmatpush1.bf16.msra.mxu0 0
    %3836 = vmatprep.subr.bf16.mxu0 0
    %3837 = vmatpush1.bf16.msra.mxu0 0
    %3838 = vmatprep.subr.bf16.mxu0 0
    %3839 = vmatpush1.bf16.msra.mxu0 0
    %3840 = vmatprep.subr.bf16.mxu0 0
    %3841 = vmatpush1.bf16.msra.mxu0 0
    %3842 = vmatprep.subr.bf16.mxu0 0
    %3843 = vmatpush1.bf16.msra.mxu0 0
    %3844 = vmatprep.subr.bf16.mxu0 0
    %3845 = vmatpush1.bf16.msra.mxu0 0
    %3846 = vmatprep.subr.bf16.mxu0 0
    %3847 = vmatpush1.bf16.msra.mxu0 0
    %3848 = vmatprep.subr.bf16.mxu0 0
    %3849 = vmatpush1.bf16.msra.mxu0 0
    %3850 = vmatprep.mubr.bf16.mxu0 0
    %3851 = vmatmul.mubr.bf16.gmra.mrb[0].mxu0 %v3817
    %v3852 = vpop.f32.mrb[0].mxu0
    %v3853 = vadd.f32 %v608, %v3852
    %v3854 = vpop.f32.mrb[0].mxu0
    %v3855 = vadd.f32 %v612, %v3854
    %v3856 = vpop.f32.mrb[0].mxu0
    %v3857 = vpop.f32.mrb[0].mxu0
    %3858 = vdwg.mxu0
    %3859 = vmatprep.subr.bf16.mxu0 %v724
    %3860 = vmatpush1.bf16.msra.mxu0 %v723
    %3861 = vmatprep.subr.bf16.mxu0 %v728
    %3862 = vmatpush1.bf16.msra.mxu0 %v727
    %3863 = vmatprep.subr.bf16.mxu0 %v732
    %3864 = vmatpush1.bf16.msra.mxu0 %v731
    %3865 = vmatprep.subr.bf16.mxu0 %v736
    %3866 = vmatpush1.bf16.msra.mxu0 %v735
    %3867 = vmatprep.subr.bf16.mxu0 %v740
    %3868 = vmatpush1.bf16.msra.mxu0 %v739
    %3869 = vmatprep.subr.bf16.mxu0 %v744
    %3870 = vmatpush1.bf16.msra.mxu0 %v743
    %3871 = vmatprep.subr.bf16.mxu0 %v748
    %3872 = vmatpush1.bf16.msra.mxu0 %v747
    %3873 = vmatprep.subr.bf16.mxu0 %v752
    %3874 = vmatpush1.bf16.msra.mxu0 %v751
    %3875 = vmatprep.subr.bf16.mxu0 0
    %3876 = vmatpush1.bf16.msra.mxu0 0
    %3877 = vmatprep.subr.bf16.mxu0 0
    %3878 = vmatpush1.bf16.msra.mxu0 0
    %3879 = vmatprep.subr.bf16.mxu0 0
    %3880 = vmatpush1.bf16.msra.mxu0 0
    %3881 = vmatprep.subr.bf16.mxu0 0
    %3882 = vmatpush1.bf16.msra.mxu0 0
    %3883 = vmatprep.subr.bf16.mxu0 0
    %3884 = vmatpush1.bf16.msra.mxu0 0
    %3885 = vmatprep.subr.bf16.mxu0 0
    %3886 = vmatpush1.bf16.msra.mxu0 0
    %3887 = vmatprep.subr.bf16.mxu0 0
    %3888 = vmatpush1.bf16.msra.mxu0 0
    %3889 = vmatprep.subr.bf16.mxu0 0
    %3890 = vmatpush1.bf16.msra.mxu0 0
    %3891 = vmatprep.mubr.bf16.mxu0 0
    %3892 = vmatmul.mubr.bf16.gmra.mrb[0].mxu0 %v3817
    %v3893 = vpop.f32.mrb[0].mxu0
    %v3894 = vadd.f32 %v616, %v3893
    %v3895 = vpop.f32.mrb[0].mxu0
    %v3896 = vadd.f32 %v620, %v3895
    %v3897 = vpop.f32.mrb[0].mxu0
    %v3898 = vpop.f32.mrb[0].mxu0
    %3899 = vdwg.mxu0
    %3900 = vmatprep.subr.bf16.mxu0 %v1713
    %3901 = vmatpush1.bf16.msra.mxu0 %v1712
    %3902 = vmatprep.subr.bf16.mxu0 %v1717
    %3903 = vmatpush1.bf16.msra.mxu0 %v1716
    %3904 = vmatprep.subr.bf16.mxu0 %v1721
    %3905 = vmatpush1.bf16.msra.mxu0 %v1720
    %3906 = vmatprep.subr.bf16.mxu0 %v1725
    %3907 = vmatpush1.bf16.msra.mxu0 %v1724
    %3908 = vmatprep.subr.bf16.mxu0 %v1729
    %3909 = vmatpush1.bf16.msra.mxu0 %v1728
    %3910 = vmatprep.subr.bf16.mxu0 %v1733
    %3911 = vmatpush1.bf16.msra.mxu0 %v1732
    %3912 = vmatprep.subr.bf16.mxu0 %v1737
    %3913 = vmatpush1.bf16.msra.mxu0 %v1736
    %3914 = vmatprep.subr.bf16.mxu0 %v1741
    %3915 = vmatpush1.bf16.msra.mxu0 %v1740
    %3916 = vmatprep.subr.bf16.mxu0 0
    %3917 = vmatpush1.bf16.msra.mxu0 0
    %3918 = vmatprep.subr.bf16.mxu0 0
    %3919 = vmatpush1.bf16.msra.mxu0 0
    %3920 = vmatprep.subr.bf16.mxu0 0
    %3921 = vmatpush1.bf16.msra.mxu0 0
    %3922 = vmatprep.subr.bf16.mxu0 0
    %3923 = vmatpush1.bf16.msra.mxu0 0
    %3924 = vmatprep.subr.bf16.mxu0 0
    %3925 = vmatpush1.bf16.msra.mxu0 0
    %3926 = vmatprep.subr.bf16.mxu0 0
    %3927 = vmatpush1.bf16.msra.mxu0 0
    %3928 = vmatprep.subr.bf16.mxu0 0
    %3929 = vmatpush1.bf16.msra.mxu0 0
    %3930 = vmatprep.subr.bf16.mxu0 0
    %3931 = vmatpush1.bf16.msra.mxu0 0
    %3932 = vmatprep.mubr.bf16.mxu0 0
    %3933 = vmatmul.mubr.bf16.gmra.mrb[0].mxu0 %v3521
    %v3934 = vpop.f32.mrb[0].mxu0
    %v3935 = vadd.f32 0.0, %v3934
    %v3936 = vpop.f32.mrb[0].mxu0
    %v3937 = vadd.f32 0.0, %v3936
    %v3938 = vpop.f32.mrb[0].mxu0
    %v3939 = vpop.f32.mrb[0].mxu0
    %3940 = vdwg.mxu0
    %3941 = vmatprep.subr.bf16.mxu0 %v1715
    %3942 = vmatpush1.bf16.msra.mxu0 %v1714
    %3943 = vmatprep.subr.bf16.mxu0 %v1719
    %3944 = vmatpush1.bf16.msra.mxu0 %v1718
    %3945 = vmatprep.subr.bf16.mxu0 %v1723
    %3946 = vmatpush1.bf16.msra.mxu0 %v1722
    %3947 = vmatprep.subr.bf16.mxu0 %v1727
    %3948 = vmatpush1.bf16.msra.mxu0 %v1726
    %3949 = vmatprep.subr.bf16.mxu0 %v1731
    %3950 = vmatpush1.bf16.msra.mxu0 %v1730
    %3951 = vmatprep.subr.bf16.mxu0 %v1735
    %3952 = vmatpush1.bf16.msra.mxu0 %v1734
    %3953 = vmatprep.subr.bf16.mxu0 %v1739
    %3954 = vmatpush1.bf16.msra.mxu0 %v1738
    %3955 = vmatprep.subr.bf16.mxu0 %v1743
    %3956 = vmatpush1.bf16.msra.mxu0 %v1742
    %3957 = vmatprep.subr.bf16.mxu0 0
    %3958 = vmatpush1.bf16.msra.mxu0 0
    %3959 = vmatprep.subr.bf16.mxu0 0
    %3960 = vmatpush1.bf16.msra.mxu0 0
    %3961 = vmatprep.subr.bf16.mxu0 0
    %3962 = vmatpush1.bf16.msra.mxu0 0
    %3963 = vmatprep.subr.bf16.mxu0 0
    %3964 = vmatpush1.bf16.msra.mxu0 0
    %3965 = vmatprep.subr.bf16.mxu0 0
    %3966 = vmatpush1.bf16.msra.mxu0 0
    %3967 = vmatprep.subr.bf16.mxu0 0
    %3968 = vmatpush1.bf16.msra.mxu0 0
    %3969 = vmatprep.subr.bf16.mxu0 0
    %3970 = vmatpush1.bf16.msra.mxu0 0
    %3971 = vmatprep.subr.bf16.mxu0 0
    %3972 = vmatpush1.bf16.msra.mxu0 0
    %3973 = vmatprep.mubr.bf16.mxu0 0
    %3974 = vmatmul.mubr.bf16.gmra.mrb[0].mxu0 %v3521
    %v3975 = vpop.f32.mrb[0].mxu0
    %v3976 = vadd.f32 0.0, %v3975
    %v3977 = vpop.f32.mrb[0].mxu0
    %v3978 = vadd.f32 0.0, %v3977
    %v3979 = vpop.f32.mrb[0].mxu0
    %v3980 = vpop.f32.mrb[0].mxu0
    %3981 = vdwg.mxu0
    %v3982 = vadd.f32 %v3853, %v3935
    %v3983 = vadd.f32 %v3855, %v3937
    %v3984 = vadd.f32 %v3894, %v3976
    %v3985 = vadd.f32 %v3896, %v3978
    %v3986 = vmul.f32 %v3982, 0.5
    %v3987 = vmul.f32 %v3983, 0.5
    %v3988 = vmul.f32 %v3984, 0.5
    %v3989 = vtanh.pop %v3986
    %v3990 = vtanh.pop %v3987
    %v3991 = vtanh.pop %v3988
    %v3992 = vmul.f32 %v3989, 0.5
    %v3993 = vmul.f32 %v3990, 0.5
    %v3994 = vmul.f32 %v3991, 0.5
    %v3995 = vadd.f32 %v3992, 0.5
    %v3996 = vadd.f32 %v3993, 0.5
    %v3997 = vadd.f32 %v3994, 0.5
    %v3998 = vtanh.pop %v3985
    %v3999 = vmul.f32 %v3996, %v3518
    %v4000 = vmul.f32 %v3995, %v3998
    %v4001 = vadd.f32 %v3999, %v4000
    %v4002 = vtanh.pop %v4001
    %v4003 = vmul.f32 %v3997, %v4002
    %v4004 = vpack.c.bf16 %v4003, %v4003
    %4005 = vmatprep.subr.bf16.mxu0 %v1037
    %4006 = vmatpush1.bf16.msra.mxu0 %v1036
    %4007 = vmatprep.subr.bf16.mxu0 %v1041
    %4008 = vmatpush1.bf16.msra.mxu0 %v1040
    %4009 = vmatprep.subr.bf16.mxu0 %v1045
    %4010 = vmatpush1.bf16.msra.mxu0 %v1044
    %4011 = vmatprep.subr.bf16.mxu0 %v1049
    %4012 = vmatpush1.bf16.msra.mxu0 %v1048
    %4013 = vmatprep.subr.bf16.mxu0 %v1053
    %4014 = vmatpush1.bf16.msra.mxu0 %v1052
    %4015 = vmatprep.subr.bf16.mxu0 %v1057
    %4016 = vmatpush1.bf16.msra.mxu0 %v1056
    %4017 = vmatprep.subr.bf16.mxu0 %v1061
    %4018 = vmatpush1.bf16.msra.mxu0 %v1060
    %4019 = vmatprep.subr.bf16.mxu0 %v1065
    %4020 = vmatpush1.bf16.msra.mxu0 %v1064
    %4021 = vmatprep.subr.bf16.mxu0 0
    %4022 = vmatpush1.bf16.msra.mxu0 0
    %4023 = vmatprep.subr.bf16.mxu0 0
    %4024 = vmatpush1.bf16.msra.mxu0 0
    %4025 = vmatprep.subr.bf16.mxu0 0
    %4026 = vmatpush1.bf16.msra.mxu0 0
    %4027 = vmatprep.subr.bf16.mxu0 0
    %4028 = vmatpush1.bf16.msra.mxu0 0
    %4029 = vmatprep.subr.bf16.mxu0 0
    %4030 = vmatpush1.bf16.msra.mxu0 0
    %4031 = vmatprep.subr.bf16.mxu0 0
    %4032 = vmatpush1.bf16.msra.mxu0 0
    %4033 = vmatprep.subr.bf16.mxu0 0
    %4034 = vmatpush1.bf16.msra.mxu0 0
    %4035 = vmatprep.subr.bf16.mxu0 0
    %4036 = vmatpush1.bf16.msra.mxu0 0
    %4037 = vmatprep.mubr.bf16.mxu0 0
    %4038 = vmatmul.mubr.bf16.gmra.mrb[0].mxu0 %v4004
    %v4039 = vpop.f32.mrb[0].mxu0
    %v4040 = vadd.f32 %v923, %v4039
    %v4041 = vpop.f32.mrb[0].mxu0
    %v4042 = vadd.f32 %v927, %v4041
    %v4043 = vpop.f32.mrb[0].mxu0
    %v4044 = vpop.f32.mrb[0].mxu0
    %4045 = vdwg.mxu0
    %4046 = vmatprep.subr.bf16.mxu0 %v1039
    %4047 = vmatpush1.bf16.msra.mxu0 %v1038
    %4048 = vmatprep.subr.bf16.mxu0 %v1043
    %4049 = vmatpush1.bf16.msra.mxu0 %v1042
    %4050 = vmatprep.subr.bf16.mxu0 %v1047
    %4051 = vmatpush1.bf16.msra.mxu0 %v1046
    %4052 = vmatprep.subr.bf16.mxu0 %v1051
    %4053 = vmatpush1.bf16.msra.mxu0 %v1050
    %4054 = vmatprep.subr.bf16.mxu0 %v1055
    %4055 = vmatpush1.bf16.msra.mxu0 %v1054
    %4056 = vmatprep.subr.bf16.mxu0 %v1059
    %4057 = vmatpush1.bf16.msra.mxu0 %v1058
    %4058 = vmatprep.subr.bf16.mxu0 %v1063
    %4059 = vmatpush1.bf16.msra.mxu0 %v1062
    %4060 = vmatprep.subr.bf16.mxu0 %v1067
    %4061 = vmatpush1.bf16.msra.mxu0 %v1066
    %4062 = vmatprep.subr.bf16.mxu0 0
    %4063 = vmatpush1.bf16.msra.mxu0 0
    %4064 = vmatprep.subr.bf16.mxu0 0
    %4065 = vmatpush1.bf16.msra.mxu0 0
    %4066 = vmatprep.subr.bf16.mxu0 0
    %4067 = vmatpush1.bf16.msra.mxu0 0
    %4068 = vmatprep.subr.bf16.mxu0 0
    %4069 = vmatpush1.bf16.msra.mxu0 0
    %4070 = vmatprep.subr.bf16.mxu0 0
    %4071 = vmatpush1.bf16.msra.mxu0 0
    %4072 = vmatprep.subr.bf16.mxu0 0
    %4073 = vmatpush1.bf16.msra.mxu0 0
    %4074 = vmatprep.subr.bf16.mxu0 0
    %4075 = vmatpush1.bf16.msra.mxu0 0
    %4076 = vmatprep.subr.bf16.mxu0 0
    %4077 = vmatpush1.bf16.msra.mxu0 0
    %4078 = vmatprep.mubr.bf16.mxu0 0
    %4079 = vmatmul.mubr.bf16.gmra.mrb[0].mxu0 %v4004
    %v4080 = vpop.f32.mrb[0].mxu0
    %v4081 = vadd.f32 %v931, %v4080
    %v4082 = vpop.f32.mrb[0].mxu0
    %v4083 = vadd.f32 %v935, %v4082
    %v4084 = vpop.f32.mrb[0].mxu0
    %v4085 = vpop.f32.mrb[0].mxu0
    %4086 = vdwg.mxu0
    %4087 = vmatprep.subr.bf16.mxu0 %v2092
    %4088 = vmatpush1.bf16.msra.mxu0 %v2091
    %4089 = vmatprep.subr.bf16.mxu0 %v2096
    %4090 = vmatpush1.bf16.msra.mxu0 %v2095
    %4091 = vmatprep.subr.bf16.mxu0 %v2100
    %4092 = vmatpush1.bf16.msra.mxu0 %v2099
    %4093 = vmatprep.subr.bf16.mxu0 %v2104
    %4094 = vmatpush1.bf16.msra.mxu0 %v2103
    %4095 = vmatprep.subr.bf16.mxu0 %v2108
    %4096 = vmatpush1.bf16.msra.mxu0 %v2107
    %4097 = vmatprep.subr.bf16.mxu0 %v2112
    %4098 = vmatpush1.bf16.msra.mxu0 %v2111
    %4099 = vmatprep.subr.bf16.mxu0 %v2116
    %4100 = vmatpush1.bf16.msra.mxu0 %v2115
    %4101 = vmatprep.subr.bf16.mxu0 %v2120
    %4102 = vmatpush1.bf16.msra.mxu0 %v2119
    %4103 = vmatprep.subr.bf16.mxu0 0
    %4104 = vmatpush1.bf16.msra.mxu0 0
    %4105 = vmatprep.subr.bf16.mxu0 0
    %4106 = vmatpush1.bf16.msra.mxu0 0
    %4107 = vmatprep.subr.bf16.mxu0 0
    %4108 = vmatpush1.bf16.msra.mxu0 0
    %4109 = vmatprep.subr.bf16.mxu0 0
    %4110 = vmatpush1.bf16.msra.mxu0 0
    %4111 = vmatprep.subr.bf16.mxu0 0
    %4112 = vmatpush1.bf16.msra.mxu0 0
    %4113 = vmatprep.subr.bf16.mxu0 0
    %4114 = vmatpush1.bf16.msra.mxu0 0
    %4115 = vmatprep.subr.bf16.mxu0 0
    %4116 = vmatpush1.bf16.msra.mxu0 0
    %4117 = vmatprep.subr.bf16.mxu0 0
    %4118 = vmatpush1.bf16.msra.mxu0 0
    %4119 = vmatprep.mubr.bf16.mxu0 0
    %4120 = vmatmul.mubr.bf16.gmra.mrb[0].mxu0 %v3708
    %v4121 = vpop.f32.mrb[0].mxu0
    %v4122 = vadd.f32 0.0, %v4121
    %v4123 = vpop.f32.mrb[0].mxu0
    %v4124 = vadd.f32 0.0, %v4123
    %v4125 = vpop.f32.mrb[0].mxu0
    %v4126 = vpop.f32.mrb[0].mxu0
    %4127 = vdwg.mxu0
    %4128 = vmatprep.subr.bf16.mxu0 %v2094
    %4129 = vmatpush1.bf16.msra.mxu0 %v2093
    %4130 = vmatprep.subr.bf16.mxu0 %v2098
    %4131 = vmatpush1.bf16.msra.mxu0 %v2097
    %4132 = vmatprep.subr.bf16.mxu0 %v2102
    %4133 = vmatpush1.bf16.msra.mxu0 %v2101
    %4134 = vmatprep.subr.bf16.mxu0 %v2106
    %4135 = vmatpush1.bf16.msra.mxu0 %v2105
    %4136 = vmatprep.subr.bf16.mxu0 %v2110
    %4137 = vmatpush1.bf16.msra.mxu0 %v2109
    %4138 = vmatprep.subr.bf16.mxu0 %v2114
    %4139 = vmatpush1.bf16.msra.mxu0 %v2113
    %4140 = vmatprep.subr.bf16.mxu0 %v2118
    %4141 = vmatpush1.bf16.msra.mxu0 %v2117
    %4142 = vmatprep.subr.bf16.mxu0 %v2122
    %4143 = vmatpush1.bf16.msra.mxu0 %v2121
    %4144 = vmatprep.subr.bf16.mxu0 0
    %4145 = vmatpush1.bf16.msra.mxu0 0
    %4146 = vmatprep.subr.bf16.mxu0 0
    %4147 = vmatpush1.bf16.msra.mxu0 0
    %4148 = vmatprep.subr.bf16.mxu0 0
    %4149 = vmatpush1.bf16.msra.mxu0 0
    %4150 = vmatprep.subr.bf16.mxu0 0
    %4151 = vmatpush1.bf16.msra.mxu0 0
    %4152 = vmatprep.subr.bf16.mxu0 0
    %4153 = vmatpush1.bf16.msra.mxu0 0
    %4154 = vmatprep.subr.bf16.mxu0 0
    %4155 = vmatpush1.bf16.msra.mxu0 0
    %4156 = vmatprep.subr.bf16.mxu0 0
    %4157 = vmatpush1.bf16.msra.mxu0 0
    %4158 = vmatprep.subr.bf16.mxu0 0
    %4159 = vmatpush1.bf16.msra.mxu0 0
    %4160 = vmatprep.mubr.bf16.mxu0 0
    %4161 = vmatmul.mubr.bf16.gmra.mrb[0].mxu0 %v3708
    %v4162 = vpop.f32.mrb[0].mxu0
    %v4163 = vadd.f32 0.0, %v4162
    %v4164 = vpop.f32.mrb[0].mxu0
    %v4165 = vadd.f32 0.0, %v4164
    %v4166 = vpop.f32.mrb[0].mxu0
    %v4167 = vpop.f32.mrb[0].mxu0
    %4168 = vdwg.mxu0
    %v4169 = vadd.f32 %v4040, %v4122
    %v4170 = vadd.f32 %v4042, %v4124
    %v4171 = vadd.f32 %v4081, %v4163
    %v4172 = vadd.f32 %v4083, %v4165
    %v4173 = vmul.f32 %v4169, 0.5
    %v4174 = vmul.f32 %v4170, 0.5
    %v4175 = vmul.f32 %v4171, 0.5
    %v4176 = vtanh.pop %v4173
    %v4177 = vtanh.pop %v4174
    %v4178 = vtanh.pop %v4175
    %v4179 = vmul.f32 %v4176, 0.5
    %v4180 = vmul.f32 %v4177, 0.5
    %v4181 = vmul.f32 %v4178, 0.5
    %v4182 = vadd.f32 %v4179, 0.5
    %v4183 = vadd.f32 %v4180, 0.5
    %v4184 = vadd.f32 %v4181, 0.5
    %v4185 = vtanh.pop %v4172
    %v4186 = vmul.f32 %v4183, %v3705
    %v4187 = vmul.f32 %v4182, %v4185
    %v4188 = vadd.f32 %v4186, %v4187
    %v4189 = vtanh.pop %v4188
    %v4190 = vmul.f32 %v4184, %v4189
    %v4191 = vpack.c.bf16 %v4190, %v4190
    %v4192 = vld [vmem:[#allocation2 + $0xc0] sm:$0xff]
    %v4193 = vld [vmem:[#allocation2 + $0xc8] sm:$0xff]
    %v4194 = vld [vmem:[#allocation2 + $0xd0] sm:$0xff]
    %v4195 = vld [vmem:[#allocation2 + $0xd8] sm:$0xff]
    %4196 = vmatprep.subr.bf16.mxu0 %v1334
    %4197 = vmatpush1.bf16.msra.mxu0 %v1333
    %4198 = vmatprep.subr.bf16.mxu0 %v1338
    %4199 = vmatpush1.bf16.msra.mxu0 %v1337
    %4200 = vmatprep.subr.bf16.mxu0 %v1342
    %4201 = vmatpush1.bf16.msra.mxu0 %v1341
    %4202 = vmatprep.subr.bf16.mxu0 %v1346
    %4203 = vmatpush1.bf16.msra.mxu0 %v1345
    %4204 = vmatprep.subr.bf16.mxu0 %v1350
    %4205 = vmatpush1.bf16.msra.mxu0 %v1349
    %4206 = vmatprep.subr.bf16.mxu0 %v1354
    %4207 = vmatpush1.bf16.msra.mxu0 %v1353
    %4208 = vmatprep.subr.bf16.mxu0 %v1358
    %4209 = vmatpush1.bf16.msra.mxu0 %v1357
    %4210 = vmatprep.subr.bf16.mxu0 %v1362
    %4211 = vmatpush1.bf16.msra.mxu0 %v1361
    %4212 = vmatprep.subr.bf16.mxu0 0
    %4213 = vmatpush1.bf16.msra.mxu0 0
    %4214 = vmatprep.subr.bf16.mxu0 0
    %4215 = vmatpush1.bf16.msra.mxu0 0
    %4216 = vmatprep.subr.bf16.mxu0 0
    %4217 = vmatpush1.bf16.msra.mxu0 0
    %4218 = vmatprep.subr.bf16.mxu0 0
    %4219 = vmatpush1.bf16.msra.mxu0 0
    %4220 = vmatprep.subr.bf16.mxu0 0
    %4221 = vmatpush1.bf16.msra.mxu0 0
    %4222 = vmatprep.subr.bf16.mxu0 0
    %4223 = vmatpush1.bf16.msra.mxu0 0
    %4224 = vmatprep.subr.bf16.mxu0 0
    %4225 = vmatpush1.bf16.msra.mxu0 0
    %4226 = vmatprep.subr.bf16.mxu0 0
    %4227 = vmatpush1.bf16.msra.mxu0 0
    %4228 = vmatprep.mubr.bf16.mxu0 0
    %4229 = vmatmul.mubr.bf16.gmra.mrb[0].mxu0 %v3817
    %v4230 = vpop.f32.mrb[0].mxu0
    %v4231 = vadd.f32 0.0, %v4230
    %v4232 = vpop.f32.mrb[0].mxu0
    %v4233 = vadd.f32 0.0, %v4232
    %v4234 = vpop.f32.mrb[0].mxu0
    %v4235 = vpop.f32.mrb[0].mxu0
    %4236 = vdwg.mxu0
    %4237 = vmatprep.subr.bf16.mxu0 %v1336
    %4238 = vmatpush1.bf16.msra.mxu0 %v1335
    %4239 = vmatprep.subr.bf16.mxu0 %v1340
    %4240 = vmatpush1.bf16.msra.mxu0 %v1339
    %4241 = vmatprep.subr.bf16.mxu0 %v1344
    %4242 = vmatpush1.bf16.msra.mxu0 %v1343
    %4243 = vmatprep.subr.bf16.mxu0 %v1348
    %4244 = vmatpush1.bf16.msra.mxu0 %v1347
    %4245 = vmatprep.subr.bf16.mxu0 %v1352
    %4246 = vmatpush1.bf16.msra.mxu0 %v1351
    %4247 = vmatprep.subr.bf16.mxu0 %v1356
    %4248 = vmatpush1.bf16.msra.mxu0 %v1355
    %4249 = vmatprep.subr.bf16.mxu0 %v1360
    %4250 = vmatpush1.bf16.msra.mxu0 %v1359
    %4251 = vmatprep.subr.bf16.mxu0 %v1364
    %4252 = vmatpush1.bf16.msra.mxu0 %v1363
    %4253 = vmatprep.subr.bf16.mxu0 0
    %4254 = vmatpush1.bf16.msra.mxu0 0
    %4255 = vmatprep.subr.bf16.mxu0 0
    %4256 = vmatpush1.bf16.msra.mxu0 0
    %4257 = vmatprep.subr.bf16.mxu0 0
    %4258 = vmatpush1.bf16.msra.mxu0 0
    %4259 = vmatprep.subr.bf16.mxu0 0
    %4260 = vmatpush1.bf16.msra.mxu0 0
    %4261 = vmatprep.subr.bf16.mxu0 0
    %4262 = vmatpush1.bf16.msra.mxu0 0
    %4263 = vmatprep.subr.bf16.mxu0 0
    %4264 = vmatpush1.bf16.msra.mxu0 0
    %4265 = vmatprep.subr.bf16.mxu0 0
    %4266 = vmatpush1.bf16.msra.mxu0 0
    %4267 = vmatprep.subr.bf16.mxu0 0
    %4268 = vmatpush1.bf16.msra.mxu0 0
    %4269 = vmatprep.mubr.bf16.mxu0 0
    %4270 = vmatmul.mubr.bf16.gmra.mrb[0].mxu0 %v3817
    %v4271 = vpop.f32.mrb[0].mxu0
    %v4272 = vadd.f32 0.0, %v4271
    %v4273 = vpop.f32.mrb[0].mxu0
    %v4274 = vadd.f32 0.0, %v4273
    %v4275 = vpop.f32.mrb[0].mxu0
    %v4276 = vpop.f32.mrb[0].mxu0
    %4277 = vdwg.mxu0
    %v4278 = vadd.f32 %v4192, %v4231
    %v4279 = vadd.f32 %v4193, %v4233
    %v4280 = vadd.f32 %v4194, %v4272
    %v4281 = vadd.f32 %v4195, %v4274
    %v4282 = vmul.f32 %v4278, 0.5
    %v4283 = vmul.f32 %v4279, 0.5
    %v4284 = vmul.f32 %v4280, 0.5
    %v4285 = vtanh.pop %v4282
    %v4286 = vtanh.pop %v4283
    %v4287 = vtanh.pop %v4284
    %v4288 = vmul.f32 %v4285, 0.5
    %v4289 = vmul.f32 %v4286, 0.5
    %v4290 = vmul.f32 %v4287, 0.5
    %v4291 = vadd.f32 %v4288, 0.5
    %v4292 = vadd.f32 %v4289, 0.5
    %v4293 = vadd.f32 %v4290, 0.5
    %v4294 = vtanh.pop %v4281
    %v4295 = vmul.f32 %v4292, %v3814
    %v4296 = vmul.f32 %v4291, %v4294
    %v4297 = vadd.f32 %v4295, %v4296
    %v4298 = vtanh.pop %v4297
    %v4299 = vmul.f32 %v4293, %v4298
    %v4300 = vpack.c.bf16 %v4299, %v4299
    %4301 = vmatprep.subr.bf16.mxu0 %v722
    %4302 = vmatpush1.bf16.msra.mxu0 %v721
    %4303 = vmatprep.subr.bf16.mxu0 %v726
    %4304 = vmatpush1.bf16.msra.mxu0 %v725
    %4305 = vmatprep.subr.bf16.mxu0 %v730
    %4306 = vmatpush1.bf16.msra.mxu0 %v729
    %4307 = vmatprep.subr.bf16.mxu0 %v734
    %4308 = vmatpush1.bf16.msra.mxu0 %v733
    %4309 = vmatprep.subr.bf16.mxu0 %v738
    %4310 = vmatpush1.bf16.msra.mxu0 %v737
    %4311 = vmatprep.subr.bf16.mxu0 %v742
    %4312 = vmatpush1.bf16.msra.mxu0 %v741
    %4313 = vmatprep.subr.bf16.mxu0 %v746
    %4314 = vmatpush1.bf16.msra.mxu0 %v745
    %4315 = vmatprep.subr.bf16.mxu0 %v750
    %4316 = vmatpush1.bf16.msra.mxu0 %v749
    %4317 = vmatprep.subr.bf16.mxu0 0
    %4318 = vmatpush1.bf16.msra.mxu0 0
    %4319 = vmatprep.subr.bf16.mxu0 0
    %4320 = vmatpush1.bf16.msra.mxu0 0
    %4321 = vmatprep.subr.bf16.mxu0 0
    %4322 = vmatpush1.bf16.msra.mxu0 0
    %4323 = vmatprep.subr.bf16.mxu0 0
    %4324 = vmatpush1.bf16.msra.mxu0 0
    %4325 = vmatprep.subr.bf16.mxu0 0
    %4326 = vmatpush1.bf16.msra.mxu0 0
    %4327 = vmatprep.subr.bf16.mxu0 0
    %4328 = vmatpush1.bf16.msra.mxu0 0
    %4329 = vmatprep.subr.bf16.mxu0 0
    %4330 = vmatpush1.bf16.msra.mxu0 0
    %4331 = vmatprep.subr.bf16.mxu0 0
    %4332 = vmatpush1.bf16.msra.mxu0 0
    %4333 = vmatprep.mubr.bf16.mxu0 0
    %4334 = vmatmul.mubr.bf16.gmra.mrb[0].mxu0 %v4300
    %v4335 = vpop.f32.mrb[0].mxu0
    %v4336 = vadd.f32 %v608, %v4335
    %v4337 = vpop.f32.mrb[0].mxu0
    %v4338 = vadd.f32 %v612, %v4337
    %v4339 = vpop.f32.mrb[0].mxu0
    %v4340 = vpop.f32.mrb[0].mxu0
    %4341 = vdwg.mxu0
    %4342 = vmatprep.subr.bf16.mxu0 %v724
    %4343 = vmatpush1.bf16.msra.mxu0 %v723
    %4344 = vmatprep.subr.bf16.mxu0 %v728
    %4345 = vmatpush1.bf16.msra.mxu0 %v727
    %4346 = vmatprep.subr.bf16.mxu0 %v732
    %4347 = vmatpush1.bf16.msra.mxu0 %v731
    %4348 = vmatprep.subr.bf16.mxu0 %v736
    %4349 = vmatpush1.bf16.msra.mxu0 %v735
    %4350 = vmatprep.subr.bf16.mxu0 %v740
    %4351 = vmatpush1.bf16.msra.mxu0 %v739
    %4352 = vmatprep.subr.bf16.mxu0 %v744
    %4353 = vmatpush1.bf16.msra.mxu0 %v743
    %4354 = vmatprep.subr.bf16.mxu0 %v748
    %4355 = vmatpush1.bf16.msra.mxu0 %v747
    %4356 = vmatprep.subr.bf16.mxu0 %v752
    %4357 = vmatpush1.bf16.msra.mxu0 %v751
    %4358 = vmatprep.subr.bf16.mxu0 0
    %4359 = vmatpush1.bf16.msra.mxu0 0
    %4360 = vmatprep.subr.bf16.mxu0 0
    %4361 = vmatpush1.bf16.msra.mxu0 0
    %4362 = vmatprep.subr.bf16.mxu0 0
    %4363 = vmatpush1.bf16.msra.mxu0 0
    %4364 = vmatprep.subr.bf16.mxu0 0
    %4365 = vmatpush1.bf16.msra.mxu0 0
    %4366 = vmatprep.subr.bf16.mxu0 0
    %4367 = vmatpush1.bf16.msra.mxu0 0
    %4368 = vmatprep.subr.bf16.mxu0 0
    %4369 = vmatpush1.bf16.msra.mxu0 0
    %4370 = vmatprep.subr.bf16.mxu0 0
    %4371 = vmatpush1.bf16.msra.mxu0 0
    %4372 = vmatprep.subr.bf16.mxu0 0
    %4373 = vmatpush1.bf16.msra.mxu0 0
    %4374 = vmatprep.mubr.bf16.mxu0 0
    %4375 = vmatmul.mubr.bf16.gmra.mrb[0].mxu0 %v4300
    %v4376 = vpop.f32.mrb[0].mxu0
    %v4377 = vadd.f32 %v616, %v4376
    %v4378 = vpop.f32.mrb[0].mxu0
    %v4379 = vadd.f32 %v620, %v4378
    %v4380 = vpop.f32.mrb[0].mxu0
    %v4381 = vpop.f32.mrb[0].mxu0
    %4382 = vdwg.mxu0
    %4383 = vmatprep.subr.bf16.mxu0 %v1713
    %4384 = vmatpush1.bf16.msra.mxu0 %v1712
    %4385 = vmatprep.subr.bf16.mxu0 %v1717
    %4386 = vmatpush1.bf16.msra.mxu0 %v1716
    %4387 = vmatprep.subr.bf16.mxu0 %v1721
    %4388 = vmatpush1.bf16.msra.mxu0 %v1720
    %4389 = vmatprep.subr.bf16.mxu0 %v1725
    %4390 = vmatpush1.bf16.msra.mxu0 %v1724
    %4391 = vmatprep.subr.bf16.mxu0 %v1729
    %4392 = vmatpush1.bf16.msra.mxu0 %v1728
    %4393 = vmatprep.subr.bf16.mxu0 %v1733
    %4394 = vmatpush1.bf16.msra.mxu0 %v1732
    %4395 = vmatprep.subr.bf16.mxu0 %v1737
    %4396 = vmatpush1.bf16.msra.mxu0 %v1736
    %4397 = vmatprep.subr.bf16.mxu0 %v1741
    %4398 = vmatpush1.bf16.msra.mxu0 %v1740
    %4399 = vmatprep.subr.bf16.mxu0 0
    %4400 = vmatpush1.bf16.msra.mxu0 0
    %4401 = vmatprep.subr.bf16.mxu0 0
    %4402 = vmatpush1.bf16.msra.mxu0 0
    %4403 = vmatprep.subr.bf16.mxu0 0
    %4404 = vmatpush1.bf16.msra.mxu0 0
    %4405 = vmatprep.subr.bf16.mxu0 0
    %4406 = vmatpush1.bf16.msra.mxu0 0
    %4407 = vmatprep.subr.bf16.mxu0 0
    %4408 = vmatpush1.bf16.msra.mxu0 0
    %4409 = vmatprep.subr.bf16.mxu0 0
    %4410 = vmatpush1.bf16.msra.mxu0 0
    %4411 = vmatprep.subr.bf16.mxu0 0
    %4412 = vmatpush1.bf16.msra.mxu0 0
    %4413 = vmatprep.subr.bf16.mxu0 0
    %4414 = vmatpush1.bf16.msra.mxu0 0
    %4415 = vmatprep.mubr.bf16.mxu0 0
    %4416 = vmatmul.mubr.bf16.gmra.mrb[0].mxu0 %v4004
    %v4417 = vpop.f32.mrb[0].mxu0
    %v4418 = vadd.f32 0.0, %v4417
    %v4419 = vpop.f32.mrb[0].mxu0
    %v4420 = vadd.f32 0.0, %v4419
    %v4421 = vpop.f32.mrb[0].mxu0
    %v4422 = vpop.f32.mrb[0].mxu0
    %4423 = vdwg.mxu0
    %4424 = vmatprep.subr.bf16.mxu0 %v1715
    %4425 = vmatpush1.bf16.msra.mxu0 %v1714
    %4426 = vmatprep.subr.bf16.mxu0 %v1719
    %4427 = vmatpush1.bf16.msra.mxu0 %v1718
    %4428 = vmatprep.subr.bf16.mxu0 %v1723
    %4429 = vmatpush1.bf16.msra.mxu0 %v1722
    %4430 = vmatprep.subr.bf16.mxu0 %v1727
    %4431 = vmatpush1.bf16.msra.mxu0 %v1726
    %4432 = vmatprep.subr.bf16.mxu0 %v1731
    %4433 = vmatpush1.bf16.msra.mxu0 %v1730
    %4434 = vmatprep.subr.bf16.mxu0 %v1735
    %4435 = vmatpush1.bf16.msra.mxu0 %v1734
    %4436 = vmatprep.subr.bf16.mxu0 %v1739
    %4437 = vmatpush1.bf16.msra.mxu0 %v1738
    %4438 = vmatprep.subr.bf16.mxu0 %v1743
    %4439 = vmatpush1.bf16.msra.mxu0 %v1742
    %4440 = vmatprep.subr.bf16.mxu0 0
    %4441 = vmatpush1.bf16.msra.mxu0 0
    %4442 = vmatprep.subr.bf16.mxu0 0
    %4443 = vmatpush1.bf16.msra.mxu0 0
    %4444 = vmatprep.subr.bf16.mxu0 0
    %4445 = vmatpush1.bf16.msra.mxu0 0
    %4446 = vmatprep.subr.bf16.mxu0 0
    %4447 = vmatpush1.bf16.msra.mxu0 0
    %4448 = vmatprep.subr.bf16.mxu0 0
    %4449 = vmatpush1.bf16.msra.mxu0 0
    %4450 = vmatprep.subr.bf16.mxu0 0
    %4451 = vmatpush1.bf16.msra.mxu0 0
    %4452 = vmatprep.subr.bf16.mxu0 0
    %4453 = vmatpush1.bf16.msra.mxu0 0
    %4454 = vmatprep.subr.bf16.mxu0 0
    %4455 = vmatpush1.bf16.msra.mxu0 0
    %4456 = vmatprep.mubr.bf16.mxu0 0
    %4457 = vmatmul.mubr.bf16.gmra.mrb[0].mxu0 %v4004
    %v4458 = vpop.f32.mrb[0].mxu0
    %v4459 = vadd.f32 0.0, %v4458
    %v4460 = vpop.f32.mrb[0].mxu0
    %v4461 = vadd.f32 0.0, %v4460
    %v4462 = vpop.f32.mrb[0].mxu0
    %v4463 = vpop.f32.mrb[0].mxu0
    %4464 = vdwg.mxu0
    %v4465 = vadd.f32 %v4336, %v4418
    %v4466 = vadd.f32 %v4338, %v4420
    %v4467 = vadd.f32 %v4377, %v4459
    %v4468 = vadd.f32 %v4379, %v4461
    %v4469 = vmul.f32 %v4465, 0.5
    %v4470 = vmul.f32 %v4466, 0.5
    %v4471 = vmul.f32 %v4467, 0.5
    %v4472 = vtanh.pop %v4469
    %v4473 = vtanh.pop %v4470
    %v4474 = vtanh.pop %v4471
    %v4475 = vmul.f32 %v4472, 0.5
    %v4476 = vmul.f32 %v4473, 0.5
    %v4477 = vmul.f32 %v4474, 0.5
    %v4478 = vadd.f32 %v4475, 0.5
    %v4479 = vadd.f32 %v4476, 0.5
    %v4480 = vadd.f32 %v4477, 0.5
    %v4481 = vtanh.pop %v4468
    %v4482 = vmul.f32 %v4479, %v4001
    %v4483 = vmul.f32 %v4478, %v4481
    %v4484 = vadd.f32 %v4482, %v4483
    %v4485 = vtanh.pop %v4484
    %v4486 = vmul.f32 %v4480, %v4485
    %v4487 = vpack.c.bf16 %v4486, %v4486
    %4488 = vmatprep.subr.bf16.mxu0 %v1037
    %4489 = vmatpush1.bf16.msra.mxu0 %v1036
    %4490 = vmatprep.subr.bf16.mxu0 %v1041
    %4491 = vmatpush1.bf16.msra.mxu0 %v1040
    %4492 = vmatprep.subr.bf16.mxu0 %v1045
    %4493 = vmatpush1.bf16.msra.mxu0 %v1044
    %4494 = vmatprep.subr.bf16.mxu0 %v1049
    %4495 = vmatpush1.bf16.msra.mxu0 %v1048
    %4496 = vmatprep.subr.bf16.mxu0 %v1053
    %4497 = vmatpush1.bf16.msra.mxu0 %v1052
    %4498 = vmatprep.subr.bf16.mxu0 %v1057
    %4499 = vmatpush1.bf16.msra.mxu0 %v1056
    %4500 = vmatprep.subr.bf16.mxu0 %v1061
    %4501 = vmatpush1.bf16.msra.mxu0 %v1060
    %4502 = vmatprep.subr.bf16.mxu0 %v1065
    %4503 = vmatpush1.bf16.msra.mxu0 %v1064
    %4504 = vmatprep.subr.bf16.mxu0 0
    %4505 = vmatpush1.bf16.msra.mxu0 0
    %4506 = vmatprep.subr.bf16.mxu0 0
    %4507 = vmatpush1.bf16.msra.mxu0 0
    %4508 = vmatprep.subr.bf16.mxu0 0
    %4509 = vmatpush1.bf16.msra.mxu0 0
    %4510 = vmatprep.subr.bf16.mxu0 0
    %4511 = vmatpush1.bf16.msra.mxu0 0
    %4512 = vmatprep.subr.bf16.mxu0 0
    %4513 = vmatpush1.bf16.msra.mxu0 0
    %4514 = vmatprep.subr.bf16.mxu0 0
    %4515 = vmatpush1.bf16.msra.mxu0 0
    %4516 = vmatprep.subr.bf16.mxu0 0
    %4517 = vmatpush1.bf16.msra.mxu0 0
    %4518 = vmatprep.subr.bf16.mxu0 0
    %4519 = vmatpush1.bf16.msra.mxu0 0
    %4520 = vmatprep.mubr.bf16.mxu0 0
    %4521 = vmatmul.mubr.bf16.gmra.mrb[0].mxu0 %v4487
    %v4522 = vpop.f32.mrb[0].mxu0
    %v4523 = vadd.f32 %v923, %v4522
    %v4524 = vpop.f32.mrb[0].mxu0
    %v4525 = vadd.f32 %v927, %v4524
    %v4526 = vpop.f32.mrb[0].mxu0
    %v4527 = vpop.f32.mrb[0].mxu0
    %4528 = vdwg.mxu0
    %4529 = vmatprep.subr.bf16.mxu0 %v1039
    %4530 = vmatpush1.bf16.msra.mxu0 %v1038
    %4531 = vmatprep.subr.bf16.mxu0 %v1043
    %4532 = vmatpush1.bf16.msra.mxu0 %v1042
    %4533 = vmatprep.subr.bf16.mxu0 %v1047
    %4534 = vmatpush1.bf16.msra.mxu0 %v1046
    %4535 = vmatprep.subr.bf16.mxu0 %v1051
    %4536 = vmatpush1.bf16.msra.mxu0 %v1050
    %4537 = vmatprep.subr.bf16.mxu0 %v1055
    %4538 = vmatpush1.bf16.msra.mxu0 %v1054
    %4539 = vmatprep.subr.bf16.mxu0 %v1059
    %4540 = vmatpush1.bf16.msra.mxu0 %v1058
    %4541 = vmatprep.subr.bf16.mxu0 %v1063
    %4542 = vmatpush1.bf16.msra.mxu0 %v1062
    %4543 = vmatprep.subr.bf16.mxu0 %v1067
    %4544 = vmatpush1.bf16.msra.mxu0 %v1066
    %4545 = vmatprep.subr.bf16.mxu0 0
    %4546 = vmatpush1.bf16.msra.mxu0 0
    %4547 = vmatprep.subr.bf16.mxu0 0
    %4548 = vmatpush1.bf16.msra.mxu0 0
    %4549 = vmatprep.subr.bf16.mxu0 0
    %4550 = vmatpush1.bf16.msra.mxu0 0
    %4551 = vmatprep.subr.bf16.mxu0 0
    %4552 = vmatpush1.bf16.msra.mxu0 0
    %4553 = vmatprep.subr.bf16.mxu0 0
    %4554 = vmatpush1.bf16.msra.mxu0 0
    %4555 = vmatprep.subr.bf16.mxu0 0
    %4556 = vmatpush1.bf16.msra.mxu0 0
    %4557 = vmatprep.subr.bf16.mxu0 0
    %4558 = vmatpush1.bf16.msra.mxu0 0
    %4559 = vmatprep.subr.bf16.mxu0 0
    %4560 = vmatpush1.bf16.msra.mxu0 0
    %4561 = vmatprep.mubr.bf16.mxu0 0
    %4562 = vmatmul.mubr.bf16.gmra.mrb[0].mxu0 %v4487
    %v4563 = vpop.f32.mrb[0].mxu0
    %v4564 = vadd.f32 %v931, %v4563
    %v4565 = vpop.f32.mrb[0].mxu0
    %v4566 = vadd.f32 %v935, %v4565
    %v4567 = vpop.f32.mrb[0].mxu0
    %v4568 = vpop.f32.mrb[0].mxu0
    %4569 = vdwg.mxu0
    %4570 = vmatprep.subr.bf16.mxu0 %v2092
    %4571 = vmatpush1.bf16.msra.mxu0 %v2091
    %4572 = vmatprep.subr.bf16.mxu0 %v2096
    %4573 = vmatpush1.bf16.msra.mxu0 %v2095
    %4574 = vmatprep.subr.bf16.mxu0 %v2100
    %4575 = vmatpush1.bf16.msra.mxu0 %v2099
    %4576 = vmatprep.subr.bf16.mxu0 %v2104
    %4577 = vmatpush1.bf16.msra.mxu0 %v2103
    %4578 = vmatprep.subr.bf16.mxu0 %v2108
    %4579 = vmatpush1.bf16.msra.mxu0 %v2107
    %4580 = vmatprep.subr.bf16.mxu0 %v2112
    %4581 = vmatpush1.bf16.msra.mxu0 %v2111
    %4582 = vmatprep.subr.bf16.mxu0 %v2116
    %4583 = vmatpush1.bf16.msra.mxu0 %v2115
    %4584 = vmatprep.subr.bf16.mxu0 %v2120
    %4585 = vmatpush1.bf16.msra.mxu0 %v2119
    %4586 = vmatprep.subr.bf16.mxu0 0
    %4587 = vmatpush1.bf16.msra.mxu0 0
    %4588 = vmatprep.subr.bf16.mxu0 0
    %4589 = vmatpush1.bf16.msra.mxu0 0
    %4590 = vmatprep.subr.bf16.mxu0 0
    %4591 = vmatpush1.bf16.msra.mxu0 0
    %4592 = vmatprep.subr.bf16.mxu0 0
    %4593 = vmatpush1.bf16.msra.mxu0 0
    %4594 = vmatprep.subr.bf16.mxu0 0
    %4595 = vmatpush1.bf16.msra.mxu0 0
    %4596 = vmatprep.subr.bf16.mxu0 0
    %4597 = vmatpush1.bf16.msra.mxu0 0
    %4598 = vmatprep.subr.bf16.mxu0 0
    %4599 = vmatpush1.bf16.msra.mxu0 0
    %4600 = vmatprep.subr.bf16.mxu0 0
    %4601 = vmatpush1.bf16.msra.mxu0 0
    %4602 = vmatprep.mubr.bf16.mxu0 0
    %4603 = vmatmul.mubr.bf16.gmra.mrb[0].mxu0 %v4191
    %v4604 = vpop.f32.mrb[0].mxu0
    %v4605 = vadd.f32 0.0, %v4604
    %v4606 = vpop.f32.mrb[0].mxu0
    %v4607 = vadd.f32 0.0, %v4606
    %v4608 = vpop.f32.mrb[0].mxu0
    %v4609 = vpop.f32.mrb[0].mxu0
    %4610 = vdwg.mxu0
    %4611 = vmatprep.subr.bf16.mxu0 %v2094
    %4612 = vmatpush1.bf16.msra.mxu0 %v2093
    %4613 = vmatprep.subr.bf16.mxu0 %v2098
    %4614 = vmatpush1.bf16.msra.mxu0 %v2097
    %4615 = vmatprep.subr.bf16.mxu0 %v2102
    %4616 = vmatpush1.bf16.msra.mxu0 %v2101
    %4617 = vmatprep.subr.bf16.mxu0 %v2106
    %4618 = vmatpush1.bf16.msra.mxu0 %v2105
    %4619 = vmatprep.subr.bf16.mxu0 %v2110
    %4620 = vmatpush1.bf16.msra.mxu0 %v2109
    %4621 = vmatprep.subr.bf16.mxu0 %v2114
    %4622 = vmatpush1.bf16.msra.mxu0 %v2113
    %4623 = vmatprep.subr.bf16.mxu0 %v2118
    %4624 = vmatpush1.bf16.msra.mxu0 %v2117
    %4625 = vmatprep.subr.bf16.mxu0 %v2122
    %4626 = vmatpush1.bf16.msra.mxu0 %v2121
    %4627 = vmatprep.subr.bf16.mxu0 0
    %4628 = vmatpush1.bf16.msra.mxu0 0
    %4629 = vmatprep.subr.bf16.mxu0 0
    %4630 = vmatpush1.bf16.msra.mxu0 0
    %4631 = vmatprep.subr.bf16.mxu0 0
    %4632 = vmatpush1.bf16.msra.mxu0 0
    %4633 = vmatprep.subr.bf16.mxu0 0
    %4634 = vmatpush1.bf16.msra.mxu0 0
    %4635 = vmatprep.subr.bf16.mxu0 0
    %4636 = vmatpush1.bf16.msra.mxu0 0
    %4637 = vmatprep.subr.bf16.mxu0 0
    %4638 = vmatpush1.bf16.msra.mxu0 0
    %4639 = vmatprep.subr.bf16.mxu0 0
    %4640 = vmatpush1.bf16.msra.mxu0 0
    %4641 = vmatprep.subr.bf16.mxu0 0
    %4642 = vmatpush1.bf16.msra.mxu0 0
    %4643 = vmatprep.mubr.bf16.mxu0 0
    %4644 = vmatmul.mubr.bf16.gmra.mrb[0].mxu0 %v4191
    %v4645 = vpop.f32.mrb[0].mxu0
    %v4646 = vadd.f32 0.0, %v4645
    %v4647 = vpop.f32.mrb[0].mxu0
    %v4648 = vadd.f32 0.0, %v4647
    %v4649 = vpop.f32.mrb[0].mxu0
    %v4650 = vpop.f32.mrb[0].mxu0
    %4651 = vdwg.mxu0
    %v4652 = vadd.f32 %v4523, %v4605
    %v4653 = vadd.f32 %v4525, %v4607
    %v4654 = vadd.f32 %v4564, %v4646
    %v4655 = vadd.f32 %v4566, %v4648
    %v4656 = vmul.f32 %v4652, 0.5
    %v4657 = vmul.f32 %v4653, 0.5
    %v4658 = vmul.f32 %v4654, 0.5
    %v4659 = vtanh.pop %v4656
    %v4660 = vtanh.pop %v4657
    %v4661 = vtanh.pop %v4658
    %v4662 = vmul.f32 %v4659, 0.5
    %v4663 = vmul.f32 %v4660, 0.5
    %v4664 = vmul.f32 %v4661, 0.5
    %v4665 = vadd.f32 %v4662, 0.5
    %v4666 = vadd.f32 %v4663, 0.5
    %v4667 = vadd.f32 %v4664, 0.5
    %v4668 = vtanh.pop %v4655
    %v4669 = vmul.f32 %v4666, %v4188
    %v4670 = vmul.f32 %v4665, %v4668
    %v4671 = vadd.f32 %v4669, %v4670
    %v4672 = vtanh.pop %v4671
    %v4673 = vmul.f32 %v4667, %v4672
    %v4674 = vpack.c.bf16 %v4673, %v4673
    %v4675 = vld [vmem:[#allocation2 + $0xe0] sm:$0xff]
    %v4676 = vld [vmem:[#allocation2 + $0xe8] sm:$0xff]
    %v4677 = vld [vmem:[#allocation2 + $0xf0] sm:$0xff]
    %v4678 = vld [vmem:[#allocation2 + $0xf8] sm:$0xff]
    %4679 = vmatprep.subr.bf16.mxu0 %v1334
    %4680 = vmatpush1.bf16.msra.mxu0 %v1333
    %4681 = vmatprep.subr.bf16.mxu0 %v1338
    %4682 = vmatpush1.bf16.msra.mxu0 %v1337
    %4683 = vmatprep.subr.bf16.mxu0 %v1342
    %4684 = vmatpush1.bf16.msra.mxu0 %v1341
    %4685 = vmatprep.subr.bf16.mxu0 %v1346
    %4686 = vmatpush1.bf16.msra.mxu0 %v1345
    %4687 = vmatprep.subr.bf16.mxu0 %v1350
    %4688 = vmatpush1.bf16.msra.mxu0 %v1349
    %4689 = vmatprep.subr.bf16.mxu0 %v1354
    %4690 = vmatpush1.bf16.msra.mxu0 %v1353
    %4691 = vmatprep.subr.bf16.mxu0 %v1358
    %4692 = vmatpush1.bf16.msra.mxu0 %v1357
    %4693 = vmatprep.subr.bf16.mxu0 %v1362
    %4694 = vmatpush1.bf16.msra.mxu0 %v1361
    %4695 = vmatprep.subr.bf16.mxu0 0
    %4696 = vmatpush1.bf16.msra.mxu0 0
    %4697 = vmatprep.subr.bf16.mxu0 0
    %4698 = vmatpush1.bf16.msra.mxu0 0
    %4699 = vmatprep.subr.bf16.mxu0 0
    %4700 = vmatpush1.bf16.msra.mxu0 0
    %4701 = vmatprep.subr.bf16.mxu0 0
    %4702 = vmatpush1.bf16.msra.mxu0 0
    %4703 = vmatprep.subr.bf16.mxu0 0
    %4704 = vmatpush1.bf16.msra.mxu0 0
    %4705 = vmatprep.subr.bf16.mxu0 0
    %4706 = vmatpush1.bf16.msra.mxu0 0
    %4707 = vmatprep.subr.bf16.mxu0 0
    %4708 = vmatpush1.bf16.msra.mxu0 0
    %4709 = vmatprep.subr.bf16.mxu0 0
    %4710 = vmatpush1.bf16.msra.mxu0 0
    %4711 = vmatprep.mubr.bf16.mxu0 0
    %4712 = vmatmul.mubr.bf16.gmra.mrb[0].mxu0 %v4300
    %v4713 = vpop.f32.mrb[0].mxu0
    %v4714 = vadd.f32 0.0, %v4713
    %v4715 = vpop.f32.mrb[0].mxu0
    %v4716 = vadd.f32 0.0, %v4715
    %v4717 = vpop.f32.mrb[0].mxu0
    %v4718 = vpop.f32.mrb[0].mxu0
    %4719 = vdwg.mxu0
    %4720 = vmatprep.subr.bf16.mxu0 %v1336
    %4721 = vmatpush1.bf16.msra.mxu0 %v1335
    %4722 = vmatprep.subr.bf16.mxu0 %v1340
    %4723 = vmatpush1.bf16.msra.mxu0 %v1339
    %4724 = vmatprep.subr.bf16.mxu0 %v1344
    %4725 = vmatpush1.bf16.msra.mxu0 %v1343
    %4726 = vmatprep.subr.bf16.mxu0 %v1348
    %4727 = vmatpush1.bf16.msra.mxu0 %v1347
    %4728 = vmatprep.subr.bf16.mxu0 %v1352
    %4729 = vmatpush1.bf16.msra.mxu0 %v1351
    %4730 = vmatprep.subr.bf16.mxu0 %v1356
    %4731 = vmatpush1.bf16.msra.mxu0 %v1355
    %4732 = vmatprep.subr.bf16.mxu0 %v1360
    %4733 = vmatpush1.bf16.msra.mxu0 %v1359
    %4734 = vmatprep.subr.bf16.mxu0 %v1364
    %4735 = vmatpush1.bf16.msra.mxu0 %v1363
    %4736 = vmatprep.subr.bf16.mxu0 0
    %4737 = vmatpush1.bf16.msra.mxu0 0
    %4738 = vmatprep.subr.bf16.mxu0 0
    %4739 = vmatpush1.bf16.msra.mxu0 0
    %4740 = vmatprep.subr.bf16.mxu0 0
    %4741 = vmatpush1.bf16.msra.mxu0 0
    %4742 = vmatprep.subr.bf16.mxu0 0
    %4743 = vmatpush1.bf16.msra.mxu0 0
    %4744 = vmatprep.subr.bf16.mxu0 0
    %4745 = vmatpush1.bf16.msra.mxu0 0
    %4746 = vmatprep.subr.bf16.mxu0 0
    %4747 = vmatpush1.bf16.msra.mxu0 0
    %4748 = vmatprep.subr.bf16.mxu0 0
    %4749 = vmatpush1.bf16.msra.mxu0 0
    %4750 = vmatprep.subr.bf16.mxu0 0
    %4751 = vmatpush1.bf16.msra.mxu0 0
    %4752 = vmatprep.mubr.bf16.mxu0 0
    %4753 = vmatmul.mubr.bf16.gmra.mrb[0].mxu0 %v4300
    %v4754 = vpop.f32.mrb[0].mxu0
    %v4755 = vadd.f32 0.0, %v4754
    %v4756 = vpop.f32.mrb[0].mxu0
    %v4757 = vadd.f32 0.0, %v4756
    %v4758 = vpop.f32.mrb[0].mxu0
    %v4759 = vpop.f32.mrb[0].mxu0
    %4760 = vdwg.mxu0
    %v4761 = vadd.f32 %v4675, %v4714
    %v4762 = vadd.f32 %v4676, %v4716
    %v4763 = vadd.f32 %v4677, %v4755
    %v4764 = vadd.f32 %v4678, %v4757
    %v4765 = vmul.f32 %v4761, 0.5
    %v4766 = vmul.f32 %v4762, 0.5
    %v4767 = vmul.f32 %v4763, 0.5
    %v4768 = vtanh.pop %v4765
    %v4769 = vtanh.pop %v4766
    %v4770 = vtanh.pop %v4767
    %v4771 = vmul.f32 %v4768, 0.5
    %v4772 = vmul.f32 %v4769, 0.5
    %v4773 = vmul.f32 %v4770, 0.5
    %v4774 = vadd.f32 %v4771, 0.5
    %v4775 = vadd.f32 %v4772, 0.5
    %v4776 = vadd.f32 %v4773, 0.5
    %v4777 = vtanh.pop %v4764
    %v4778 = vmul.f32 %v4775, %v4297
    %v4779 = vmul.f32 %v4774, %v4777
    %v4780 = vadd.f32 %v4778, %v4779
    %v4781 = vtanh.pop %v4780
    %v4782 = vmul.f32 %v4776, %v4781
    %v4783 = vpack.c.bf16 %v4782, %v4782
    %4784 = vmatprep.subr.bf16.mxu0 %v722
    %4785 = vmatpush1.bf16.msra.mxu0 %v721
    %4786 = vmatprep.subr.bf16.mxu0 %v726
    %4787 = vmatpush1.bf16.msra.mxu0 %v725
    %4788 = vmatprep.subr.bf16.mxu0 %v730
    %4789 = vmatpush1.bf16.msra.mxu0 %v729
    %4790 = vmatprep.subr.bf16.mxu0 %v734
    %4791 = vmatpush1.bf16.msra.mxu0 %v733
    %4792 = vmatprep.subr.bf16.mxu0 %v738
    %4793 = vmatpush1.bf16.msra.mxu0 %v737
    %4794 = vmatprep.subr.bf16.mxu0 %v742
    %4795 = vmatpush1.bf16.msra.mxu0 %v741
    %4796 = vmatprep.subr.bf16.mxu0 %v746
    %4797 = vmatpush1.bf16.msra.mxu0 %v745
    %4798 = vmatprep.subr.bf16.mxu0 %v750
    %4799 = vmatpush1.bf16.msra.mxu0 %v749
    %4800 = vmatprep.subr.bf16.mxu0 0
    %4801 = vmatpush1.bf16.msra.mxu0 0
    %4802 = vmatprep.subr.bf16.mxu0 0
    %4803 = vmatpush1.bf16.msra.mxu0 0
    %4804 = vmatprep.subr.bf16.mxu0 0
    %4805 = vmatpush1.bf16.msra.mxu0 0
    %4806 = vmatprep.subr.bf16.mxu0 0
    %4807 = vmatpush1.bf16.msra.mxu0 0
    %4808 = vmatprep.subr.bf16.mxu0 0
    %4809 = vmatpush1.bf16.msra.mxu0 0
    %4810 = vmatprep.subr.bf16.mxu0 0
    %4811 = vmatpush1.bf16.msra.mxu0 0
    %4812 = vmatprep.subr.bf16.mxu0 0
    %4813 = vmatpush1.bf16.msra.mxu0 0
    %4814 = vmatprep.subr.bf16.mxu0 0
    %4815 = vmatpush1.bf16.msra.mxu0 0
    %4816 = vmatprep.mubr.bf16.mxu0 0
    %4817 = vmatmul.mubr.bf16.gmra.mrb[0].mxu0 %v4783
    %v4818 = vpop.f32.mrb[0].mxu0
    %v4819 = vadd.f32 %v608, %v4818
    %v4820 = vpop.f32.mrb[0].mxu0
    %v4821 = vadd.f32 %v612, %v4820
    %v4822 = vpop.f32.mrb[0].mxu0
    %v4823 = vpop.f32.mrb[0].mxu0
    %4824 = vdwg.mxu0
    %4825 = vmatprep.subr.bf16.mxu0 %v724
    %4826 = vmatpush1.bf16.msra.mxu0 %v723
    %4827 = vmatprep.subr.bf16.mxu0 %v728
    %4828 = vmatpush1.bf16.msra.mxu0 %v727
    %4829 = vmatprep.subr.bf16.mxu0 %v732
    %4830 = vmatpush1.bf16.msra.mxu0 %v731
    %4831 = vmatprep.subr.bf16.mxu0 %v736
    %4832 = vmatpush1.bf16.msra.mxu0 %v735
    %4833 = vmatprep.subr.bf16.mxu0 %v740
    %4834 = vmatpush1.bf16.msra.mxu0 %v739
    %4835 = vmatprep.subr.bf16.mxu0 %v744
    %4836 = vmatpush1.bf16.msra.mxu0 %v743
    %4837 = vmatprep.subr.bf16.mxu0 %v748
    %4838 = vmatpush1.bf16.msra.mxu0 %v747
    %4839 = vmatprep.subr.bf16.mxu0 %v752
    %4840 = vmatpush1.bf16.msra.mxu0 %v751
    %4841 = vmatprep.subr.bf16.mxu0 0
    %4842 = vmatpush1.bf16.msra.mxu0 0
    %4843 = vmatprep.subr.bf16.mxu0 0
    %4844 = vmatpush1.bf16.msra.mxu0 0
    %4845 = vmatprep.subr.bf16.mxu0 0
    %4846 = vmatpush1.bf16.msra.mxu0 0
    %4847 = vmatprep.subr.bf16.mxu0 0
    %4848 = vmatpush1.bf16.msra.mxu0 0
    %4849 = vmatprep.subr.bf16.mxu0 0
    %4850 = vmatpush1.bf16.msra.mxu0 0
    %4851 = vmatprep.subr.bf16.mxu0 0
    %4852 = vmatpush1.bf16.msra.mxu0 0
    %4853 = vmatprep.subr.bf16.mxu0 0
    %4854 = vmatpush1.bf16.msra.mxu0 0
    %4855 = vmatprep.subr.bf16.mxu0 0
    %4856 = vmatpush1.bf16.msra.mxu0 0
    %4857 = vmatprep.mubr.bf16.mxu0 0
    %4858 = vmatmul.mubr.bf16.gmra.mrb[0].mxu0 %v4783
    %v4859 = vpop.f32.mrb[0].mxu0
    %v4860 = vadd.f32 %v616, %v4859
    %v4861 = vpop.f32.mrb[0].mxu0
    %v4862 = vadd.f32 %v620, %v4861
    %v4863 = vpop.f32.mrb[0].mxu0
    %v4864 = vpop.f32.mrb[0].mxu0
    %4865 = vdwg.mxu0
    %4866 = vmatprep.subr.bf16.mxu0 %v1713
    %4867 = vmatpush1.bf16.msra.mxu0 %v1712
    %4868 = vmatprep.subr.bf16.mxu0 %v1717
    %4869 = vmatpush1.bf16.msra.mxu0 %v1716
    %4870 = vmatprep.subr.bf16.mxu0 %v1721
    %4871 = vmatpush1.bf16.msra.mxu0 %v1720
    %4872 = vmatprep.subr.bf16.mxu0 %v1725
    %4873 = vmatpush1.bf16.msra.mxu0 %v1724
    %4874 = vmatprep.subr.bf16.mxu0 %v1729
    %4875 = vmatpush1.bf16.msra.mxu0 %v1728
    %4876 = vmatprep.subr.bf16.mxu0 %v1733
    %4877 = vmatpush1.bf16.msra.mxu0 %v1732
    %4878 = vmatprep.subr.bf16.mxu0 %v1737
    %4879 = vmatpush1.bf16.msra.mxu0 %v1736
    %4880 = vmatprep.subr.bf16.mxu0 %v1741
    %4881 = vmatpush1.bf16.msra.mxu0 %v1740
    %4882 = vmatprep.subr.bf16.mxu0 0
    %4883 = vmatpush1.bf16.msra.mxu0 0
    %4884 = vmatprep.subr.bf16.mxu0 0
    %4885 = vmatpush1.bf16.msra.mxu0 0
    %4886 = vmatprep.subr.bf16.mxu0 0
    %4887 = vmatpush1.bf16.msra.mxu0 0
    %4888 = vmatprep.subr.bf16.mxu0 0
    %4889 = vmatpush1.bf16.msra.mxu0 0
    %4890 = vmatprep.subr.bf16.mxu0 0
    %4891 = vmatpush1.bf16.msra.mxu0 0
    %4892 = vmatprep.subr.bf16.mxu0 0
    %4893 = vmatpush1.bf16.msra.mxu0 0
    %4894 = vmatprep.subr.bf16.mxu0 0
    %4895 = vmatpush1.bf16.msra.mxu0 0
    %4896 = vmatprep.subr.bf16.mxu0 0
    %4897 = vmatpush1.bf16.msra.mxu0 0
    %4898 = vmatprep.mubr.bf16.mxu0 0
    %4899 = vmatmul.mubr.bf16.gmra.mrb[0].mxu0 %v4487
    %v4900 = vpop.f32.mrb[0].mxu0
    %v4901 = vadd.f32 0.0, %v4900
    %v4902 = vpop.f32.mrb[0].mxu0
    %v4903 = vadd.f32 0.0, %v4902
    %v4904 = vpop.f32.mrb[0].mxu0
    %v4905 = vpop.f32.mrb[0].mxu0
    %4906 = vdwg.mxu0
    %4907 = vmatprep.subr.bf16.mxu0 %v1715
    %4908 = vmatpush1.bf16.msra.mxu0 %v1714
    %4909 = vmatprep.subr.bf16.mxu0 %v1719
    %4910 = vmatpush1.bf16.msra.mxu0 %v1718
    %4911 = vmatprep.subr.bf16.mxu0 %v1723
    %4912 = vmatpush1.bf16.msra.mxu0 %v1722
    %4913 = vmatprep.subr.bf16.mxu0 %v1727
    %4914 = vmatpush1.bf16.msra.mxu0 %v1726
    %4915 = vmatprep.subr.bf16.mxu0 %v1731
    %4916 = vmatpush1.bf16.msra.mxu0 %v1730
    %4917 = vmatprep.subr.bf16.mxu0 %v1735
    %4918 = vmatpush1.bf16.msra.mxu0 %v1734
    %4919 = vmatprep.subr.bf16.mxu0 %v1739
    %4920 = vmatpush1.bf16.msra.mxu0 %v1738
    %4921 = vmatprep.subr.bf16.mxu0 %v1743
    %4922 = vmatpush1.bf16.msra.mxu0 %v1742
    %4923 = vmatprep.subr.bf16.mxu0 0
    %4924 = vmatpush1.bf16.msra.mxu0 0
    %4925 = vmatprep.subr.bf16.mxu0 0
    %4926 = vmatpush1.bf16.msra.mxu0 0
    %4927 = vmatprep.subr.bf16.mxu0 0
    %4928 = vmatpush1.bf16.msra.mxu0 0
    %4929 = vmatprep.subr.bf16.mxu0 0
    %4930 = vmatpush1.bf16.msra.mxu0 0
    %4931 = vmatprep.subr.bf16.mxu0 0
    %4932 = vmatpush1.bf16.msra.mxu0 0
    %4933 = vmatprep.subr.bf16.mxu0 0
    %4934 = vmatpush1.bf16.msra.mxu0 0
    %4935 = vmatprep.subr.bf16.mxu0 0
    %4936 = vmatpush1.bf16.msra.mxu0 0
    %4937 = vmatprep.subr.bf16.mxu0 0
    %4938 = vmatpush1.bf16.msra.mxu0 0
    %4939 = vmatprep.mubr.bf16.mxu0 0
    %4940 = vmatmul.mubr.bf16.gmra.mrb[0].mxu0 %v4487
    %v4941 = vpop.f32.mrb[0].mxu0
    %v4942 = vadd.f32 0.0, %v4941
    %v4943 = vpop.f32.mrb[0].mxu0
    %v4944 = vadd.f32 0.0, %v4943
    %v4945 = vpop.f32.mrb[0].mxu0
    %v4946 = vpop.f32.mrb[0].mxu0
    %4947 = vdwg.mxu0
    %v4948 = vadd.f32 %v4819, %v4901
    %v4949 = vadd.f32 %v4821, %v4903
    %v4950 = vadd.f32 %v4860, %v4942
    %v4951 = vadd.f32 %v4862, %v4944
    %v4952 = vmul.f32 %v4948, 0.5
    %v4953 = vmul.f32 %v4949, 0.5
    %v4954 = vmul.f32 %v4950, 0.5
    %v4955 = vtanh.pop %v4952
    %v4956 = vtanh.pop %v4953
    %v4957 = vtanh.pop %v4954
    %v4958 = vmul.f32 %v4955, 0.5
    %v4959 = vmul.f32 %v4956, 0.5
    %v4960 = vmul.f32 %v4957, 0.5
    %v4961 = vadd.f32 %v4958, 0.5
    %v4962 = vadd.f32 %v4959, 0.5
    %v4963 = vadd.f32 %v4960, 0.5
    %v4964 = vtanh.pop %v4951
    %v4965 = vmul.f32 %v4962, %v4484
    %v4966 = vmul.f32 %v4961, %v4964
    %v4967 = vadd.f32 %v4965, %v4966
    %v4968 = vtanh.pop %v4967
    %v4969 = vmul.f32 %v4963, %v4968
    %v4970 = vpack.c.bf16 %v4969, %v4969
    %4971 = vmatprep.subr.bf16.mxu0 %v1037
    %4972 = vmatpush1.bf16.msra.mxu0 %v1036
    %4973 = vmatprep.subr.bf16.mxu0 %v1041
    %4974 = vmatpush1.bf16.msra.mxu0 %v1040
    %4975 = vmatprep.subr.bf16.mxu0 %v1045
    %4976 = vmatpush1.bf16.msra.mxu0 %v1044
    %4977 = vmatprep.subr.bf16.mxu0 %v1049
    %4978 = vmatpush1.bf16.msra.mxu0 %v1048
    %4979 = vmatprep.subr.bf16.mxu0 %v1053
    %4980 = vmatpush1.bf16.msra.mxu0 %v1052
    %4981 = vmatprep.subr.bf16.mxu0 %v1057
    %4982 = vmatpush1.bf16.msra.mxu0 %v1056
    %4983 = vmatprep.subr.bf16.mxu0 %v1061
    %4984 = vmatpush1.bf16.msra.mxu0 %v1060
    %4985 = vmatprep.subr.bf16.mxu0 %v1065
    %4986 = vmatpush1.bf16.msra.mxu0 %v1064
    %4987 = vmatprep.subr.bf16.mxu0 0
    %4988 = vmatpush1.bf16.msra.mxu0 0
    %4989 = vmatprep.subr.bf16.mxu0 0
    %4990 = vmatpush1.bf16.msra.mxu0 0
    %4991 = vmatprep.subr.bf16.mxu0 0
    %4992 = vmatpush1.bf16.msra.mxu0 0
    %4993 = vmatprep.subr.bf16.mxu0 0
    %4994 = vmatpush1.bf16.msra.mxu0 0
    %4995 = vmatprep.subr.bf16.mxu0 0
    %4996 = vmatpush1.bf16.msra.mxu0 0
    %4997 = vmatprep.subr.bf16.mxu0 0
    %4998 = vmatpush1.bf16.msra.mxu0 0
    %4999 = vmatprep.subr.bf16.mxu0 0
    %5000 = vmatpush1.bf16.msra.mxu0 0
    %5001 = vmatprep.subr.bf16.mxu0 0
    %5002 = vmatpush1.bf16.msra.mxu0 0
    %5003 = vmatprep.mubr.bf16.mxu0 0
    %5004 = vmatmul.mubr.bf16.gmra.mrb[0].mxu0 %v4970
    %v5005 = vpop.f32.mrb[0].mxu0
    %v5006 = vadd.f32 %v923, %v5005
    %v5007 = vpop.f32.mrb[0].mxu0
    %v5008 = vadd.f32 %v927, %v5007
    %v5009 = vpop.f32.mrb[0].mxu0
    %v5010 = vpop.f32.mrb[0].mxu0
    %5011 = vdwg.mxu0
    %5012 = vmatprep.subr.bf16.mxu0 %v1039
    %5013 = vmatpush1.bf16.msra.mxu0 %v1038
    %5014 = vmatprep.subr.bf16.mxu0 %v1043
    %5015 = vmatpush1.bf16.msra.mxu0 %v1042
    %5016 = vmatprep.subr.bf16.mxu0 %v1047
    %5017 = vmatpush1.bf16.msra.mxu0 %v1046
    %5018 = vmatprep.subr.bf16.mxu0 %v1051
    %5019 = vmatpush1.bf16.msra.mxu0 %v1050
    %5020 = vmatprep.subr.bf16.mxu0 %v1055
    %5021 = vmatpush1.bf16.msra.mxu0 %v1054
    %5022 = vmatprep.subr.bf16.mxu0 %v1059
    %5023 = vmatpush1.bf16.msra.mxu0 %v1058
    %5024 = vmatprep.subr.bf16.mxu0 %v1063
    %5025 = vmatpush1.bf16.msra.mxu0 %v1062
    %5026 = vmatprep.subr.bf16.mxu0 %v1067
    %5027 = vmatpush1.bf16.msra.mxu0 %v1066
    %5028 = vmatprep.subr.bf16.mxu0 0
    %5029 = vmatpush1.bf16.msra.mxu0 0
    %5030 = vmatprep.subr.bf16.mxu0 0
    %5031 = vmatpush1.bf16.msra.mxu0 0
    %5032 = vmatprep.subr.bf16.mxu0 0
    %5033 = vmatpush1.bf16.msra.mxu0 0
    %5034 = vmatprep.subr.bf16.mxu0 0
    %5035 = vmatpush1.bf16.msra.mxu0 0
    %5036 = vmatprep.subr.bf16.mxu0 0
    %5037 = vmatpush1.bf16.msra.mxu0 0
    %5038 = vmatprep.subr.bf16.mxu0 0
    %5039 = vmatpush1.bf16.msra.mxu0 0
    %5040 = vmatprep.subr.bf16.mxu0 0
    %5041 = vmatpush1.bf16.msra.mxu0 0
    %5042 = vmatprep.subr.bf16.mxu0 0
    %5043 = vmatpush1.bf16.msra.mxu0 0
    %5044 = vmatprep.mubr.bf16.mxu0 0
    %5045 = vmatmul.mubr.bf16.gmra.mrb[0].mxu0 %v4970
    %v5046 = vpop.f32.mrb[0].mxu0
    %v5047 = vadd.f32 %v931, %v5046
    %v5048 = vpop.f32.mrb[0].mxu0
    %v5049 = vadd.f32 %v935, %v5048
    %v5050 = vpop.f32.mrb[0].mxu0
    %v5051 = vpop.f32.mrb[0].mxu0
    %5052 = vdwg.mxu0
    %5053 = vmatprep.subr.bf16.mxu0 %v2092
    %5054 = vmatpush1.bf16.msra.mxu0 %v2091
    %5055 = vmatprep.subr.bf16.mxu0 %v2096
    %5056 = vmatpush1.bf16.msra.mxu0 %v2095
    %5057 = vmatprep.subr.bf16.mxu0 %v2100
    %5058 = vmatpush1.bf16.msra.mxu0 %v2099
    %5059 = vmatprep.subr.bf16.mxu0 %v2104
    %5060 = vmatpush1.bf16.msra.mxu0 %v2103
    %5061 = vmatprep.subr.bf16.mxu0 %v2108
    %5062 = vmatpush1.bf16.msra.mxu0 %v2107
    %5063 = vmatprep.subr.bf16.mxu0 %v2112
    %5064 = vmatpush1.bf16.msra.mxu0 %v2111
    %5065 = vmatprep.subr.bf16.mxu0 %v2116
    %5066 = vmatpush1.bf16.msra.mxu0 %v2115
    %5067 = vmatprep.subr.bf16.mxu0 %v2120
    %5068 = vmatpush1.bf16.msra.mxu0 %v2119
    %5069 = vmatprep.subr.bf16.mxu0 0
    %5070 = vmatpush1.bf16.msra.mxu0 0
    %5071 = vmatprep.subr.bf16.mxu0 0
    %5072 = vmatpush1.bf16.msra.mxu0 0
    %5073 = vmatprep.subr.bf16.mxu0 0
    %5074 = vmatpush1.bf16.msra.mxu0 0
    %5075 = vmatprep.subr.bf16.mxu0 0
    %5076 = vmatpush1.bf16.msra.mxu0 0
    %5077 = vmatprep.subr.bf16.mxu0 0
    %5078 = vmatpush1.bf16.msra.mxu0 0
    %5079 = vmatprep.subr.bf16.mxu0 0
    %5080 = vmatpush1.bf16.msra.mxu0 0
    %5081 = vmatprep.subr.bf16.mxu0 0
    %5082 = vmatpush1.bf16.msra.mxu0 0
    %5083 = vmatprep.subr.bf16.mxu0 0
    %5084 = vmatpush1.bf16.msra.mxu0 0
    %5085 = vmatprep.mubr.bf16.mxu0 0
    %5086 = vmatmul.mubr.bf16.gmra.mrb[0].mxu0 %v4674
    %v5087 = vpop.f32.mrb[0].mxu0
    %v5088 = vadd.f32 0.0, %v5087
    %v5089 = vpop.f32.mrb[0].mxu0
    %v5090 = vadd.f32 0.0, %v5089
    %v5091 = vpop.f32.mrb[0].mxu0
    %v5092 = vpop.f32.mrb[0].mxu0
    %5093 = vdwg.mxu0
    %5094 = vmatprep.subr.bf16.mxu0 %v2094
    %5095 = vmatpush1.bf16.msra.mxu0 %v2093
    %5096 = vmatprep.subr.bf16.mxu0 %v2098
    %5097 = vmatpush1.bf16.msra.mxu0 %v2097
    %5098 = vmatprep.subr.bf16.mxu0 %v2102
    %5099 = vmatpush1.bf16.msra.mxu0 %v2101
    %5100 = vmatprep.subr.bf16.mxu0 %v2106
    %5101 = vmatpush1.bf16.msra.mxu0 %v2105
    %5102 = vmatprep.subr.bf16.mxu0 %v2110
    %5103 = vmatpush1.bf16.msra.mxu0 %v2109
    %5104 = vmatprep.subr.bf16.mxu0 %v2114
    %5105 = vmatpush1.bf16.msra.mxu0 %v2113
    %5106 = vmatprep.subr.bf16.mxu0 %v2118
    %5107 = vmatpush1.bf16.msra.mxu0 %v2117
    %5108 = vmatprep.subr.bf16.mxu0 %v2122
    %5109 = vmatpush1.bf16.msra.mxu0 %v2121
    %5110 = vmatprep.subr.bf16.mxu0 0
    %5111 = vmatpush1.bf16.msra.mxu0 0
    %5112 = vmatprep.subr.bf16.mxu0 0
    %5113 = vmatpush1.bf16.msra.mxu0 0
    %5114 = vmatprep.subr.bf16.mxu0 0
    %5115 = vmatpush1.bf16.msra.mxu0 0
    %5116 = vmatprep.subr.bf16.mxu0 0
    %5117 = vmatpush1.bf16.msra.mxu0 0
    %5118 = vmatprep.subr.bf16.mxu0 0
    %5119 = vmatpush1.bf16.msra.mxu0 0
    %5120 = vmatprep.subr.bf16.mxu0 0
    %5121 = vmatpush1.bf16.msra.mxu0 0
    %5122 = vmatprep.subr.bf16.mxu0 0
    %5123 = vmatpush1.bf16.msra.mxu0 0
    %5124 = vmatprep.subr.bf16.mxu0 0
    %5125 = vmatpush1.bf16.msra.mxu0 0
    %5126 = vmatprep.mubr.bf16.mxu0 0
    %5127 = vmatmul.mubr.bf16.gmra.mrb[0].mxu0 %v4674
    %v5128 = vpop.f32.mrb[0].mxu0
    %v5129 = vadd.f32 0.0, %v5128
    %v5130 = vpop.f32.mrb[0].mxu0
    %v5131 = vadd.f32 0.0, %v5130
    %v5132 = vpop.f32.mrb[0].mxu0
    %v5133 = vpop.f32.mrb[0].mxu0
    %5134 = vdwg.mxu0
    %v5135 = vadd.f32 %v5006, %v5088
    %v5136 = vadd.f32 %v5008, %v5090
    %v5137 = vadd.f32 %v5047, %v5129
    %v5138 = vadd.f32 %v5049, %v5131
    %v5139 = vmul.f32 %v5135, 0.5
    %v5140 = vmul.f32 %v5136, 0.5
    %v5141 = vmul.f32 %v5137, 0.5
    %v5142 = vtanh.pop %v5139
    %v5143 = vtanh.pop %v5140
    %v5144 = vtanh.pop %v5141
    %v5145 = vmul.f32 %v5142, 0.5
    %v5146 = vmul.f32 %v5143, 0.5
    %v5147 = vmul.f32 %v5144, 0.5
    %v5148 = vadd.f32 %v5145, 0.5
    %v5149 = vadd.f32 %v5146, 0.5
    %v5150 = vadd.f32 %v5147, 0.5
    %v5151 = vtanh.pop %v5138
    %v5152 = vmul.f32 %v5149, %v4671
    %v5153 = vmul.f32 %v5148, %v5151
    %v5154 = vadd.f32 %v5152, %v5153
    %v5155 = vtanh.pop %v5154
    %v5156 = vmul.f32 %v5150, %v5155
    %v5157 = vpack.c.bf16 %v5156, %v5156
    %v5158 = vld [vmem:[%s10] sm:$0xf]
    %v5159 = vld [vmem:[%s10 + $0x4] sm:$0xf]
    %v5160 = vld [vmem:[%s10 + $0x8] sm:$0xf]
    %v5161 = vld [vmem:[%s10 + $0xc] sm:$0xf]
    %v5162 = vld [vmem:[%s10 + $0x10] sm:$0xf]
    %v5163 = vld [vmem:[%s10 + $0x14] sm:$0xf]
    %v5164 = vld [vmem:[%s10 + $0x18] sm:$0xf]
    %v5165 = vld [vmem:[%s10 + $0x1c] sm:$0xf]
    %v5166 = vld [vmem:[%s10 + $0x20] sm:$0xf]
    %v5167 = vld [vmem:[%s10 + $0x24] sm:$0xf]
    %v5168 = vld [vmem:[%s10 + $0x28] sm:$0xf]
    %v5169 = vld [vmem:[%s10 + $0x2c] sm:$0xf]
    %v5170 = vld [vmem:[%s10 + $0x30] sm:$0xf]
    %v5171 = vld [vmem:[%s10 + $0x34] sm:$0xf]
    %v5172 = vld [vmem:[%s10 + $0x38] sm:$0xf]
    %v5173 = vld [vmem:[%s10 + $0x3c] sm:$0xf]
    %v5174 = vld [vmem:[%s11] sm:$0x1]
    %v5176 = vlaneseq
    %v5177 = vshrl.u32 %v5176, 7
    %v5178 = vsub.s32 0, %v5177
    %v5179 = vrot.slane %v5174, %v5178
    %v5197 = vunpack.c.l.b16 %v5158
    %v5198 = vunpack.c.l.b16 %v5159
    %v5199 = vunpack.c.l.b16 %v5160
    %v5200 = vunpack.c.l.b16 %v5161
    %v5201 = vunpack.c.l.b16 %v5162
    %v5202 = vunpack.c.l.b16 %v5163
    %v5203 = vunpack.c.l.b16 %v5164
    %v5204 = vunpack.c.l.b16 %v5165
    %v5205 = vunpack.c.l.b16 %v5166
    %v5206 = vunpack.c.l.b16 %v5167
    %v5207 = vunpack.c.l.b16 %v5168
    %v5208 = vunpack.c.l.b16 %v5169
    %v5209 = vunpack.c.l.b16 %v5170
    %v5210 = vunpack.c.l.b16 %v5171
    %v5211 = vunpack.c.l.b16 %v5172
    %v5212 = vunpack.c.l.b16 %v5173
    %v5213 = vpack.c.b16 %v5198, %v5197
    %v5214 = vpack.c.b16 %v5200, %v5199
    %v5215 = vpack.c.b16 %v5202, %v5201
    %v5216 = vpack.c.b16 %v5204, %v5203
    %v5217 = vpack.c.b16 %v5206, %v5205
    %v5218 = vpack.c.b16 %v5208, %v5207
    %v5219 = vpack.c.b16 %v5210, %v5209
    %v5220 = vpack.c.b16 %v5212, %v5211
    %5229 = vmatprep.subr.bf16.mxu0 0
    %5230 = vmatpush1.bf16.msra.mxu0 %v5213
    %5231 = vmatprep.subr.bf16.mxu0 0
    %5232 = vmatpush1.bf16.msra.mxu0 %v5214
    %5233 = vmatprep.subr.bf16.mxu0 0
    %5234 = vmatpush1.bf16.msra.mxu0 %v5215
    %5235 = vmatprep.subr.bf16.mxu0 0
    %5236 = vmatpush1.bf16.msra.mxu0 %v5216
    %5237 = vmatprep.subr.bf16.mxu0 0
    %5238 = vmatpush1.bf16.msra.mxu0 %v5217
    %5239 = vmatprep.subr.bf16.mxu0 0
    %5240 = vmatpush1.bf16.msra.mxu0 %v5218
    %5241 = vmatprep.subr.bf16.mxu0 0
    %5242 = vmatpush1.bf16.msra.mxu0 %v5219
    %5243 = vmatprep.subr.bf16.mxu0 0
    %5244 = vmatpush1.bf16.msra.mxu0 %v5220
    %5245 = vmatprep.subr.bf16.mxu0 0
    %5246 = vmatpush1.bf16.msra.mxu0 0
    %5247 = vmatprep.subr.bf16.mxu0 0
    %5248 = vmatpush1.bf16.msra.mxu0 0
    %5249 = vmatprep.subr.bf16.mxu0 0
    %5250 = vmatpush1.bf16.msra.mxu0 0
    %5251 = vmatprep.subr.bf16.mxu0 0
    %5252 = vmatpush1.bf16.msra.mxu0 0
    %5253 = vmatprep.subr.bf16.mxu0 0
    %5254 = vmatpush1.bf16.msra.mxu0 0
    %5255 = vmatprep.subr.bf16.mxu0 0
    %5256 = vmatpush1.bf16.msra.mxu0 0
    %5257 = vmatprep.subr.bf16.mxu0 0
    %5258 = vmatpush1.bf16.msra.mxu0 0
    %5259 = vmatprep.subr.bf16.mxu0 0
    %5260 = vmatpush1.bf16.msra.mxu0 0
    %5261 = vmatprep.mubr.bf16.mxu0 0
    %5262 = vmatmul.mubr.bf16.gmra.mrb[0].mxu0 %v5157
    %v5263 = vpop.f32.mrb[0].mxu0
    %v5264 = vadd.f32 %v5179, %v5263
    %v5265 = vpop.f32.mrb[0].mxu0
    %v5266 = vpop.f32.mrb[0].mxu0
    %v5267 = vpop.f32.mrb[0].mxu0
    %5268 = vdwg.mxu0
    %5269 = vst [vmem:[%s12] sm:$0xff] %v5264
    // Predicated region
    $region74: #{lstm_model_forward.1} parent=1 // pred_check
      _
    $region75: #{lstm_model_forward.1} parent=1 // pred_check_branch
      %5271 = sbr.rel (0) target = $region77
    $region76: #{lstm_model_forward.1} parent=1 // pred_region
      _
    $region77: #{lstm_model_forward.1} parent=1 // pred_fallthru
      _
    // Predicated region
    $region78: #{lstm_model_forward.1} parent=1 // pred_check
      _
    $region79: #{lstm_model_forward.1} parent=1 // pred_check_branch
      %5273 = sbr.rel (0) target = $region81
    $region80: #{lstm_model_forward.1} parent=1 // pred_region
      _
    $region81: #{lstm_model_forward.1} parent=1 // pred_fallthru
      _
    %5274 = vsyncpa [#allocation4], 1
    %5275 = vsyncpa [#allocation6], 1
    %5276 = vsyncpa [#allocation9], 1
    %5277 = vsyncpa [#allocation12], 1

</llo_original>
